<compile_context>
chip_gen: v5e
topology: v5e:2x2
jax: 0.10.0
libtpu: 0.0.40
codegen_flags: <defaults>
</compile_context>

<pallas_src>
import functools
import math

import numpy as np
import jax
import jax.numpy as jnp
from jax.experimental import pallas as pl
from jax.experimental.pallas import tpu as pltpu

NEG_SLOPE = 0.01       # nn.LeakyReLU default
BN_EPS = 1e-5          # nn.BatchNorm2d default
_LANE = 128
_VMEM_LIMIT = 32 * 1024 * 1024


def _round_up(n, m=_LANE):
    return ((n + m - 1) // m) * m


# ------------------------------ fused Pallas kernel ------------------------------

def _fused_vae_kernel(*refs, n_enc, n_dec, z_dim):
    """Whole VAE forward for one batch element; one matmul per layer.

    refs order: x, eps, enc_T[0..n_enc-1], enc_end_T, dec_start_T, dec_T[0..n_dec-1],
                dec_end_bias, out, latent
    Activations are (1, N) row vectors in (h, w, c)-flattened order, lane-padded to 128.
    """
    x_ref, eps_ref = refs[0], refs[1]
    enc_refs = refs[2:2 + n_enc]
    we_ref = refs[2 + n_enc]
    wd0_ref = refs[3 + n_enc]
    dec_refs = refs[4 + n_enc:4 + n_enc + n_dec]
    bend_ref = refs[4 + n_enc + n_dec]
    out_ref = refs[5 + n_enc + n_dec]
    lat_ref = refs[6 + n_enc + n_dec]

    # --- encoder: Conv(4,2,1)+LeakyReLU per stage, each ONE block-Toeplitz matmul ---
    h = x_ref[0]                                                     # (1, K0) bf16
    for wref in enc_refs:
        a = jnp.dot(h, wref[...], preferred_element_type=jnp.float32)
        h = jnp.where(a >= 0, a, NEG_SLOPE * a).astype(jnp.bfloat16)

    # --- encoder end (to 1x1, 2*z channels): no norm / no activation ---
    e = jnp.dot(h, we_ref[...], preferred_element_type=jnp.float32)  # (1, lat_width)

    # latent vector: lanes [0,z) = mu, lanes [z,2z) = std = exp(log_std), rest stay 0
    lane = jax.lax.broadcasted_iota(jnp.int32, e.shape, 1)
    std_band = (lane >= z_dim) & (lane < 2 * z_dim)
    latent = jnp.where(std_band, jnp.exp(e), e)
    lat_ref[0] = latent                                              # full-width store

    # reparameterisation folded into the next matmul:
    #   eps_ref = [1]*z ++ eps ++ [0]*pad  ->  latent*eps = [mu | std*eps | 0]
    #   dec_start weight duplicates its first z K-rows, so (mu + std*eps) @ W is computed.
    h = (latent * eps_ref[0]).astype(jnp.bfloat16)
    a = jnp.dot(h, wd0_ref[...], preferred_element_type=jnp.float32)  # ConvT(start)
    h = jnp.where(a >= 0, a, NEG_SLOPE * a).astype(jnp.bfloat16)      # + LeakyReLU

    # --- decoder ConvT(4,2,1) stages; last one has folded BatchNorm (eval) + LReLU ---
    y = None
    for i, wref in enumerate(dec_refs):
        a = jnp.dot(h, wref[...], preferred_element_type=jnp.float32)
        if i == n_dec - 1:
            a = a + bend_ref[...]                                     # BN shift
        y = jnp.where(a >= 0, a, NEG_SLOPE * a)
        h = y.astype(jnp.bfloat16)
    out_ref[0] = y


# ------------------------- host-side block-Toeplitz packing -------------------------

def _toeplitz_conv(w, hin, win, stride, pad):
    """Conv2d weight (Cout,Cin,kh,kw) -> (Hin*Win*Cin, Hout*Wout*Cout), (h,w,c) flat order."""
    w = np.asarray(w, np.float32)
    cout, cin, kh, kw = w.shape
    hout = (hin + 2 * pad - kh) // stride + 1
    wout = (win + 2 * pad - kw) // stride + 1
    T = np.zeros((hin * win * cin, hout * wout * cout), np.float32)
    for ho in range(hout):
        for wo in range(wout):
            c0 = (ho * wout + wo) * cout
            for ki in range(kh):
                hi = ho * stride - pad + ki
                if hi < 0 or hi >= hin:
                    continue
                for kj in range(kw):
                    wi = wo * stride - pad + kj
                    if wi < 0 or wi >= win:
                        continue
                    r0 = (hi * win + wi) * cin
                    T[r0:r0 + cin, c0:c0 + cout] = w[:, :, ki, kj].T
    return T, (hout, wout, cout)


def _toeplitz_convT(w, hin, win, stride, pad):
    """ConvTranspose2d weight (Cin,Cout,kh,kw) -> (Hin*Win*Cin, Hout*Wout*Cout)."""
    w = np.asarray(w, np.float32)
    cin, cout, kh, kw = w.shape
    hout = (hin - 1) * stride - 2 * pad + kh
    wout = (win - 1) * stride - 2 * pad + kw
    T = np.zeros((hin * win * cin, hout * wout * cout), np.float32)
    for hi in range(hin):
        for wi in range(win):
            r0 = (hi * win + wi) * cin
            for ki in range(kh):
                ho = hi * stride - pad + ki
                if ho < 0 or ho >= hout:
                    continue
                for kj in range(kw):
                    wo = wi * stride - pad + kj
                    if wo < 0 or wo >= wout:
                        continue
                    c0 = (ho * wout + wo) * cout
                    T[r0:r0 + cin, c0:c0 + cout] = w[:, :, ki, kj]
    return T, (hout, wout, cout)


def _pad_matrix(T, k_pad, n_pad):
    k, n = T.shape
    out = np.zeros((k_pad, n_pad), np.float32)
    out[:k, :n] = T
    return out


def pack_params(params, input_size, h_size, z_dim):
    """One-time packing of all layers into lane-padded bf16 block-Toeplitz matrices."""
    C, H, W = input_size

    # --- encoder strided-conv stages ---
    hin, win = H, W
    k_in = _round_up(H * W * C)
    enc_T = []
    for w in params['enc_convs']:
        T, (hout, wout, cout) = _toeplitz_conv(w, hin, win, 2, 1)
        n_pad = _round_up(T.shape[1])
        enc_T.append(jnp.asarray(_pad_matrix(T, k_in, n_pad), jnp.bfloat16))
        hin, win = hout, wout
        k_in = n_pad

    # --- encoder end (kernel = full spatial extent -> 1x1, 2*z channels) ---
    Te, _ = _toeplitz_conv(params['enc_end'], hin, win, 1, 0)
    lat_width = _round_up(2 * z_dim)
    enc_end_T = jnp.asarray(_pad_matrix(Te, k_in, lat_width), jnp.bfloat16)

    # --- decoder start (1x1 -> kend) with reparam duplication on K ---
    Td0, (h0, w0, c0) = _toeplitz_convT(params['dec_start'], 1, 1, 1, 0)
    n0_pad = _round_up(Td0.shape[1])
    Wd0 = np.zeros((lat_width, n0_pad), np.float32)
    Wd0[:z_dim, :Td0.shape[1]] = Td0
    Wd0[z_dim:2 * z_dim, :Td0.shape[1]] = Td0     # z = mu + std*eps uses the same weights
    dec_start_T = jnp.asarray(Wd0, jnp.bfloat16)

    # --- decoder transposed-conv stages (mid + end) ---
    hin, win = h0, w0
    k_in = n0_pad
    dec_T = []
    for w in params['dec_mid']:
        T, (hout, wout, cout) = _toeplitz_convT(w, hin, win, 2, 1)
        n_pad = _round_up(T.shape[1])
        dec_T.append(jnp.asarray(_pad_matrix(T, k_in, n_pad), jnp.bfloat16))
        hin, win = hout, wout
        k_in = n_pad

    # end stage: fold eval-mode BatchNorm scale into the weight, shift into a bias vector
    T, (hout, wout, cout) = _toeplitz_convT(params['dec_end'], hin, win, 2, 1)
    gamma, beta, mean, var = (np.asarray(a, np.float32) for a in params['dec_end_bn'])
    scale = gamma / np.sqrt(var + BN_EPS)
    shift = beta - mean * scale
    T = T * np.tile(scale, hout * wout)[None, :]
    n_last = T.shape[1]
    n_last_pad = _round_up(n_last)
    dec_T.append(jnp.asarray(_pad_matrix(T, k_in, n_last_pad), jnp.bfloat16))
    bias = np.zeros((1, n_last_pad), np.float32)
    bias[0, :n_last] = np.tile(shift, hout * wout)

    assert (hout, wout, cout) == (H, W, C), "decoder output shape mismatch"

    packed = dict(enc_T=enc_T, enc_end_T=enc_end_T, dec_start_T=dec_start_T,
                  dec_T=dec_T, dec_end_bias=jnp.asarray(bias))
    cfg = dict(input_size=input_size, z_dim=z_dim, lat_width=lat_width,
               flat_in=H * W * C, flat_in_pad=_round_up(H * W * C),
               out_spatial=(hout, wout, cout), flat_out=n_last, flat_out_pad=n_last_pad)
    return packed, cfg


# --------------------------------- forward wrapper ---------------------------------

def vae_forward(packed, cfg, x_nchw, sample=False, eps=None):
    C, H, W = cfg['input_size']
    z = cfg['z_dim']
    lat_w = cfg['lat_width']
    B = x_nchw.shape[0]
    flat = H * W * C

    # NHWC-flatten + single bf16 cast at the producer (halves input DMA bytes).
    x = jnp.transpose(x_nchw, (0, 2, 3, 1)).reshape(B, 1, flat)
    if cfg['flat_in_pad'] != flat:
        x = jnp.pad(x, ((0, 0), (0, 0), (0, cfg['flat_in_pad'] - flat)))
    x = x.astype(jnp.bfloat16)

    if sample:
        if eps is None:
            raise ValueError("sample=True requires eps of shape (B, z_dim)")
        eps_arr = eps.reshape(B, z).astype(jnp.float32)
    else:
        eps_arr = jnp.zeros((B, z), jnp.float32)      # eval path: z = mu
    eps_vec = jnp.concatenate(
        [jnp.ones((B, z), jnp.float32), eps_arr,
         jnp.zeros((B, lat_w - 2 * z), jnp.float32)], axis=1).reshape(B, 1, lat_w)

    enc_T = packed['enc_T']
    dec_T = packed['dec_T']
    n_enc, n_dec = len(enc_T), len(dec_T)
    weights = (list(enc_T) + [packed['enc_end_T'], packed['dec_start_T']]
               + list(dec_T) + [packed['dec_end_bias']])

    def act_spec(nlanes):
        return pl.BlockSpec((1, 1, nlanes), lambda b: (b, 0, 0))

    def full_spec(arr):
        nd = arr.ndim
        return pl.BlockSpec(tuple(arr.shape), lambda b, _nd=nd: (0,) * _nd)

    in_specs = ([act_spec(cfg['flat_in_pad']), act_spec(lat_w)]
                + [full_spec(w) for w in weights])
    out_specs = (act_spec(cfg['flat_out_pad']), act_spec(lat_w))
    out_shape = (jax.ShapeDtypeStruct((B, 1, cfg['flat_out_pad']), jnp.float32),
                 jax.ShapeDtypeStruct((B, 1, lat_w), jnp.float32))

    out_flat, latent = pl.pallas_call(
        functools.partial(_fused_vae_kernel, n_enc=n_enc, n_dec=n_dec, z_dim=z),
        out_shape=out_shape,
        grid=(B,),
        in_specs=in_specs,
        out_specs=out_specs,
        compiler_params=pltpu.CompilerParams(
            dimension_semantics=("parallel",),          # one batch element per TC on v7x
            vmem_limit_bytes=_VMEM_LIMIT),
    )(x, eps_vec, *weights)

    ho, wo, co = cfg['out_spatial']
    x_rec = out_flat[:, 0, :cfg['flat_out']].reshape(B, ho, wo, co).transpose(0, 3, 1, 2)
    mu = latent[:, 0, :z].reshape(B, z, 1, 1)
    std = latent[:, 0, z:2 * z].reshape(B, z, 1, 1)
    # NB: original module returns std under the (misnamed) 'z_logvar' key; reproduced.
    return x_rec, {'z_mu': mu, 'z_logvar': std}


# ------------------------------ parameter initialization ------------------------------

def init_vae_params(key, input_size, h_size, z_dim):
    C, H, W = input_size
    keys = iter(jax.random.split(key, 2 * len(h_size) + 4))

    def nrm(shape, fan_in):
        return jax.random.normal(next(keys), shape, jnp.float32) / math.sqrt(fan_in)

    enc_convs, cin = [], C
    for cout in h_size:                                # Conv2d(cin, cout, 4, 2, 1, bias=False)
        enc_convs.append(nrm((cout, cin, 4, 4), cin * 16))
        cin = cout
    kend = (H // 2 ** len(h_size), W // 2 ** len(h_size))
    enc_end = nrm((2 * z_dim, cin, kend[0], kend[1]), cin * kend[0] * kend[1])

    h_rev = tuple(h_size[::-1])
    dec_start = nrm((z_dim, h_rev[0], kend[0], kend[1]), z_dim)
    dec_mid, cin = [], h_rev[0]
    for cout in h_rev[1:]:                             # ConvTranspose2d(cin, cout, 4, 2, 1)
        dec_mid.append(nrm((cin, cout, 4, 4), cin * 16))
        cin = cout
    dec_end = nrm((cin, C, 4, 4), cin * 16)
    dec_end_bn = (jnp.ones((C,), jnp.float32), jnp.zeros((C,), jnp.float32),    # gamma, beta
                  jnp.zeros((C,), jnp.float32), jnp.ones((C,), jnp.float32))    # running mean, var
    return dict(enc_convs=enc_convs, enc_end=enc_end, dec_start=dec_start,
                dec_mid=dec_mid, dec_end=dec_end, dec_end_bn=dec_end_bn)


# ------------------------------- pure-JAX reference ------------------------------------
# Precision-matched (bf16 operands, f32 accumulation) so tolerances stay tight.

def _ref_conv(x, w, stride, pads, leaky):
    y = jax.lax.conv_general_dilated(
        x.astype(jnp.bfloat16), w.astype(jnp.bfloat16), (stride, stride), pads,
        dimension_numbers=('NCHW', 'OIHW', 'NCHW'),
        preferred_element_type=jnp.float32)
    return jnp.where(y >= 0, y, NEG_SLOPE * y) if leaky else y


def _ref_convT(x, wt, stride, pad, leaky):
    kh, kw = wt.shape[2], wt.shape[3]
    w = jnp.flip(wt, (2, 3)).transpose(1, 0, 2, 3)
    y = jax.lax.conv_general_dilated(
        x.astype(jnp.bfloat16), w.astype(jnp.bfloat16), (1, 1),
        [(kh - 1 - pad,) * 2, (kw - 1 - pad,) * 2],
        lhs_dilation=(stride, stride),
        dimension_numbers=('NCHW', 'OIHW', 'NCHW'),
        preferred_element_type=jnp.float32)
    return jnp.where(y >= 0, y, NEG_SLOPE * y) if leaky else y


def ref_forward(params, x, z_dim):
    h = x
    for w in params['enc_convs']:
        h = _ref_conv(h, w, 2, [(1, 1), (1, 1)], True)
    enc = _ref_conv(h, params['enc_end'], 1, [(0, 0), (0, 0)], False)
    mu, log_std = jnp.split(enc, 2, axis=1)
    std = jnp.exp(log_std)
    z = mu                                                            # eval path
    h = _ref_convT(z, params['dec_start'], 1, 0, True)
    for w in params['dec_mid']:
        h = _ref_convT(h, w, 2, 1, True)
    y = _ref_convT(h, params['dec_end'], 2, 1, False)
    gamma, beta, mean, var = params['dec_end_bn']
    y = (y - mean[None, :, None, None]) / jnp.sqrt(var[None, :, None, None] + BN_EPS) \
        * gamma[None, :, None, None] + beta[None, :, None, None]
    x_rec = jnp.where(y >= 0, y, NEG_SLOPE * y)
    return x_rec, {'z_mu': mu, 'z_logvar': std}


# ----------------------------------------- main -----------------------------------------

if __name__ == "__main__":
    # VAE(input_size=(4,16,16), h_size=(8,16), z_dim=8), batch 2.
    input_size = (4, 16, 16)
    h_size = (8, 16)
    z_dim = 8
    B = 2

    key = jax.random.PRNGKey(0)
    kx, kp = jax.random.split(key)
    x = jax.random.normal(kx, (B,) + input_size, dtype=jnp.float32)

    params = init_vae_params(kp, input_size, h_size, z_dim)
    packed, cfg = pack_params(params, input_size, h_size, z_dim)

    fwd = jax.jit(lambda pk, xx: vae_forward(pk, cfg, xx))
    x_rec, lat = fwd(packed, x)
    jax.block_until_ready(x_rec)
    jax.block_until_ready(lat['z_mu'])
    jax.block_until_ready(lat['z_logvar'])

    # correctness check against a precision-matched XLA-conv reference
    x_ref, lat_ref = ref_forward(params, x, z_dim)
    np.testing.assert_allclose(np.asarray(x_rec), np.asarray(x_ref), rtol=1e-2, atol=5e-3)
    np.testing.assert_allclose(np.asarray(lat['z_mu']), np.asarray(lat_ref['z_mu']),
                               rtol=1e-2, atol=5e-3)
    np.testing.assert_allclose(np.asarray(lat['z_logvar']), np.asarray(lat_ref['z_logvar']),
                               rtol=1e-2, atol=5e-3)

    assert x_rec.shape == (B,) + input_size
    print("KERNEL_OK")
</pallas_src>

<mosaic_0001>
module attributes {stable_mosaic.version = 11 : i64} {
  func.func @_fused_vae_kernel(%arg0: i32, %arg1: memref<1x1x1024xbf16, #tpu.memory_space<vmem>>, %arg2: memref<1x1x128xf32, #tpu.memory_space<vmem>>, %arg3: memref<1024x512xbf16, #tpu.memory_space<vmem>>, %arg4: memref<512x256xbf16, #tpu.memory_space<vmem>>, %arg5: memref<256x128xbf16, #tpu.memory_space<vmem>>, %arg6: memref<128x256xbf16, #tpu.memory_space<vmem>>, %arg7: memref<256x512xbf16, #tpu.memory_space<vmem>>, %arg8: memref<512x1024xbf16, #tpu.memory_space<vmem>>, %arg9: memref<1x1024xf32, #tpu.memory_space<vmem>>, %arg10: memref<1x1x1024xf32, #tpu.memory_space<vmem>>, %arg11: memref<1x1x128xf32, #tpu.memory_space<vmem>>) attributes {dimension_semantics = [#tpu.dimension_semantics<parallel>], iteration_bounds = array<i64: 2>, scalar_prefetch = 0 : i64, scratch_operands = 0 : i64, tpu.core_type = #tpu.core_type<tc>, window_params = [{transform_indices = @transform_0, window_bounds = array<i64: 1, 1, 1024>}, {transform_indices = @transform_1, window_bounds = array<i64: 1, 1, 128>}, {pipeline_mode = #tpu.pipeline_mode<synchronous>, transform_indices = @transform_2, window_bounds = array<i64: 1024, 512>}, {pipeline_mode = #tpu.pipeline_mode<synchronous>, transform_indices = @transform_3, window_bounds = array<i64: 512, 256>}, {pipeline_mode = #tpu.pipeline_mode<synchronous>, transform_indices = @transform_4, window_bounds = array<i64: 256, 128>}, {pipeline_mode = #tpu.pipeline_mode<synchronous>, transform_indices = @transform_5, window_bounds = array<i64: 128, 256>}, {pipeline_mode = #tpu.pipeline_mode<synchronous>, transform_indices = @transform_6, window_bounds = array<i64: 256, 512>}, {pipeline_mode = #tpu.pipeline_mode<synchronous>, transform_indices = @transform_7, window_bounds = array<i64: 512, 1024>}, {pipeline_mode = #tpu.pipeline_mode<synchronous>, transform_indices = @transform_8, window_bounds = array<i64: 1, 1024>}, {transform_indices = @transform_9, window_bounds = array<i64: 1, 1, 1024>}, {transform_indices = @transform_10, window_bounds = array<i64: 1, 1, 128>}]} {
    %c0 = arith.constant 0 : index
    %c0_0 = arith.constant 0 : index
    %c0_1 = arith.constant 0 : index
    %0 = vector.load %arg1[%c0, %c0_0, %c0_1] : memref<1x1x1024xbf16, #tpu.memory_space<vmem>>, vector<1x1x1024xbf16>
    %1 = vector.shape_cast %0 : vector<1x1x1024xbf16> to vector<1x1024xbf16>
    %c0_2 = arith.constant 0 : index
    %c0_3 = arith.constant 0 : index
    %2 = vector.load %arg3[%c0_2, %c0_3] : memref<1024x512xbf16, #tpu.memory_space<vmem>>, vector<1024x512xbf16>
    %cst = arith.constant dense<0.000000e+00> : vector<1x512xf32>
    %3 = tpu.matmul %1, %2, %cst {dimension_numbers = #tpu.dot_dimension_numbers<[1], [0], [0], [1], [0, 0, 1, 1], [], []>} : vector<1x1024xbf16>, vector<1024x512xbf16>, vector<1x512xf32> -> vector<1x512xf32>
    %cst_4 = arith.constant 0.000000e+00 : f32
    %4 = vector.broadcast %cst_4 : f32 to vector<1x512xf32>
    %5 = arith.cmpf oge, %3, %4 : vector<1x512xf32>
    %cst_5 = arith.constant 0.00999999977 : f32
    %6 = vector.broadcast %cst_5 : f32 to vector<1x512xf32>
    %7 = arith.mulf %6, %3 : vector<1x512xf32>
    %8 = arith.select %5, %3, %7 : vector<1x512xi1>, vector<1x512xf32>
    %9 = arith.truncf %8 : vector<1x512xf32> to vector<1x512xbf16>
    %c0_6 = arith.constant 0 : index
    %c0_7 = arith.constant 0 : index
    %10 = vector.load %arg4[%c0_6, %c0_7] : memref<512x256xbf16, #tpu.memory_space<vmem>>, vector<512x256xbf16>
    %cst_8 = arith.constant dense<0.000000e+00> : vector<1x256xf32>
    %11 = tpu.matmul %9, %10, %cst_8 {dimension_numbers = #tpu.dot_dimension_numbers<[1], [0], [0], [1], [0, 0, 1, 1], [], []>} : vector<1x512xbf16>, vector<512x256xbf16>, vector<1x256xf32> -> vector<1x256xf32>
    %cst_9 = arith.constant 0.000000e+00 : f32
    %12 = vector.broadcast %cst_9 : f32 to vector<1x256xf32>
    %13 = arith.cmpf oge, %11, %12 : vector<1x256xf32>
    %cst_10 = arith.constant 0.00999999977 : f32
    %14 = vector.broadcast %cst_10 : f32 to vector<1x256xf32>
    %15 = arith.mulf %14, %11 : vector<1x256xf32>
    %16 = arith.select %13, %11, %15 : vector<1x256xi1>, vector<1x256xf32>
    %17 = arith.truncf %16 : vector<1x256xf32> to vector<1x256xbf16>
    %c0_11 = arith.constant 0 : index
    %c0_12 = arith.constant 0 : index
    %18 = vector.load %arg5[%c0_11, %c0_12] : memref<256x128xbf16, #tpu.memory_space<vmem>>, vector<256x128xbf16>
    %cst_13 = arith.constant dense<0.000000e+00> : vector<1x128xf32>
    %19 = tpu.matmul %17, %18, %cst_13 {dimension_numbers = #tpu.dot_dimension_numbers<[1], [0], [0], [1], [0, 0, 1, 1], [], []>} : vector<1x256xbf16>, vector<256x128xbf16>, vector<1x128xf32> -> vector<1x128xf32>
    %20 = tpu.iota {dimensions = array<i32: 1>} : vector<1x128xi32>
    %c8_i32 = arith.constant 8 : i32
    %21 = vector.broadcast %c8_i32 : i32 to vector<1x128xi32>
    %22 = arith.cmpi sge, %20, %21 : vector<1x128xi32>
    %c16_i32 = arith.constant 16 : i32
    %23 = vector.broadcast %c16_i32 : i32 to vector<1x128xi32>
    %24 = arith.cmpi slt, %20, %23 : vector<1x128xi32>
    %25 = arith.andi %22, %24 : vector<1x128xi1>
    %26 = math.exp %19 : vector<1x128xf32>
    %27 = arith.select %25, %26, %19 : vector<1x128xi1>, vector<1x128xf32>
    %c0_14 = arith.constant 0 : index
    %c0_15 = arith.constant 0 : index
    %c0_16 = arith.constant 0 : index
    %28 = vector.load %arg11[%c0_14, %c0_15, %c0_16] : memref<1x1x128xf32, #tpu.memory_space<vmem>>, vector<1x1x128xf32>
    %29 = vector.shape_cast %28 : vector<1x1x128xf32> to vector<1x128xf32>
    %30 = vector.shape_cast %27 : vector<1x128xf32> to vector<1x1x128xf32>
    tpu.vector_store %arg11[%c0_14, %c0_15, %c0_16], %30 {strides = array<i32>} : memref<1x1x128xf32, #tpu.memory_space<vmem>>, vector<1x1x128xf32>,
    %c0_17 = arith.constant 0 : index
    %c0_18 = arith.constant 0 : index
    %c0_19 = arith.constant 0 : index
    %31 = vector.load %arg2[%c0_17, %c0_18, %c0_19] : memref<1x1x128xf32, #tpu.memory_space<vmem>>, vector<1x1x128xf32>
    %32 = vector.shape_cast %31 : vector<1x1x128xf32> to vector<1x128xf32>
    %33 = arith.mulf %27, %32 : vector<1x128xf32>
    %34 = arith.truncf %33 : vector<1x128xf32> to vector<1x128xbf16>
    %c0_20 = arith.constant 0 : index
    %c0_21 = arith.constant 0 : index
    %35 = vector.load %arg6[%c0_20, %c0_21] : memref<128x256xbf16, #tpu.memory_space<vmem>>, vector<128x256xbf16>
    %cst_22 = arith.constant dense<0.000000e+00> : vector<1x256xf32>
    %36 = tpu.matmul %34, %35, %cst_22 {dimension_numbers = #tpu.dot_dimension_numbers<[1], [0], [0], [1], [0, 0, 1, 1], [], []>} : vector<1x128xbf16>, vector<128x256xbf16>, vector<1x256xf32> -> vector<1x256xf32>
    %cst_23 = arith.constant 0.000000e+00 : f32
    %37 = vector.broadcast %cst_23 : f32 to vector<1x256xf32>
    %38 = arith.cmpf oge, %36, %37 : vector<1x256xf32>
    %cst_24 = arith.constant 0.00999999977 : f32
    %39 = vector.broadcast %cst_24 : f32 to vector<1x256xf32>
    %40 = arith.mulf %39, %36 : vector<1x256xf32>
    %41 = arith.select %38, %36, %40 : vector<1x256xi1>, vector<1x256xf32>
    %42 = arith.truncf %41 : vector<1x256xf32> to vector<1x256xbf16>
    %c0_25 = arith.constant 0 : index
    %c0_26 = arith.constant 0 : index
    %43 = vector.load %arg7[%c0_25, %c0_26] : memref<256x512xbf16, #tpu.memory_space<vmem>>, vector<256x512xbf16>
    %cst_27 = arith.constant dense<0.000000e+00> : vector<1x512xf32>
    %44 = tpu.matmul %42, %43, %cst_27 {dimension_numbers = #tpu.dot_dimension_numbers<[1], [0], [0], [1], [0, 0, 1, 1], [], []>} : vector<1x256xbf16>, vector<256x512xbf16>, vector<1x512xf32> -> vector<1x512xf32>
    %cst_28 = arith.constant 0.000000e+00 : f32
    %45 = vector.broadcast %cst_28 : f32 to vector<1x512xf32>
    %46 = arith.cmpf oge, %44, %45 : vector<1x512xf32>
    %cst_29 = arith.constant 0.00999999977 : f32
    %47 = vector.broadcast %cst_29 : f32 to vector<1x512xf32>
    %48 = arith.mulf %47, %44 : vector<1x512xf32>
    %49 = arith.select %46, %44, %48 : vector<1x512xi1>, vector<1x512xf32>
    %50 = arith.truncf %49 : vector<1x512xf32> to vector<1x512xbf16>
    %c0_30 = arith.constant 0 : index
    %c0_31 = arith.constant 0 : index
    %51 = vector.load %arg8[%c0_30, %c0_31] : memref<512x1024xbf16, #tpu.memory_space<vmem>>, vector<512x1024xbf16>
    %cst_32 = arith.constant dense<0.000000e+00> : vector<1x1024xf32>
    %52 = tpu.matmul %50, %51, %cst_32 {dimension_numbers = #tpu.dot_dimension_numbers<[1], [0], [0], [1], [0, 0, 1, 1], [], []>} : vector<1x512xbf16>, vector<512x1024xbf16>, vector<1x1024xf32> -> vector<1x1024xf32>
    %c0_33 = arith.constant 0 : index
    %c0_34 = arith.constant 0 : index
    %53 = vector.load %arg9[%c0_33, %c0_34] : memref<1x1024xf32, #tpu.memory_space<vmem>>, vector<1x1024xf32>
    %54 = arith.addf %52, %53 : vector<1x1024xf32>
    %cst_35 = arith.constant 0.000000e+00 : f32
    %55 = vector.broadcast %cst_35 : f32 to vector<1x1024xf32>
    %56 = arith.cmpf oge, %54, %55 : vector<1x1024xf32>
    %cst_36 = arith.constant 0.00999999977 : f32
    %57 = vector.broadcast %cst_36 : f32 to vector<1x1024xf32>
    %58 = arith.mulf %57, %54 : vector<1x1024xf32>
    %59 = arith.select %56, %54, %58 : vector<1x1024xi1>, vector<1x1024xf32>
    %c0_37 = arith.constant 0 : index
    %c0_38 = arith.constant 0 : index
    %c0_39 = arith.constant 0 : index
    %60 = vector.load %arg10[%c0_37, %c0_38, %c0_39] : memref<1x1x1024xf32, #tpu.memory_space<vmem>>, vector<1x1x1024xf32>
    %61 = vector.shape_cast %60 : vector<1x1x1024xf32> to vector<1x1024xf32>
    %62 = vector.shape_cast %59 : vector<1x1024xf32> to vector<1x1x1024xf32>
    tpu.vector_store %arg10[%c0_37, %c0_38, %c0_39], %62 {strides = array<i32>} : memref<1x1x1024xf32, #tpu.memory_space<vmem>>, vector<1x1x1024xf32>,
    return
  }
  func.func @transform_0(%arg0: i32) -> (i32, i32, i32) {
    %c0_i32 = arith.constant 0 : i32
    %c0_i32_0 = arith.constant 0 : i32
    %c0_i32_1 = arith.constant 0 : i32
    return %arg0, %c0_i32, %c0_i32_0 : i32, i32, i32
  }
  func.func @transform_1(%arg0: i32) -> (i32, i32, i32) {
    %c0_i32 = arith.constant 0 : i32
    %c0_i32_0 = arith.constant 0 : i32
    %c0_i32_1 = arith.constant 0 : i32
    return %arg0, %c0_i32, %c0_i32_0 : i32, i32, i32
  }
  func.func @transform_2(%arg0: i32) -> (i32, i32) {
    %c0_i32 = arith.constant 0 : i32
    %c0_i32_0 = arith.constant 0 : i32
    %c0_i32_1 = arith.constant 0 : i32
    return %c0_i32, %c0_i32_0 : i32, i32
  }
  func.func @transform_3(%arg0: i32) -> (i32, i32) {
    %c0_i32 = arith.constant 0 : i32
    %c0_i32_0 = arith.constant 0 : i32
    %c0_i32_1 = arith.constant 0 : i32
    return %c0_i32, %c0_i32_0 : i32, i32
  }
  func.func @transform_4(%arg0: i32) -> (i32, i32) {
    %c0_i32 = arith.constant 0 : i32
    %c0_i32_0 = arith.constant 0 : i32
    %c0_i32_1 = arith.constant 0 : i32
    return %c0_i32, %c0_i32_0 : i32, i32
  }
  func.func @transform_5(%arg0: i32) -> (i32, i32) {
    %c0_i32 = arith.constant 0 : i32
    %c0_i32_0 = arith.constant 0 : i32
    %c0_i32_1 = arith.constant 0 : i32
    return %c0_i32, %c0_i32_0 : i32, i32
  }
  func.func @transform_6(%arg0: i32) -> (i32, i32) {
    %c0_i32 = arith.constant 0 : i32
    %c0_i32_0 = arith.constant 0 : i32
    %c0_i32_1 = arith.constant 0 : i32
    return %c0_i32, %c0_i32_0 : i32, i32
  }
  func.func @transform_7(%arg0: i32) -> (i32, i32) {
    %c0_i32 = arith.constant 0 : i32
    %c0_i32_0 = arith.constant 0 : i32
    %c0_i32_1 = arith.constant 0 : i32
    return %c0_i32, %c0_i32_0 : i32, i32
  }
  func.func @transform_8(%arg0: i32) -> (i32, i32) {
    %c0_i32 = arith.constant 0 : i32
    %c0_i32_0 = arith.constant 0 : i32
    %c0_i32_1 = arith.constant 0 : i32
    return %c0_i32, %c0_i32_0 : i32, i32
  }
  func.func @transform_9(%arg0: i32) -> (i32, i32, i32) {
    %c0_i32 = arith.constant 0 : i32
    %c0_i32_0 = arith.constant 0 : i32
    %c0_i32_1 = arith.constant 0 : i32
    return %arg0, %c0_i32, %c0_i32_0 : i32, i32, i32
  }
  func.func @transform_10(%arg0: i32) -> (i32, i32, i32) {
    %c0_i32 = arith.constant 0 : i32
    %c0_i32_0 = arith.constant 0 : i32
    %c0_i32_1 = arith.constant 0 : i32
    return %arg0, %c0_i32, %c0_i32_0 : i32, i32, i32
  }
}

</mosaic_0001>

<llo_original>
// kernel: squeeze.3
$region0: #{squeeze.3}
  %s0 = inlined_call_operand.vmem [shape: f32[2,1024], index: 0, kind: input, shape index: {}]
  %s1 = inlined_call_operand.vmem [shape: f32[2,16,16,4], index: 1, kind: output, shape index: {}]
  $region1: #{squeeze.3} parent=0
    #allocation0 [shape = 'u8[32768]{0}', space=vmem, size = 0x8000, scoped, tag = 'scoped mem for input reshape']
    %s3 = ssub.s32 4, 1
    %s4 = scalar_lea.vmem %s0, 14
    %v5 = vld [vmem:[%s4] sm:%s3]
    %s6 = scalar_lea.vmem [#allocation0], 56
    %7 = vst [vmem:[%s6] sm:%s3] %v5
    %s8 = scalar_lea.vmem %s0, 12
    %v9 = vld [vmem:[%s8] sm:%s3]
    %s10 = scalar_lea.vmem [#allocation0], 48
    %11 = vst [vmem:[%s10] sm:%s3] %v9
    %s12 = scalar_lea.vmem %s0, 10
    %v13 = vld [vmem:[%s12] sm:%s3]
    %s14 = scalar_lea.vmem [#allocation0], 40
    %15 = vst [vmem:[%s14] sm:%s3] %v13
    %s16 = scalar_lea.vmem %s0, 8
    %v17 = vld [vmem:[%s16] sm:%s3]
    %s18 = scalar_lea.vmem [#allocation0], 32
    %19 = vst [vmem:[%s18] sm:%s3] %v17
    %s20 = scalar_lea.vmem %s0, 6
    %v21 = vld [vmem:[%s20] sm:%s3]
    %s22 = scalar_lea.vmem [#allocation0], 24
    %23 = vst [vmem:[%s22] sm:%s3] %v21
    %s24 = scalar_lea.vmem %s0, 4
    %v25 = vld [vmem:[%s24] sm:%s3]
    %s26 = scalar_lea.vmem [#allocation0], 16
    %27 = vst [vmem:[%s26] sm:%s3] %v25
    %s28 = scalar_lea.vmem %s0, 2
    %v29 = vld [vmem:[%s28] sm:%s3]
    %s30 = scalar_lea.vmem [#allocation0], 8
    %31 = vst [vmem:[%s30] sm:%s3] %v29
    %v32 = vld [vmem:[%s0] sm:%s3]
    %33 = vst [vmem:[#allocation0] sm:%s3] %v32
    %v34 = vld [vmem:[#allocation0] sm:$0x3]
    %vm35 = vcmask 31744
    %36 = vst.msk [vmem:[%s1] sm:$0x1] %vm35, %v34
    %s37 = scalar_lea.vmem %s1, 255
    %38 = vst.msk [vmem:[%s37] sm:$0x2] %vm35, %v34
    %s39 = scalar_lea.vmem [#allocation0], 8
    %v40 = vld [vmem:[%s39] sm:$0x3]
    %vm41 = vcmask 31744
    %s42 = scalar_lea.vmem %s1, 32
    %43 = vst.msk [vmem:[%s42] sm:$0x1] %vm41, %v40
    %s44 = scalar_lea.vmem %s1, 287
    %45 = vst.msk [vmem:[%s44] sm:$0x2] %vm41, %v40
    %s46 = scalar_lea.vmem [#allocation0], 16
    %v47 = vld [vmem:[%s46] sm:$0x3]
    %vm48 = vcmask 31744
    %s49 = scalar_lea.vmem %s1, 64
    %50 = vst.msk [vmem:[%s49] sm:$0x1] %vm48, %v47
    %s51 = scalar_lea.vmem %s1, 319
    %52 = vst.msk [vmem:[%s51] sm:$0x2] %vm48, %v47
    %s53 = scalar_lea.vmem [#allocation0], 24
    %v54 = vld [vmem:[%s53] sm:$0x3]
    %vm55 = vcmask 31744
    %s56 = scalar_lea.vmem %s1, 96
    %57 = vst.msk [vmem:[%s56] sm:$0x1] %vm55, %v54
    %s58 = scalar_lea.vmem %s1, 351
    %59 = vst.msk [vmem:[%s58] sm:$0x2] %vm55, %v54
    %s60 = scalar_lea.vmem [#allocation0], 32
    %v61 = vld [vmem:[%s60] sm:$0x3]
    %vm62 = vcmask 31744
    %s63 = scalar_lea.vmem %s1, 128
    %64 = vst.msk [vmem:[%s63] sm:$0x1] %vm62, %v61
    %s65 = scalar_lea.vmem %s1, 383
    %66 = vst.msk [vmem:[%s65] sm:$0x2] %vm62, %v61
    %s67 = scalar_lea.vmem [#allocation0], 40
    %v68 = vld [vmem:[%s67] sm:$0x3]
    %vm69 = vcmask 31744
    %s70 = scalar_lea.vmem %s1, 160
    %71 = vst.msk [vmem:[%s70] sm:$0x1] %vm69, %v68
    %s72 = scalar_lea.vmem %s1, 415
    %73 = vst.msk [vmem:[%s72] sm:$0x2] %vm69, %v68
    %s74 = scalar_lea.vmem [#allocation0], 48
    %v75 = vld [vmem:[%s74] sm:$0x3]
    %vm76 = vcmask 31744
    %s77 = scalar_lea.vmem %s1, 192
    %78 = vst.msk [vmem:[%s77] sm:$0x1] %vm76, %v75
    %s79 = scalar_lea.vmem %s1, 447
    %80 = vst.msk [vmem:[%s79] sm:$0x2] %vm76, %v75
    %s81 = scalar_lea.vmem [#allocation0], 56
    %v82 = vld [vmem:[%s81] sm:$0x3]
    %vm83 = vcmask 31744
    %s84 = scalar_lea.vmem %s1, 224
    %85 = vst.msk [vmem:[%s84] sm:$0x1] %vm83, %v82
    %s86 = scalar_lea.vmem %s1, 479
    %87 = vst.msk [vmem:[%s86] sm:$0x2] %vm83, %v82
    %v88 = vld.sshfl [vmem:[#allocation0] sm:$0xff pattern:$0x99999810]
    %s89 = scalar_lea.vmem [#allocation0], 16
    %v90 = vld.sshfl [vmem:[%s89] sm:$0xff pattern:$0x98100000]
    %vm91 = vcmask 1047556
    %v92 = vsel %vm91, %v90, %v88
    %93 = vrot.lane.b32.xlu0 %v92, 124
    %v94 = vpop.permute.xlu0 %93
    %vm95 = vcmask 31744
    %s96 = scalar_lea.vmem %s1, 1
    %97 = vst.msk [vmem:[%s96] sm:$0x1] %vm95, %v94
    %s98 = scalar_lea.vmem %s1, 256
    %99 = vst.msk [vmem:[%s98] sm:$0x2] %vm95, %v94
    %s100 = scalar_lea.vmem %s1, 31
    %101 = vst.msk [vmem:[%s100] sm:$0x4] %vm95, %v94
    %s102 = scalar_lea.vmem %s1, 286
    %103 = vst.msk [vmem:[%s102] sm:$0x8] %vm95, %v94
    %s104 = scalar_lea.vmem %s1, 61
    %105 = vst.msk [vmem:[%s104] sm:$0x10] %vm95, %v94
    %s106 = scalar_lea.vmem %s1, 316
    %107 = vst.msk [vmem:[%s106] sm:$0x20] %vm95, %v94
    %s108 = scalar_lea.vmem %s1, 91
    %109 = vst.msk [vmem:[%s108] sm:$0x40] %vm95, %v94
    %s110 = scalar_lea.vmem %s1, 346
    %111 = vst.msk [vmem:[%s110] sm:$0x80] %vm95, %v94
    %s112 = scalar_lea.vmem [#allocation0], 32
    %v113 = vld.sshfl [vmem:[%s112] sm:$0xff pattern:$0x99999810]
    %s114 = scalar_lea.vmem [#allocation0], 48
    %v115 = vld.sshfl [vmem:[%s114] sm:$0xff pattern:$0x98100000]
    %vm116 = vcmask 1047556
    %v117 = vsel %vm116, %v115, %v113
    %118 = vrot.lane.b32.xlu0 %v117, 124
    %v119 = vpop.permute.xlu0 %118
    %vm120 = vcmask 31744
    %s121 = scalar_lea.vmem %s1, 129
    %122 = vst.msk [vmem:[%s121] sm:$0x1] %vm120, %v119
    %s123 = scalar_lea.vmem %s1, 384
    %124 = vst.msk [vmem:[%s123] sm:$0x2] %vm120, %v119
    %s125 = scalar_lea.vmem %s1, 159
    %126 = vst.msk [vmem:[%s125] sm:$0x4] %vm120, %v119
    %s127 = scalar_lea.vmem %s1, 414
    %128 = vst.msk [vmem:[%s127] sm:$0x8] %vm120, %v119
    %s129 = scalar_lea.vmem %s1, 189
    %130 = vst.msk [vmem:[%s129] sm:$0x10] %vm120, %v119
    %s131 = scalar_lea.vmem %s1, 444
    %132 = vst.msk [vmem:[%s131] sm:$0x20] %vm120, %v119
    %s133 = scalar_lea.vmem %s1, 219
    %134 = vst.msk [vmem:[%s133] sm:$0x40] %vm120, %v119
    %s135 = scalar_lea.vmem %s1, 474
    %136 = vst.msk [vmem:[%s135] sm:$0x80] %vm120, %v119
    %v137 = vld.sshfl [vmem:[#allocation0] sm:$0xff pattern:$0x99999810]
    %s138 = scalar_lea.vmem [#allocation0], 16
    %v139 = vld.sshfl [vmem:[%s138] sm:$0xff pattern:$0x98100000]
    %vm140 = vcmask 1047556
    %v141 = vsel %vm140, %v139, %v137
    %142 = vrot.lane.b32.xlu0 %v141, 120
    %v143 = vpop.permute.xlu0 %142
    %vm144 = vcmask 31744
    %s145 = scalar_lea.vmem %s1, 2
    %146 = vst.msk [vmem:[%s145] sm:$0x1] %vm144, %v143
    %s147 = scalar_lea.vmem %s1, 257
    %148 = vst.msk [vmem:[%s147] sm:$0x2] %vm144, %v143
    %s149 = scalar_lea.vmem %s1, 32
    %150 = vst.msk [vmem:[%s149] sm:$0x4] %vm144, %v143
    %s151 = scalar_lea.vmem %s1, 287
    %152 = vst.msk [vmem:[%s151] sm:$0x8] %vm144, %v143
    %s153 = scalar_lea.vmem %s1, 62
    %154 = vst.msk [vmem:[%s153] sm:$0x10] %vm144, %v143
    %s155 = scalar_lea.vmem %s1, 317
    %156 = vst.msk [vmem:[%s155] sm:$0x20] %vm144, %v143
    %s157 = scalar_lea.vmem %s1, 92
    %158 = vst.msk [vmem:[%s157] sm:$0x40] %vm144, %v143
    %s159 = scalar_lea.vmem %s1, 347
    %160 = vst.msk [vmem:[%s159] sm:$0x80] %vm144, %v143
    %s161 = scalar_lea.vmem [#allocation0], 32
    %v162 = vld.sshfl [vmem:[%s161] sm:$0xff pattern:$0x99999810]
    %s163 = scalar_lea.vmem [#allocation0], 48
    %v164 = vld.sshfl [vmem:[%s163] sm:$0xff pattern:$0x98100000]
    %vm165 = vcmask 1047556
    %v166 = vsel %vm165, %v164, %v162
    %167 = vrot.lane.b32.xlu0 %v166, 120
    %v168 = vpop.permute.xlu0 %167
    %vm169 = vcmask 31744
    %s170 = scalar_lea.vmem %s1, 130
    %171 = vst.msk [vmem:[%s170] sm:$0x1] %vm169, %v168
    %s172 = scalar_lea.vmem %s1, 385
    %173 = vst.msk [vmem:[%s172] sm:$0x2] %vm169, %v168
    %s174 = scalar_lea.vmem %s1, 160
    %175 = vst.msk [vmem:[%s174] sm:$0x4] %vm169, %v168
    %s176 = scalar_lea.vmem %s1, 415
    %177 = vst.msk [vmem:[%s176] sm:$0x8] %vm169, %v168
    %s178 = scalar_lea.vmem %s1, 190
    %179 = vst.msk [vmem:[%s178] sm:$0x10] %vm169, %v168
    %s180 = scalar_lea.vmem %s1, 445
    %181 = vst.msk [vmem:[%s180] sm:$0x20] %vm169, %v168
    %s182 = scalar_lea.vmem %s1, 220
    %183 = vst.msk [vmem:[%s182] sm:$0x40] %vm169, %v168
    %s184 = scalar_lea.vmem %s1, 475
    %185 = vst.msk [vmem:[%s184] sm:$0x80] %vm169, %v168
    %v186 = vld.sshfl [vmem:[#allocation0] sm:$0xff pattern:$0x99999810]
    %s187 = scalar_lea.vmem [#allocation0], 16
    %v188 = vld.sshfl [vmem:[%s187] sm:$0xff pattern:$0x98100000]
    %vm189 = vcmask 1047556
    %v190 = vsel %vm189, %v188, %v186
    %191 = vrot.lane.b32.xlu0 %v190, 116
    %v192 = vpop.permute.xlu0 %191
    %vm193 = vcmask 31744
    %s194 = scalar_lea.vmem %s1, 3
    %195 = vst.msk [vmem:[%s194] sm:$0x1] %vm193, %v192
    %s196 = scalar_lea.vmem %s1, 258
    %197 = vst.msk [vmem:[%s196] sm:$0x2] %vm193, %v192
    %s198 = scalar_lea.vmem %s1, 33
    %199 = vst.msk [vmem:[%s198] sm:$0x4] %vm193, %v192
    %s200 = scalar_lea.vmem %s1, 288
    %201 = vst.msk [vmem:[%s200] sm:$0x8] %vm193, %v192
    %s202 = scalar_lea.vmem %s1, 63
    %203 = vst.msk [vmem:[%s202] sm:$0x10] %vm193, %v192
    %s204 = scalar_lea.vmem %s1, 318
    %205 = vst.msk [vmem:[%s204] sm:$0x20] %vm193, %v192
    %s206 = scalar_lea.vmem %s1, 93
    %207 = vst.msk [vmem:[%s206] sm:$0x40] %vm193, %v192
    %s208 = scalar_lea.vmem %s1, 348
    %209 = vst.msk [vmem:[%s208] sm:$0x80] %vm193, %v192
    %s210 = scalar_lea.vmem [#allocation0], 32
    %v211 = vld.sshfl [vmem:[%s210] sm:$0xff pattern:$0x99999810]
    %s212 = scalar_lea.vmem [#allocation0], 48
    %v213 = vld.sshfl [vmem:[%s212] sm:$0xff pattern:$0x98100000]
    %vm214 = vcmask 1047556
    %v215 = vsel %vm214, %v213, %v211
    %216 = vrot.lane.b32.xlu0 %v215, 116
    %v217 = vpop.permute.xlu0 %216
    %vm218 = vcmask 31744
    %s219 = scalar_lea.vmem %s1, 131
    %220 = vst.msk [vmem:[%s219] sm:$0x1] %vm218, %v217
    %s221 = scalar_lea.vmem %s1, 386
    %222 = vst.msk [vmem:[%s221] sm:$0x2] %vm218, %v217
    %s223 = scalar_lea.vmem %s1, 161
    %224 = vst.msk [vmem:[%s223] sm:$0x4] %vm218, %v217
    %s225 = scalar_lea.vmem %s1, 416
    %226 = vst.msk [vmem:[%s225] sm:$0x8] %vm218, %v217
    %s227 = scalar_lea.vmem %s1, 191
    %228 = vst.msk [vmem:[%s227] sm:$0x10] %vm218, %v217
    %s229 = scalar_lea.vmem %s1, 446
    %230 = vst.msk [vmem:[%s229] sm:$0x20] %vm218, %v217
    %s231 = scalar_lea.vmem %s1, 221
    %232 = vst.msk [vmem:[%s231] sm:$0x40] %vm218, %v217
    %s233 = scalar_lea.vmem %s1, 476
    %234 = vst.msk [vmem:[%s233] sm:$0x80] %vm218, %v217
    %v235 = vld.sshfl [vmem:[#allocation0] sm:$0xff pattern:$0x99999810]
    %s236 = scalar_lea.vmem [#allocation0], 16
    %v237 = vld.sshfl [vmem:[%s236] sm:$0xff pattern:$0x98100000]
    %vm238 = vcmask 1047556
    %v239 = vsel %vm238, %v237, %v235
    %240 = vrot.lane.b32.xlu0 %v239, 112
    %v241 = vpop.permute.xlu0 %240
    %vm242 = vcmask 31744
    %s243 = scalar_lea.vmem %s1, 4
    %244 = vst.msk [vmem:[%s243] sm:$0x1] %vm242, %v241
    %s245 = scalar_lea.vmem %s1, 259
    %246 = vst.msk [vmem:[%s245] sm:$0x2] %vm242, %v241
    %s247 = scalar_lea.vmem %s1, 34
    %248 = vst.msk [vmem:[%s247] sm:$0x4] %vm242, %v241
    %s249 = scalar_lea.vmem %s1, 289
    %250 = vst.msk [vmem:[%s249] sm:$0x8] %vm242, %v241
    %s251 = scalar_lea.vmem %s1, 64
    %252 = vst.msk [vmem:[%s251] sm:$0x10] %vm242, %v241
    %s253 = scalar_lea.vmem %s1, 319
    %254 = vst.msk [vmem:[%s253] sm:$0x20] %vm242, %v241
    %s255 = scalar_lea.vmem %s1, 94
    %256 = vst.msk [vmem:[%s255] sm:$0x40] %vm242, %v241
    %s257 = scalar_lea.vmem %s1, 349
    %258 = vst.msk [vmem:[%s257] sm:$0x80] %vm242, %v241
    %s259 = scalar_lea.vmem [#allocation0], 32
    %v260 = vld.sshfl [vmem:[%s259] sm:$0xff pattern:$0x99999810]
    %s261 = scalar_lea.vmem [#allocation0], 48
    %v262 = vld.sshfl [vmem:[%s261] sm:$0xff pattern:$0x98100000]
    %vm263 = vcmask 1047556
    %v264 = vsel %vm263, %v262, %v260
    %265 = vrot.lane.b32.xlu0 %v264, 112
    %v266 = vpop.permute.xlu0 %265
    %vm267 = vcmask 31744
    %s268 = scalar_lea.vmem %s1, 132
    %269 = vst.msk [vmem:[%s268] sm:$0x1] %vm267, %v266
    %s270 = scalar_lea.vmem %s1, 387
    %271 = vst.msk [vmem:[%s270] sm:$0x2] %vm267, %v266
    %s272 = scalar_lea.vmem %s1, 162
    %273 = vst.msk [vmem:[%s272] sm:$0x4] %vm267, %v266
    %s274 = scalar_lea.vmem %s1, 417
    %275 = vst.msk [vmem:[%s274] sm:$0x8] %vm267, %v266
    %s276 = scalar_lea.vmem %s1, 192
    %277 = vst.msk [vmem:[%s276] sm:$0x10] %vm267, %v266
    %s278 = scalar_lea.vmem %s1, 447
    %279 = vst.msk [vmem:[%s278] sm:$0x20] %vm267, %v266
    %s280 = scalar_lea.vmem %s1, 222
    %281 = vst.msk [vmem:[%s280] sm:$0x40] %vm267, %v266
    %s282 = scalar_lea.vmem %s1, 477
    %283 = vst.msk [vmem:[%s282] sm:$0x80] %vm267, %v266
    %v284 = vld.sshfl [vmem:[#allocation0] sm:$0xff pattern:$0x99999810]
    %s285 = scalar_lea.vmem [#allocation0], 16
    %v286 = vld.sshfl [vmem:[%s285] sm:$0xff pattern:$0x98100000]
    %vm287 = vcmask 1047556
    %v288 = vsel %vm287, %v286, %v284
    %289 = vrot.lane.b32.xlu0 %v288, 108
    %v290 = vpop.permute.xlu0 %289
    %vm291 = vcmask 31744
    %s292 = scalar_lea.vmem %s1, 5
    %293 = vst.msk [vmem:[%s292] sm:$0x1] %vm291, %v290
    %s294 = scalar_lea.vmem %s1, 260
    %295 = vst.msk [vmem:[%s294] sm:$0x2] %vm291, %v290
    %s296 = scalar_lea.vmem %s1, 35
    %297 = vst.msk [vmem:[%s296] sm:$0x4] %vm291, %v290
    %s298 = scalar_lea.vmem %s1, 290
    %299 = vst.msk [vmem:[%s298] sm:$0x8] %vm291, %v290
    %s300 = scalar_lea.vmem %s1, 65
    %301 = vst.msk [vmem:[%s300] sm:$0x10] %vm291, %v290
    %s302 = scalar_lea.vmem %s1, 320
    %303 = vst.msk [vmem:[%s302] sm:$0x20] %vm291, %v290
    %s304 = scalar_lea.vmem %s1, 95
    %305 = vst.msk [vmem:[%s304] sm:$0x40] %vm291, %v290
    %s306 = scalar_lea.vmem %s1, 350
    %307 = vst.msk [vmem:[%s306] sm:$0x80] %vm291, %v290
    %s308 = scalar_lea.vmem [#allocation0], 32
    %v309 = vld.sshfl [vmem:[%s308] sm:$0xff pattern:$0x99999810]
    %s310 = scalar_lea.vmem [#allocation0], 48
    %v311 = vld.sshfl [vmem:[%s310] sm:$0xff pattern:$0x98100000]
    %vm312 = vcmask 1047556
    %v313 = vsel %vm312, %v311, %v309
    %314 = vrot.lane.b32.xlu0 %v313, 108
    %v315 = vpop.permute.xlu0 %314
    %vm316 = vcmask 31744
    %s317 = scalar_lea.vmem %s1, 133
    %318 = vst.msk [vmem:[%s317] sm:$0x1] %vm316, %v315
    %s319 = scalar_lea.vmem %s1, 388
    %320 = vst.msk [vmem:[%s319] sm:$0x2] %vm316, %v315
    %s321 = scalar_lea.vmem %s1, 163
    %322 = vst.msk [vmem:[%s321] sm:$0x4] %vm316, %v315
    %s323 = scalar_lea.vmem %s1, 418
    %324 = vst.msk [vmem:[%s323] sm:$0x8] %vm316, %v315
    %s325 = scalar_lea.vmem %s1, 193
    %326 = vst.msk [vmem:[%s325] sm:$0x10] %vm316, %v315
    %s327 = scalar_lea.vmem %s1, 448
    %328 = vst.msk [vmem:[%s327] sm:$0x20] %vm316, %v315
    %s329 = scalar_lea.vmem %s1, 223
    %330 = vst.msk [vmem:[%s329] sm:$0x40] %vm316, %v315
    %s331 = scalar_lea.vmem %s1, 478
    %332 = vst.msk [vmem:[%s331] sm:$0x80] %vm316, %v315
    %v333 = vld.sshfl [vmem:[#allocation0] sm:$0xff pattern:$0x99999810]
    %s334 = scalar_lea.vmem [#allocation0], 16
    %v335 = vld.sshfl [vmem:[%s334] sm:$0xff pattern:$0x98100000]
    %vm336 = vcmask 1047556
    %v337 = vsel %vm336, %v335, %v333
    %338 = vrot.lane.b32.xlu0 %v337, 104
    %v339 = vpop.permute.xlu0 %338
    %vm340 = vcmask 31744
    %s341 = scalar_lea.vmem %s1, 6
    %342 = vst.msk [vmem:[%s341] sm:$0x1] %vm340, %v339
    %s343 = scalar_lea.vmem %s1, 261
    %344 = vst.msk [vmem:[%s343] sm:$0x2] %vm340, %v339
    %s345 = scalar_lea.vmem %s1, 36
    %346 = vst.msk [vmem:[%s345] sm:$0x4] %vm340, %v339
    %s347 = scalar_lea.vmem %s1, 291
    %348 = vst.msk [vmem:[%s347] sm:$0x8] %vm340, %v339
    %s349 = scalar_lea.vmem %s1, 66
    %350 = vst.msk [vmem:[%s349] sm:$0x10] %vm340, %v339
    %s351 = scalar_lea.vmem %s1, 321
    %352 = vst.msk [vmem:[%s351] sm:$0x20] %vm340, %v339
    %s353 = scalar_lea.vmem %s1, 96
    %354 = vst.msk [vmem:[%s353] sm:$0x40] %vm340, %v339
    %s355 = scalar_lea.vmem %s1, 351
    %356 = vst.msk [vmem:[%s355] sm:$0x80] %vm340, %v339
    %s357 = scalar_lea.vmem [#allocation0], 32
    %v358 = vld.sshfl [vmem:[%s357] sm:$0xff pattern:$0x99999810]
    %s359 = scalar_lea.vmem [#allocation0], 48
    %v360 = vld.sshfl [vmem:[%s359] sm:$0xff pattern:$0x98100000]
    %vm361 = vcmask 1047556
    %v362 = vsel %vm361, %v360, %v358
    %363 = vrot.lane.b32.xlu0 %v362, 104
    %v364 = vpop.permute.xlu0 %363
    %vm365 = vcmask 31744
    %s366 = scalar_lea.vmem %s1, 134
    %367 = vst.msk [vmem:[%s366] sm:$0x1] %vm365, %v364
    %s368 = scalar_lea.vmem %s1, 389
    %369 = vst.msk [vmem:[%s368] sm:$0x2] %vm365, %v364
    %s370 = scalar_lea.vmem %s1, 164
    %371 = vst.msk [vmem:[%s370] sm:$0x4] %vm365, %v364
    %s372 = scalar_lea.vmem %s1, 419
    %373 = vst.msk [vmem:[%s372] sm:$0x8] %vm365, %v364
    %s374 = scalar_lea.vmem %s1, 194
    %375 = vst.msk [vmem:[%s374] sm:$0x10] %vm365, %v364
    %s376 = scalar_lea.vmem %s1, 449
    %377 = vst.msk [vmem:[%s376] sm:$0x20] %vm365, %v364
    %s378 = scalar_lea.vmem %s1, 224
    %379 = vst.msk [vmem:[%s378] sm:$0x40] %vm365, %v364
    %s380 = scalar_lea.vmem %s1, 479
    %381 = vst.msk [vmem:[%s380] sm:$0x80] %vm365, %v364
    %v382 = vld.sshfl [vmem:[#allocation0] sm:$0xff pattern:$0x99999810]
    %s383 = scalar_lea.vmem [#allocation0], 16
    %v384 = vld.sshfl [vmem:[%s383] sm:$0xff pattern:$0x98100000]
    %vm385 = vcmask 1047556
    %v386 = vsel %vm385, %v384, %v382
    %387 = vrot.lane.b32.xlu0 %v386, 100
    %v388 = vpop.permute.xlu0 %387
    %vm389 = vcmask 31744
    %s390 = scalar_lea.vmem %s1, 7
    %391 = vst.msk [vmem:[%s390] sm:$0x1] %vm389, %v388
    %s392 = scalar_lea.vmem %s1, 262
    %393 = vst.msk [vmem:[%s392] sm:$0x2] %vm389, %v388
    %s394 = scalar_lea.vmem %s1, 37
    %395 = vst.msk [vmem:[%s394] sm:$0x4] %vm389, %v388
    %s396 = scalar_lea.vmem %s1, 292
    %397 = vst.msk [vmem:[%s396] sm:$0x8] %vm389, %v388
    %s398 = scalar_lea.vmem %s1, 67
    %399 = vst.msk [vmem:[%s398] sm:$0x10] %vm389, %v388
    %s400 = scalar_lea.vmem %s1, 322
    %401 = vst.msk [vmem:[%s400] sm:$0x20] %vm389, %v388
    %s402 = scalar_lea.vmem %s1, 97
    %403 = vst.msk [vmem:[%s402] sm:$0x40] %vm389, %v388
    %s404 = scalar_lea.vmem %s1, 352
    %405 = vst.msk [vmem:[%s404] sm:$0x80] %vm389, %v388
    %s406 = scalar_lea.vmem [#allocation0], 32
    %v407 = vld.sshfl [vmem:[%s406] sm:$0xff pattern:$0x99999810]
    %s408 = scalar_lea.vmem [#allocation0], 48
    %v409 = vld.sshfl [vmem:[%s408] sm:$0xff pattern:$0x98100000]
    %vm410 = vcmask 1047556
    %v411 = vsel %vm410, %v409, %v407
    %412 = vrot.lane.b32.xlu0 %v411, 100
    %v413 = vpop.permute.xlu0 %412
    %vm414 = vcmask 31744
    %s415 = scalar_lea.vmem %s1, 135
    %416 = vst.msk [vmem:[%s415] sm:$0x1] %vm414, %v413
    %s417 = scalar_lea.vmem %s1, 390
    %418 = vst.msk [vmem:[%s417] sm:$0x2] %vm414, %v413
    %s419 = scalar_lea.vmem %s1, 165
    %420 = vst.msk [vmem:[%s419] sm:$0x4] %vm414, %v413
    %s421 = scalar_lea.vmem %s1, 420
    %422 = vst.msk [vmem:[%s421] sm:$0x8] %vm414, %v413
    %s423 = scalar_lea.vmem %s1, 195
    %424 = vst.msk [vmem:[%s423] sm:$0x10] %vm414, %v413
    %s425 = scalar_lea.vmem %s1, 450
    %426 = vst.msk [vmem:[%s425] sm:$0x20] %vm414, %v413
    %s427 = scalar_lea.vmem %s1, 225
    %428 = vst.msk [vmem:[%s427] sm:$0x40] %vm414, %v413
    %s429 = scalar_lea.vmem %s1, 480
    %430 = vst.msk [vmem:[%s429] sm:$0x80] %vm414, %v413
    %v431 = vld.sshfl [vmem:[#allocation0] sm:$0xff pattern:$0x99999810]
    %s432 = scalar_lea.vmem [#allocation0], 16
    %v433 = vld.sshfl [vmem:[%s432] sm:$0xff pattern:$0x98100000]
    %vm434 = vcmask 1047556
    %v435 = vsel %vm434, %v433, %v431
    %436 = vrot.lane.b32.xlu0 %v435, 96
    %v437 = vpop.permute.xlu0 %436
    %vm438 = vcmask 31744
    %s439 = scalar_lea.vmem %s1, 8
    %440 = vst.msk [vmem:[%s439] sm:$0x1] %vm438, %v437
    %s441 = scalar_lea.vmem %s1, 263
    %442 = vst.msk [vmem:[%s441] sm:$0x2] %vm438, %v437
    %s443 = scalar_lea.vmem %s1, 38
    %444 = vst.msk [vmem:[%s443] sm:$0x4] %vm438, %v437
    %s445 = scalar_lea.vmem %s1, 293
    %446 = vst.msk [vmem:[%s445] sm:$0x8] %vm438, %v437
    %s447 = scalar_lea.vmem %s1, 68
    %448 = vst.msk [vmem:[%s447] sm:$0x10] %vm438, %v437
    %s449 = scalar_lea.vmem %s1, 323
    %450 = vst.msk [vmem:[%s449] sm:$0x20] %vm438, %v437
    %s451 = scalar_lea.vmem %s1, 98
    %452 = vst.msk [vmem:[%s451] sm:$0x40] %vm438, %v437
    %s453 = scalar_lea.vmem %s1, 353
    %454 = vst.msk [vmem:[%s453] sm:$0x80] %vm438, %v437
    %s455 = scalar_lea.vmem [#allocation0], 32
    %v456 = vld.sshfl [vmem:[%s455] sm:$0xff pattern:$0x99999810]
    %s457 = scalar_lea.vmem [#allocation0], 48
    %v458 = vld.sshfl [vmem:[%s457] sm:$0xff pattern:$0x98100000]
    %vm459 = vcmask 1047556
    %v460 = vsel %vm459, %v458, %v456
    %461 = vrot.lane.b32.xlu0 %v460, 96
    %v462 = vpop.permute.xlu0 %461
    %vm463 = vcmask 31744
    %s464 = scalar_lea.vmem %s1, 136
    %465 = vst.msk [vmem:[%s464] sm:$0x1] %vm463, %v462
    %s466 = scalar_lea.vmem %s1, 391
    %467 = vst.msk [vmem:[%s466] sm:$0x2] %vm463, %v462
    %s468 = scalar_lea.vmem %s1, 166
    %469 = vst.msk [vmem:[%s468] sm:$0x4] %vm463, %v462
    %s470 = scalar_lea.vmem %s1, 421
    %471 = vst.msk [vmem:[%s470] sm:$0x8] %vm463, %v462
    %s472 = scalar_lea.vmem %s1, 196
    %473 = vst.msk [vmem:[%s472] sm:$0x10] %vm463, %v462
    %s474 = scalar_lea.vmem %s1, 451
    %475 = vst.msk [vmem:[%s474] sm:$0x20] %vm463, %v462
    %s476 = scalar_lea.vmem %s1, 226
    %477 = vst.msk [vmem:[%s476] sm:$0x40] %vm463, %v462
    %s478 = scalar_lea.vmem %s1, 481
    %479 = vst.msk [vmem:[%s478] sm:$0x80] %vm463, %v462
    %v480 = vld.sshfl [vmem:[#allocation0] sm:$0xff pattern:$0x99999810]
    %s481 = scalar_lea.vmem [#allocation0], 16
    %v482 = vld.sshfl [vmem:[%s481] sm:$0xff pattern:$0x98100000]
    %vm483 = vcmask 1047556
    %v484 = vsel %vm483, %v482, %v480
    %485 = vrot.lane.b32.xlu0 %v484, 92
    %v486 = vpop.permute.xlu0 %485
    %vm487 = vcmask 31744
    %s488 = scalar_lea.vmem %s1, 9
    %489 = vst.msk [vmem:[%s488] sm:$0x1] %vm487, %v486
    %s490 = scalar_lea.vmem %s1, 264
    %491 = vst.msk [vmem:[%s490] sm:$0x2] %vm487, %v486
    %s492 = scalar_lea.vmem %s1, 39
    %493 = vst.msk [vmem:[%s492] sm:$0x4] %vm487, %v486
    %s494 = scalar_lea.vmem %s1, 294
    %495 = vst.msk [vmem:[%s494] sm:$0x8] %vm487, %v486
    %s496 = scalar_lea.vmem %s1, 69
    %497 = vst.msk [vmem:[%s496] sm:$0x10] %vm487, %v486
    %s498 = scalar_lea.vmem %s1, 324
    %499 = vst.msk [vmem:[%s498] sm:$0x20] %vm487, %v486
    %s500 = scalar_lea.vmem %s1, 99
    %501 = vst.msk [vmem:[%s500] sm:$0x40] %vm487, %v486
    %s502 = scalar_lea.vmem %s1, 354
    %503 = vst.msk [vmem:[%s502] sm:$0x80] %vm487, %v486
    %s504 = scalar_lea.vmem [#allocation0], 32
    %v505 = vld.sshfl [vmem:[%s504] sm:$0xff pattern:$0x99999810]
    %s506 = scalar_lea.vmem [#allocation0], 48
    %v507 = vld.sshfl [vmem:[%s506] sm:$0xff pattern:$0x98100000]
    %vm508 = vcmask 1047556
    %v509 = vsel %vm508, %v507, %v505
    %510 = vrot.lane.b32.xlu0 %v509, 92
    %v511 = vpop.permute.xlu0 %510
    %vm512 = vcmask 31744
    %s513 = scalar_lea.vmem %s1, 137
    %514 = vst.msk [vmem:[%s513] sm:$0x1] %vm512, %v511
    %s515 = scalar_lea.vmem %s1, 392
    %516 = vst.msk [vmem:[%s515] sm:$0x2] %vm512, %v511
    %s517 = scalar_lea.vmem %s1, 167
    %518 = vst.msk [vmem:[%s517] sm:$0x4] %vm512, %v511
    %s519 = scalar_lea.vmem %s1, 422
    %520 = vst.msk [vmem:[%s519] sm:$0x8] %vm512, %v511
    %s521 = scalar_lea.vmem %s1, 197
    %522 = vst.msk [vmem:[%s521] sm:$0x10] %vm512, %v511
    %s523 = scalar_lea.vmem %s1, 452
    %524 = vst.msk [vmem:[%s523] sm:$0x20] %vm512, %v511
    %s525 = scalar_lea.vmem %s1, 227
    %526 = vst.msk [vmem:[%s525] sm:$0x40] %vm512, %v511
    %s527 = scalar_lea.vmem %s1, 482
    %528 = vst.msk [vmem:[%s527] sm:$0x80] %vm512, %v511
    %v529 = vld.sshfl [vmem:[#allocation0] sm:$0xff pattern:$0x99999810]
    %s530 = scalar_lea.vmem [#allocation0], 16
    %v531 = vld.sshfl [vmem:[%s530] sm:$0xff pattern:$0x98100000]
    %vm532 = vcmask 1047556
    %v533 = vsel %vm532, %v531, %v529
    %534 = vrot.lane.b32.xlu0 %v533, 88
    %v535 = vpop.permute.xlu0 %534
    %vm536 = vcmask 31744
    %s537 = scalar_lea.vmem %s1, 10
    %538 = vst.msk [vmem:[%s537] sm:$0x1] %vm536, %v535
    %s539 = scalar_lea.vmem %s1, 265
    %540 = vst.msk [vmem:[%s539] sm:$0x2] %vm536, %v535
    %s541 = scalar_lea.vmem %s1, 40
    %542 = vst.msk [vmem:[%s541] sm:$0x4] %vm536, %v535
    %s543 = scalar_lea.vmem %s1, 295
    %544 = vst.msk [vmem:[%s543] sm:$0x8] %vm536, %v535
    %s545 = scalar_lea.vmem %s1, 70
    %546 = vst.msk [vmem:[%s545] sm:$0x10] %vm536, %v535
    %s547 = scalar_lea.vmem %s1, 325
    %548 = vst.msk [vmem:[%s547] sm:$0x20] %vm536, %v535
    %s549 = scalar_lea.vmem %s1, 100
    %550 = vst.msk [vmem:[%s549] sm:$0x40] %vm536, %v535
    %s551 = scalar_lea.vmem %s1, 355
    %552 = vst.msk [vmem:[%s551] sm:$0x80] %vm536, %v535
    %s553 = scalar_lea.vmem [#allocation0], 32
    %v554 = vld.sshfl [vmem:[%s553] sm:$0xff pattern:$0x99999810]
    %s555 = scalar_lea.vmem [#allocation0], 48
    %v556 = vld.sshfl [vmem:[%s555] sm:$0xff pattern:$0x98100000]
    %vm557 = vcmask 1047556
    %v558 = vsel %vm557, %v556, %v554
    %559 = vrot.lane.b32.xlu0 %v558, 88
    %v560 = vpop.permute.xlu0 %559
    %vm561 = vcmask 31744
    %s562 = scalar_lea.vmem %s1, 138
    %563 = vst.msk [vmem:[%s562] sm:$0x1] %vm561, %v560
    %s564 = scalar_lea.vmem %s1, 393
    %565 = vst.msk [vmem:[%s564] sm:$0x2] %vm561, %v560
    %s566 = scalar_lea.vmem %s1, 168
    %567 = vst.msk [vmem:[%s566] sm:$0x4] %vm561, %v560
    %s568 = scalar_lea.vmem %s1, 423
    %569 = vst.msk [vmem:[%s568] sm:$0x8] %vm561, %v560
    %s570 = scalar_lea.vmem %s1, 198
    %571 = vst.msk [vmem:[%s570] sm:$0x10] %vm561, %v560
    %s572 = scalar_lea.vmem %s1, 453
    %573 = vst.msk [vmem:[%s572] sm:$0x20] %vm561, %v560
    %s574 = scalar_lea.vmem %s1, 228
    %575 = vst.msk [vmem:[%s574] sm:$0x40] %vm561, %v560
    %s576 = scalar_lea.vmem %s1, 483
    %577 = vst.msk [vmem:[%s576] sm:$0x80] %vm561, %v560
    %v578 = vld.sshfl [vmem:[#allocation0] sm:$0xff pattern:$0x99999810]
    %s579 = scalar_lea.vmem [#allocation0], 16
    %v580 = vld.sshfl [vmem:[%s579] sm:$0xff pattern:$0x98100000]
    %vm581 = vcmask 1047556
    %v582 = vsel %vm581, %v580, %v578
    %583 = vrot.lane.b32.xlu0 %v582, 84
    %v584 = vpop.permute.xlu0 %583
    %vm585 = vcmask 31744
    %s586 = scalar_lea.vmem %s1, 11
    %587 = vst.msk [vmem:[%s586] sm:$0x1] %vm585, %v584
    %s588 = scalar_lea.vmem %s1, 266
    %589 = vst.msk [vmem:[%s588] sm:$0x2] %vm585, %v584
    %s590 = scalar_lea.vmem %s1, 41
    %591 = vst.msk [vmem:[%s590] sm:$0x4] %vm585, %v584
    %s592 = scalar_lea.vmem %s1, 296
    %593 = vst.msk [vmem:[%s592] sm:$0x8] %vm585, %v584
    %s594 = scalar_lea.vmem %s1, 71
    %595 = vst.msk [vmem:[%s594] sm:$0x10] %vm585, %v584
    %s596 = scalar_lea.vmem %s1, 326
    %597 = vst.msk [vmem:[%s596] sm:$0x20] %vm585, %v584
    %s598 = scalar_lea.vmem %s1, 101
    %599 = vst.msk [vmem:[%s598] sm:$0x40] %vm585, %v584
    %s600 = scalar_lea.vmem %s1, 356
    %601 = vst.msk [vmem:[%s600] sm:$0x80] %vm585, %v584
    %s602 = scalar_lea.vmem [#allocation0], 32
    %v603 = vld.sshfl [vmem:[%s602] sm:$0xff pattern:$0x99999810]
    %s604 = scalar_lea.vmem [#allocation0], 48
    %v605 = vld.sshfl [vmem:[%s604] sm:$0xff pattern:$0x98100000]
    %vm606 = vcmask 1047556
    %v607 = vsel %vm606, %v605, %v603
    %608 = vrot.lane.b32.xlu0 %v607, 84
    %v609 = vpop.permute.xlu0 %608
    %vm610 = vcmask 31744
    %s611 = scalar_lea.vmem %s1, 139
    %612 = vst.msk [vmem:[%s611] sm:$0x1] %vm610, %v609
    %s613 = scalar_lea.vmem %s1, 394
    %614 = vst.msk [vmem:[%s613] sm:$0x2] %vm610, %v609
    %s615 = scalar_lea.vmem %s1, 169
    %616 = vst.msk [vmem:[%s615] sm:$0x4] %vm610, %v609
    %s617 = scalar_lea.vmem %s1, 424
    %618 = vst.msk [vmem:[%s617] sm:$0x8] %vm610, %v609
    %s619 = scalar_lea.vmem %s1, 199
    %620 = vst.msk [vmem:[%s619] sm:$0x10] %vm610, %v609
    %s621 = scalar_lea.vmem %s1, 454
    %622 = vst.msk [vmem:[%s621] sm:$0x20] %vm610, %v609
    %s623 = scalar_lea.vmem %s1, 229
    %624 = vst.msk [vmem:[%s623] sm:$0x40] %vm610, %v609
    %s625 = scalar_lea.vmem %s1, 484
    %626 = vst.msk [vmem:[%s625] sm:$0x80] %vm610, %v609
    %v627 = vld.sshfl [vmem:[#allocation0] sm:$0xff pattern:$0x99999810]
    %s628 = scalar_lea.vmem [#allocation0], 16
    %v629 = vld.sshfl [vmem:[%s628] sm:$0xff pattern:$0x98100000]
    %vm630 = vcmask 1047556
    %v631 = vsel %vm630, %v629, %v627
    %632 = vrot.lane.b32.xlu0 %v631, 80
    %v633 = vpop.permute.xlu0 %632
    %vm634 = vcmask 31744
    %s635 = scalar_lea.vmem %s1, 12
    %636 = vst.msk [vmem:[%s635] sm:$0x1] %vm634, %v633
    %s637 = scalar_lea.vmem %s1, 267
    %638 = vst.msk [vmem:[%s637] sm:$0x2] %vm634, %v633
    %s639 = scalar_lea.vmem %s1, 42
    %640 = vst.msk [vmem:[%s639] sm:$0x4] %vm634, %v633
    %s641 = scalar_lea.vmem %s1, 297
    %642 = vst.msk [vmem:[%s641] sm:$0x8] %vm634, %v633
    %s643 = scalar_lea.vmem %s1, 72
    %644 = vst.msk [vmem:[%s643] sm:$0x10] %vm634, %v633
    %s645 = scalar_lea.vmem %s1, 327
    %646 = vst.msk [vmem:[%s645] sm:$0x20] %vm634, %v633
    %s647 = scalar_lea.vmem %s1, 102
    %648 = vst.msk [vmem:[%s647] sm:$0x40] %vm634, %v633
    %s649 = scalar_lea.vmem %s1, 357
    %650 = vst.msk [vmem:[%s649] sm:$0x80] %vm634, %v633
    %s651 = scalar_lea.vmem [#allocation0], 32
    %v652 = vld.sshfl [vmem:[%s651] sm:$0xff pattern:$0x99999810]
    %s653 = scalar_lea.vmem [#allocation0], 48
    %v654 = vld.sshfl [vmem:[%s653] sm:$0xff pattern:$0x98100000]
    %vm655 = vcmask 1047556
    %v656 = vsel %vm655, %v654, %v652
    %657 = vrot.lane.b32.xlu0 %v656, 80
    %v658 = vpop.permute.xlu0 %657
    %vm659 = vcmask 31744
    %s660 = scalar_lea.vmem %s1, 140
    %661 = vst.msk [vmem:[%s660] sm:$0x1] %vm659, %v658
    %s662 = scalar_lea.vmem %s1, 395
    %663 = vst.msk [vmem:[%s662] sm:$0x2] %vm659, %v658
    %s664 = scalar_lea.vmem %s1, 170
    %665 = vst.msk [vmem:[%s664] sm:$0x4] %vm659, %v658
    %s666 = scalar_lea.vmem %s1, 425
    %667 = vst.msk [vmem:[%s666] sm:$0x8] %vm659, %v658
    %s668 = scalar_lea.vmem %s1, 200
    %669 = vst.msk [vmem:[%s668] sm:$0x10] %vm659, %v658
    %s670 = scalar_lea.vmem %s1, 455
    %671 = vst.msk [vmem:[%s670] sm:$0x20] %vm659, %v658
    %s672 = scalar_lea.vmem %s1, 230
    %673 = vst.msk [vmem:[%s672] sm:$0x40] %vm659, %v658
    %s674 = scalar_lea.vmem %s1, 485
    %675 = vst.msk [vmem:[%s674] sm:$0x80] %vm659, %v658
    %v676 = vld.sshfl [vmem:[#allocation0] sm:$0xff pattern:$0x99999810]
    %s677 = scalar_lea.vmem [#allocation0], 16
    %v678 = vld.sshfl [vmem:[%s677] sm:$0xff pattern:$0x98100000]
    %vm679 = vcmask 1047556
    %v680 = vsel %vm679, %v678, %v676
    %681 = vrot.lane.b32.xlu0 %v680, 76
    %v682 = vpop.permute.xlu0 %681
    %vm683 = vcmask 31744
    %s684 = scalar_lea.vmem %s1, 13
    %685 = vst.msk [vmem:[%s684] sm:$0x1] %vm683, %v682
    %s686 = scalar_lea.vmem %s1, 268
    %687 = vst.msk [vmem:[%s686] sm:$0x2] %vm683, %v682
    %s688 = scalar_lea.vmem %s1, 43
    %689 = vst.msk [vmem:[%s688] sm:$0x4] %vm683, %v682
    %s690 = scalar_lea.vmem %s1, 298
    %691 = vst.msk [vmem:[%s690] sm:$0x8] %vm683, %v682
    %s692 = scalar_lea.vmem %s1, 73
    %693 = vst.msk [vmem:[%s692] sm:$0x10] %vm683, %v682
    %s694 = scalar_lea.vmem %s1, 328
    %695 = vst.msk [vmem:[%s694] sm:$0x20] %vm683, %v682
    %s696 = scalar_lea.vmem %s1, 103
    %697 = vst.msk [vmem:[%s696] sm:$0x40] %vm683, %v682
    %s698 = scalar_lea.vmem %s1, 358
    %699 = vst.msk [vmem:[%s698] sm:$0x80] %vm683, %v682
    %s700 = scalar_lea.vmem [#allocation0], 32
    %v701 = vld.sshfl [vmem:[%s700] sm:$0xff pattern:$0x99999810]
    %s702 = scalar_lea.vmem [#allocation0], 48
    %v703 = vld.sshfl [vmem:[%s702] sm:$0xff pattern:$0x98100000]
    %vm704 = vcmask 1047556
    %v705 = vsel %vm704, %v703, %v701
    %706 = vrot.lane.b32.xlu0 %v705, 76
    %v707 = vpop.permute.xlu0 %706
    %vm708 = vcmask 31744
    %s709 = scalar_lea.vmem %s1, 141
    %710 = vst.msk [vmem:[%s709] sm:$0x1] %vm708, %v707
    %s711 = scalar_lea.vmem %s1, 396
    %712 = vst.msk [vmem:[%s711] sm:$0x2] %vm708, %v707
    %s713 = scalar_lea.vmem %s1, 171
    %714 = vst.msk [vmem:[%s713] sm:$0x4] %vm708, %v707
    %s715 = scalar_lea.vmem %s1, 426
    %716 = vst.msk [vmem:[%s715] sm:$0x8] %vm708, %v707
    %s717 = scalar_lea.vmem %s1, 201
    %718 = vst.msk [vmem:[%s717] sm:$0x10] %vm708, %v707
    %s719 = scalar_lea.vmem %s1, 456
    %720 = vst.msk [vmem:[%s719] sm:$0x20] %vm708, %v707
    %s721 = scalar_lea.vmem %s1, 231
    %722 = vst.msk [vmem:[%s721] sm:$0x40] %vm708, %v707
    %s723 = scalar_lea.vmem %s1, 486
    %724 = vst.msk [vmem:[%s723] sm:$0x80] %vm708, %v707
    %v725 = vld.sshfl [vmem:[#allocation0] sm:$0xff pattern:$0x99999810]
    %s726 = scalar_lea.vmem [#allocation0], 16
    %v727 = vld.sshfl [vmem:[%s726] sm:$0xff pattern:$0x98100000]
    %vm728 = vcmask 1047556
    %v729 = vsel %vm728, %v727, %v725
    %730 = vrot.lane.b32.xlu0 %v729, 72
    %v731 = vpop.permute.xlu0 %730
    %vm732 = vcmask 31744
    %s733 = scalar_lea.vmem %s1, 14
    %734 = vst.msk [vmem:[%s733] sm:$0x1] %vm732, %v731
    %s735 = scalar_lea.vmem %s1, 269
    %736 = vst.msk [vmem:[%s735] sm:$0x2] %vm732, %v731
    %s737 = scalar_lea.vmem %s1, 44
    %738 = vst.msk [vmem:[%s737] sm:$0x4] %vm732, %v731
    %s739 = scalar_lea.vmem %s1, 299
    %740 = vst.msk [vmem:[%s739] sm:$0x8] %vm732, %v731
    %s741 = scalar_lea.vmem %s1, 74
    %742 = vst.msk [vmem:[%s741] sm:$0x10] %vm732, %v731
    %s743 = scalar_lea.vmem %s1, 329
    %744 = vst.msk [vmem:[%s743] sm:$0x20] %vm732, %v731
    %s745 = scalar_lea.vmem %s1, 104
    %746 = vst.msk [vmem:[%s745] sm:$0x40] %vm732, %v731
    %s747 = scalar_lea.vmem %s1, 359
    %748 = vst.msk [vmem:[%s747] sm:$0x80] %vm732, %v731
    %s749 = scalar_lea.vmem [#allocation0], 32
    %v750 = vld.sshfl [vmem:[%s749] sm:$0xff pattern:$0x99999810]
    %s751 = scalar_lea.vmem [#allocation0], 48
    %v752 = vld.sshfl [vmem:[%s751] sm:$0xff pattern:$0x98100000]
    %vm753 = vcmask 1047556
    %v754 = vsel %vm753, %v752, %v750
    %755 = vrot.lane.b32.xlu0 %v754, 72
    %v756 = vpop.permute.xlu0 %755
    %vm757 = vcmask 31744
    %s758 = scalar_lea.vmem %s1, 142
    %759 = vst.msk [vmem:[%s758] sm:$0x1] %vm757, %v756
    %s760 = scalar_lea.vmem %s1, 397
    %761 = vst.msk [vmem:[%s760] sm:$0x2] %vm757, %v756
    %s762 = scalar_lea.vmem %s1, 172
    %763 = vst.msk [vmem:[%s762] sm:$0x4] %vm757, %v756
    %s764 = scalar_lea.vmem %s1, 427
    %765 = vst.msk [vmem:[%s764] sm:$0x8] %vm757, %v756
    %s766 = scalar_lea.vmem %s1, 202
    %767 = vst.msk [vmem:[%s766] sm:$0x10] %vm757, %v756
    %s768 = scalar_lea.vmem %s1, 457
    %769 = vst.msk [vmem:[%s768] sm:$0x20] %vm757, %v756
    %s770 = scalar_lea.vmem %s1, 232
    %771 = vst.msk [vmem:[%s770] sm:$0x40] %vm757, %v756
    %s772 = scalar_lea.vmem %s1, 487
    %773 = vst.msk [vmem:[%s772] sm:$0x80] %vm757, %v756
    %v774 = vld.sshfl [vmem:[#allocation0] sm:$0xff pattern:$0x99999810]
    %s775 = scalar_lea.vmem [#allocation0], 16
    %v776 = vld.sshfl [vmem:[%s775] sm:$0xff pattern:$0x98100000]
    %vm777 = vcmask 1047556
    %v778 = vsel %vm777, %v776, %v774
    %779 = vrot.lane.b32.xlu0 %v778, 68
    %v780 = vpop.permute.xlu0 %779
    %vm781 = vcmask 31744
    %s782 = scalar_lea.vmem %s1, 15
    %783 = vst.msk [vmem:[%s782] sm:$0x1] %vm781, %v780
    %s784 = scalar_lea.vmem %s1, 270
    %785 = vst.msk [vmem:[%s784] sm:$0x2] %vm781, %v780
    %s786 = scalar_lea.vmem %s1, 45
    %787 = vst.msk [vmem:[%s786] sm:$0x4] %vm781, %v780
    %s788 = scalar_lea.vmem %s1, 300
    %789 = vst.msk [vmem:[%s788] sm:$0x8] %vm781, %v780
    %s790 = scalar_lea.vmem %s1, 75
    %791 = vst.msk [vmem:[%s790] sm:$0x10] %vm781, %v780
    %s792 = scalar_lea.vmem %s1, 330
    %793 = vst.msk [vmem:[%s792] sm:$0x20] %vm781, %v780
    %s794 = scalar_lea.vmem %s1, 105
    %795 = vst.msk [vmem:[%s794] sm:$0x40] %vm781, %v780
    %s796 = scalar_lea.vmem %s1, 360
    %797 = vst.msk [vmem:[%s796] sm:$0x80] %vm781, %v780
    %s798 = scalar_lea.vmem [#allocation0], 32
    %v799 = vld.sshfl [vmem:[%s798] sm:$0xff pattern:$0x99999810]
    %s800 = scalar_lea.vmem [#allocation0], 48
    %v801 = vld.sshfl [vmem:[%s800] sm:$0xff pattern:$0x98100000]
    %vm802 = vcmask 1047556
    %v803 = vsel %vm802, %v801, %v799
    %804 = vrot.lane.b32.xlu0 %v803, 68
    %v805 = vpop.permute.xlu0 %804
    %vm806 = vcmask 31744
    %s807 = scalar_lea.vmem %s1, 143
    %808 = vst.msk [vmem:[%s807] sm:$0x1] %vm806, %v805
    %s809 = scalar_lea.vmem %s1, 398
    %810 = vst.msk [vmem:[%s809] sm:$0x2] %vm806, %v805
    %s811 = scalar_lea.vmem %s1, 173
    %812 = vst.msk [vmem:[%s811] sm:$0x4] %vm806, %v805
    %s813 = scalar_lea.vmem %s1, 428
    %814 = vst.msk [vmem:[%s813] sm:$0x8] %vm806, %v805
    %s815 = scalar_lea.vmem %s1, 203
    %816 = vst.msk [vmem:[%s815] sm:$0x10] %vm806, %v805
    %s817 = scalar_lea.vmem %s1, 458
    %818 = vst.msk [vmem:[%s817] sm:$0x20] %vm806, %v805
    %s819 = scalar_lea.vmem %s1, 233
    %820 = vst.msk [vmem:[%s819] sm:$0x40] %vm806, %v805
    %s821 = scalar_lea.vmem %s1, 488
    %822 = vst.msk [vmem:[%s821] sm:$0x80] %vm806, %v805
    %v823 = vld.sshfl [vmem:[#allocation0] sm:$0xff pattern:$0x99999810]
    %s824 = scalar_lea.vmem [#allocation0], 16
    %v825 = vld.sshfl [vmem:[%s824] sm:$0xff pattern:$0x98100000]
    %vm826 = vcmask 1047556
    %v827 = vsel %vm826, %v825, %v823
    %828 = vrot.lane.b32.xlu0 %v827, 64
    %v829 = vpop.permute.xlu0 %828
    %vm830 = vcmask 31744
    %s831 = scalar_lea.vmem %s1, 16
    %832 = vst.msk [vmem:[%s831] sm:$0x1] %vm830, %v829
    %s833 = scalar_lea.vmem %s1, 271
    %834 = vst.msk [vmem:[%s833] sm:$0x2] %vm830, %v829
    %s835 = scalar_lea.vmem %s1, 46
    %836 = vst.msk [vmem:[%s835] sm:$0x4] %vm830, %v829
    %s837 = scalar_lea.vmem %s1, 301
    %838 = vst.msk [vmem:[%s837] sm:$0x8] %vm830, %v829
    %s839 = scalar_lea.vmem %s1, 76
    %840 = vst.msk [vmem:[%s839] sm:$0x10] %vm830, %v829
    %s841 = scalar_lea.vmem %s1, 331
    %842 = vst.msk [vmem:[%s841] sm:$0x20] %vm830, %v829
    %s843 = scalar_lea.vmem %s1, 106
    %844 = vst.msk [vmem:[%s843] sm:$0x40] %vm830, %v829
    %s845 = scalar_lea.vmem %s1, 361
    %846 = vst.msk [vmem:[%s845] sm:$0x80] %vm830, %v829
    %s847 = scalar_lea.vmem [#allocation0], 32
    %v848 = vld.sshfl [vmem:[%s847] sm:$0xff pattern:$0x99999810]
    %s849 = scalar_lea.vmem [#allocation0], 48
    %v850 = vld.sshfl [vmem:[%s849] sm:$0xff pattern:$0x98100000]
    %vm851 = vcmask 1047556
    %v852 = vsel %vm851, %v850, %v848
    %853 = vrot.lane.b32.xlu0 %v852, 64
    %v854 = vpop.permute.xlu0 %853
    %vm855 = vcmask 31744
    %s856 = scalar_lea.vmem %s1, 144
    %857 = vst.msk [vmem:[%s856] sm:$0x1] %vm855, %v854
    %s858 = scalar_lea.vmem %s1, 399
    %859 = vst.msk [vmem:[%s858] sm:$0x2] %vm855, %v854
    %s860 = scalar_lea.vmem %s1, 174
    %861 = vst.msk [vmem:[%s860] sm:$0x4] %vm855, %v854
    %s862 = scalar_lea.vmem %s1, 429
    %863 = vst.msk [vmem:[%s862] sm:$0x8] %vm855, %v854
    %s864 = scalar_lea.vmem %s1, 204
    %865 = vst.msk [vmem:[%s864] sm:$0x10] %vm855, %v854
    %s866 = scalar_lea.vmem %s1, 459
    %867 = vst.msk [vmem:[%s866] sm:$0x20] %vm855, %v854
    %s868 = scalar_lea.vmem %s1, 234
    %869 = vst.msk [vmem:[%s868] sm:$0x40] %vm855, %v854
    %s870 = scalar_lea.vmem %s1, 489
    %871 = vst.msk [vmem:[%s870] sm:$0x80] %vm855, %v854
    %v872 = vld.sshfl [vmem:[#allocation0] sm:$0xff pattern:$0x99999810]
    %s873 = scalar_lea.vmem [#allocation0], 16
    %v874 = vld.sshfl [vmem:[%s873] sm:$0xff pattern:$0x98100000]
    %vm875 = vcmask 1047556
    %v876 = vsel %vm875, %v874, %v872
    %877 = vrot.lane.b32.xlu0 %v876, 60
    %v878 = vpop.permute.xlu0 %877
    %vm879 = vcmask 31744
    %s880 = scalar_lea.vmem %s1, 17
    %881 = vst.msk [vmem:[%s880] sm:$0x1] %vm879, %v878
    %s882 = scalar_lea.vmem %s1, 272
    %883 = vst.msk [vmem:[%s882] sm:$0x2] %vm879, %v878
    %s884 = scalar_lea.vmem %s1, 47
    %885 = vst.msk [vmem:[%s884] sm:$0x4] %vm879, %v878
    %s886 = scalar_lea.vmem %s1, 302
    %887 = vst.msk [vmem:[%s886] sm:$0x8] %vm879, %v878
    %s888 = scalar_lea.vmem %s1, 77
    %889 = vst.msk [vmem:[%s888] sm:$0x10] %vm879, %v878
    %s890 = scalar_lea.vmem %s1, 332
    %891 = vst.msk [vmem:[%s890] sm:$0x20] %vm879, %v878
    %s892 = scalar_lea.vmem %s1, 107
    %893 = vst.msk [vmem:[%s892] sm:$0x40] %vm879, %v878
    %s894 = scalar_lea.vmem %s1, 362
    %895 = vst.msk [vmem:[%s894] sm:$0x80] %vm879, %v878
    %s896 = scalar_lea.vmem [#allocation0], 32
    %v897 = vld.sshfl [vmem:[%s896] sm:$0xff pattern:$0x99999810]
    %s898 = scalar_lea.vmem [#allocation0], 48
    %v899 = vld.sshfl [vmem:[%s898] sm:$0xff pattern:$0x98100000]
    %vm900 = vcmask 1047556
    %v901 = vsel %vm900, %v899, %v897
    %902 = vrot.lane.b32.xlu0 %v901, 60
    %v903 = vpop.permute.xlu0 %902
    %vm904 = vcmask 31744
    %s905 = scalar_lea.vmem %s1, 145
    %906 = vst.msk [vmem:[%s905] sm:$0x1] %vm904, %v903
    %s907 = scalar_lea.vmem %s1, 400
    %908 = vst.msk [vmem:[%s907] sm:$0x2] %vm904, %v903
    %s909 = scalar_lea.vmem %s1, 175
    %910 = vst.msk [vmem:[%s909] sm:$0x4] %vm904, %v903
    %s911 = scalar_lea.vmem %s1, 430
    %912 = vst.msk [vmem:[%s911] sm:$0x8] %vm904, %v903
    %s913 = scalar_lea.vmem %s1, 205
    %914 = vst.msk [vmem:[%s913] sm:$0x10] %vm904, %v903
    %s915 = scalar_lea.vmem %s1, 460
    %916 = vst.msk [vmem:[%s915] sm:$0x20] %vm904, %v903
    %s917 = scalar_lea.vmem %s1, 235
    %918 = vst.msk [vmem:[%s917] sm:$0x40] %vm904, %v903
    %s919 = scalar_lea.vmem %s1, 490
    %920 = vst.msk [vmem:[%s919] sm:$0x80] %vm904, %v903
    %v921 = vld.sshfl [vmem:[#allocation0] sm:$0xff pattern:$0x99999810]
    %s922 = scalar_lea.vmem [#allocation0], 16
    %v923 = vld.sshfl [vmem:[%s922] sm:$0xff pattern:$0x98100000]
    %vm924 = vcmask 1047556
    %v925 = vsel %vm924, %v923, %v921
    %926 = vrot.lane.b32.xlu0 %v925, 56
    %v927 = vpop.permute.xlu0 %926
    %vm928 = vcmask 31744
    %s929 = scalar_lea.vmem %s1, 18
    %930 = vst.msk [vmem:[%s929] sm:$0x1] %vm928, %v927
    %s931 = scalar_lea.vmem %s1, 273
    %932 = vst.msk [vmem:[%s931] sm:$0x2] %vm928, %v927
    %s933 = scalar_lea.vmem %s1, 48
    %934 = vst.msk [vmem:[%s933] sm:$0x4] %vm928, %v927
    %s935 = scalar_lea.vmem %s1, 303
    %936 = vst.msk [vmem:[%s935] sm:$0x8] %vm928, %v927
    %s937 = scalar_lea.vmem %s1, 78
    %938 = vst.msk [vmem:[%s937] sm:$0x10] %vm928, %v927
    %s939 = scalar_lea.vmem %s1, 333
    %940 = vst.msk [vmem:[%s939] sm:$0x20] %vm928, %v927
    %s941 = scalar_lea.vmem %s1, 108
    %942 = vst.msk [vmem:[%s941] sm:$0x40] %vm928, %v927
    %s943 = scalar_lea.vmem %s1, 363
    %944 = vst.msk [vmem:[%s943] sm:$0x80] %vm928, %v927
    %s945 = scalar_lea.vmem [#allocation0], 32
    %v946 = vld.sshfl [vmem:[%s945] sm:$0xff pattern:$0x99999810]
    %s947 = scalar_lea.vmem [#allocation0], 48
    %v948 = vld.sshfl [vmem:[%s947] sm:$0xff pattern:$0x98100000]
    %vm949 = vcmask 1047556
    %v950 = vsel %vm949, %v948, %v946
    %951 = vrot.lane.b32.xlu0 %v950, 56
    %v952 = vpop.permute.xlu0 %951
    %vm953 = vcmask 31744
    %s954 = scalar_lea.vmem %s1, 146
    %955 = vst.msk [vmem:[%s954] sm:$0x1] %vm953, %v952
    %s956 = scalar_lea.vmem %s1, 401
    %957 = vst.msk [vmem:[%s956] sm:$0x2] %vm953, %v952
    %s958 = scalar_lea.vmem %s1, 176
    %959 = vst.msk [vmem:[%s958] sm:$0x4] %vm953, %v952
    %s960 = scalar_lea.vmem %s1, 431
    %961 = vst.msk [vmem:[%s960] sm:$0x8] %vm953, %v952
    %s962 = scalar_lea.vmem %s1, 206
    %963 = vst.msk [vmem:[%s962] sm:$0x10] %vm953, %v952
    %s964 = scalar_lea.vmem %s1, 461
    %965 = vst.msk [vmem:[%s964] sm:$0x20] %vm953, %v952
    %s966 = scalar_lea.vmem %s1, 236
    %967 = vst.msk [vmem:[%s966] sm:$0x40] %vm953, %v952
    %s968 = scalar_lea.vmem %s1, 491
    %969 = vst.msk [vmem:[%s968] sm:$0x80] %vm953, %v952
    %v970 = vld.sshfl [vmem:[#allocation0] sm:$0xff pattern:$0x99999810]
    %s971 = scalar_lea.vmem [#allocation0], 16
    %v972 = vld.sshfl [vmem:[%s971] sm:$0xff pattern:$0x98100000]
    %vm973 = vcmask 1047556
    %v974 = vsel %vm973, %v972, %v970
    %975 = vrot.lane.b32.xlu0 %v974, 52
    %v976 = vpop.permute.xlu0 %975
    %vm977 = vcmask 31744
    %s978 = scalar_lea.vmem %s1, 19
    %979 = vst.msk [vmem:[%s978] sm:$0x1] %vm977, %v976
    %s980 = scalar_lea.vmem %s1, 274
    %981 = vst.msk [vmem:[%s980] sm:$0x2] %vm977, %v976
    %s982 = scalar_lea.vmem %s1, 49
    %983 = vst.msk [vmem:[%s982] sm:$0x4] %vm977, %v976
    %s984 = scalar_lea.vmem %s1, 304
    %985 = vst.msk [vmem:[%s984] sm:$0x8] %vm977, %v976
    %s986 = scalar_lea.vmem %s1, 79
    %987 = vst.msk [vmem:[%s986] sm:$0x10] %vm977, %v976
    %s988 = scalar_lea.vmem %s1, 334
    %989 = vst.msk [vmem:[%s988] sm:$0x20] %vm977, %v976
    %s990 = scalar_lea.vmem %s1, 109
    %991 = vst.msk [vmem:[%s990] sm:$0x40] %vm977, %v976
    %s992 = scalar_lea.vmem %s1, 364
    %993 = vst.msk [vmem:[%s992] sm:$0x80] %vm977, %v976
    %s994 = scalar_lea.vmem [#allocation0], 32
    %v995 = vld.sshfl [vmem:[%s994] sm:$0xff pattern:$0x99999810]
    %s996 = scalar_lea.vmem [#allocation0], 48
    %v997 = vld.sshfl [vmem:[%s996] sm:$0xff pattern:$0x98100000]
    %vm998 = vcmask 1047556
    %v999 = vsel %vm998, %v997, %v995
    %1000 = vrot.lane.b32.xlu0 %v999, 52
    %v1001 = vpop.permute.xlu0 %1000
    %vm1002 = vcmask 31744
    %s1003 = scalar_lea.vmem %s1, 147
    %1004 = vst.msk [vmem:[%s1003] sm:$0x1] %vm1002, %v1001
    %s1005 = scalar_lea.vmem %s1, 402
    %1006 = vst.msk [vmem:[%s1005] sm:$0x2] %vm1002, %v1001
    %s1007 = scalar_lea.vmem %s1, 177
    %1008 = vst.msk [vmem:[%s1007] sm:$0x4] %vm1002, %v1001
    %s1009 = scalar_lea.vmem %s1, 432
    %1010 = vst.msk [vmem:[%s1009] sm:$0x8] %vm1002, %v1001
    %s1011 = scalar_lea.vmem %s1, 207
    %1012 = vst.msk [vmem:[%s1011] sm:$0x10] %vm1002, %v1001
    %s1013 = scalar_lea.vmem %s1, 462
    %1014 = vst.msk [vmem:[%s1013] sm:$0x20] %vm1002, %v1001
    %s1015 = scalar_lea.vmem %s1, 237
    %1016 = vst.msk [vmem:[%s1015] sm:$0x40] %vm1002, %v1001
    %s1017 = scalar_lea.vmem %s1, 492
    %1018 = vst.msk [vmem:[%s1017] sm:$0x80] %vm1002, %v1001
    %v1019 = vld.sshfl [vmem:[#allocation0] sm:$0xff pattern:$0x99999810]
    %s1020 = scalar_lea.vmem [#allocation0], 16
    %v1021 = vld.sshfl [vmem:[%s1020] sm:$0xff pattern:$0x98100000]
    %vm1022 = vcmask 1047556
    %v1023 = vsel %vm1022, %v1021, %v1019
    %1024 = vrot.lane.b32.xlu0 %v1023, 48
    %v1025 = vpop.permute.xlu0 %1024
    %vm1026 = vcmask 31744
    %s1027 = scalar_lea.vmem %s1, 20
    %1028 = vst.msk [vmem:[%s1027] sm:$0x1] %vm1026, %v1025
    %s1029 = scalar_lea.vmem %s1, 275
    %1030 = vst.msk [vmem:[%s1029] sm:$0x2] %vm1026, %v1025
    %s1031 = scalar_lea.vmem %s1, 50
    %1032 = vst.msk [vmem:[%s1031] sm:$0x4] %vm1026, %v1025
    %s1033 = scalar_lea.vmem %s1, 305
    %1034 = vst.msk [vmem:[%s1033] sm:$0x8] %vm1026, %v1025
    %s1035 = scalar_lea.vmem %s1, 80
    %1036 = vst.msk [vmem:[%s1035] sm:$0x10] %vm1026, %v1025
    %s1037 = scalar_lea.vmem %s1, 335
    %1038 = vst.msk [vmem:[%s1037] sm:$0x20] %vm1026, %v1025
    %s1039 = scalar_lea.vmem %s1, 110
    %1040 = vst.msk [vmem:[%s1039] sm:$0x40] %vm1026, %v1025
    %s1041 = scalar_lea.vmem %s1, 365
    %1042 = vst.msk [vmem:[%s1041] sm:$0x80] %vm1026, %v1025
    %s1043 = scalar_lea.vmem [#allocation0], 32
    %v1044 = vld.sshfl [vmem:[%s1043] sm:$0xff pattern:$0x99999810]
    %s1045 = scalar_lea.vmem [#allocation0], 48
    %v1046 = vld.sshfl [vmem:[%s1045] sm:$0xff pattern:$0x98100000]
    %vm1047 = vcmask 1047556
    %v1048 = vsel %vm1047, %v1046, %v1044
    %1049 = vrot.lane.b32.xlu0 %v1048, 48
    %v1050 = vpop.permute.xlu0 %1049
    %vm1051 = vcmask 31744
    %s1052 = scalar_lea.vmem %s1, 148
    %1053 = vst.msk [vmem:[%s1052] sm:$0x1] %vm1051, %v1050
    %s1054 = scalar_lea.vmem %s1, 403
    %1055 = vst.msk [vmem:[%s1054] sm:$0x2] %vm1051, %v1050
    %s1056 = scalar_lea.vmem %s1, 178
    %1057 = vst.msk [vmem:[%s1056] sm:$0x4] %vm1051, %v1050
    %s1058 = scalar_lea.vmem %s1, 433
    %1059 = vst.msk [vmem:[%s1058] sm:$0x8] %vm1051, %v1050
    %s1060 = scalar_lea.vmem %s1, 208
    %1061 = vst.msk [vmem:[%s1060] sm:$0x10] %vm1051, %v1050
    %s1062 = scalar_lea.vmem %s1, 463
    %1063 = vst.msk [vmem:[%s1062] sm:$0x20] %vm1051, %v1050
    %s1064 = scalar_lea.vmem %s1, 238
    %1065 = vst.msk [vmem:[%s1064] sm:$0x40] %vm1051, %v1050
    %s1066 = scalar_lea.vmem %s1, 493
    %1067 = vst.msk [vmem:[%s1066] sm:$0x80] %vm1051, %v1050
    %v1068 = vld.sshfl [vmem:[#allocation0] sm:$0xff pattern:$0x99999810]
    %s1069 = scalar_lea.vmem [#allocation0], 16
    %v1070 = vld.sshfl [vmem:[%s1069] sm:$0xff pattern:$0x98100000]
    %vm1071 = vcmask 1047556
    %v1072 = vsel %vm1071, %v1070, %v1068
    %1073 = vrot.lane.b32.xlu0 %v1072, 44
    %v1074 = vpop.permute.xlu0 %1073
    %vm1075 = vcmask 31744
    %s1076 = scalar_lea.vmem %s1, 21
    %1077 = vst.msk [vmem:[%s1076] sm:$0x1] %vm1075, %v1074
    %s1078 = scalar_lea.vmem %s1, 276
    %1079 = vst.msk [vmem:[%s1078] sm:$0x2] %vm1075, %v1074
    %s1080 = scalar_lea.vmem %s1, 51
    %1081 = vst.msk [vmem:[%s1080] sm:$0x4] %vm1075, %v1074
    %s1082 = scalar_lea.vmem %s1, 306
    %1083 = vst.msk [vmem:[%s1082] sm:$0x8] %vm1075, %v1074
    %s1084 = scalar_lea.vmem %s1, 81
    %1085 = vst.msk [vmem:[%s1084] sm:$0x10] %vm1075, %v1074
    %s1086 = scalar_lea.vmem %s1, 336
    %1087 = vst.msk [vmem:[%s1086] sm:$0x20] %vm1075, %v1074
    %s1088 = scalar_lea.vmem %s1, 111
    %1089 = vst.msk [vmem:[%s1088] sm:$0x40] %vm1075, %v1074
    %s1090 = scalar_lea.vmem %s1, 366
    %1091 = vst.msk [vmem:[%s1090] sm:$0x80] %vm1075, %v1074
    %s1092 = scalar_lea.vmem [#allocation0], 32
    %v1093 = vld.sshfl [vmem:[%s1092] sm:$0xff pattern:$0x99999810]
    %s1094 = scalar_lea.vmem [#allocation0], 48
    %v1095 = vld.sshfl [vmem:[%s1094] sm:$0xff pattern:$0x98100000]
    %vm1096 = vcmask 1047556
    %v1097 = vsel %vm1096, %v1095, %v1093
    %1098 = vrot.lane.b32.xlu0 %v1097, 44
    %v1099 = vpop.permute.xlu0 %1098
    %vm1100 = vcmask 31744
    %s1101 = scalar_lea.vmem %s1, 149
    %1102 = vst.msk [vmem:[%s1101] sm:$0x1] %vm1100, %v1099
    %s1103 = scalar_lea.vmem %s1, 404
    %1104 = vst.msk [vmem:[%s1103] sm:$0x2] %vm1100, %v1099
    %s1105 = scalar_lea.vmem %s1, 179
    %1106 = vst.msk [vmem:[%s1105] sm:$0x4] %vm1100, %v1099
    %s1107 = scalar_lea.vmem %s1, 434
    %1108 = vst.msk [vmem:[%s1107] sm:$0x8] %vm1100, %v1099
    %s1109 = scalar_lea.vmem %s1, 209
    %1110 = vst.msk [vmem:[%s1109] sm:$0x10] %vm1100, %v1099
    %s1111 = scalar_lea.vmem %s1, 464
    %1112 = vst.msk [vmem:[%s1111] sm:$0x20] %vm1100, %v1099
    %s1113 = scalar_lea.vmem %s1, 239
    %1114 = vst.msk [vmem:[%s1113] sm:$0x40] %vm1100, %v1099
    %s1115 = scalar_lea.vmem %s1, 494
    %1116 = vst.msk [vmem:[%s1115] sm:$0x80] %vm1100, %v1099
    %v1117 = vld.sshfl [vmem:[#allocation0] sm:$0xff pattern:$0x99999810]
    %s1118 = scalar_lea.vmem [#allocation0], 16
    %v1119 = vld.sshfl [vmem:[%s1118] sm:$0xff pattern:$0x98100000]
    %vm1120 = vcmask 1047556
    %v1121 = vsel %vm1120, %v1119, %v1117
    %1122 = vrot.lane.b32.xlu0 %v1121, 40
    %v1123 = vpop.permute.xlu0 %1122
    %vm1124 = vcmask 31744
    %s1125 = scalar_lea.vmem %s1, 22
    %1126 = vst.msk [vmem:[%s1125] sm:$0x1] %vm1124, %v1123
    %s1127 = scalar_lea.vmem %s1, 277
    %1128 = vst.msk [vmem:[%s1127] sm:$0x2] %vm1124, %v1123
    %s1129 = scalar_lea.vmem %s1, 52
    %1130 = vst.msk [vmem:[%s1129] sm:$0x4] %vm1124, %v1123
    %s1131 = scalar_lea.vmem %s1, 307
    %1132 = vst.msk [vmem:[%s1131] sm:$0x8] %vm1124, %v1123
    %s1133 = scalar_lea.vmem %s1, 82
    %1134 = vst.msk [vmem:[%s1133] sm:$0x10] %vm1124, %v1123
    %s1135 = scalar_lea.vmem %s1, 337
    %1136 = vst.msk [vmem:[%s1135] sm:$0x20] %vm1124, %v1123
    %s1137 = scalar_lea.vmem %s1, 112
    %1138 = vst.msk [vmem:[%s1137] sm:$0x40] %vm1124, %v1123
    %s1139 = scalar_lea.vmem %s1, 367
    %1140 = vst.msk [vmem:[%s1139] sm:$0x80] %vm1124, %v1123
    %s1141 = scalar_lea.vmem [#allocation0], 32
    %v1142 = vld.sshfl [vmem:[%s1141] sm:$0xff pattern:$0x99999810]
    %s1143 = scalar_lea.vmem [#allocation0], 48
    %v1144 = vld.sshfl [vmem:[%s1143] sm:$0xff pattern:$0x98100000]
    %vm1145 = vcmask 1047556
    %v1146 = vsel %vm1145, %v1144, %v1142
    %1147 = vrot.lane.b32.xlu0 %v1146, 40
    %v1148 = vpop.permute.xlu0 %1147
    %vm1149 = vcmask 31744
    %s1150 = scalar_lea.vmem %s1, 150
    %1151 = vst.msk [vmem:[%s1150] sm:$0x1] %vm1149, %v1148
    %s1152 = scalar_lea.vmem %s1, 405
    %1153 = vst.msk [vmem:[%s1152] sm:$0x2] %vm1149, %v1148
    %s1154 = scalar_lea.vmem %s1, 180
    %1155 = vst.msk [vmem:[%s1154] sm:$0x4] %vm1149, %v1148
    %s1156 = scalar_lea.vmem %s1, 435
    %1157 = vst.msk [vmem:[%s1156] sm:$0x8] %vm1149, %v1148
    %s1158 = scalar_lea.vmem %s1, 210
    %1159 = vst.msk [vmem:[%s1158] sm:$0x10] %vm1149, %v1148
    %s1160 = scalar_lea.vmem %s1, 465
    %1161 = vst.msk [vmem:[%s1160] sm:$0x20] %vm1149, %v1148
    %s1162 = scalar_lea.vmem %s1, 240
    %1163 = vst.msk [vmem:[%s1162] sm:$0x40] %vm1149, %v1148
    %s1164 = scalar_lea.vmem %s1, 495
    %1165 = vst.msk [vmem:[%s1164] sm:$0x80] %vm1149, %v1148
    %v1166 = vld.sshfl [vmem:[#allocation0] sm:$0xff pattern:$0x99999810]
    %s1167 = scalar_lea.vmem [#allocation0], 16
    %v1168 = vld.sshfl [vmem:[%s1167] sm:$0xff pattern:$0x98100000]
    %vm1169 = vcmask 1047556
    %v1170 = vsel %vm1169, %v1168, %v1166
    %1171 = vrot.lane.b32.xlu0 %v1170, 36
    %v1172 = vpop.permute.xlu0 %1171
    %vm1173 = vcmask 31744
    %s1174 = scalar_lea.vmem %s1, 23
    %1175 = vst.msk [vmem:[%s1174] sm:$0x1] %vm1173, %v1172
    %s1176 = scalar_lea.vmem %s1, 278
    %1177 = vst.msk [vmem:[%s1176] sm:$0x2] %vm1173, %v1172
    %s1178 = scalar_lea.vmem %s1, 53
    %1179 = vst.msk [vmem:[%s1178] sm:$0x4] %vm1173, %v1172
    %s1180 = scalar_lea.vmem %s1, 308
    %1181 = vst.msk [vmem:[%s1180] sm:$0x8] %vm1173, %v1172
    %s1182 = scalar_lea.vmem %s1, 83
    %1183 = vst.msk [vmem:[%s1182] sm:$0x10] %vm1173, %v1172
    %s1184 = scalar_lea.vmem %s1, 338
    %1185 = vst.msk [vmem:[%s1184] sm:$0x20] %vm1173, %v1172
    %s1186 = scalar_lea.vmem %s1, 113
    %1187 = vst.msk [vmem:[%s1186] sm:$0x40] %vm1173, %v1172
    %s1188 = scalar_lea.vmem %s1, 368
    %1189 = vst.msk [vmem:[%s1188] sm:$0x80] %vm1173, %v1172
    %s1190 = scalar_lea.vmem [#allocation0], 32
    %v1191 = vld.sshfl [vmem:[%s1190] sm:$0xff pattern:$0x99999810]
    %s1192 = scalar_lea.vmem [#allocation0], 48
    %v1193 = vld.sshfl [vmem:[%s1192] sm:$0xff pattern:$0x98100000]
    %vm1194 = vcmask 1047556
    %v1195 = vsel %vm1194, %v1193, %v1191
    %1196 = vrot.lane.b32.xlu0 %v1195, 36
    %v1197 = vpop.permute.xlu0 %1196
    %vm1198 = vcmask 31744
    %s1199 = scalar_lea.vmem %s1, 151
    %1200 = vst.msk [vmem:[%s1199] sm:$0x1] %vm1198, %v1197
    %s1201 = scalar_lea.vmem %s1, 406
    %1202 = vst.msk [vmem:[%s1201] sm:$0x2] %vm1198, %v1197
    %s1203 = scalar_lea.vmem %s1, 181
    %1204 = vst.msk [vmem:[%s1203] sm:$0x4] %vm1198, %v1197
    %s1205 = scalar_lea.vmem %s1, 436
    %1206 = vst.msk [vmem:[%s1205] sm:$0x8] %vm1198, %v1197
    %s1207 = scalar_lea.vmem %s1, 211
    %1208 = vst.msk [vmem:[%s1207] sm:$0x10] %vm1198, %v1197
    %s1209 = scalar_lea.vmem %s1, 466
    %1210 = vst.msk [vmem:[%s1209] sm:$0x20] %vm1198, %v1197
    %s1211 = scalar_lea.vmem %s1, 241
    %1212 = vst.msk [vmem:[%s1211] sm:$0x40] %vm1198, %v1197
    %s1213 = scalar_lea.vmem %s1, 496
    %1214 = vst.msk [vmem:[%s1213] sm:$0x80] %vm1198, %v1197
    %v1215 = vld.sshfl [vmem:[#allocation0] sm:$0xff pattern:$0x99999810]
    %s1216 = scalar_lea.vmem [#allocation0], 16
    %v1217 = vld.sshfl [vmem:[%s1216] sm:$0xff pattern:$0x98100000]
    %vm1218 = vcmask 1047556
    %v1219 = vsel %vm1218, %v1217, %v1215
    %1220 = vrot.lane.b32.xlu0 %v1219, 32
    %v1221 = vpop.permute.xlu0 %1220
    %vm1222 = vcmask 31744
    %s1223 = scalar_lea.vmem %s1, 24
    %1224 = vst.msk [vmem:[%s1223] sm:$0x1] %vm1222, %v1221
    %s1225 = scalar_lea.vmem %s1, 279
    %1226 = vst.msk [vmem:[%s1225] sm:$0x2] %vm1222, %v1221
    %s1227 = scalar_lea.vmem %s1, 54
    %1228 = vst.msk [vmem:[%s1227] sm:$0x4] %vm1222, %v1221
    %s1229 = scalar_lea.vmem %s1, 309
    %1230 = vst.msk [vmem:[%s1229] sm:$0x8] %vm1222, %v1221
    %s1231 = scalar_lea.vmem %s1, 84
    %1232 = vst.msk [vmem:[%s1231] sm:$0x10] %vm1222, %v1221
    %s1233 = scalar_lea.vmem %s1, 339
    %1234 = vst.msk [vmem:[%s1233] sm:$0x20] %vm1222, %v1221
    %s1235 = scalar_lea.vmem %s1, 114
    %1236 = vst.msk [vmem:[%s1235] sm:$0x40] %vm1222, %v1221
    %s1237 = scalar_lea.vmem %s1, 369
    %1238 = vst.msk [vmem:[%s1237] sm:$0x80] %vm1222, %v1221
    %s1239 = scalar_lea.vmem [#allocation0], 32
    %v1240 = vld.sshfl [vmem:[%s1239] sm:$0xff pattern:$0x99999810]
    %s1241 = scalar_lea.vmem [#allocation0], 48
    %v1242 = vld.sshfl [vmem:[%s1241] sm:$0xff pattern:$0x98100000]
    %vm1243 = vcmask 1047556
    %v1244 = vsel %vm1243, %v1242, %v1240
    %1245 = vrot.lane.b32.xlu0 %v1244, 32
    %v1246 = vpop.permute.xlu0 %1245
    %vm1247 = vcmask 31744
    %s1248 = scalar_lea.vmem %s1, 152
    %1249 = vst.msk [vmem:[%s1248] sm:$0x1] %vm1247, %v1246
    %s1250 = scalar_lea.vmem %s1, 407
    %1251 = vst.msk [vmem:[%s1250] sm:$0x2] %vm1247, %v1246
    %s1252 = scalar_lea.vmem %s1, 182
    %1253 = vst.msk [vmem:[%s1252] sm:$0x4] %vm1247, %v1246
    %s1254 = scalar_lea.vmem %s1, 437
    %1255 = vst.msk [vmem:[%s1254] sm:$0x8] %vm1247, %v1246
    %s1256 = scalar_lea.vmem %s1, 212
    %1257 = vst.msk [vmem:[%s1256] sm:$0x10] %vm1247, %v1246
    %s1258 = scalar_lea.vmem %s1, 467
    %1259 = vst.msk [vmem:[%s1258] sm:$0x20] %vm1247, %v1246
    %s1260 = scalar_lea.vmem %s1, 242
    %1261 = vst.msk [vmem:[%s1260] sm:$0x40] %vm1247, %v1246
    %s1262 = scalar_lea.vmem %s1, 497
    %1263 = vst.msk [vmem:[%s1262] sm:$0x80] %vm1247, %v1246
    %v1264 = vld.sshfl [vmem:[#allocation0] sm:$0xff pattern:$0x99999810]
    %s1265 = scalar_lea.vmem [#allocation0], 16
    %v1266 = vld.sshfl [vmem:[%s1265] sm:$0xff pattern:$0x98100000]
    %vm1267 = vcmask 1047556
    %v1268 = vsel %vm1267, %v1266, %v1264
    %1269 = vrot.lane.b32.xlu0 %v1268, 28
    %v1270 = vpop.permute.xlu0 %1269
    %vm1271 = vcmask 31744
    %s1272 = scalar_lea.vmem %s1, 25
    %1273 = vst.msk [vmem:[%s1272] sm:$0x1] %vm1271, %v1270
    %s1274 = scalar_lea.vmem %s1, 280
    %1275 = vst.msk [vmem:[%s1274] sm:$0x2] %vm1271, %v1270
    %s1276 = scalar_lea.vmem %s1, 55
    %1277 = vst.msk [vmem:[%s1276] sm:$0x4] %vm1271, %v1270
    %s1278 = scalar_lea.vmem %s1, 310
    %1279 = vst.msk [vmem:[%s1278] sm:$0x8] %vm1271, %v1270
    %s1280 = scalar_lea.vmem %s1, 85
    %1281 = vst.msk [vmem:[%s1280] sm:$0x10] %vm1271, %v1270
    %s1282 = scalar_lea.vmem %s1, 340
    %1283 = vst.msk [vmem:[%s1282] sm:$0x20] %vm1271, %v1270
    %s1284 = scalar_lea.vmem %s1, 115
    %1285 = vst.msk [vmem:[%s1284] sm:$0x40] %vm1271, %v1270
    %s1286 = scalar_lea.vmem %s1, 370
    %1287 = vst.msk [vmem:[%s1286] sm:$0x80] %vm1271, %v1270
    %s1288 = scalar_lea.vmem [#allocation0], 32
    %v1289 = vld.sshfl [vmem:[%s1288] sm:$0xff pattern:$0x99999810]
    %s1290 = scalar_lea.vmem [#allocation0], 48
    %v1291 = vld.sshfl [vmem:[%s1290] sm:$0xff pattern:$0x98100000]
    %vm1292 = vcmask 1047556
    %v1293 = vsel %vm1292, %v1291, %v1289
    %1294 = vrot.lane.b32.xlu0 %v1293, 28
    %v1295 = vpop.permute.xlu0 %1294
    %vm1296 = vcmask 31744
    %s1297 = scalar_lea.vmem %s1, 153
    %1298 = vst.msk [vmem:[%s1297] sm:$0x1] %vm1296, %v1295
    %s1299 = scalar_lea.vmem %s1, 408
    %1300 = vst.msk [vmem:[%s1299] sm:$0x2] %vm1296, %v1295
    %s1301 = scalar_lea.vmem %s1, 183
    %1302 = vst.msk [vmem:[%s1301] sm:$0x4] %vm1296, %v1295
    %s1303 = scalar_lea.vmem %s1, 438
    %1304 = vst.msk [vmem:[%s1303] sm:$0x8] %vm1296, %v1295
    %s1305 = scalar_lea.vmem %s1, 213
    %1306 = vst.msk [vmem:[%s1305] sm:$0x10] %vm1296, %v1295
    %s1307 = scalar_lea.vmem %s1, 468
    %1308 = vst.msk [vmem:[%s1307] sm:$0x20] %vm1296, %v1295
    %s1309 = scalar_lea.vmem %s1, 243
    %1310 = vst.msk [vmem:[%s1309] sm:$0x40] %vm1296, %v1295
    %s1311 = scalar_lea.vmem %s1, 498
    %1312 = vst.msk [vmem:[%s1311] sm:$0x80] %vm1296, %v1295
    %v1313 = vld.sshfl [vmem:[#allocation0] sm:$0xff pattern:$0x99999810]
    %s1314 = scalar_lea.vmem [#allocation0], 16
    %v1315 = vld.sshfl [vmem:[%s1314] sm:$0xff pattern:$0x98100000]
    %vm1316 = vcmask 1047556
    %v1317 = vsel %vm1316, %v1315, %v1313
    %1318 = vrot.lane.b32.xlu0 %v1317, 24
    %v1319 = vpop.permute.xlu0 %1318
    %vm1320 = vcmask 31744
    %s1321 = scalar_lea.vmem %s1, 26
    %1322 = vst.msk [vmem:[%s1321] sm:$0x1] %vm1320, %v1319
    %s1323 = scalar_lea.vmem %s1, 281
    %1324 = vst.msk [vmem:[%s1323] sm:$0x2] %vm1320, %v1319
    %s1325 = scalar_lea.vmem %s1, 56
    %1326 = vst.msk [vmem:[%s1325] sm:$0x4] %vm1320, %v1319
    %s1327 = scalar_lea.vmem %s1, 311
    %1328 = vst.msk [vmem:[%s1327] sm:$0x8] %vm1320, %v1319
    %s1329 = scalar_lea.vmem %s1, 86
    %1330 = vst.msk [vmem:[%s1329] sm:$0x10] %vm1320, %v1319
    %s1331 = scalar_lea.vmem %s1, 341
    %1332 = vst.msk [vmem:[%s1331] sm:$0x20] %vm1320, %v1319
    %s1333 = scalar_lea.vmem %s1, 116
    %1334 = vst.msk [vmem:[%s1333] sm:$0x40] %vm1320, %v1319
    %s1335 = scalar_lea.vmem %s1, 371
    %1336 = vst.msk [vmem:[%s1335] sm:$0x80] %vm1320, %v1319
    %s1337 = scalar_lea.vmem [#allocation0], 32
    %v1338 = vld.sshfl [vmem:[%s1337] sm:$0xff pattern:$0x99999810]
    %s1339 = scalar_lea.vmem [#allocation0], 48
    %v1340 = vld.sshfl [vmem:[%s1339] sm:$0xff pattern:$0x98100000]
    %vm1341 = vcmask 1047556
    %v1342 = vsel %vm1341, %v1340, %v1338
    %1343 = vrot.lane.b32.xlu0 %v1342, 24
    %v1344 = vpop.permute.xlu0 %1343
    %vm1345 = vcmask 31744
    %s1346 = scalar_lea.vmem %s1, 154
    %1347 = vst.msk [vmem:[%s1346] sm:$0x1] %vm1345, %v1344
    %s1348 = scalar_lea.vmem %s1, 409
    %1349 = vst.msk [vmem:[%s1348] sm:$0x2] %vm1345, %v1344
    %s1350 = scalar_lea.vmem %s1, 184
    %1351 = vst.msk [vmem:[%s1350] sm:$0x4] %vm1345, %v1344
    %s1352 = scalar_lea.vmem %s1, 439
    %1353 = vst.msk [vmem:[%s1352] sm:$0x8] %vm1345, %v1344
    %s1354 = scalar_lea.vmem %s1, 214
    %1355 = vst.msk [vmem:[%s1354] sm:$0x10] %vm1345, %v1344
    %s1356 = scalar_lea.vmem %s1, 469
    %1357 = vst.msk [vmem:[%s1356] sm:$0x20] %vm1345, %v1344
    %s1358 = scalar_lea.vmem %s1, 244
    %1359 = vst.msk [vmem:[%s1358] sm:$0x40] %vm1345, %v1344
    %s1360 = scalar_lea.vmem %s1, 499
    %1361 = vst.msk [vmem:[%s1360] sm:$0x80] %vm1345, %v1344
    %v1362 = vld.sshfl [vmem:[#allocation0] sm:$0xff pattern:$0x99999810]
    %s1363 = scalar_lea.vmem [#allocation0], 16
    %v1364 = vld.sshfl [vmem:[%s1363] sm:$0xff pattern:$0x98100000]
    %vm1365 = vcmask 1047556
    %v1366 = vsel %vm1365, %v1364, %v1362
    %1367 = vrot.lane.b32.xlu0 %v1366, 20
    %v1368 = vpop.permute.xlu0 %1367
    %vm1369 = vcmask 31744
    %s1370 = scalar_lea.vmem %s1, 27
    %1371 = vst.msk [vmem:[%s1370] sm:$0x1] %vm1369, %v1368
    %s1372 = scalar_lea.vmem %s1, 282
    %1373 = vst.msk [vmem:[%s1372] sm:$0x2] %vm1369, %v1368
    %s1374 = scalar_lea.vmem %s1, 57
    %1375 = vst.msk [vmem:[%s1374] sm:$0x4] %vm1369, %v1368
    %s1376 = scalar_lea.vmem %s1, 312
    %1377 = vst.msk [vmem:[%s1376] sm:$0x8] %vm1369, %v1368
    %s1378 = scalar_lea.vmem %s1, 87
    %1379 = vst.msk [vmem:[%s1378] sm:$0x10] %vm1369, %v1368
    %s1380 = scalar_lea.vmem %s1, 342
    %1381 = vst.msk [vmem:[%s1380] sm:$0x20] %vm1369, %v1368
    %s1382 = scalar_lea.vmem %s1, 117
    %1383 = vst.msk [vmem:[%s1382] sm:$0x40] %vm1369, %v1368
    %s1384 = scalar_lea.vmem %s1, 372
    %1385 = vst.msk [vmem:[%s1384] sm:$0x80] %vm1369, %v1368
    %s1386 = scalar_lea.vmem [#allocation0], 32
    %v1387 = vld.sshfl [vmem:[%s1386] sm:$0xff pattern:$0x99999810]
    %s1388 = scalar_lea.vmem [#allocation0], 48
    %v1389 = vld.sshfl [vmem:[%s1388] sm:$0xff pattern:$0x98100000]
    %vm1390 = vcmask 1047556
    %v1391 = vsel %vm1390, %v1389, %v1387
    %1392 = vrot.lane.b32.xlu0 %v1391, 20
    %v1393 = vpop.permute.xlu0 %1392
    %vm1394 = vcmask 31744
    %s1395 = scalar_lea.vmem %s1, 155
    %1396 = vst.msk [vmem:[%s1395] sm:$0x1] %vm1394, %v1393
    %s1397 = scalar_lea.vmem %s1, 410
    %1398 = vst.msk [vmem:[%s1397] sm:$0x2] %vm1394, %v1393
    %s1399 = scalar_lea.vmem %s1, 185
    %1400 = vst.msk [vmem:[%s1399] sm:$0x4] %vm1394, %v1393
    %s1401 = scalar_lea.vmem %s1, 440
    %1402 = vst.msk [vmem:[%s1401] sm:$0x8] %vm1394, %v1393
    %s1403 = scalar_lea.vmem %s1, 215
    %1404 = vst.msk [vmem:[%s1403] sm:$0x10] %vm1394, %v1393
    %s1405 = scalar_lea.vmem %s1, 470
    %1406 = vst.msk [vmem:[%s1405] sm:$0x20] %vm1394, %v1393
    %s1407 = scalar_lea.vmem %s1, 245
    %1408 = vst.msk [vmem:[%s1407] sm:$0x40] %vm1394, %v1393
    %s1409 = scalar_lea.vmem %s1, 500
    %1410 = vst.msk [vmem:[%s1409] sm:$0x80] %vm1394, %v1393
    %v1411 = vld.sshfl [vmem:[#allocation0] sm:$0xff pattern:$0x99999810]
    %s1412 = scalar_lea.vmem [#allocation0], 16
    %v1413 = vld.sshfl [vmem:[%s1412] sm:$0xff pattern:$0x98100000]
    %vm1414 = vcmask 1047556
    %v1415 = vsel %vm1414, %v1413, %v1411
    %1416 = vrot.lane.b32.xlu0 %v1415, 16
    %v1417 = vpop.permute.xlu0 %1416
    %vm1418 = vcmask 31744
    %s1419 = scalar_lea.vmem %s1, 28
    %1420 = vst.msk [vmem:[%s1419] sm:$0x1] %vm1418, %v1417
    %s1421 = scalar_lea.vmem %s1, 283
    %1422 = vst.msk [vmem:[%s1421] sm:$0x2] %vm1418, %v1417
    %s1423 = scalar_lea.vmem %s1, 58
    %1424 = vst.msk [vmem:[%s1423] sm:$0x4] %vm1418, %v1417
    %s1425 = scalar_lea.vmem %s1, 313
    %1426 = vst.msk [vmem:[%s1425] sm:$0x8] %vm1418, %v1417
    %s1427 = scalar_lea.vmem %s1, 88
    %1428 = vst.msk [vmem:[%s1427] sm:$0x10] %vm1418, %v1417
    %s1429 = scalar_lea.vmem %s1, 343
    %1430 = vst.msk [vmem:[%s1429] sm:$0x20] %vm1418, %v1417
    %s1431 = scalar_lea.vmem %s1, 118
    %1432 = vst.msk [vmem:[%s1431] sm:$0x40] %vm1418, %v1417
    %s1433 = scalar_lea.vmem %s1, 373
    %1434 = vst.msk [vmem:[%s1433] sm:$0x80] %vm1418, %v1417
    %s1435 = scalar_lea.vmem [#allocation0], 32
    %v1436 = vld.sshfl [vmem:[%s1435] sm:$0xff pattern:$0x99999810]
    %s1437 = scalar_lea.vmem [#allocation0], 48
    %v1438 = vld.sshfl [vmem:[%s1437] sm:$0xff pattern:$0x98100000]
    %vm1439 = vcmask 1047556
    %v1440 = vsel %vm1439, %v1438, %v1436
    %1441 = vrot.lane.b32.xlu0 %v1440, 16
    %v1442 = vpop.permute.xlu0 %1441
    %vm1443 = vcmask 31744
    %s1444 = scalar_lea.vmem %s1, 156
    %1445 = vst.msk [vmem:[%s1444] sm:$0x1] %vm1443, %v1442
    %s1446 = scalar_lea.vmem %s1, 411
    %1447 = vst.msk [vmem:[%s1446] sm:$0x2] %vm1443, %v1442
    %s1448 = scalar_lea.vmem %s1, 186
    %1449 = vst.msk [vmem:[%s1448] sm:$0x4] %vm1443, %v1442
    %s1450 = scalar_lea.vmem %s1, 441
    %1451 = vst.msk [vmem:[%s1450] sm:$0x8] %vm1443, %v1442
    %s1452 = scalar_lea.vmem %s1, 216
    %1453 = vst.msk [vmem:[%s1452] sm:$0x10] %vm1443, %v1442
    %s1454 = scalar_lea.vmem %s1, 471
    %1455 = vst.msk [vmem:[%s1454] sm:$0x20] %vm1443, %v1442
    %s1456 = scalar_lea.vmem %s1, 246
    %1457 = vst.msk [vmem:[%s1456] sm:$0x40] %vm1443, %v1442
    %s1458 = scalar_lea.vmem %s1, 501
    %1459 = vst.msk [vmem:[%s1458] sm:$0x80] %vm1443, %v1442
    %v1460 = vld.sshfl [vmem:[#allocation0] sm:$0xff pattern:$0x99999810]
    %s1461 = scalar_lea.vmem [#allocation0], 16
    %v1462 = vld.sshfl [vmem:[%s1461] sm:$0xff pattern:$0x98100000]
    %vm1463 = vcmask 1047556
    %v1464 = vsel %vm1463, %v1462, %v1460
    %1465 = vrot.lane.b32.xlu0 %v1464, 12
    %v1466 = vpop.permute.xlu0 %1465
    %vm1467 = vcmask 31744
    %s1468 = scalar_lea.vmem %s1, 29
    %1469 = vst.msk [vmem:[%s1468] sm:$0x1] %vm1467, %v1466
    %s1470 = scalar_lea.vmem %s1, 284
    %1471 = vst.msk [vmem:[%s1470] sm:$0x2] %vm1467, %v1466
    %s1472 = scalar_lea.vmem %s1, 59
    %1473 = vst.msk [vmem:[%s1472] sm:$0x4] %vm1467, %v1466
    %s1474 = scalar_lea.vmem %s1, 314
    %1475 = vst.msk [vmem:[%s1474] sm:$0x8] %vm1467, %v1466
    %s1476 = scalar_lea.vmem %s1, 89
    %1477 = vst.msk [vmem:[%s1476] sm:$0x10] %vm1467, %v1466
    %s1478 = scalar_lea.vmem %s1, 344
    %1479 = vst.msk [vmem:[%s1478] sm:$0x20] %vm1467, %v1466
    %s1480 = scalar_lea.vmem %s1, 119
    %1481 = vst.msk [vmem:[%s1480] sm:$0x40] %vm1467, %v1466
    %s1482 = scalar_lea.vmem %s1, 374
    %1483 = vst.msk [vmem:[%s1482] sm:$0x80] %vm1467, %v1466
    %s1484 = scalar_lea.vmem [#allocation0], 32
    %v1485 = vld.sshfl [vmem:[%s1484] sm:$0xff pattern:$0x99999810]
    %s1486 = scalar_lea.vmem [#allocation0], 48
    %v1487 = vld.sshfl [vmem:[%s1486] sm:$0xff pattern:$0x98100000]
    %vm1488 = vcmask 1047556
    %v1489 = vsel %vm1488, %v1487, %v1485
    %1490 = vrot.lane.b32.xlu0 %v1489, 12
    %v1491 = vpop.permute.xlu0 %1490
    %vm1492 = vcmask 31744
    %s1493 = scalar_lea.vmem %s1, 157
    %1494 = vst.msk [vmem:[%s1493] sm:$0x1] %vm1492, %v1491
    %s1495 = scalar_lea.vmem %s1, 412
    %1496 = vst.msk [vmem:[%s1495] sm:$0x2] %vm1492, %v1491
    %s1497 = scalar_lea.vmem %s1, 187
    %1498 = vst.msk [vmem:[%s1497] sm:$0x4] %vm1492, %v1491
    %s1499 = scalar_lea.vmem %s1, 442
    %1500 = vst.msk [vmem:[%s1499] sm:$0x8] %vm1492, %v1491
    %s1501 = scalar_lea.vmem %s1, 217
    %1502 = vst.msk [vmem:[%s1501] sm:$0x10] %vm1492, %v1491
    %s1503 = scalar_lea.vmem %s1, 472
    %1504 = vst.msk [vmem:[%s1503] sm:$0x20] %vm1492, %v1491
    %s1505 = scalar_lea.vmem %s1, 247
    %1506 = vst.msk [vmem:[%s1505] sm:$0x40] %vm1492, %v1491
    %s1507 = scalar_lea.vmem %s1, 502
    %1508 = vst.msk [vmem:[%s1507] sm:$0x80] %vm1492, %v1491
    %v1509 = vld.sshfl [vmem:[#allocation0] sm:$0xff pattern:$0x99999810]
    %s1510 = scalar_lea.vmem [#allocation0], 16
    %v1511 = vld.sshfl [vmem:[%s1510] sm:$0xff pattern:$0x98100000]
    %vm1512 = vcmask 1047556
    %v1513 = vsel %vm1512, %v1511, %v1509
    %1514 = vrot.lane.b32.xlu0 %v1513, 8
    %v1515 = vpop.permute.xlu0 %1514
    %vm1516 = vcmask 31744
    %s1517 = scalar_lea.vmem %s1, 30
    %1518 = vst.msk [vmem:[%s1517] sm:$0x1] %vm1516, %v1515
    %s1519 = scalar_lea.vmem %s1, 285
    %1520 = vst.msk [vmem:[%s1519] sm:$0x2] %vm1516, %v1515
    %s1521 = scalar_lea.vmem %s1, 60
    %1522 = vst.msk [vmem:[%s1521] sm:$0x4] %vm1516, %v1515
    %s1523 = scalar_lea.vmem %s1, 315
    %1524 = vst.msk [vmem:[%s1523] sm:$0x8] %vm1516, %v1515
    %s1525 = scalar_lea.vmem %s1, 90
    %1526 = vst.msk [vmem:[%s1525] sm:$0x10] %vm1516, %v1515
    %s1527 = scalar_lea.vmem %s1, 345
    %1528 = vst.msk [vmem:[%s1527] sm:$0x20] %vm1516, %v1515
    %s1529 = scalar_lea.vmem %s1, 120
    %1530 = vst.msk [vmem:[%s1529] sm:$0x40] %vm1516, %v1515
    %s1531 = scalar_lea.vmem %s1, 375
    %1532 = vst.msk [vmem:[%s1531] sm:$0x80] %vm1516, %v1515
    %s1533 = scalar_lea.vmem [#allocation0], 32
    %v1534 = vld.sshfl [vmem:[%s1533] sm:$0xff pattern:$0x99999810]
    %s1535 = scalar_lea.vmem [#allocation0], 48
    %v1536 = vld.sshfl [vmem:[%s1535] sm:$0xff pattern:$0x98100000]
    %vm1537 = vcmask 1047556
    %v1538 = vsel %vm1537, %v1536, %v1534
    %1539 = vrot.lane.b32.xlu0 %v1538, 8
    %v1540 = vpop.permute.xlu0 %1539
    %vm1541 = vcmask 31744
    %s1542 = scalar_lea.vmem %s1, 158
    %1543 = vst.msk [vmem:[%s1542] sm:$0x1] %vm1541, %v1540
    %s1544 = scalar_lea.vmem %s1, 413
    %1545 = vst.msk [vmem:[%s1544] sm:$0x2] %vm1541, %v1540
    %s1546 = scalar_lea.vmem %s1, 188
    %1547 = vst.msk [vmem:[%s1546] sm:$0x4] %vm1541, %v1540
    %s1548 = scalar_lea.vmem %s1, 443
    %1549 = vst.msk [vmem:[%s1548] sm:$0x8] %vm1541, %v1540
    %s1550 = scalar_lea.vmem %s1, 218
    %1551 = vst.msk [vmem:[%s1550] sm:$0x10] %vm1541, %v1540
    %s1552 = scalar_lea.vmem %s1, 473
    %1553 = vst.msk [vmem:[%s1552] sm:$0x20] %vm1541, %v1540
    %s1554 = scalar_lea.vmem %s1, 248
    %1555 = vst.msk [vmem:[%s1554] sm:$0x40] %vm1541, %v1540
    %s1556 = scalar_lea.vmem %s1, 503
    %1557 = vst.msk [vmem:[%s1556] sm:$0x80] %vm1541, %v1540
    %v1558 = vld.sshfl [vmem:[#allocation0] sm:$0xff pattern:$0x99999810]
    %s1559 = scalar_lea.vmem [#allocation0], 16
    %v1560 = vld.sshfl [vmem:[%s1559] sm:$0xff pattern:$0x98100000]
    %vm1561 = vcmask 1047556
    %v1562 = vsel %vm1561, %v1560, %v1558
    %1563 = vrot.lane.b32.xlu0 %v1562, 4
    %v1564 = vpop.permute.xlu0 %1563
    %vm1565 = vcmask 31744
    %s1566 = scalar_lea.vmem %s1, 31
    %1567 = vst.msk [vmem:[%s1566] sm:$0x1] %vm1565, %v1564
    %s1568 = scalar_lea.vmem %s1, 286
    %1569 = vst.msk [vmem:[%s1568] sm:$0x2] %vm1565, %v1564
    %s1570 = scalar_lea.vmem %s1, 61
    %1571 = vst.msk [vmem:[%s1570] sm:$0x4] %vm1565, %v1564
    %s1572 = scalar_lea.vmem %s1, 316
    %1573 = vst.msk [vmem:[%s1572] sm:$0x8] %vm1565, %v1564
    %s1574 = scalar_lea.vmem %s1, 91
    %1575 = vst.msk [vmem:[%s1574] sm:$0x10] %vm1565, %v1564
    %s1576 = scalar_lea.vmem %s1, 346
    %1577 = vst.msk [vmem:[%s1576] sm:$0x20] %vm1565, %v1564
    %s1578 = scalar_lea.vmem %s1, 121
    %1579 = vst.msk [vmem:[%s1578] sm:$0x40] %vm1565, %v1564
    %s1580 = scalar_lea.vmem %s1, 376
    %1581 = vst.msk [vmem:[%s1580] sm:$0x80] %vm1565, %v1564
    %s1582 = scalar_lea.vmem [#allocation0], 32
    %v1583 = vld.sshfl [vmem:[%s1582] sm:$0xff pattern:$0x99999810]
    %s1584 = scalar_lea.vmem [#allocation0], 48
    %v1585 = vld.sshfl [vmem:[%s1584] sm:$0xff pattern:$0x98100000]
    %vm1586 = vcmask 1047556
    %v1587 = vsel %vm1586, %v1585, %v1583
    %1588 = vrot.lane.b32.xlu0 %v1587, 4
    %v1589 = vpop.permute.xlu0 %1588
    %vm1590 = vcmask 31744
    %s1591 = scalar_lea.vmem %s1, 159
    %1592 = vst.msk [vmem:[%s1591] sm:$0x1] %vm1590, %v1589
    %s1593 = scalar_lea.vmem %s1, 414
    %1594 = vst.msk [vmem:[%s1593] sm:$0x2] %vm1590, %v1589
    %s1595 = scalar_lea.vmem %s1, 189
    %1596 = vst.msk [vmem:[%s1595] sm:$0x4] %vm1590, %v1589
    %s1597 = scalar_lea.vmem %s1, 444
    %1598 = vst.msk [vmem:[%s1597] sm:$0x8] %vm1590, %v1589
    %s1599 = scalar_lea.vmem %s1, 219
    %1600 = vst.msk [vmem:[%s1599] sm:$0x10] %vm1590, %v1589
    %s1601 = scalar_lea.vmem %s1, 474
    %1602 = vst.msk [vmem:[%s1601] sm:$0x20] %vm1590, %v1589
    %s1603 = scalar_lea.vmem %s1, 249
    %1604 = vst.msk [vmem:[%s1603] sm:$0x40] %vm1590, %v1589
    %s1605 = scalar_lea.vmem %s1, 504
    %1606 = vst.msk [vmem:[%s1605] sm:$0x80] %vm1590, %v1589

// kernel: _lambda_.1
$region0: #{_lambda_.1}
  #allocation0 [shape = 'u32[]', space=smem, size = 0x4, offset = 0x4, fixed_abs, tag = 'smem constant byte address 0x4 - core index']
  #allocation1 [shape = 'u32[72,128]{1,0:T(1,128)}', space=vmem, size = 0x9000, scoped, tag = 'internal scratch']
  %s0 = inlined_call_operand.vmem [shape: bf16[2,1,1024], index: 0, kind: input, shape index: {}]
  %s1 = inlined_call_operand.vmem [shape: f32[2,1,128], index: 1, kind: input, shape index: {}]
  %s2 = inlined_call_operand.hbm [shape: bf16[1024,512], index: 2, kind: input, shape index: {}]
  %s3 = inlined_call_operand.vmem [shape: bf16[512,256], index: 3, kind: input, shape index: {}]
  %s4 = inlined_call_operand.vmem [shape: bf16[256,128], index: 4, kind: input, shape index: {}]
  %s5 = inlined_call_operand.vmem [shape: bf16[128,256], index: 5, kind: input, shape index: {}]
  %s6 = inlined_call_operand.hbm [shape: bf16[256,512], index: 6, kind: input, shape index: {}]
  %s7 = inlined_call_operand.hbm [shape: bf16[512,1024], index: 7, kind: input, shape index: {}]
  %s8 = inlined_call_operand.vmem [shape: f32[1,1024], index: 8, kind: input, shape index: {}]
  %s9 = inlined_call_operand.vmem [shape: f32[2,1,1024], index: 9, kind: output, shape index: {0}]
  %s10 = inlined_call_operand.vmem [shape: f32[2,1,128], index: 10, kind: output, shape index: {1}]
  %11 = xla_tuple %s9, %s10
  %s12 = sld [smem:[#allocation0]]
  $region89: #{_lambda_.1} parent=0
    _
  %s14 = ssub.s32 1, %s12
  %s15 = scalar_select 0, %s14, %s12
  $region1: #{_lambda_.1} parent=0
    #allocation2 [shape = 'u8[1048576]{0}', space=vmem, size = 0x100000, scoped, tag = 'input window, operand 2, single buffered']
    #allocation3 [shape = 's32[2]{0}', space=sflag, size = 0x8, scoped, tag = 'scoped memory for _lambda_.1']
    #allocation4 [shape = 'u8[262144]{0}', space=vmem, size = 0x40000, scoped, tag = 'input window, operand 6, single buffered']
    #allocation5 [shape = 's32[1]{0}', space=sflag, size = 0x4, scoped, tag = 'scoped memory for _lambda_.1']
    #allocation6 [shape = 'u8[1048576]{0}', space=vmem, size = 0x100000, scoped, tag = 'input window, operand 7, single buffered']
    %16 = vsyncpa [#allocation3], 0
    %17 = vsyncpa [#allocation5], 0
    loop: start=0, step=1, limit=4
    $region2: #{_lambda_.1} parent=1 // loop_pre_header
      _
    $region3: #{_lambda_.1} parent=1 // loop_header
      %s19 = sphi 0, %s23
      %p20 = scmp.ge.s32.totalorder %s19, 4
      %s29 = sphi 0, %s31
      %s32 = sphi 0, %s29
      %s33 = sphi 0, %s32
      %s49 = sphi 0, %s33
      %s55 = sphi 0, %s57
      %s58 = sphi 0, %s55
      %s59 = sphi 0, %s58
      %s75 = sphi 0, %s59
      %s79 = sphi 0, %s79
      %s81 = sphi 0, %s79
      %s82 = sphi 0, %s81
      %s96 = sphi 0, %s82
      %s100 = sphi 0, %s100
      %s102 = sphi 0, %s100
      %s103 = sphi 0, %s102
      %s117 = sphi 0, %s103
      %s121 = sphi 0, %s121
      %s123 = sphi 0, %s121
      %s124 = sphi 0, %s123
      %s138 = sphi 0, %s124
      %s142 = sphi 0, %s142
      %s144 = sphi 0, %s142
      %s145 = sphi 0, %s144
      %s159 = sphi 0, %s145
      %s163 = sphi 0, %s163
      %s165 = sphi 0, %s163
      %s166 = sphi 0, %s165
      %s180 = sphi 0, %s166
      %s184 = sphi 0, %s184
      %s186 = sphi 0, %s184
      %s187 = sphi 0, %s186
      %s201 = sphi 0, %s187
      %s205 = sphi 0, %s205
      %s207 = sphi 0, %s205
      %s208 = sphi 0, %s207
      %s222 = sphi 0, %s208
      %s228 = sphi 0, %s230
      %s231 = sphi 0, %s228
      %s232 = sphi 0, %s231
      %s248 = sphi 0, %s232
      %s254 = sphi 0, %s256
      %s257 = sphi 0, %s254
      %s258 = sphi 0, %s257
      %s274 = sphi 0, %s258
    $region4: #{_lambda_.1} parent=1 // loop_header_branch
      %22 = sbr.rel (%p20) target = $region8
    $region5: #{_lambda_.1} parent=1 // loop_body
      %s24 = ssub.s32 %s19, 1
      %s25 = ssub.s32 %s19, 2
      %s26 = sadd.s32 %s19, 1
      %s27 = ssub.s32 %s19, %s26
      %p28 = scmp.eq.s32.totalorder %s27, 0
      %s30 = sadd.s32 %s29, 1
      %s31 = scalar_select %p28, %s29, %s30
      %p34 = pneg %p28
      %p35 = scmp.eq.s32.totalorder %s19, 1
      %p36 = por %p34, %p35
      %p37 = scmp.ne.s32.totalorder %s29, %s32
      %p38 = scmp.eq.s32.totalorder %s19, 0
      %p39 = por %p37, %p38
      %p40 = scmp.ne.s32.totalorder %s29, %s32
      %p41 = scmp.eq.s32.totalorder %s24, 1
      %p42 = por %p40, %p41
      %p43 = scmp.ne.s32.totalorder %s32, %s33
      %p44 = scmp.eq.s32.totalorder %s24, 0
      %p45 = por %p43, %p44
      %p46 = scmp.ne.s32.totalorder %s32, %s33
      %p47 = scmp.eq.s32.totalorder %s25, 1
      %p48 = por %p46, %p47
      %p50 = scmp.ne.s32.totalorder %s33, %s49
      %p51 = scmp.eq.s32.totalorder %s25, 0
      %p52 = por %p50, %p51
      %s53 = ssub.s32 %s19, %s26
      %p54 = scmp.eq.s32.totalorder %s53, 0
      %s56 = sadd.s32 %s55, 1
      %s57 = scalar_select %p54, %s55, %s56
      %p60 = pneg %p54
      %p61 = scmp.eq.s32.totalorder %s19, 1
      %p62 = por %p60, %p61
      %p63 = scmp.ne.s32.totalorder %s55, %s58
      %p64 = scmp.eq.s32.totalorder %s19, 0
      %p65 = por %p63, %p64
      %p66 = scmp.ne.s32.totalorder %s55, %s58
      %p67 = scmp.eq.s32.totalorder %s24, 1
      %p68 = por %p66, %p67
      %p69 = scmp.ne.s32.totalorder %s58, %s59
      %p70 = scmp.eq.s32.totalorder %s24, 0
      %p71 = por %p69, %p70
      %p72 = scmp.ne.s32.totalorder %s58, %s59
      %p73 = scmp.eq.s32.totalorder %s25, 1
      %p74 = por %p72, %p73
      %p76 = scmp.ne.s32.totalorder %s59, %s75
      %p77 = scmp.eq.s32.totalorder %s25, 0
      %p78 = por %p76, %p77
      %s80 = sadd.s32 %s79, 1
      %p83 = scmp.eq.s32.totalorder %s19, 1
      %p84 = scmp.ne.s32.totalorder %s79, %s81
      %p85 = scmp.eq.s32.totalorder %s19, 0
      %p86 = por %p84, %p85
      %p87 = scmp.ne.s32.totalorder %s79, %s81
      %p88 = scmp.eq.s32.totalorder %s24, 1
      %p89 = por %p87, %p88
      %p90 = scmp.ne.s32.totalorder %s81, %s82
      %p91 = scmp.eq.s32.totalorder %s24, 0
      %p92 = por %p90, %p91
      %p93 = scmp.ne.s32.totalorder %s81, %s82
      %p94 = scmp.eq.s32.totalorder %s25, 1
      %p95 = por %p93, %p94
      %p97 = scmp.ne.s32.totalorder %s82, %s96
      %p98 = scmp.eq.s32.totalorder %s25, 0
      %p99 = por %p97, %p98
      %s101 = sadd.s32 %s100, 1
      %p104 = scmp.eq.s32.totalorder %s19, 1
      %p105 = scmp.ne.s32.totalorder %s100, %s102
      %p106 = scmp.eq.s32.totalorder %s19, 0
      %p107 = por %p105, %p106
      %p108 = scmp.ne.s32.totalorder %s100, %s102
      %p109 = scmp.eq.s32.totalorder %s24, 1
      %p110 = por %p108, %p109
      %p111 = scmp.ne.s32.totalorder %s102, %s103
      %p112 = scmp.eq.s32.totalorder %s24, 0
      %p113 = por %p111, %p112
      %p114 = scmp.ne.s32.totalorder %s102, %s103
      %p115 = scmp.eq.s32.totalorder %s25, 1
      %p116 = por %p114, %p115
      %p118 = scmp.ne.s32.totalorder %s103, %s117
      %p119 = scmp.eq.s32.totalorder %s25, 0
      %p120 = por %p118, %p119
      %s122 = sadd.s32 %s121, 1
      %p125 = scmp.eq.s32.totalorder %s19, 1
      %p126 = scmp.ne.s32.totalorder %s121, %s123
      %p127 = scmp.eq.s32.totalorder %s19, 0
      %p128 = por %p126, %p127
      %p129 = scmp.ne.s32.totalorder %s121, %s123
      %p130 = scmp.eq.s32.totalorder %s24, 1
      %p131 = por %p129, %p130
      %p132 = scmp.ne.s32.totalorder %s123, %s124
      %p133 = scmp.eq.s32.totalorder %s24, 0
      %p134 = por %p132, %p133
      %p135 = scmp.ne.s32.totalorder %s123, %s124
      %p136 = scmp.eq.s32.totalorder %s25, 1
      %p137 = por %p135, %p136
      %p139 = scmp.ne.s32.totalorder %s124, %s138
      %p140 = scmp.eq.s32.totalorder %s25, 0
      %p141 = por %p139, %p140
      %s143 = sadd.s32 %s142, 1
      %p146 = scmp.eq.s32.totalorder %s19, 1
      %p147 = scmp.ne.s32.totalorder %s142, %s144
      %p148 = scmp.eq.s32.totalorder %s19, 0
      %p149 = por %p147, %p148
      %p150 = scmp.ne.s32.totalorder %s142, %s144
      %p151 = scmp.eq.s32.totalorder %s24, 1
      %p152 = por %p150, %p151
      %p153 = scmp.ne.s32.totalorder %s144, %s145
      %p154 = scmp.eq.s32.totalorder %s24, 0
      %p155 = por %p153, %p154
      %p156 = scmp.ne.s32.totalorder %s144, %s145
      %p157 = scmp.eq.s32.totalorder %s25, 1
      %p158 = por %p156, %p157
      %p160 = scmp.ne.s32.totalorder %s145, %s159
      %p161 = scmp.eq.s32.totalorder %s25, 0
      %p162 = por %p160, %p161
      %s164 = sadd.s32 %s163, 1
      %p167 = scmp.eq.s32.totalorder %s19, 1
      %p168 = scmp.ne.s32.totalorder %s163, %s165
      %p169 = scmp.eq.s32.totalorder %s19, 0
      %p170 = por %p168, %p169
      %p171 = scmp.ne.s32.totalorder %s163, %s165
      %p172 = scmp.eq.s32.totalorder %s24, 1
      %p173 = por %p171, %p172
      %p174 = scmp.ne.s32.totalorder %s165, %s166
      %p175 = scmp.eq.s32.totalorder %s24, 0
      %p176 = por %p174, %p175
      %p177 = scmp.ne.s32.totalorder %s165, %s166
      %p178 = scmp.eq.s32.totalorder %s25, 1
      %p179 = por %p177, %p178
      %p181 = scmp.ne.s32.totalorder %s166, %s180
      %p182 = scmp.eq.s32.totalorder %s25, 0
      %p183 = por %p181, %p182
      %s185 = sadd.s32 %s184, 1
      %p188 = scmp.eq.s32.totalorder %s19, 1
      %p189 = scmp.ne.s32.totalorder %s184, %s186
      %p190 = scmp.eq.s32.totalorder %s19, 0
      %p191 = por %p189, %p190
      %p192 = scmp.ne.s32.totalorder %s184, %s186
      %p193 = scmp.eq.s32.totalorder %s24, 1
      %p194 = por %p192, %p193
      %p195 = scmp.ne.s32.totalorder %s186, %s187
      %p196 = scmp.eq.s32.totalorder %s24, 0
      %p197 = por %p195, %p196
      %p198 = scmp.ne.s32.totalorder %s186, %s187
      %p199 = scmp.eq.s32.totalorder %s25, 1
      %p200 = por %p198, %p199
      %p202 = scmp.ne.s32.totalorder %s187, %s201
      %p203 = scmp.eq.s32.totalorder %s25, 0
      %p204 = por %p202, %p203
      %s206 = sadd.s32 %s205, 1
      %p209 = scmp.eq.s32.totalorder %s19, 1
      %p210 = scmp.ne.s32.totalorder %s205, %s207
      %p211 = scmp.eq.s32.totalorder %s19, 0
      %p212 = por %p210, %p211
      %p213 = scmp.ne.s32.totalorder %s205, %s207
      %p214 = scmp.eq.s32.totalorder %s24, 1
      %p215 = por %p213, %p214
      %p216 = scmp.ne.s32.totalorder %s207, %s208
      %p217 = scmp.eq.s32.totalorder %s24, 0
      %p218 = por %p216, %p217
      %p219 = scmp.ne.s32.totalorder %s207, %s208
      %p220 = scmp.eq.s32.totalorder %s25, 1
      %p221 = por %p219, %p220
      %p223 = scmp.ne.s32.totalorder %s208, %s222
      %p224 = scmp.eq.s32.totalorder %s25, 0
      %p225 = por %p223, %p224
      %s226 = ssub.s32 %s19, %s26
      %p227 = scmp.eq.s32.totalorder %s226, 0
      %s229 = sadd.s32 %s228, 1
      %s230 = scalar_select %p227, %s228, %s229
      %p233 = pneg %p227
      %p234 = scmp.eq.s32.totalorder %s19, 1
      %p235 = por %p233, %p234
      %p236 = scmp.ne.s32.totalorder %s228, %s231
      %p237 = scmp.eq.s32.totalorder %s19, 0
      %p238 = por %p236, %p237
      %p239 = scmp.ne.s32.totalorder %s228, %s231
      %p240 = scmp.eq.s32.totalorder %s24, 1
      %p241 = por %p239, %p240
      %p242 = scmp.ne.s32.totalorder %s231, %s232
      %p243 = scmp.eq.s32.totalorder %s24, 0
      %p244 = por %p242, %p243
      %p245 = scmp.ne.s32.totalorder %s231, %s232
      %p246 = scmp.eq.s32.totalorder %s25, 1
      %p247 = por %p245, %p246
      %p249 = scmp.ne.s32.totalorder %s232, %s248
      %p250 = scmp.eq.s32.totalorder %s25, 0
      %p251 = por %p249, %p250
      %s252 = ssub.s32 %s19, %s26
      %p253 = scmp.eq.s32.totalorder %s252, 0
      %s255 = sadd.s32 %s254, 1
      %s256 = scalar_select %p253, %s254, %s255
      %p259 = pneg %p253
      %p260 = scmp.eq.s32.totalorder %s19, 1
      %p261 = por %p259, %p260
      %p262 = scmp.ne.s32.totalorder %s254, %s257
      %p263 = scmp.eq.s32.totalorder %s19, 0
      %p264 = por %p262, %p263
      %p265 = scmp.ne.s32.totalorder %s254, %s257
      %p266 = scmp.eq.s32.totalorder %s24, 1
      %p267 = por %p265, %p266
      %p268 = scmp.ne.s32.totalorder %s257, %s258
      %p269 = scmp.eq.s32.totalorder %s24, 0
      %p270 = por %p268, %p269
      %p271 = scmp.ne.s32.totalorder %s257, %s258
      %p272 = scmp.eq.s32.totalorder %s25, 1
      %p273 = por %p271, %p272
      %p275 = scmp.ne.s32.totalorder %s258, %s274
      %p276 = scmp.eq.s32.totalorder %s25, 0
      %p277 = por %p275, %p276
      %p278 = scmp.le.s32.totalorder 1, %s19
      %p279 = scmp.lt.s32.totalorder %s19, 3
      %p280 = pnand %p278, %p279
      %p281 = pneg %p280
      // Predicated region
      $region9: #{_lambda_.1} parent=5 // pred_check
        _
      $region10: #{_lambda_.1} parent=5 // pred_check_branch
        %283 = sbr.rel (%p280) target = $region12
      $region11: #{_lambda_.1} parent=5 // pred_region
        %s284 = ssub.s32 %s19, 1
        // Predicated region
        $region13: #{_lambda_.1} parent=11 // pred_check
          %p285 = pneg %p92
        $region14: #{_lambda_.1} parent=11 // pred_check_branch
          %287 = sbr.rel (%p285) target = $region16
        $region15: #{_lambda_.1} parent=11 // pred_region
          %289 = vsyncadd [#allocation3], 0
          %s290 = sshll.u32 %s2, 4
          %s291 = int_to_ptr.hbm [resolvable:$true] %s290
          %s292 = sshll.u32 [#allocation2], 4
          %s293 = int_to_ptr.vmem [resolvable:$true] %s292
          %298 = dma.hbm_to_vmem [thread:$0]  %s291, 32768, %s293, [#allocation3], 256, 256, 16
        $region16: #{_lambda_.1} parent=11 // pred_fallthru
          _
        // Predicated region
        $region17: #{_lambda_.1} parent=11 // pred_check
          %p299 = pneg %p113
        $region18: #{_lambda_.1} parent=11 // pred_check_branch
          %301 = sbr.rel (%p299) target = $region20
        $region19: #{_lambda_.1} parent=11 // pred_region
          _
        $region20: #{_lambda_.1} parent=11 // pred_fallthru
          _
        // Predicated region
        $region21: #{_lambda_.1} parent=11 // pred_check
          %p302 = pneg %p134
        $region22: #{_lambda_.1} parent=11 // pred_check_branch
          %304 = sbr.rel (%p302) target = $region24
        $region23: #{_lambda_.1} parent=11 // pred_region
          _
        $region24: #{_lambda_.1} parent=11 // pred_fallthru
          _
        // Predicated region
        $region25: #{_lambda_.1} parent=11 // pred_check
          %p305 = pneg %p155
        $region26: #{_lambda_.1} parent=11 // pred_check_branch
          %307 = sbr.rel (%p305) target = $region28
        $region27: #{_lambda_.1} parent=11 // pred_region
          _
        $region28: #{_lambda_.1} parent=11 // pred_fallthru
          _
        // Predicated region
        $region29: #{_lambda_.1} parent=11 // pred_check
          %p308 = pneg %p176
        $region30: #{_lambda_.1} parent=11 // pred_check_branch
          %310 = sbr.rel (%p308) target = $region32
        $region31: #{_lambda_.1} parent=11 // pred_region
          %312 = vsyncadd [#allocation5], 0
          %s313 = sshll.u32 %s6, 4
          %s314 = int_to_ptr.hbm [resolvable:$true] %s313
          %s315 = sshll.u32 [#allocation4], 4
          %s316 = int_to_ptr.vmem [resolvable:$true] %s315
          %321 = dma.hbm_to_vmem [thread:$0]  %s314, 8192, %s316, [#allocation5], 256, 256, 16
        $region32: #{_lambda_.1} parent=11 // pred_fallthru
          _
        // Predicated region
        $region33: #{_lambda_.1} parent=11 // pred_check
          %p322 = pneg %p197
        $region34: #{_lambda_.1} parent=11 // pred_check_branch
          %324 = sbr.rel (%p322) target = $region36
        $region35: #{_lambda_.1} parent=11 // pred_region
          %326 = vsyncadd [#allocation5], 0
          %s327 = sshll.u32 %s7, 4
          %s328 = int_to_ptr.hbm [resolvable:$true] %s327
          %s329 = sshll.u32 [#allocation6], 4
          %s330 = int_to_ptr.vmem [resolvable:$true] %s329
          %335 = dma.hbm_to_vmem [thread:$0]  %s328, 32768, %s330, [#allocation5], 512, 512, 32
        $region36: #{_lambda_.1} parent=11 // pred_fallthru
          _
        // Predicated region
        $region37: #{_lambda_.1} parent=11 // pred_check
          %p336 = pneg %p218
        $region38: #{_lambda_.1} parent=11 // pred_check_branch
          %338 = sbr.rel (%p336) target = $region40
        $region39: #{_lambda_.1} parent=11 // pred_region
          _
        $region40: #{_lambda_.1} parent=11 // pred_fallthru
          _
      $region12: #{_lambda_.1} parent=5 // pred_fallthru
        _
      %p339 = scmp.lt.s32.totalorder %s19, 2
      // Predicated region
      $region41: #{_lambda_.1} parent=5 // pred_check
        %p340 = pneg %p339
      $region42: #{_lambda_.1} parent=5 // pred_check_branch
        %342 = sbr.rel (%p340) target = $region44
      $region43: #{_lambda_.1} parent=5 // pred_region
        // Predicated region
        $region45: #{_lambda_.1} parent=43 // pred_check
          %p343 = pneg %p39
        $region46: #{_lambda_.1} parent=43 // pred_check_branch
          %345 = sbr.rel (%p343) target = $region48
        $region47: #{_lambda_.1} parent=43 // pred_region
          %p346 = scmp.lt.s32.totalorder %s19, 1
          %s347 = scalar_select %p346, %s19, 1
          %s348 = smul.addr %s347, 8
          %s349 = scalar_lea.vmem %s0, %s348
        $region48: #{_lambda_.1} parent=43 // pred_fallthru
          _
        // Predicated region
        $region49: #{_lambda_.1} parent=43 // pred_check
          %p350 = pneg %p65
        $region50: #{_lambda_.1} parent=43 // pred_check_branch
          %352 = sbr.rel (%p350) target = $region52
        $region51: #{_lambda_.1} parent=43 // pred_region
          %p353 = scmp.lt.s32.totalorder %s19, 1
          %s354 = scalar_select %p353, %s19, 1
          %s355 = scalar_lea.vmem %s1, %s354
        $region52: #{_lambda_.1} parent=43 // pred_fallthru
          _
      $region44: #{_lambda_.1} parent=5 // pred_fallthru
        _
      %p356 = scmp.le.s32.totalorder 1, %s19
      %p357 = scmp.lt.s32.totalorder %s19, 3
      %p358 = pnand %p356, %p357
      %p359 = pneg %p358
      // Predicated region
      $region53: #{_lambda_.1} parent=5 // pred_check
        _
      $region54: #{_lambda_.1} parent=5 // pred_check_branch
        %361 = sbr.rel (%p358) target = $region56
      $region55: #{_lambda_.1} parent=5 // pred_region
        %s362 = ssub.s32 %s19, 1
        // Predicated region
        $region57: #{_lambda_.1} parent=55 // pred_check
          %p363 = pneg %p92
        $region58: #{_lambda_.1} parent=55 // pred_check_branch
          %365 = sbr.rel (%p363) target = $region60
        $region59: #{_lambda_.1} parent=55 // pred_region
          %367 = dma.done [#allocation3], 32768
        $region60: #{_lambda_.1} parent=55 // pred_fallthru
          _
        // Predicated region
        $region61: #{_lambda_.1} parent=55 // pred_check
          %p368 = pneg %p176
        $region62: #{_lambda_.1} parent=55 // pred_check_branch
          %370 = sbr.rel (%p368) target = $region64
        $region63: #{_lambda_.1} parent=55 // pred_region
          %372 = dma.done [#allocation5], 8192
        $region64: #{_lambda_.1} parent=55 // pred_fallthru
          _
        // Predicated region
        $region65: #{_lambda_.1} parent=55 // pred_check
          %p373 = pneg %p197
        $region66: #{_lambda_.1} parent=55 // pred_check_branch
          %375 = sbr.rel (%p373) target = $region68
        $region67: #{_lambda_.1} parent=55 // pred_region
          %377 = dma.done [#allocation5], 32768
        $region68: #{_lambda_.1} parent=55 // pred_fallthru
          _
        %p378 = scmp.lt.s32.totalorder %s24, 1
        %s379 = scalar_select %p378, %s24, 1
        %s380 = smul.addr %s379, 8
        %s381 = scalar_lea.vmem %s0, %s380
        %p382 = pneg %p45
        %p383 = pneg %p42
        %p384 = scmp.lt.s32.totalorder %s24, 1
        %s385 = scalar_select %p384, %s24, 1
        %s386 = scalar_lea.vmem %s1, %s385
        %p387 = pneg %p71
        %p388 = pneg %p68
        %p389 = pneg %p92
        %p390 = pneg %p89
        %p391 = pneg %p113
        %p392 = pneg %p110
        %p393 = pneg %p134
        %p394 = pneg %p131
        %p395 = pneg %p155
        %p396 = pneg %p152
        %p397 = pneg %p176
        %p398 = pneg %p173
        %p399 = pneg %p197
        %p400 = pneg %p194
        %p401 = pneg %p218
        %p402 = pneg %p215
        %p403 = pneg %p244
        %p404 = pneg %p241
        %p405 = scmp.lt.s32.totalorder %s24, 1
        %s406 = scalar_select %p405, %s24, 1
        %s407 = smul.addr %s406, 8
        %s408 = scalar_lea.vmem %s9, %s407
        %p409 = pneg %p270
        %p410 = pneg %p267
        %p411 = scmp.lt.s32.totalorder %s24, 1
        %s412 = scalar_select %p411, %s24, 1
        %s413 = scalar_lea.vmem %s10, %s412
        %p414 = scmp.lt.s32.totalorder %s24, 1
        %s415 = scalar_select %p414, %s24, 1
        %s416 = smul.addr %s415, 8
        %s417 = scalar_lea.vmem %s0, %s416
        %p418 = scmp.lt.s32.totalorder %s24, 1
        %s419 = scalar_select %p418, %s24, 1
        %s420 = scalar_lea.vmem %s1, %s419
        %p421 = scmp.lt.s32.totalorder %s24, 1
        %s422 = scalar_select %p421, %s24, 1
        %s423 = smul.addr %s422, 8
        %s424 = scalar_lea.vmem %s9, %s423
        %p425 = scmp.lt.s32.totalorder %s24, 1
        %s426 = scalar_select %p425, %s24, 1
        %s427 = scalar_lea.vmem %s10, %s426
        %v428 = vld [vmem:[%s417] sm:$0xff]
        %v429 = vld [vmem:[#allocation2] sm:$0xff]
        %v430 = vld [vmem:[#allocation2 + $0x8] sm:$0xff]
        %v431 = vld [vmem:[#allocation2 + $0x10] sm:$0xff]
        %v432 = vld [vmem:[#allocation2 + $0x18] sm:$0xff]
        %v433 = vld [vmem:[#allocation2 + $0x20] sm:$0xff]
        %v434 = vld [vmem:[#allocation2 + $0x28] sm:$0xff]
        %v435 = vld [vmem:[#allocation2 + $0x30] sm:$0xff]
        %v436 = vld [vmem:[#allocation2 + $0x38] sm:$0xff]
        %v437 = vld [vmem:[#allocation2 + $0x40] sm:$0xff]
        %v438 = vld [vmem:[#allocation2 + $0x48] sm:$0xff]
        %v439 = vld [vmem:[#allocation2 + $0x50] sm:$0xff]
        %v440 = vld [vmem:[#allocation2 + $0x58] sm:$0xff]
        %v441 = vld [vmem:[#allocation2 + $0x60] sm:$0xff]
        %v442 = vld [vmem:[#allocation2 + $0x68] sm:$0xff]
        %v443 = vld [vmem:[#allocation2 + $0x70] sm:$0xff]
        %v444 = vld [vmem:[#allocation2 + $0x78] sm:$0xff]
        %v445 = vld [vmem:[#allocation2 + $0x80] sm:$0xff]
        %v446 = vld [vmem:[#allocation2 + $0x88] sm:$0xff]
        %v447 = vld [vmem:[#allocation2 + $0x90] sm:$0xff]
        %v448 = vld [vmem:[#allocation2 + $0x98] sm:$0xff]
        %v449 = vld [vmem:[#allocation2 + $0xa0] sm:$0xff]
        %v450 = vld [vmem:[#allocation2 + $0xa8] sm:$0xff]
        %v451 = vld [vmem:[#allocation2 + $0xb0] sm:$0xff]
        %v452 = vld [vmem:[#allocation2 + $0xb8] sm:$0xff]
        %v453 = vld [vmem:[#allocation2 + $0xc0] sm:$0xff]
        %v454 = vld [vmem:[#allocation2 + $0xc8] sm:$0xff]
        %v455 = vld [vmem:[#allocation2 + $0xd0] sm:$0xff]
        %v456 = vld [vmem:[#allocation2 + $0xd8] sm:$0xff]
        %v457 = vld [vmem:[#allocation2 + $0xe0] sm:$0xff]
        %v458 = vld [vmem:[#allocation2 + $0xe8] sm:$0xff]
        %v459 = vld [vmem:[#allocation2 + $0xf0] sm:$0xff]
        %v460 = vld [vmem:[#allocation2 + $0xf8] sm:$0xff]
        %v461 = vld [vmem:[#allocation2 + $0x100] sm:$0xff]
        %v462 = vld [vmem:[#allocation2 + $0x108] sm:$0xff]
        %v463 = vld [vmem:[#allocation2 + $0x110] sm:$0xff]
        %v464 = vld [vmem:[#allocation2 + $0x118] sm:$0xff]
        %v465 = vld [vmem:[#allocation2 + $0x120] sm:$0xff]
        %v466 = vld [vmem:[#allocation2 + $0x128] sm:$0xff]
        %v467 = vld [vmem:[#allocation2 + $0x130] sm:$0xff]
        %v468 = vld [vmem:[#allocation2 + $0x138] sm:$0xff]
        %v469 = vld [vmem:[#allocation2 + $0x140] sm:$0xff]
        %v470 = vld [vmem:[#allocation2 + $0x148] sm:$0xff]
        %v471 = vld [vmem:[#allocation2 + $0x150] sm:$0xff]
        %v472 = vld [vmem:[#allocation2 + $0x158] sm:$0xff]
        %v473 = vld [vmem:[#allocation2 + $0x160] sm:$0xff]
        %v474 = vld [vmem:[#allocation2 + $0x168] sm:$0xff]
        %v475 = vld [vmem:[#allocation2 + $0x170] sm:$0xff]
        %v476 = vld [vmem:[#allocation2 + $0x178] sm:$0xff]
        %v477 = vld [vmem:[#allocation2 + $0x180] sm:$0xff]
        %v478 = vld [vmem:[#allocation2 + $0x188] sm:$0xff]
        %v479 = vld [vmem:[#allocation2 + $0x190] sm:$0xff]
        %v480 = vld [vmem:[#allocation2 + $0x198] sm:$0xff]
        %v481 = vld [vmem:[#allocation2 + $0x1a0] sm:$0xff]
        %v482 = vld [vmem:[#allocation2 + $0x1a8] sm:$0xff]
        %v483 = vld [vmem:[#allocation2 + $0x1b0] sm:$0xff]
        %v484 = vld [vmem:[#allocation2 + $0x1b8] sm:$0xff]
        %v485 = vld [vmem:[#allocation2 + $0x1c0] sm:$0xff]
        %v486 = vld [vmem:[#allocation2 + $0x1c8] sm:$0xff]
        %v487 = vld [vmem:[#allocation2 + $0x1d0] sm:$0xff]
        %v488 = vld [vmem:[#allocation2 + $0x1d8] sm:$0xff]
        %v489 = vld [vmem:[#allocation2 + $0x1e0] sm:$0xff]
        %v490 = vld [vmem:[#allocation2 + $0x1e8] sm:$0xff]
        %v491 = vld [vmem:[#allocation2 + $0x1f0] sm:$0xff]
        %v492 = vld [vmem:[#allocation2 + $0x1f8] sm:$0xff]
        %v493 = vld [vmem:[#allocation2 + $0x200] sm:$0xff]
        %v494 = vld [vmem:[#allocation2 + $0x208] sm:$0xff]
        %v495 = vld [vmem:[#allocation2 + $0x210] sm:$0xff]
        %v496 = vld [vmem:[#allocation2 + $0x218] sm:$0xff]
        %v497 = vld [vmem:[#allocation2 + $0x220] sm:$0xff]
        %v498 = vld [vmem:[#allocation2 + $0x228] sm:$0xff]
        %v499 = vld [vmem:[#allocation2 + $0x230] sm:$0xff]
        %v500 = vld [vmem:[#allocation2 + $0x238] sm:$0xff]
        %v501 = vld [vmem:[#allocation2 + $0x240] sm:$0xff]
        %v502 = vld [vmem:[#allocation2 + $0x248] sm:$0xff]
        %v503 = vld [vmem:[#allocation2 + $0x250] sm:$0xff]
        %v504 = vld [vmem:[#allocation2 + $0x258] sm:$0xff]
        %v505 = vld [vmem:[#allocation2 + $0x260] sm:$0xff]
        %v506 = vld [vmem:[#allocation2 + $0x268] sm:$0xff]
        %v507 = vld [vmem:[#allocation2 + $0x270] sm:$0xff]
        %v508 = vld [vmem:[#allocation2 + $0x278] sm:$0xff]
        %v509 = vld [vmem:[#allocation2 + $0x280] sm:$0xff]
        %v510 = vld [vmem:[#allocation2 + $0x288] sm:$0xff]
        %v511 = vld [vmem:[#allocation2 + $0x290] sm:$0xff]
        %v512 = vld [vmem:[#allocation2 + $0x298] sm:$0xff]
        %v513 = vld [vmem:[#allocation2 + $0x2a0] sm:$0xff]
        %v514 = vld [vmem:[#allocation2 + $0x2a8] sm:$0xff]
        %v515 = vld [vmem:[#allocation2 + $0x2b0] sm:$0xff]
        %v516 = vld [vmem:[#allocation2 + $0x2b8] sm:$0xff]
        %v517 = vld [vmem:[#allocation2 + $0x2c0] sm:$0xff]
        %v518 = vld [vmem:[#allocation2 + $0x2c8] sm:$0xff]
        %v519 = vld [vmem:[#allocation2 + $0x2d0] sm:$0xff]
        %v520 = vld [vmem:[#allocation2 + $0x2d8] sm:$0xff]
        %v521 = vld [vmem:[#allocation2 + $0x2e0] sm:$0xff]
        %v522 = vld [vmem:[#allocation2 + $0x2e8] sm:$0xff]
        %v523 = vld [vmem:[#allocation2 + $0x2f0] sm:$0xff]
        %v524 = vld [vmem:[#allocation2 + $0x2f8] sm:$0xff]
        %v525 = vld [vmem:[#allocation2 + $0x300] sm:$0xff]
        %v526 = vld [vmem:[#allocation2 + $0x308] sm:$0xff]
        %v527 = vld [vmem:[#allocation2 + $0x310] sm:$0xff]
        %v528 = vld [vmem:[#allocation2 + $0x318] sm:$0xff]
        %v529 = vld [vmem:[#allocation2 + $0x320] sm:$0xff]
        %v530 = vld [vmem:[#allocation2 + $0x328] sm:$0xff]
        %v531 = vld [vmem:[#allocation2 + $0x330] sm:$0xff]
        %v532 = vld [vmem:[#allocation2 + $0x338] sm:$0xff]
        %v533 = vld [vmem:[#allocation2 + $0x340] sm:$0xff]
        %v534 = vld [vmem:[#allocation2 + $0x348] sm:$0xff]
        %v535 = vld [vmem:[#allocation2 + $0x350] sm:$0xff]
        %v536 = vld [vmem:[#allocation2 + $0x358] sm:$0xff]
        %v537 = vld [vmem:[#allocation2 + $0x360] sm:$0xff]
        %v538 = vld [vmem:[#allocation2 + $0x368] sm:$0xff]
        %v539 = vld [vmem:[#allocation2 + $0x370] sm:$0xff]
        %v540 = vld [vmem:[#allocation2 + $0x378] sm:$0xff]
        %v541 = vld [vmem:[#allocation2 + $0x380] sm:$0xff]
        %v542 = vld [vmem:[#allocation2 + $0x388] sm:$0xff]
        %v543 = vld [vmem:[#allocation2 + $0x390] sm:$0xff]
        %v544 = vld [vmem:[#allocation2 + $0x398] sm:$0xff]
        %v545 = vld [vmem:[#allocation2 + $0x3a0] sm:$0xff]
        %v546 = vld [vmem:[#allocation2 + $0x3a8] sm:$0xff]
        %v547 = vld [vmem:[#allocation2 + $0x3b0] sm:$0xff]
        %v548 = vld [vmem:[#allocation2 + $0x3b8] sm:$0xff]
        %v549 = vld [vmem:[#allocation2 + $0x3c0] sm:$0xff]
        %v550 = vld [vmem:[#allocation2 + $0x3c8] sm:$0xff]
        %v551 = vld [vmem:[#allocation2 + $0x3d0] sm:$0xff]
        %v552 = vld [vmem:[#allocation2 + $0x3d8] sm:$0xff]
        %v553 = vld [vmem:[#allocation2 + $0x3e0] sm:$0xff]
        %v554 = vld [vmem:[#allocation2 + $0x3e8] sm:$0xff]
        %v555 = vld [vmem:[#allocation2 + $0x3f0] sm:$0xff]
        %v556 = vld [vmem:[#allocation2 + $0x3f8] sm:$0xff]
        %v557 = vld [vmem:[#allocation2 + $0x400] sm:$0xff]
        %v558 = vld [vmem:[#allocation2 + $0x408] sm:$0xff]
        %v559 = vld [vmem:[#allocation2 + $0x410] sm:$0xff]
        %v560 = vld [vmem:[#allocation2 + $0x418] sm:$0xff]
        %v561 = vld [vmem:[#allocation2 + $0x420] sm:$0xff]
        %v562 = vld [vmem:[#allocation2 + $0x428] sm:$0xff]
        %v563 = vld [vmem:[#allocation2 + $0x430] sm:$0xff]
        %v564 = vld [vmem:[#allocation2 + $0x438] sm:$0xff]
        %v565 = vld [vmem:[#allocation2 + $0x440] sm:$0xff]
        %v566 = vld [vmem:[#allocation2 + $0x448] sm:$0xff]
        %v567 = vld [vmem:[#allocation2 + $0x450] sm:$0xff]
        %v568 = vld [vmem:[#allocation2 + $0x458] sm:$0xff]
        %v569 = vld [vmem:[#allocation2 + $0x460] sm:$0xff]
        %v570 = vld [vmem:[#allocation2 + $0x468] sm:$0xff]
        %v571 = vld [vmem:[#allocation2 + $0x470] sm:$0xff]
        %v572 = vld [vmem:[#allocation2 + $0x478] sm:$0xff]
        %v573 = vld [vmem:[#allocation2 + $0x480] sm:$0xff]
        %v574 = vld [vmem:[#allocation2 + $0x488] sm:$0xff]
        %v575 = vld [vmem:[#allocation2 + $0x490] sm:$0xff]
        %v576 = vld [vmem:[#allocation2 + $0x498] sm:$0xff]
        %v577 = vld [vmem:[#allocation2 + $0x4a0] sm:$0xff]
        %v578 = vld [vmem:[#allocation2 + $0x4a8] sm:$0xff]
        %v579 = vld [vmem:[#allocation2 + $0x4b0] sm:$0xff]
        %v580 = vld [vmem:[#allocation2 + $0x4b8] sm:$0xff]
        %v581 = vld [vmem:[#allocation2 + $0x4c0] sm:$0xff]
        %v582 = vld [vmem:[#allocation2 + $0x4c8] sm:$0xff]
        %v583 = vld [vmem:[#allocation2 + $0x4d0] sm:$0xff]
        %v584 = vld [vmem:[#allocation2 + $0x4d8] sm:$0xff]
        %v585 = vld [vmem:[#allocation2 + $0x4e0] sm:$0xff]
        %v586 = vld [vmem:[#allocation2 + $0x4e8] sm:$0xff]
        %v587 = vld [vmem:[#allocation2 + $0x4f0] sm:$0xff]
        %v588 = vld [vmem:[#allocation2 + $0x4f8] sm:$0xff]
        %v589 = vld [vmem:[#allocation2 + $0x500] sm:$0xff]
        %v590 = vld [vmem:[#allocation2 + $0x508] sm:$0xff]
        %v591 = vld [vmem:[#allocation2 + $0x510] sm:$0xff]
        %v592 = vld [vmem:[#allocation2 + $0x518] sm:$0xff]
        %v593 = vld [vmem:[#allocation2 + $0x520] sm:$0xff]
        %v594 = vld [vmem:[#allocation2 + $0x528] sm:$0xff]
        %v595 = vld [vmem:[#allocation2 + $0x530] sm:$0xff]
        %v596 = vld [vmem:[#allocation2 + $0x538] sm:$0xff]
        %v597 = vld [vmem:[#allocation2 + $0x540] sm:$0xff]
        %v598 = vld [vmem:[#allocation2 + $0x548] sm:$0xff]
        %v599 = vld [vmem:[#allocation2 + $0x550] sm:$0xff]
        %v600 = vld [vmem:[#allocation2 + $0x558] sm:$0xff]
        %v601 = vld [vmem:[#allocation2 + $0x560] sm:$0xff]
        %v602 = vld [vmem:[#allocation2 + $0x568] sm:$0xff]
        %v603 = vld [vmem:[#allocation2 + $0x570] sm:$0xff]
        %v604 = vld [vmem:[#allocation2 + $0x578] sm:$0xff]
        %v605 = vld [vmem:[#allocation2 + $0x580] sm:$0xff]
        %v606 = vld [vmem:[#allocation2 + $0x588] sm:$0xff]
        %v607 = vld [vmem:[#allocation2 + $0x590] sm:$0xff]
        %v608 = vld [vmem:[#allocation2 + $0x598] sm:$0xff]
        %v609 = vld [vmem:[#allocation2 + $0x5a0] sm:$0xff]
        %v610 = vld [vmem:[#allocation2 + $0x5a8] sm:$0xff]
        %v611 = vld [vmem:[#allocation2 + $0x5b0] sm:$0xff]
        %v612 = vld [vmem:[#allocation2 + $0x5b8] sm:$0xff]
        %v613 = vld [vmem:[#allocation2 + $0x5c0] sm:$0xff]
        %v614 = vld [vmem:[#allocation2 + $0x5c8] sm:$0xff]
        %v615 = vld [vmem:[#allocation2 + $0x5d0] sm:$0xff]
        %v616 = vld [vmem:[#allocation2 + $0x5d8] sm:$0xff]
        %v617 = vld [vmem:[#allocation2 + $0x5e0] sm:$0xff]
        %v618 = vld [vmem:[#allocation2 + $0x5e8] sm:$0xff]
        %v619 = vld [vmem:[#allocation2 + $0x5f0] sm:$0xff]
        %v620 = vld [vmem:[#allocation2 + $0x5f8] sm:$0xff]
        %v621 = vld [vmem:[#allocation2 + $0x600] sm:$0xff]
        %v622 = vld [vmem:[#allocation2 + $0x608] sm:$0xff]
        %v623 = vld [vmem:[#allocation2 + $0x610] sm:$0xff]
        %v624 = vld [vmem:[#allocation2 + $0x618] sm:$0xff]
        %v625 = vld [vmem:[#allocation2 + $0x620] sm:$0xff]
        %v626 = vld [vmem:[#allocation2 + $0x628] sm:$0xff]
        %v627 = vld [vmem:[#allocation2 + $0x630] sm:$0xff]
        %v628 = vld [vmem:[#allocation2 + $0x638] sm:$0xff]
        %v629 = vld [vmem:[#allocation2 + $0x640] sm:$0xff]
        %v630 = vld [vmem:[#allocation2 + $0x648] sm:$0xff]
        %v631 = vld [vmem:[#allocation2 + $0x650] sm:$0xff]
        %v632 = vld [vmem:[#allocation2 + $0x658] sm:$0xff]
        %v633 = vld [vmem:[#allocation2 + $0x660] sm:$0xff]
        %v634 = vld [vmem:[#allocation2 + $0x668] sm:$0xff]
        %v635 = vld [vmem:[#allocation2 + $0x670] sm:$0xff]
        %v636 = vld [vmem:[#allocation2 + $0x678] sm:$0xff]
        %v637 = vld [vmem:[#allocation2 + $0x680] sm:$0xff]
        %v638 = vld [vmem:[#allocation2 + $0x688] sm:$0xff]
        %v639 = vld [vmem:[#allocation2 + $0x690] sm:$0xff]
        %v640 = vld [vmem:[#allocation2 + $0x698] sm:$0xff]
        %v641 = vld [vmem:[#allocation2 + $0x6a0] sm:$0xff]
        %v642 = vld [vmem:[#allocation2 + $0x6a8] sm:$0xff]
        %v643 = vld [vmem:[#allocation2 + $0x6b0] sm:$0xff]
        %v644 = vld [vmem:[#allocation2 + $0x6b8] sm:$0xff]
        %v645 = vld [vmem:[#allocation2 + $0x6c0] sm:$0xff]
        %v646 = vld [vmem:[#allocation2 + $0x6c8] sm:$0xff]
        %v647 = vld [vmem:[#allocation2 + $0x6d0] sm:$0xff]
        %v648 = vld [vmem:[#allocation2 + $0x6d8] sm:$0xff]
        %v649 = vld [vmem:[#allocation2 + $0x6e0] sm:$0xff]
        %v650 = vld [vmem:[#allocation2 + $0x6e8] sm:$0xff]
        %v651 = vld [vmem:[#allocation2 + $0x6f0] sm:$0xff]
        %v652 = vld [vmem:[#allocation2 + $0x6f8] sm:$0xff]
        %v653 = vld [vmem:[#allocation2 + $0x700] sm:$0xff]
        %v654 = vld [vmem:[#allocation2 + $0x708] sm:$0xff]
        %v655 = vld [vmem:[#allocation2 + $0x710] sm:$0xff]
        %v656 = vld [vmem:[#allocation2 + $0x718] sm:$0xff]
        %v657 = vld [vmem:[#allocation2 + $0x720] sm:$0xff]
        %v658 = vld [vmem:[#allocation2 + $0x728] sm:$0xff]
        %v659 = vld [vmem:[#allocation2 + $0x730] sm:$0xff]
        %v660 = vld [vmem:[#allocation2 + $0x738] sm:$0xff]
        %v661 = vld [vmem:[#allocation2 + $0x740] sm:$0xff]
        %v662 = vld [vmem:[#allocation2 + $0x748] sm:$0xff]
        %v663 = vld [vmem:[#allocation2 + $0x750] sm:$0xff]
        %v664 = vld [vmem:[#allocation2 + $0x758] sm:$0xff]
        %v665 = vld [vmem:[#allocation2 + $0x760] sm:$0xff]
        %v666 = vld [vmem:[#allocation2 + $0x768] sm:$0xff]
        %v667 = vld [vmem:[#allocation2 + $0x770] sm:$0xff]
        %v668 = vld [vmem:[#allocation2 + $0x778] sm:$0xff]
        %v669 = vld [vmem:[#allocation2 + $0x780] sm:$0xff]
        %v670 = vld [vmem:[#allocation2 + $0x788] sm:$0xff]
        %v671 = vld [vmem:[#allocation2 + $0x790] sm:$0xff]
        %v672 = vld [vmem:[#allocation2 + $0x798] sm:$0xff]
        %v673 = vld [vmem:[#allocation2 + $0x7a0] sm:$0xff]
        %v674 = vld [vmem:[#allocation2 + $0x7a8] sm:$0xff]
        %v675 = vld [vmem:[#allocation2 + $0x7b0] sm:$0xff]
        %v676 = vld [vmem:[#allocation2 + $0x7b8] sm:$0xff]
        %v677 = vld [vmem:[#allocation2 + $0x7c0] sm:$0xff]
        %v678 = vld [vmem:[#allocation2 + $0x7c8] sm:$0xff]
        %v679 = vld [vmem:[#allocation2 + $0x7d0] sm:$0xff]
        %v680 = vld [vmem:[#allocation2 + $0x7d8] sm:$0xff]
        %v681 = vld [vmem:[#allocation2 + $0x7e0] sm:$0xff]
        %v682 = vld [vmem:[#allocation2 + $0x7e8] sm:$0xff]
        %v683 = vld [vmem:[#allocation2 + $0x7f0] sm:$0xff]
        %v684 = vld [vmem:[#allocation2 + $0x7f8] sm:$0xff]
        %686 = vst [vmem:[#allocation1] ss:$9 sm:$0xff] %v428
        %v687 = vld [vmem:[#allocation1] sm:$0xff]
        %v688 = vld [vmem:[#allocation1 + $0x9] sm:$0xff]
        %v689 = vld [vmem:[#allocation1 + $0x12] sm:$0xff]
        %v690 = vld [vmem:[#allocation1 + $0x1b] sm:$0xff]
        %v691 = vld [vmem:[#allocation1 + $0x24] sm:$0xff]
        %v692 = vld [vmem:[#allocation1 + $0x2d] sm:$0xff]
        %v693 = vld [vmem:[#allocation1 + $0x36] sm:$0xff]
        %v694 = vld [vmem:[#allocation1 + $0x3f] sm:$0xff]
        %v959 = vunpack.c.l.b16 %v429
        %v960 = vunpack.c.h.b16 %v429
        %v961 = vunpack.c.l.b16 %v430
        %v962 = vunpack.c.h.b16 %v430
        %v963 = vunpack.c.l.b16 %v431
        %v964 = vunpack.c.h.b16 %v431
        %v965 = vunpack.c.l.b16 %v432
        %v966 = vunpack.c.h.b16 %v432
        %v967 = vunpack.c.l.b16 %v433
        %v968 = vunpack.c.h.b16 %v433
        %v969 = vunpack.c.l.b16 %v434
        %v970 = vunpack.c.h.b16 %v434
        %v971 = vunpack.c.l.b16 %v435
        %v972 = vunpack.c.h.b16 %v435
        %v973 = vunpack.c.l.b16 %v436
        %v974 = vunpack.c.h.b16 %v436
        %v975 = vunpack.c.l.b16 %v437
        %v976 = vunpack.c.h.b16 %v437
        %v977 = vunpack.c.l.b16 %v438
        %v978 = vunpack.c.h.b16 %v438
        %v979 = vunpack.c.l.b16 %v439
        %v980 = vunpack.c.h.b16 %v439
        %v981 = vunpack.c.l.b16 %v440
        %v982 = vunpack.c.h.b16 %v440
        %v983 = vunpack.c.l.b16 %v441
        %v984 = vunpack.c.h.b16 %v441
        %v985 = vunpack.c.l.b16 %v442
        %v986 = vunpack.c.h.b16 %v442
        %v987 = vunpack.c.l.b16 %v443
        %v988 = vunpack.c.h.b16 %v443
        %v989 = vunpack.c.l.b16 %v444
        %v990 = vunpack.c.h.b16 %v444
        %v991 = vunpack.c.l.b16 %v445
        %v992 = vunpack.c.h.b16 %v445
        %v993 = vunpack.c.l.b16 %v446
        %v994 = vunpack.c.h.b16 %v446
        %v995 = vunpack.c.l.b16 %v447
        %v996 = vunpack.c.h.b16 %v447
        %v997 = vunpack.c.l.b16 %v448
        %v998 = vunpack.c.h.b16 %v448
        %v999 = vunpack.c.l.b16 %v449
        %v1000 = vunpack.c.h.b16 %v449
        %v1001 = vunpack.c.l.b16 %v450
        %v1002 = vunpack.c.h.b16 %v450
        %v1003 = vunpack.c.l.b16 %v451
        %v1004 = vunpack.c.h.b16 %v451
        %v1005 = vunpack.c.l.b16 %v452
        %v1006 = vunpack.c.h.b16 %v452
        %v1007 = vunpack.c.l.b16 %v453
        %v1008 = vunpack.c.h.b16 %v453
        %v1009 = vunpack.c.l.b16 %v454
        %v1010 = vunpack.c.h.b16 %v454
        %v1011 = vunpack.c.l.b16 %v455
        %v1012 = vunpack.c.h.b16 %v455
        %v1013 = vunpack.c.l.b16 %v456
        %v1014 = vunpack.c.h.b16 %v456
        %v1015 = vunpack.c.l.b16 %v457
        %v1016 = vunpack.c.h.b16 %v457
        %v1017 = vunpack.c.l.b16 %v458
        %v1018 = vunpack.c.h.b16 %v458
        %v1019 = vunpack.c.l.b16 %v459
        %v1020 = vunpack.c.h.b16 %v459
        %v1021 = vunpack.c.l.b16 %v460
        %v1022 = vunpack.c.h.b16 %v460
        %v1023 = vunpack.c.l.b16 %v461
        %v1024 = vunpack.c.h.b16 %v461
        %v1025 = vunpack.c.l.b16 %v462
        %v1026 = vunpack.c.h.b16 %v462
        %v1027 = vunpack.c.l.b16 %v463
        %v1028 = vunpack.c.h.b16 %v463
        %v1029 = vunpack.c.l.b16 %v464
        %v1030 = vunpack.c.h.b16 %v464
        %v1031 = vunpack.c.l.b16 %v465
        %v1032 = vunpack.c.h.b16 %v465
        %v1033 = vunpack.c.l.b16 %v466
        %v1034 = vunpack.c.h.b16 %v466
        %v1035 = vunpack.c.l.b16 %v467
        %v1036 = vunpack.c.h.b16 %v467
        %v1037 = vunpack.c.l.b16 %v468
        %v1038 = vunpack.c.h.b16 %v468
        %v1039 = vunpack.c.l.b16 %v469
        %v1040 = vunpack.c.h.b16 %v469
        %v1041 = vunpack.c.l.b16 %v470
        %v1042 = vunpack.c.h.b16 %v470
        %v1043 = vunpack.c.l.b16 %v471
        %v1044 = vunpack.c.h.b16 %v471
        %v1045 = vunpack.c.l.b16 %v472
        %v1046 = vunpack.c.h.b16 %v472
        %v1047 = vunpack.c.l.b16 %v473
        %v1048 = vunpack.c.h.b16 %v473
        %v1049 = vunpack.c.l.b16 %v474
        %v1050 = vunpack.c.h.b16 %v474
        %v1051 = vunpack.c.l.b16 %v475
        %v1052 = vunpack.c.h.b16 %v475
        %v1053 = vunpack.c.l.b16 %v476
        %v1054 = vunpack.c.h.b16 %v476
        %v1055 = vunpack.c.l.b16 %v477
        %v1056 = vunpack.c.h.b16 %v477
        %v1057 = vunpack.c.l.b16 %v478
        %v1058 = vunpack.c.h.b16 %v478
        %v1059 = vunpack.c.l.b16 %v479
        %v1060 = vunpack.c.h.b16 %v479
        %v1061 = vunpack.c.l.b16 %v480
        %v1062 = vunpack.c.h.b16 %v480
        %v1063 = vunpack.c.l.b16 %v481
        %v1064 = vunpack.c.h.b16 %v481
        %v1065 = vunpack.c.l.b16 %v482
        %v1066 = vunpack.c.h.b16 %v482
        %v1067 = vunpack.c.l.b16 %v483
        %v1068 = vunpack.c.h.b16 %v483
        %v1069 = vunpack.c.l.b16 %v484
        %v1070 = vunpack.c.h.b16 %v484
        %v1071 = vunpack.c.l.b16 %v485
        %v1072 = vunpack.c.h.b16 %v485
        %v1073 = vunpack.c.l.b16 %v486
        %v1074 = vunpack.c.h.b16 %v486
        %v1075 = vunpack.c.l.b16 %v487
        %v1076 = vunpack.c.h.b16 %v487
        %v1077 = vunpack.c.l.b16 %v488
        %v1078 = vunpack.c.h.b16 %v488
        %v1079 = vunpack.c.l.b16 %v489
        %v1080 = vunpack.c.h.b16 %v489
        %v1081 = vunpack.c.l.b16 %v490
        %v1082 = vunpack.c.h.b16 %v490
        %v1083 = vunpack.c.l.b16 %v491
        %v1084 = vunpack.c.h.b16 %v491
        %v1085 = vunpack.c.l.b16 %v492
        %v1086 = vunpack.c.h.b16 %v492
        %v1087 = vunpack.c.l.b16 %v493
        %v1088 = vunpack.c.h.b16 %v493
        %v1089 = vunpack.c.l.b16 %v494
        %v1090 = vunpack.c.h.b16 %v494
        %v1091 = vunpack.c.l.b16 %v495
        %v1092 = vunpack.c.h.b16 %v495
        %v1093 = vunpack.c.l.b16 %v496
        %v1094 = vunpack.c.h.b16 %v496
        %v1095 = vunpack.c.l.b16 %v497
        %v1096 = vunpack.c.h.b16 %v497
        %v1097 = vunpack.c.l.b16 %v498
        %v1098 = vunpack.c.h.b16 %v498
        %v1099 = vunpack.c.l.b16 %v499
        %v1100 = vunpack.c.h.b16 %v499
        %v1101 = vunpack.c.l.b16 %v500
        %v1102 = vunpack.c.h.b16 %v500
        %v1103 = vunpack.c.l.b16 %v501
        %v1104 = vunpack.c.h.b16 %v501
        %v1105 = vunpack.c.l.b16 %v502
        %v1106 = vunpack.c.h.b16 %v502
        %v1107 = vunpack.c.l.b16 %v503
        %v1108 = vunpack.c.h.b16 %v503
        %v1109 = vunpack.c.l.b16 %v504
        %v1110 = vunpack.c.h.b16 %v504
        %v1111 = vunpack.c.l.b16 %v505
        %v1112 = vunpack.c.h.b16 %v505
        %v1113 = vunpack.c.l.b16 %v506
        %v1114 = vunpack.c.h.b16 %v506
        %v1115 = vunpack.c.l.b16 %v507
        %v1116 = vunpack.c.h.b16 %v507
        %v1117 = vunpack.c.l.b16 %v508
        %v1118 = vunpack.c.h.b16 %v508
        %v1119 = vunpack.c.l.b16 %v509
        %v1120 = vunpack.c.h.b16 %v509
        %v1121 = vunpack.c.l.b16 %v510
        %v1122 = vunpack.c.h.b16 %v510
        %v1123 = vunpack.c.l.b16 %v511
        %v1124 = vunpack.c.h.b16 %v511
        %v1125 = vunpack.c.l.b16 %v512
        %v1126 = vunpack.c.h.b16 %v512
        %v1127 = vunpack.c.l.b16 %v513
        %v1128 = vunpack.c.h.b16 %v513
        %v1129 = vunpack.c.l.b16 %v514
        %v1130 = vunpack.c.h.b16 %v514
        %v1131 = vunpack.c.l.b16 %v515
        %v1132 = vunpack.c.h.b16 %v515
        %v1133 = vunpack.c.l.b16 %v516
        %v1134 = vunpack.c.h.b16 %v516
        %v1135 = vunpack.c.l.b16 %v517
        %v1136 = vunpack.c.h.b16 %v517
        %v1137 = vunpack.c.l.b16 %v518
        %v1138 = vunpack.c.h.b16 %v518
        %v1139 = vunpack.c.l.b16 %v519
        %v1140 = vunpack.c.h.b16 %v519
        %v1141 = vunpack.c.l.b16 %v520
        %v1142 = vunpack.c.h.b16 %v520
        %v1143 = vunpack.c.l.b16 %v521
        %v1144 = vunpack.c.h.b16 %v521
        %v1145 = vunpack.c.l.b16 %v522
        %v1146 = vunpack.c.h.b16 %v522
        %v1147 = vunpack.c.l.b16 %v523
        %v1148 = vunpack.c.h.b16 %v523
        %v1149 = vunpack.c.l.b16 %v524
        %v1150 = vunpack.c.h.b16 %v524
        %v1151 = vunpack.c.l.b16 %v525
        %v1152 = vunpack.c.h.b16 %v525
        %v1153 = vunpack.c.l.b16 %v526
        %v1154 = vunpack.c.h.b16 %v526
        %v1155 = vunpack.c.l.b16 %v527
        %v1156 = vunpack.c.h.b16 %v527
        %v1157 = vunpack.c.l.b16 %v528
        %v1158 = vunpack.c.h.b16 %v528
        %v1159 = vunpack.c.l.b16 %v529
        %v1160 = vunpack.c.h.b16 %v529
        %v1161 = vunpack.c.l.b16 %v530
        %v1162 = vunpack.c.h.b16 %v530
        %v1163 = vunpack.c.l.b16 %v531
        %v1164 = vunpack.c.h.b16 %v531
        %v1165 = vunpack.c.l.b16 %v532
        %v1166 = vunpack.c.h.b16 %v532
        %v1167 = vunpack.c.l.b16 %v533
        %v1168 = vunpack.c.h.b16 %v533
        %v1169 = vunpack.c.l.b16 %v534
        %v1170 = vunpack.c.h.b16 %v534
        %v1171 = vunpack.c.l.b16 %v535
        %v1172 = vunpack.c.h.b16 %v535
        %v1173 = vunpack.c.l.b16 %v536
        %v1174 = vunpack.c.h.b16 %v536
        %v1175 = vunpack.c.l.b16 %v537
        %v1176 = vunpack.c.h.b16 %v537
        %v1177 = vunpack.c.l.b16 %v538
        %v1178 = vunpack.c.h.b16 %v538
        %v1179 = vunpack.c.l.b16 %v539
        %v1180 = vunpack.c.h.b16 %v539
        %v1181 = vunpack.c.l.b16 %v540
        %v1182 = vunpack.c.h.b16 %v540
        %v1183 = vunpack.c.l.b16 %v541
        %v1184 = vunpack.c.h.b16 %v541
        %v1185 = vunpack.c.l.b16 %v542
        %v1186 = vunpack.c.h.b16 %v542
        %v1187 = vunpack.c.l.b16 %v543
        %v1188 = vunpack.c.h.b16 %v543
        %v1189 = vunpack.c.l.b16 %v544
        %v1190 = vunpack.c.h.b16 %v544
        %v1191 = vunpack.c.l.b16 %v545
        %v1192 = vunpack.c.h.b16 %v545
        %v1193 = vunpack.c.l.b16 %v546
        %v1194 = vunpack.c.h.b16 %v546
        %v1195 = vunpack.c.l.b16 %v547
        %v1196 = vunpack.c.h.b16 %v547
        %v1197 = vunpack.c.l.b16 %v548
        %v1198 = vunpack.c.h.b16 %v548
        %v1199 = vunpack.c.l.b16 %v549
        %v1200 = vunpack.c.h.b16 %v549
        %v1201 = vunpack.c.l.b16 %v550
        %v1202 = vunpack.c.h.b16 %v550
        %v1203 = vunpack.c.l.b16 %v551
        %v1204 = vunpack.c.h.b16 %v551
        %v1205 = vunpack.c.l.b16 %v552
        %v1206 = vunpack.c.h.b16 %v552
        %v1207 = vunpack.c.l.b16 %v553
        %v1208 = vunpack.c.h.b16 %v553
        %v1209 = vunpack.c.l.b16 %v554
        %v1210 = vunpack.c.h.b16 %v554
        %v1211 = vunpack.c.l.b16 %v555
        %v1212 = vunpack.c.h.b16 %v555
        %v1213 = vunpack.c.l.b16 %v556
        %v1214 = vunpack.c.h.b16 %v556
        %v1215 = vunpack.c.l.b16 %v557
        %v1216 = vunpack.c.h.b16 %v557
        %v1217 = vunpack.c.l.b16 %v558
        %v1218 = vunpack.c.h.b16 %v558
        %v1219 = vunpack.c.l.b16 %v559
        %v1220 = vunpack.c.h.b16 %v559
        %v1221 = vunpack.c.l.b16 %v560
        %v1222 = vunpack.c.h.b16 %v560
        %v1223 = vunpack.c.l.b16 %v561
        %v1224 = vunpack.c.h.b16 %v561
        %v1225 = vunpack.c.l.b16 %v562
        %v1226 = vunpack.c.h.b16 %v562
        %v1227 = vunpack.c.l.b16 %v563
        %v1228 = vunpack.c.h.b16 %v563
        %v1229 = vunpack.c.l.b16 %v564
        %v1230 = vunpack.c.h.b16 %v564
        %v1231 = vunpack.c.l.b16 %v565
        %v1232 = vunpack.c.h.b16 %v565
        %v1233 = vunpack.c.l.b16 %v566
        %v1234 = vunpack.c.h.b16 %v566
        %v1235 = vunpack.c.l.b16 %v567
        %v1236 = vunpack.c.h.b16 %v567
        %v1237 = vunpack.c.l.b16 %v568
        %v1238 = vunpack.c.h.b16 %v568
        %v1239 = vunpack.c.l.b16 %v569
        %v1240 = vunpack.c.h.b16 %v569
        %v1241 = vunpack.c.l.b16 %v570
        %v1242 = vunpack.c.h.b16 %v570
        %v1243 = vunpack.c.l.b16 %v571
        %v1244 = vunpack.c.h.b16 %v571
        %v1245 = vunpack.c.l.b16 %v572
        %v1246 = vunpack.c.h.b16 %v572
        %v1247 = vunpack.c.l.b16 %v573
        %v1248 = vunpack.c.h.b16 %v573
        %v1249 = vunpack.c.l.b16 %v574
        %v1250 = vunpack.c.h.b16 %v574
        %v1251 = vunpack.c.l.b16 %v575
        %v1252 = vunpack.c.h.b16 %v575
        %v1253 = vunpack.c.l.b16 %v576
        %v1254 = vunpack.c.h.b16 %v576
        %v1255 = vunpack.c.l.b16 %v577
        %v1256 = vunpack.c.h.b16 %v577
        %v1257 = vunpack.c.l.b16 %v578
        %v1258 = vunpack.c.h.b16 %v578
        %v1259 = vunpack.c.l.b16 %v579
        %v1260 = vunpack.c.h.b16 %v579
        %v1261 = vunpack.c.l.b16 %v580
        %v1262 = vunpack.c.h.b16 %v580
        %v1263 = vunpack.c.l.b16 %v581
        %v1264 = vunpack.c.h.b16 %v581
        %v1265 = vunpack.c.l.b16 %v582
        %v1266 = vunpack.c.h.b16 %v582
        %v1267 = vunpack.c.l.b16 %v583
        %v1268 = vunpack.c.h.b16 %v583
        %v1269 = vunpack.c.l.b16 %v584
        %v1270 = vunpack.c.h.b16 %v584
        %v1271 = vunpack.c.l.b16 %v585
        %v1272 = vunpack.c.h.b16 %v585
        %v1273 = vunpack.c.l.b16 %v586
        %v1274 = vunpack.c.h.b16 %v586
        %v1275 = vunpack.c.l.b16 %v587
        %v1276 = vunpack.c.h.b16 %v587
        %v1277 = vunpack.c.l.b16 %v588
        %v1278 = vunpack.c.h.b16 %v588
        %v1279 = vunpack.c.l.b16 %v589
        %v1280 = vunpack.c.h.b16 %v589
        %v1281 = vunpack.c.l.b16 %v590
        %v1282 = vunpack.c.h.b16 %v590
        %v1283 = vunpack.c.l.b16 %v591
        %v1284 = vunpack.c.h.b16 %v591
        %v1285 = vunpack.c.l.b16 %v592
        %v1286 = vunpack.c.h.b16 %v592
        %v1287 = vunpack.c.l.b16 %v593
        %v1288 = vunpack.c.h.b16 %v593
        %v1289 = vunpack.c.l.b16 %v594
        %v1290 = vunpack.c.h.b16 %v594
        %v1291 = vunpack.c.l.b16 %v595
        %v1292 = vunpack.c.h.b16 %v595
        %v1293 = vunpack.c.l.b16 %v596
        %v1294 = vunpack.c.h.b16 %v596
        %v1295 = vunpack.c.l.b16 %v597
        %v1296 = vunpack.c.h.b16 %v597
        %v1297 = vunpack.c.l.b16 %v598
        %v1298 = vunpack.c.h.b16 %v598
        %v1299 = vunpack.c.l.b16 %v599
        %v1300 = vunpack.c.h.b16 %v599
        %v1301 = vunpack.c.l.b16 %v600
        %v1302 = vunpack.c.h.b16 %v600
        %v1303 = vunpack.c.l.b16 %v601
        %v1304 = vunpack.c.h.b16 %v601
        %v1305 = vunpack.c.l.b16 %v602
        %v1306 = vunpack.c.h.b16 %v602
        %v1307 = vunpack.c.l.b16 %v603
        %v1308 = vunpack.c.h.b16 %v603
        %v1309 = vunpack.c.l.b16 %v604
        %v1310 = vunpack.c.h.b16 %v604
        %v1311 = vunpack.c.l.b16 %v605
        %v1312 = vunpack.c.h.b16 %v605
        %v1313 = vunpack.c.l.b16 %v606
        %v1314 = vunpack.c.h.b16 %v606
        %v1315 = vunpack.c.l.b16 %v607
        %v1316 = vunpack.c.h.b16 %v607
        %v1317 = vunpack.c.l.b16 %v608
        %v1318 = vunpack.c.h.b16 %v608
        %v1319 = vunpack.c.l.b16 %v609
        %v1320 = vunpack.c.h.b16 %v609
        %v1321 = vunpack.c.l.b16 %v610
        %v1322 = vunpack.c.h.b16 %v610
        %v1323 = vunpack.c.l.b16 %v611
        %v1324 = vunpack.c.h.b16 %v611
        %v1325 = vunpack.c.l.b16 %v612
        %v1326 = vunpack.c.h.b16 %v612
        %v1327 = vunpack.c.l.b16 %v613
        %v1328 = vunpack.c.h.b16 %v613
        %v1329 = vunpack.c.l.b16 %v614
        %v1330 = vunpack.c.h.b16 %v614
        %v1331 = vunpack.c.l.b16 %v615
        %v1332 = vunpack.c.h.b16 %v615
        %v1333 = vunpack.c.l.b16 %v616
        %v1334 = vunpack.c.h.b16 %v616
        %v1335 = vunpack.c.l.b16 %v617
        %v1336 = vunpack.c.h.b16 %v617
        %v1337 = vunpack.c.l.b16 %v618
        %v1338 = vunpack.c.h.b16 %v618
        %v1339 = vunpack.c.l.b16 %v619
        %v1340 = vunpack.c.h.b16 %v619
        %v1341 = vunpack.c.l.b16 %v620
        %v1342 = vunpack.c.h.b16 %v620
        %v1343 = vunpack.c.l.b16 %v621
        %v1344 = vunpack.c.h.b16 %v621
        %v1345 = vunpack.c.l.b16 %v622
        %v1346 = vunpack.c.h.b16 %v622
        %v1347 = vunpack.c.l.b16 %v623
        %v1348 = vunpack.c.h.b16 %v623
        %v1349 = vunpack.c.l.b16 %v624
        %v1350 = vunpack.c.h.b16 %v624
        %v1351 = vunpack.c.l.b16 %v625
        %v1352 = vunpack.c.h.b16 %v625
        %v1353 = vunpack.c.l.b16 %v626
        %v1354 = vunpack.c.h.b16 %v626
        %v1355 = vunpack.c.l.b16 %v627
        %v1356 = vunpack.c.h.b16 %v627
        %v1357 = vunpack.c.l.b16 %v628
        %v1358 = vunpack.c.h.b16 %v628
        %v1359 = vunpack.c.l.b16 %v629
        %v1360 = vunpack.c.h.b16 %v629
        %v1361 = vunpack.c.l.b16 %v630
        %v1362 = vunpack.c.h.b16 %v630
        %v1363 = vunpack.c.l.b16 %v631
        %v1364 = vunpack.c.h.b16 %v631
        %v1365 = vunpack.c.l.b16 %v632
        %v1366 = vunpack.c.h.b16 %v632
        %v1367 = vunpack.c.l.b16 %v633
        %v1368 = vunpack.c.h.b16 %v633
        %v1369 = vunpack.c.l.b16 %v634
        %v1370 = vunpack.c.h.b16 %v634
        %v1371 = vunpack.c.l.b16 %v635
        %v1372 = vunpack.c.h.b16 %v635
        %v1373 = vunpack.c.l.b16 %v636
        %v1374 = vunpack.c.h.b16 %v636
        %v1375 = vunpack.c.l.b16 %v637
        %v1376 = vunpack.c.h.b16 %v637
        %v1377 = vunpack.c.l.b16 %v638
        %v1378 = vunpack.c.h.b16 %v638
        %v1379 = vunpack.c.l.b16 %v639
        %v1380 = vunpack.c.h.b16 %v639
        %v1381 = vunpack.c.l.b16 %v640
        %v1382 = vunpack.c.h.b16 %v640
        %v1383 = vunpack.c.l.b16 %v641
        %v1384 = vunpack.c.h.b16 %v641
        %v1385 = vunpack.c.l.b16 %v642
        %v1386 = vunpack.c.h.b16 %v642
        %v1387 = vunpack.c.l.b16 %v643
        %v1388 = vunpack.c.h.b16 %v643
        %v1389 = vunpack.c.l.b16 %v644
        %v1390 = vunpack.c.h.b16 %v644
        %v1391 = vunpack.c.l.b16 %v645
        %v1392 = vunpack.c.h.b16 %v645
        %v1393 = vunpack.c.l.b16 %v646
        %v1394 = vunpack.c.h.b16 %v646
        %v1395 = vunpack.c.l.b16 %v647
        %v1396 = vunpack.c.h.b16 %v647
        %v1397 = vunpack.c.l.b16 %v648
        %v1398 = vunpack.c.h.b16 %v648
        %v1399 = vunpack.c.l.b16 %v649
        %v1400 = vunpack.c.h.b16 %v649
        %v1401 = vunpack.c.l.b16 %v650
        %v1402 = vunpack.c.h.b16 %v650
        %v1403 = vunpack.c.l.b16 %v651
        %v1404 = vunpack.c.h.b16 %v651
        %v1405 = vunpack.c.l.b16 %v652
        %v1406 = vunpack.c.h.b16 %v652
        %v1407 = vunpack.c.l.b16 %v653
        %v1408 = vunpack.c.h.b16 %v653
        %v1409 = vunpack.c.l.b16 %v654
        %v1410 = vunpack.c.h.b16 %v654
        %v1411 = vunpack.c.l.b16 %v655
        %v1412 = vunpack.c.h.b16 %v655
        %v1413 = vunpack.c.l.b16 %v656
        %v1414 = vunpack.c.h.b16 %v656
        %v1415 = vunpack.c.l.b16 %v657
        %v1416 = vunpack.c.h.b16 %v657
        %v1417 = vunpack.c.l.b16 %v658
        %v1418 = vunpack.c.h.b16 %v658
        %v1419 = vunpack.c.l.b16 %v659
        %v1420 = vunpack.c.h.b16 %v659
        %v1421 = vunpack.c.l.b16 %v660
        %v1422 = vunpack.c.h.b16 %v660
        %v1423 = vunpack.c.l.b16 %v661
        %v1424 = vunpack.c.h.b16 %v661
        %v1425 = vunpack.c.l.b16 %v662
        %v1426 = vunpack.c.h.b16 %v662
        %v1427 = vunpack.c.l.b16 %v663
        %v1428 = vunpack.c.h.b16 %v663
        %v1429 = vunpack.c.l.b16 %v664
        %v1430 = vunpack.c.h.b16 %v664
        %v1431 = vunpack.c.l.b16 %v665
        %v1432 = vunpack.c.h.b16 %v665
        %v1433 = vunpack.c.l.b16 %v666
        %v1434 = vunpack.c.h.b16 %v666
        %v1435 = vunpack.c.l.b16 %v667
        %v1436 = vunpack.c.h.b16 %v667
        %v1437 = vunpack.c.l.b16 %v668
        %v1438 = vunpack.c.h.b16 %v668
        %v1439 = vunpack.c.l.b16 %v669
        %v1440 = vunpack.c.h.b16 %v669
        %v1441 = vunpack.c.l.b16 %v670
        %v1442 = vunpack.c.h.b16 %v670
        %v1443 = vunpack.c.l.b16 %v671
        %v1444 = vunpack.c.h.b16 %v671
        %v1445 = vunpack.c.l.b16 %v672
        %v1446 = vunpack.c.h.b16 %v672
        %v1447 = vunpack.c.l.b16 %v673
        %v1448 = vunpack.c.h.b16 %v673
        %v1449 = vunpack.c.l.b16 %v674
        %v1450 = vunpack.c.h.b16 %v674
        %v1451 = vunpack.c.l.b16 %v675
        %v1452 = vunpack.c.h.b16 %v675
        %v1453 = vunpack.c.l.b16 %v676
        %v1454 = vunpack.c.h.b16 %v676
        %v1455 = vunpack.c.l.b16 %v677
        %v1456 = vunpack.c.h.b16 %v677
        %v1457 = vunpack.c.l.b16 %v678
        %v1458 = vunpack.c.h.b16 %v678
        %v1459 = vunpack.c.l.b16 %v679
        %v1460 = vunpack.c.h.b16 %v679
        %v1461 = vunpack.c.l.b16 %v680
        %v1462 = vunpack.c.h.b16 %v680
        %v1463 = vunpack.c.l.b16 %v681
        %v1464 = vunpack.c.h.b16 %v681
        %v1465 = vunpack.c.l.b16 %v682
        %v1466 = vunpack.c.h.b16 %v682
        %v1467 = vunpack.c.l.b16 %v683
        %v1468 = vunpack.c.h.b16 %v683
        %v1469 = vunpack.c.l.b16 %v684
        %v1470 = vunpack.c.h.b16 %v684
        %v1471 = vpack.c.b16 %v963, %v959
        %v1472 = vpack.c.b16 %v964, %v960
        %v1473 = vpack.c.b16 %v965, %v961
        %v1474 = vpack.c.b16 %v966, %v962
        %v1475 = vpack.c.b16 %v971, %v967
        %v1476 = vpack.c.b16 %v972, %v968
        %v1477 = vpack.c.b16 %v973, %v969
        %v1478 = vpack.c.b16 %v974, %v970
        %v1479 = vpack.c.b16 %v979, %v975
        %v1480 = vpack.c.b16 %v980, %v976
        %v1481 = vpack.c.b16 %v981, %v977
        %v1482 = vpack.c.b16 %v982, %v978
        %v1483 = vpack.c.b16 %v987, %v983
        %v1484 = vpack.c.b16 %v988, %v984
        %v1485 = vpack.c.b16 %v989, %v985
        %v1486 = vpack.c.b16 %v990, %v986
        %v1487 = vpack.c.b16 %v995, %v991
        %v1488 = vpack.c.b16 %v996, %v992
        %v1489 = vpack.c.b16 %v997, %v993
        %v1490 = vpack.c.b16 %v998, %v994
        %v1491 = vpack.c.b16 %v1003, %v999
        %v1492 = vpack.c.b16 %v1004, %v1000
        %v1493 = vpack.c.b16 %v1005, %v1001
        %v1494 = vpack.c.b16 %v1006, %v1002
        %v1495 = vpack.c.b16 %v1011, %v1007
        %v1496 = vpack.c.b16 %v1012, %v1008
        %v1497 = vpack.c.b16 %v1013, %v1009
        %v1498 = vpack.c.b16 %v1014, %v1010
        %v1499 = vpack.c.b16 %v1019, %v1015
        %v1500 = vpack.c.b16 %v1020, %v1016
        %v1501 = vpack.c.b16 %v1021, %v1017
        %v1502 = vpack.c.b16 %v1022, %v1018
        %v1503 = vpack.c.b16 %v1027, %v1023
        %v1504 = vpack.c.b16 %v1028, %v1024
        %v1505 = vpack.c.b16 %v1029, %v1025
        %v1506 = vpack.c.b16 %v1030, %v1026
        %v1507 = vpack.c.b16 %v1035, %v1031
        %v1508 = vpack.c.b16 %v1036, %v1032
        %v1509 = vpack.c.b16 %v1037, %v1033
        %v1510 = vpack.c.b16 %v1038, %v1034
        %v1511 = vpack.c.b16 %v1043, %v1039
        %v1512 = vpack.c.b16 %v1044, %v1040
        %v1513 = vpack.c.b16 %v1045, %v1041
        %v1514 = vpack.c.b16 %v1046, %v1042
        %v1515 = vpack.c.b16 %v1051, %v1047
        %v1516 = vpack.c.b16 %v1052, %v1048
        %v1517 = vpack.c.b16 %v1053, %v1049
        %v1518 = vpack.c.b16 %v1054, %v1050
        %v1519 = vpack.c.b16 %v1059, %v1055
        %v1520 = vpack.c.b16 %v1060, %v1056
        %v1521 = vpack.c.b16 %v1061, %v1057
        %v1522 = vpack.c.b16 %v1062, %v1058
        %v1523 = vpack.c.b16 %v1067, %v1063
        %v1524 = vpack.c.b16 %v1068, %v1064
        %v1525 = vpack.c.b16 %v1069, %v1065
        %v1526 = vpack.c.b16 %v1070, %v1066
        %v1527 = vpack.c.b16 %v1075, %v1071
        %v1528 = vpack.c.b16 %v1076, %v1072
        %v1529 = vpack.c.b16 %v1077, %v1073
        %v1530 = vpack.c.b16 %v1078, %v1074
        %v1531 = vpack.c.b16 %v1083, %v1079
        %v1532 = vpack.c.b16 %v1084, %v1080
        %v1533 = vpack.c.b16 %v1085, %v1081
        %v1534 = vpack.c.b16 %v1086, %v1082
        %v1535 = vpack.c.b16 %v1091, %v1087
        %v1536 = vpack.c.b16 %v1092, %v1088
        %v1537 = vpack.c.b16 %v1093, %v1089
        %v1538 = vpack.c.b16 %v1094, %v1090
        %v1539 = vpack.c.b16 %v1099, %v1095
        %v1540 = vpack.c.b16 %v1100, %v1096
        %v1541 = vpack.c.b16 %v1101, %v1097
        %v1542 = vpack.c.b16 %v1102, %v1098
        %v1543 = vpack.c.b16 %v1107, %v1103
        %v1544 = vpack.c.b16 %v1108, %v1104
        %v1545 = vpack.c.b16 %v1109, %v1105
        %v1546 = vpack.c.b16 %v1110, %v1106
        %v1547 = vpack.c.b16 %v1115, %v1111
        %v1548 = vpack.c.b16 %v1116, %v1112
        %v1549 = vpack.c.b16 %v1117, %v1113
        %v1550 = vpack.c.b16 %v1118, %v1114
        %v1551 = vpack.c.b16 %v1123, %v1119
        %v1552 = vpack.c.b16 %v1124, %v1120
        %v1553 = vpack.c.b16 %v1125, %v1121
        %v1554 = vpack.c.b16 %v1126, %v1122
        %v1555 = vpack.c.b16 %v1131, %v1127
        %v1556 = vpack.c.b16 %v1132, %v1128
        %v1557 = vpack.c.b16 %v1133, %v1129
        %v1558 = vpack.c.b16 %v1134, %v1130
        %v1559 = vpack.c.b16 %v1139, %v1135
        %v1560 = vpack.c.b16 %v1140, %v1136
        %v1561 = vpack.c.b16 %v1141, %v1137
        %v1562 = vpack.c.b16 %v1142, %v1138
        %v1563 = vpack.c.b16 %v1147, %v1143
        %v1564 = vpack.c.b16 %v1148, %v1144
        %v1565 = vpack.c.b16 %v1149, %v1145
        %v1566 = vpack.c.b16 %v1150, %v1146
        %v1567 = vpack.c.b16 %v1155, %v1151
        %v1568 = vpack.c.b16 %v1156, %v1152
        %v1569 = vpack.c.b16 %v1157, %v1153
        %v1570 = vpack.c.b16 %v1158, %v1154
        %v1571 = vpack.c.b16 %v1163, %v1159
        %v1572 = vpack.c.b16 %v1164, %v1160
        %v1573 = vpack.c.b16 %v1165, %v1161
        %v1574 = vpack.c.b16 %v1166, %v1162
        %v1575 = vpack.c.b16 %v1171, %v1167
        %v1576 = vpack.c.b16 %v1172, %v1168
        %v1577 = vpack.c.b16 %v1173, %v1169
        %v1578 = vpack.c.b16 %v1174, %v1170
        %v1579 = vpack.c.b16 %v1179, %v1175
        %v1580 = vpack.c.b16 %v1180, %v1176
        %v1581 = vpack.c.b16 %v1181, %v1177
        %v1582 = vpack.c.b16 %v1182, %v1178
        %v1583 = vpack.c.b16 %v1187, %v1183
        %v1584 = vpack.c.b16 %v1188, %v1184
        %v1585 = vpack.c.b16 %v1189, %v1185
        %v1586 = vpack.c.b16 %v1190, %v1186
        %v1587 = vpack.c.b16 %v1195, %v1191
        %v1588 = vpack.c.b16 %v1196, %v1192
        %v1589 = vpack.c.b16 %v1197, %v1193
        %v1590 = vpack.c.b16 %v1198, %v1194
        %v1591 = vpack.c.b16 %v1203, %v1199
        %v1592 = vpack.c.b16 %v1204, %v1200
        %v1593 = vpack.c.b16 %v1205, %v1201
        %v1594 = vpack.c.b16 %v1206, %v1202
        %v1595 = vpack.c.b16 %v1211, %v1207
        %v1596 = vpack.c.b16 %v1212, %v1208
        %v1597 = vpack.c.b16 %v1213, %v1209
        %v1598 = vpack.c.b16 %v1214, %v1210
        %v1599 = vpack.c.b16 %v1219, %v1215
        %v1600 = vpack.c.b16 %v1220, %v1216
        %v1601 = vpack.c.b16 %v1221, %v1217
        %v1602 = vpack.c.b16 %v1222, %v1218
        %v1603 = vpack.c.b16 %v1227, %v1223
        %v1604 = vpack.c.b16 %v1228, %v1224
        %v1605 = vpack.c.b16 %v1229, %v1225
        %v1606 = vpack.c.b16 %v1230, %v1226
        %v1607 = vpack.c.b16 %v1235, %v1231
        %v1608 = vpack.c.b16 %v1236, %v1232
        %v1609 = vpack.c.b16 %v1237, %v1233
        %v1610 = vpack.c.b16 %v1238, %v1234
        %v1611 = vpack.c.b16 %v1243, %v1239
        %v1612 = vpack.c.b16 %v1244, %v1240
        %v1613 = vpack.c.b16 %v1245, %v1241
        %v1614 = vpack.c.b16 %v1246, %v1242
        %v1615 = vpack.c.b16 %v1251, %v1247
        %v1616 = vpack.c.b16 %v1252, %v1248
        %v1617 = vpack.c.b16 %v1253, %v1249
        %v1618 = vpack.c.b16 %v1254, %v1250
        %v1619 = vpack.c.b16 %v1259, %v1255
        %v1620 = vpack.c.b16 %v1260, %v1256
        %v1621 = vpack.c.b16 %v1261, %v1257
        %v1622 = vpack.c.b16 %v1262, %v1258
        %v1623 = vpack.c.b16 %v1267, %v1263
        %v1624 = vpack.c.b16 %v1268, %v1264
        %v1625 = vpack.c.b16 %v1269, %v1265
        %v1626 = vpack.c.b16 %v1270, %v1266
        %v1627 = vpack.c.b16 %v1275, %v1271
        %v1628 = vpack.c.b16 %v1276, %v1272
        %v1629 = vpack.c.b16 %v1277, %v1273
        %v1630 = vpack.c.b16 %v1278, %v1274
        %v1631 = vpack.c.b16 %v1283, %v1279
        %v1632 = vpack.c.b16 %v1284, %v1280
        %v1633 = vpack.c.b16 %v1285, %v1281
        %v1634 = vpack.c.b16 %v1286, %v1282
        %v1635 = vpack.c.b16 %v1291, %v1287
        %v1636 = vpack.c.b16 %v1292, %v1288
        %v1637 = vpack.c.b16 %v1293, %v1289
        %v1638 = vpack.c.b16 %v1294, %v1290
        %v1639 = vpack.c.b16 %v1299, %v1295
        %v1640 = vpack.c.b16 %v1300, %v1296
        %v1641 = vpack.c.b16 %v1301, %v1297
        %v1642 = vpack.c.b16 %v1302, %v1298
        %v1643 = vpack.c.b16 %v1307, %v1303
        %v1644 = vpack.c.b16 %v1308, %v1304
        %v1645 = vpack.c.b16 %v1309, %v1305
        %v1646 = vpack.c.b16 %v1310, %v1306
        %v1647 = vpack.c.b16 %v1315, %v1311
        %v1648 = vpack.c.b16 %v1316, %v1312
        %v1649 = vpack.c.b16 %v1317, %v1313
        %v1650 = vpack.c.b16 %v1318, %v1314
        %v1651 = vpack.c.b16 %v1323, %v1319
        %v1652 = vpack.c.b16 %v1324, %v1320
        %v1653 = vpack.c.b16 %v1325, %v1321
        %v1654 = vpack.c.b16 %v1326, %v1322
        %v1655 = vpack.c.b16 %v1331, %v1327
        %v1656 = vpack.c.b16 %v1332, %v1328
        %v1657 = vpack.c.b16 %v1333, %v1329
        %v1658 = vpack.c.b16 %v1334, %v1330
        %v1659 = vpack.c.b16 %v1339, %v1335
        %v1660 = vpack.c.b16 %v1340, %v1336
        %v1661 = vpack.c.b16 %v1341, %v1337
        %v1662 = vpack.c.b16 %v1342, %v1338
        %v1663 = vpack.c.b16 %v1347, %v1343
        %v1664 = vpack.c.b16 %v1348, %v1344
        %v1665 = vpack.c.b16 %v1349, %v1345
        %v1666 = vpack.c.b16 %v1350, %v1346
        %v1667 = vpack.c.b16 %v1355, %v1351
        %v1668 = vpack.c.b16 %v1356, %v1352
        %v1669 = vpack.c.b16 %v1357, %v1353
        %v1670 = vpack.c.b16 %v1358, %v1354
        %v1671 = vpack.c.b16 %v1363, %v1359
        %v1672 = vpack.c.b16 %v1364, %v1360
        %v1673 = vpack.c.b16 %v1365, %v1361
        %v1674 = vpack.c.b16 %v1366, %v1362
        %v1675 = vpack.c.b16 %v1371, %v1367
        %v1676 = vpack.c.b16 %v1372, %v1368
        %v1677 = vpack.c.b16 %v1373, %v1369
        %v1678 = vpack.c.b16 %v1374, %v1370
        %v1679 = vpack.c.b16 %v1379, %v1375
        %v1680 = vpack.c.b16 %v1380, %v1376
        %v1681 = vpack.c.b16 %v1381, %v1377
        %v1682 = vpack.c.b16 %v1382, %v1378
        %v1683 = vpack.c.b16 %v1387, %v1383
        %v1684 = vpack.c.b16 %v1388, %v1384
        %v1685 = vpack.c.b16 %v1389, %v1385
        %v1686 = vpack.c.b16 %v1390, %v1386
        %v1687 = vpack.c.b16 %v1395, %v1391
        %v1688 = vpack.c.b16 %v1396, %v1392
        %v1689 = vpack.c.b16 %v1397, %v1393
        %v1690 = vpack.c.b16 %v1398, %v1394
        %v1691 = vpack.c.b16 %v1403, %v1399
        %v1692 = vpack.c.b16 %v1404, %v1400
        %v1693 = vpack.c.b16 %v1405, %v1401
        %v1694 = vpack.c.b16 %v1406, %v1402
        %v1695 = vpack.c.b16 %v1411, %v1407
        %v1696 = vpack.c.b16 %v1412, %v1408
        %v1697 = vpack.c.b16 %v1413, %v1409
        %v1698 = vpack.c.b16 %v1414, %v1410
        %v1699 = vpack.c.b16 %v1419, %v1415
        %v1700 = vpack.c.b16 %v1420, %v1416
        %v1701 = vpack.c.b16 %v1421, %v1417
        %v1702 = vpack.c.b16 %v1422, %v1418
        %v1703 = vpack.c.b16 %v1427, %v1423
        %v1704 = vpack.c.b16 %v1428, %v1424
        %v1705 = vpack.c.b16 %v1429, %v1425
        %v1706 = vpack.c.b16 %v1430, %v1426
        %v1707 = vpack.c.b16 %v1435, %v1431
        %v1708 = vpack.c.b16 %v1436, %v1432
        %v1709 = vpack.c.b16 %v1437, %v1433
        %v1710 = vpack.c.b16 %v1438, %v1434
        %v1711 = vpack.c.b16 %v1443, %v1439
        %v1712 = vpack.c.b16 %v1444, %v1440
        %v1713 = vpack.c.b16 %v1445, %v1441
        %v1714 = vpack.c.b16 %v1446, %v1442
        %v1715 = vpack.c.b16 %v1451, %v1447
        %v1716 = vpack.c.b16 %v1452, %v1448
        %v1717 = vpack.c.b16 %v1453, %v1449
        %v1718 = vpack.c.b16 %v1454, %v1450
        %v1719 = vpack.c.b16 %v1459, %v1455
        %v1720 = vpack.c.b16 %v1460, %v1456
        %v1721 = vpack.c.b16 %v1461, %v1457
        %v1722 = vpack.c.b16 %v1462, %v1458
        %v1723 = vpack.c.b16 %v1467, %v1463
        %v1724 = vpack.c.b16 %v1468, %v1464
        %v1725 = vpack.c.b16 %v1469, %v1465
        %v1726 = vpack.c.b16 %v1470, %v1466
        %1983 = vmatpush.bf16.msra.mxu0 %v1499
        %1984 = vmatpush.bf16.msra.mxu0 %v1495
        %1985 = vmatpush.bf16.msra.mxu0 %v1491
        %1986 = vmatpush.bf16.msra.mxu0 %v1487
        %1987 = vmatpush.bf16.msra.mxu0 %v1483
        %1988 = vmatpush.bf16.msra.mxu0 %v1479
        %1989 = vmatpush.bf16.msra.mxu0 %v1475
        %1990 = vmatpush.bf16.msra.mxu0 %v1471
        %1991 = vmatmul.bf16.gmra.mxu0 %v687
        %v1992 = vpop.f32.mrf.mxu0
        %v1993 = vadd.f32 0.0, %v1992
        %v1994 = vpop.f32.mrf.mxu0
        %1995 = vdwg.mxu0
        %1996 = vmatpush.bf16.msra.mxu0 %v1531
        %1997 = vmatpush.bf16.msra.mxu0 %v1527
        %1998 = vmatpush.bf16.msra.mxu0 %v1523
        %1999 = vmatpush.bf16.msra.mxu0 %v1519
        %2000 = vmatpush.bf16.msra.mxu0 %v1515
        %2001 = vmatpush.bf16.msra.mxu0 %v1511
        %2002 = vmatpush.bf16.msra.mxu0 %v1507
        %2003 = vmatpush.bf16.msra.mxu0 %v1503
        %2004 = vmatmul.bf16.gmra.mxu0 %v688
        %v2005 = vpop.f32.mrf.mxu0
        %v2006 = vadd.f32 %v1993, %v2005
        %v2007 = vpop.f32.mrf.mxu0
        %2008 = vdwg.mxu0
        %2009 = vmatpush.bf16.msra.mxu0 %v1563
        %2010 = vmatpush.bf16.msra.mxu0 %v1559
        %2011 = vmatpush.bf16.msra.mxu0 %v1555
        %2012 = vmatpush.bf16.msra.mxu0 %v1551
        %2013 = vmatpush.bf16.msra.mxu0 %v1547
        %2014 = vmatpush.bf16.msra.mxu0 %v1543
        %2015 = vmatpush.bf16.msra.mxu0 %v1539
        %2016 = vmatpush.bf16.msra.mxu0 %v1535
        %2017 = vmatmul.bf16.gmra.mxu0 %v689
        %v2018 = vpop.f32.mrf.mxu0
        %v2019 = vadd.f32 %v2006, %v2018
        %v2020 = vpop.f32.mrf.mxu0
        %2021 = vdwg.mxu0
        %2022 = vmatpush.bf16.msra.mxu0 %v1595
        %2023 = vmatpush.bf16.msra.mxu0 %v1591
        %2024 = vmatpush.bf16.msra.mxu0 %v1587
        %2025 = vmatpush.bf16.msra.mxu0 %v1583
        %2026 = vmatpush.bf16.msra.mxu0 %v1579
        %2027 = vmatpush.bf16.msra.mxu0 %v1575
        %2028 = vmatpush.bf16.msra.mxu0 %v1571
        %2029 = vmatpush.bf16.msra.mxu0 %v1567
        %2030 = vmatmul.bf16.gmra.mxu0 %v690
        %v2031 = vpop.f32.mrf.mxu0
        %v2032 = vadd.f32 %v2019, %v2031
        %v2033 = vpop.f32.mrf.mxu0
        %2034 = vdwg.mxu0
        %2035 = vmatpush.bf16.msra.mxu0 %v1627
        %2036 = vmatpush.bf16.msra.mxu0 %v1623
        %2037 = vmatpush.bf16.msra.mxu0 %v1619
        %2038 = vmatpush.bf16.msra.mxu0 %v1615
        %2039 = vmatpush.bf16.msra.mxu0 %v1611
        %2040 = vmatpush.bf16.msra.mxu0 %v1607
        %2041 = vmatpush.bf16.msra.mxu0 %v1603
        %2042 = vmatpush.bf16.msra.mxu0 %v1599
        %2043 = vmatmul.bf16.gmra.mxu0 %v691
        %v2044 = vpop.f32.mrf.mxu0
        %v2045 = vadd.f32 %v2032, %v2044
        %v2046 = vpop.f32.mrf.mxu0
        %2047 = vdwg.mxu0
        %2048 = vmatpush.bf16.msra.mxu0 %v1659
        %2049 = vmatpush.bf16.msra.mxu0 %v1655
        %2050 = vmatpush.bf16.msra.mxu0 %v1651
        %2051 = vmatpush.bf16.msra.mxu0 %v1647
        %2052 = vmatpush.bf16.msra.mxu0 %v1643
        %2053 = vmatpush.bf16.msra.mxu0 %v1639
        %2054 = vmatpush.bf16.msra.mxu0 %v1635
        %2055 = vmatpush.bf16.msra.mxu0 %v1631
        %2056 = vmatmul.bf16.gmra.mxu0 %v692
        %v2057 = vpop.f32.mrf.mxu0
        %v2058 = vadd.f32 %v2045, %v2057
        %v2059 = vpop.f32.mrf.mxu0
        %2060 = vdwg.mxu0
        %2061 = vmatpush.bf16.msra.mxu0 %v1691
        %2062 = vmatpush.bf16.msra.mxu0 %v1687
        %2063 = vmatpush.bf16.msra.mxu0 %v1683
        %2064 = vmatpush.bf16.msra.mxu0 %v1679
        %2065 = vmatpush.bf16.msra.mxu0 %v1675
        %2066 = vmatpush.bf16.msra.mxu0 %v1671
        %2067 = vmatpush.bf16.msra.mxu0 %v1667
        %2068 = vmatpush.bf16.msra.mxu0 %v1663
        %2069 = vmatmul.bf16.gmra.mxu0 %v693
        %v2070 = vpop.f32.mrf.mxu0
        %v2071 = vadd.f32 %v2058, %v2070
        %v2072 = vpop.f32.mrf.mxu0
        %2073 = vdwg.mxu0
        %2074 = vmatpush.bf16.msra.mxu0 %v1723
        %2075 = vmatpush.bf16.msra.mxu0 %v1719
        %2076 = vmatpush.bf16.msra.mxu0 %v1715
        %2077 = vmatpush.bf16.msra.mxu0 %v1711
        %2078 = vmatpush.bf16.msra.mxu0 %v1707
        %2079 = vmatpush.bf16.msra.mxu0 %v1703
        %2080 = vmatpush.bf16.msra.mxu0 %v1699
        %2081 = vmatpush.bf16.msra.mxu0 %v1695
        %2082 = vmatmul.bf16.gmra.mxu0 %v694
        %v2083 = vpop.f32.mrf.mxu0
        %v2084 = vadd.f32 %v2071, %v2083
        %v2085 = vpop.f32.mrf.mxu0
        %2086 = vdwg.mxu0
        %2087 = vmatpush.bf16.msra.mxu0 %v1500
        %2088 = vmatpush.bf16.msra.mxu0 %v1496
        %2089 = vmatpush.bf16.msra.mxu0 %v1492
        %2090 = vmatpush.bf16.msra.mxu0 %v1488
        %2091 = vmatpush.bf16.msra.mxu0 %v1484
        %2092 = vmatpush.bf16.msra.mxu0 %v1480
        %2093 = vmatpush.bf16.msra.mxu0 %v1476
        %2094 = vmatpush.bf16.msra.mxu0 %v1472
        %2095 = vmatmul.bf16.gmra.mxu0 %v687
        %v2096 = vpop.f32.mrf.mxu0
        %v2097 = vadd.f32 0.0, %v2096
        %v2098 = vpop.f32.mrf.mxu0
        %2099 = vdwg.mxu0
        %2100 = vmatpush.bf16.msra.mxu0 %v1532
        %2101 = vmatpush.bf16.msra.mxu0 %v1528
        %2102 = vmatpush.bf16.msra.mxu0 %v1524
        %2103 = vmatpush.bf16.msra.mxu0 %v1520
        %2104 = vmatpush.bf16.msra.mxu0 %v1516
        %2105 = vmatpush.bf16.msra.mxu0 %v1512
        %2106 = vmatpush.bf16.msra.mxu0 %v1508
        %2107 = vmatpush.bf16.msra.mxu0 %v1504
        %2108 = vmatmul.bf16.gmra.mxu0 %v688
        %v2109 = vpop.f32.mrf.mxu0
        %v2110 = vadd.f32 %v2097, %v2109
        %v2111 = vpop.f32.mrf.mxu0
        %2112 = vdwg.mxu0
        %2113 = vmatpush.bf16.msra.mxu0 %v1564
        %2114 = vmatpush.bf16.msra.mxu0 %v1560
        %2115 = vmatpush.bf16.msra.mxu0 %v1556
        %2116 = vmatpush.bf16.msra.mxu0 %v1552
        %2117 = vmatpush.bf16.msra.mxu0 %v1548
        %2118 = vmatpush.bf16.msra.mxu0 %v1544
        %2119 = vmatpush.bf16.msra.mxu0 %v1540
        %2120 = vmatpush.bf16.msra.mxu0 %v1536
        %2121 = vmatmul.bf16.gmra.mxu0 %v689
        %v2122 = vpop.f32.mrf.mxu0
        %v2123 = vadd.f32 %v2110, %v2122
        %v2124 = vpop.f32.mrf.mxu0
        %2125 = vdwg.mxu0
        %2126 = vmatpush.bf16.msra.mxu0 %v1596
        %2127 = vmatpush.bf16.msra.mxu0 %v1592
        %2128 = vmatpush.bf16.msra.mxu0 %v1588
        %2129 = vmatpush.bf16.msra.mxu0 %v1584
        %2130 = vmatpush.bf16.msra.mxu0 %v1580
        %2131 = vmatpush.bf16.msra.mxu0 %v1576
        %2132 = vmatpush.bf16.msra.mxu0 %v1572
        %2133 = vmatpush.bf16.msra.mxu0 %v1568
        %2134 = vmatmul.bf16.gmra.mxu0 %v690
        %v2135 = vpop.f32.mrf.mxu0
        %v2136 = vadd.f32 %v2123, %v2135
        %v2137 = vpop.f32.mrf.mxu0
        %2138 = vdwg.mxu0
        %2139 = vmatpush.bf16.msra.mxu0 %v1628
        %2140 = vmatpush.bf16.msra.mxu0 %v1624
        %2141 = vmatpush.bf16.msra.mxu0 %v1620
        %2142 = vmatpush.bf16.msra.mxu0 %v1616
        %2143 = vmatpush.bf16.msra.mxu0 %v1612
        %2144 = vmatpush.bf16.msra.mxu0 %v1608
        %2145 = vmatpush.bf16.msra.mxu0 %v1604
        %2146 = vmatpush.bf16.msra.mxu0 %v1600
        %2147 = vmatmul.bf16.gmra.mxu0 %v691
        %v2148 = vpop.f32.mrf.mxu0
        %v2149 = vadd.f32 %v2136, %v2148
        %v2150 = vpop.f32.mrf.mxu0
        %2151 = vdwg.mxu0
        %2152 = vmatpush.bf16.msra.mxu0 %v1660
        %2153 = vmatpush.bf16.msra.mxu0 %v1656
        %2154 = vmatpush.bf16.msra.mxu0 %v1652
        %2155 = vmatpush.bf16.msra.mxu0 %v1648
        %2156 = vmatpush.bf16.msra.mxu0 %v1644
        %2157 = vmatpush.bf16.msra.mxu0 %v1640
        %2158 = vmatpush.bf16.msra.mxu0 %v1636
        %2159 = vmatpush.bf16.msra.mxu0 %v1632
        %2160 = vmatmul.bf16.gmra.mxu0 %v692
        %v2161 = vpop.f32.mrf.mxu0
        %v2162 = vadd.f32 %v2149, %v2161
        %v2163 = vpop.f32.mrf.mxu0
        %2164 = vdwg.mxu0
        %2165 = vmatpush.bf16.msra.mxu0 %v1692
        %2166 = vmatpush.bf16.msra.mxu0 %v1688
        %2167 = vmatpush.bf16.msra.mxu0 %v1684
        %2168 = vmatpush.bf16.msra.mxu0 %v1680
        %2169 = vmatpush.bf16.msra.mxu0 %v1676
        %2170 = vmatpush.bf16.msra.mxu0 %v1672
        %2171 = vmatpush.bf16.msra.mxu0 %v1668
        %2172 = vmatpush.bf16.msra.mxu0 %v1664
        %2173 = vmatmul.bf16.gmra.mxu0 %v693
        %v2174 = vpop.f32.mrf.mxu0
        %v2175 = vadd.f32 %v2162, %v2174
        %v2176 = vpop.f32.mrf.mxu0
        %2177 = vdwg.mxu0
        %2178 = vmatpush.bf16.msra.mxu0 %v1724
        %2179 = vmatpush.bf16.msra.mxu0 %v1720
        %2180 = vmatpush.bf16.msra.mxu0 %v1716
        %2181 = vmatpush.bf16.msra.mxu0 %v1712
        %2182 = vmatpush.bf16.msra.mxu0 %v1708
        %2183 = vmatpush.bf16.msra.mxu0 %v1704
        %2184 = vmatpush.bf16.msra.mxu0 %v1700
        %2185 = vmatpush.bf16.msra.mxu0 %v1696
        %2186 = vmatmul.bf16.gmra.mxu0 %v694
        %v2187 = vpop.f32.mrf.mxu0
        %v2188 = vadd.f32 %v2175, %v2187
        %v2189 = vpop.f32.mrf.mxu0
        %2190 = vdwg.mxu0
        %2191 = vmatpush.bf16.msra.mxu0 %v1501
        %2192 = vmatpush.bf16.msra.mxu0 %v1497
        %2193 = vmatpush.bf16.msra.mxu0 %v1493
        %2194 = vmatpush.bf16.msra.mxu0 %v1489
        %2195 = vmatpush.bf16.msra.mxu0 %v1485
        %2196 = vmatpush.bf16.msra.mxu0 %v1481
        %2197 = vmatpush.bf16.msra.mxu0 %v1477
        %2198 = vmatpush.bf16.msra.mxu0 %v1473
        %2199 = vmatmul.bf16.gmra.mxu0 %v687
        %v2200 = vpop.f32.mrf.mxu0
        %v2201 = vadd.f32 0.0, %v2200
        %v2202 = vpop.f32.mrf.mxu0
        %2203 = vdwg.mxu0
        %2204 = vmatpush.bf16.msra.mxu0 %v1533
        %2205 = vmatpush.bf16.msra.mxu0 %v1529
        %2206 = vmatpush.bf16.msra.mxu0 %v1525
        %2207 = vmatpush.bf16.msra.mxu0 %v1521
        %2208 = vmatpush.bf16.msra.mxu0 %v1517
        %2209 = vmatpush.bf16.msra.mxu0 %v1513
        %2210 = vmatpush.bf16.msra.mxu0 %v1509
        %2211 = vmatpush.bf16.msra.mxu0 %v1505
        %2212 = vmatmul.bf16.gmra.mxu0 %v688
        %v2213 = vpop.f32.mrf.mxu0
        %v2214 = vadd.f32 %v2201, %v2213
        %v2215 = vpop.f32.mrf.mxu0
        %2216 = vdwg.mxu0
        %2217 = vmatpush.bf16.msra.mxu0 %v1565
        %2218 = vmatpush.bf16.msra.mxu0 %v1561
        %2219 = vmatpush.bf16.msra.mxu0 %v1557
        %2220 = vmatpush.bf16.msra.mxu0 %v1553
        %2221 = vmatpush.bf16.msra.mxu0 %v1549
        %2222 = vmatpush.bf16.msra.mxu0 %v1545
        %2223 = vmatpush.bf16.msra.mxu0 %v1541
        %2224 = vmatpush.bf16.msra.mxu0 %v1537
        %2225 = vmatmul.bf16.gmra.mxu0 %v689
        %v2226 = vpop.f32.mrf.mxu0
        %v2227 = vadd.f32 %v2214, %v2226
        %v2228 = vpop.f32.mrf.mxu0
        %2229 = vdwg.mxu0
        %2230 = vmatpush.bf16.msra.mxu0 %v1597
        %2231 = vmatpush.bf16.msra.mxu0 %v1593
        %2232 = vmatpush.bf16.msra.mxu0 %v1589
        %2233 = vmatpush.bf16.msra.mxu0 %v1585
        %2234 = vmatpush.bf16.msra.mxu0 %v1581
        %2235 = vmatpush.bf16.msra.mxu0 %v1577
        %2236 = vmatpush.bf16.msra.mxu0 %v1573
        %2237 = vmatpush.bf16.msra.mxu0 %v1569
        %2238 = vmatmul.bf16.gmra.mxu0 %v690
        %v2239 = vpop.f32.mrf.mxu0
        %v2240 = vadd.f32 %v2227, %v2239
        %v2241 = vpop.f32.mrf.mxu0
        %2242 = vdwg.mxu0
        %2243 = vmatpush.bf16.msra.mxu0 %v1629
        %2244 = vmatpush.bf16.msra.mxu0 %v1625
        %2245 = vmatpush.bf16.msra.mxu0 %v1621
        %2246 = vmatpush.bf16.msra.mxu0 %v1617
        %2247 = vmatpush.bf16.msra.mxu0 %v1613
        %2248 = vmatpush.bf16.msra.mxu0 %v1609
        %2249 = vmatpush.bf16.msra.mxu0 %v1605
        %2250 = vmatpush.bf16.msra.mxu0 %v1601
        %2251 = vmatmul.bf16.gmra.mxu0 %v691
        %v2252 = vpop.f32.mrf.mxu0
        %v2253 = vadd.f32 %v2240, %v2252
        %v2254 = vpop.f32.mrf.mxu0
        %2255 = vdwg.mxu0
        %2256 = vmatpush.bf16.msra.mxu0 %v1661
        %2257 = vmatpush.bf16.msra.mxu0 %v1657
        %2258 = vmatpush.bf16.msra.mxu0 %v1653
        %2259 = vmatpush.bf16.msra.mxu0 %v1649
        %2260 = vmatpush.bf16.msra.mxu0 %v1645
        %2261 = vmatpush.bf16.msra.mxu0 %v1641
        %2262 = vmatpush.bf16.msra.mxu0 %v1637
        %2263 = vmatpush.bf16.msra.mxu0 %v1633
        %2264 = vmatmul.bf16.gmra.mxu0 %v692
        %v2265 = vpop.f32.mrf.mxu0
        %v2266 = vadd.f32 %v2253, %v2265
        %v2267 = vpop.f32.mrf.mxu0
        %2268 = vdwg.mxu0
        %2269 = vmatpush.bf16.msra.mxu0 %v1693
        %2270 = vmatpush.bf16.msra.mxu0 %v1689
        %2271 = vmatpush.bf16.msra.mxu0 %v1685
        %2272 = vmatpush.bf16.msra.mxu0 %v1681
        %2273 = vmatpush.bf16.msra.mxu0 %v1677
        %2274 = vmatpush.bf16.msra.mxu0 %v1673
        %2275 = vmatpush.bf16.msra.mxu0 %v1669
        %2276 = vmatpush.bf16.msra.mxu0 %v1665
        %2277 = vmatmul.bf16.gmra.mxu0 %v693
        %v2278 = vpop.f32.mrf.mxu0
        %v2279 = vadd.f32 %v2266, %v2278
        %v2280 = vpop.f32.mrf.mxu0
        %2281 = vdwg.mxu0
        %2282 = vmatpush.bf16.msra.mxu0 %v1725
        %2283 = vmatpush.bf16.msra.mxu0 %v1721
        %2284 = vmatpush.bf16.msra.mxu0 %v1717
        %2285 = vmatpush.bf16.msra.mxu0 %v1713
        %2286 = vmatpush.bf16.msra.mxu0 %v1709
        %2287 = vmatpush.bf16.msra.mxu0 %v1705
        %2288 = vmatpush.bf16.msra.mxu0 %v1701
        %2289 = vmatpush.bf16.msra.mxu0 %v1697
        %2290 = vmatmul.bf16.gmra.mxu0 %v694
        %v2291 = vpop.f32.mrf.mxu0
        %v2292 = vadd.f32 %v2279, %v2291
        %v2293 = vpop.f32.mrf.mxu0
        %2294 = vdwg.mxu0
        %2295 = vmatpush.bf16.msra.mxu0 %v1502
        %2296 = vmatpush.bf16.msra.mxu0 %v1498
        %2297 = vmatpush.bf16.msra.mxu0 %v1494
        %2298 = vmatpush.bf16.msra.mxu0 %v1490
        %2299 = vmatpush.bf16.msra.mxu0 %v1486
        %2300 = vmatpush.bf16.msra.mxu0 %v1482
        %2301 = vmatpush.bf16.msra.mxu0 %v1478
        %2302 = vmatpush.bf16.msra.mxu0 %v1474
        %2303 = vmatmul.bf16.gmra.mxu0 %v687
        %v2304 = vpop.f32.mrf.mxu0
        %v2305 = vadd.f32 0.0, %v2304
        %v2306 = vpop.f32.mrf.mxu0
        %2307 = vdwg.mxu0
        %2308 = vmatpush.bf16.msra.mxu0 %v1534
        %2309 = vmatpush.bf16.msra.mxu0 %v1530
        %2310 = vmatpush.bf16.msra.mxu0 %v1526
        %2311 = vmatpush.bf16.msra.mxu0 %v1522
        %2312 = vmatpush.bf16.msra.mxu0 %v1518
        %2313 = vmatpush.bf16.msra.mxu0 %v1514
        %2314 = vmatpush.bf16.msra.mxu0 %v1510
        %2315 = vmatpush.bf16.msra.mxu0 %v1506
        %2316 = vmatmul.bf16.gmra.mxu0 %v688
        %v2317 = vpop.f32.mrf.mxu0
        %v2318 = vadd.f32 %v2305, %v2317
        %v2319 = vpop.f32.mrf.mxu0
        %2320 = vdwg.mxu0
        %2321 = vmatpush.bf16.msra.mxu0 %v1566
        %2322 = vmatpush.bf16.msra.mxu0 %v1562
        %2323 = vmatpush.bf16.msra.mxu0 %v1558
        %2324 = vmatpush.bf16.msra.mxu0 %v1554
        %2325 = vmatpush.bf16.msra.mxu0 %v1550
        %2326 = vmatpush.bf16.msra.mxu0 %v1546
        %2327 = vmatpush.bf16.msra.mxu0 %v1542
        %2328 = vmatpush.bf16.msra.mxu0 %v1538
        %2329 = vmatmul.bf16.gmra.mxu0 %v689
        %v2330 = vpop.f32.mrf.mxu0
        %v2331 = vadd.f32 %v2318, %v2330
        %v2332 = vpop.f32.mrf.mxu0
        %2333 = vdwg.mxu0
        %2334 = vmatpush.bf16.msra.mxu0 %v1598
        %2335 = vmatpush.bf16.msra.mxu0 %v1594
        %2336 = vmatpush.bf16.msra.mxu0 %v1590
        %2337 = vmatpush.bf16.msra.mxu0 %v1586
        %2338 = vmatpush.bf16.msra.mxu0 %v1582
        %2339 = vmatpush.bf16.msra.mxu0 %v1578
        %2340 = vmatpush.bf16.msra.mxu0 %v1574
        %2341 = vmatpush.bf16.msra.mxu0 %v1570
        %2342 = vmatmul.bf16.gmra.mxu0 %v690
        %v2343 = vpop.f32.mrf.mxu0
        %v2344 = vadd.f32 %v2331, %v2343
        %v2345 = vpop.f32.mrf.mxu0
        %2346 = vdwg.mxu0
        %2347 = vmatpush.bf16.msra.mxu0 %v1630
        %2348 = vmatpush.bf16.msra.mxu0 %v1626
        %2349 = vmatpush.bf16.msra.mxu0 %v1622
        %2350 = vmatpush.bf16.msra.mxu0 %v1618
        %2351 = vmatpush.bf16.msra.mxu0 %v1614
        %2352 = vmatpush.bf16.msra.mxu0 %v1610
        %2353 = vmatpush.bf16.msra.mxu0 %v1606
        %2354 = vmatpush.bf16.msra.mxu0 %v1602
        %2355 = vmatmul.bf16.gmra.mxu0 %v691
        %v2356 = vpop.f32.mrf.mxu0
        %v2357 = vadd.f32 %v2344, %v2356
        %v2358 = vpop.f32.mrf.mxu0
        %2359 = vdwg.mxu0
        %2360 = vmatpush.bf16.msra.mxu0 %v1662
        %2361 = vmatpush.bf16.msra.mxu0 %v1658
        %2362 = vmatpush.bf16.msra.mxu0 %v1654
        %2363 = vmatpush.bf16.msra.mxu0 %v1650
        %2364 = vmatpush.bf16.msra.mxu0 %v1646
        %2365 = vmatpush.bf16.msra.mxu0 %v1642
        %2366 = vmatpush.bf16.msra.mxu0 %v1638
        %2367 = vmatpush.bf16.msra.mxu0 %v1634
        %2368 = vmatmul.bf16.gmra.mxu0 %v692
        %v2369 = vpop.f32.mrf.mxu0
        %v2370 = vadd.f32 %v2357, %v2369
        %v2371 = vpop.f32.mrf.mxu0
        %2372 = vdwg.mxu0
        %2373 = vmatpush.bf16.msra.mxu0 %v1694
        %2374 = vmatpush.bf16.msra.mxu0 %v1690
        %2375 = vmatpush.bf16.msra.mxu0 %v1686
        %2376 = vmatpush.bf16.msra.mxu0 %v1682
        %2377 = vmatpush.bf16.msra.mxu0 %v1678
        %2378 = vmatpush.bf16.msra.mxu0 %v1674
        %2379 = vmatpush.bf16.msra.mxu0 %v1670
        %2380 = vmatpush.bf16.msra.mxu0 %v1666
        %2381 = vmatmul.bf16.gmra.mxu0 %v693
        %v2382 = vpop.f32.mrf.mxu0
        %v2383 = vadd.f32 %v2370, %v2382
        %v2384 = vpop.f32.mrf.mxu0
        %2385 = vdwg.mxu0
        %2386 = vmatpush.bf16.msra.mxu0 %v1726
        %2387 = vmatpush.bf16.msra.mxu0 %v1722
        %2388 = vmatpush.bf16.msra.mxu0 %v1718
        %2389 = vmatpush.bf16.msra.mxu0 %v1714
        %2390 = vmatpush.bf16.msra.mxu0 %v1710
        %2391 = vmatpush.bf16.msra.mxu0 %v1706
        %2392 = vmatpush.bf16.msra.mxu0 %v1702
        %2393 = vmatpush.bf16.msra.mxu0 %v1698
        %2394 = vmatmul.bf16.gmra.mxu0 %v694
        %v2395 = vpop.f32.mrf.mxu0
        %v2396 = vadd.f32 %v2383, %v2395
        %v2397 = vpop.f32.mrf.mxu0
        %2398 = vdwg.mxu0
        %vm2399 = vcmp.ge.f32.partialorder %v2084, 0.0
        %vm2400 = vcmp.ge.f32.partialorder %v2188, 0.0
        %vm2401 = vcmp.ge.f32.partialorder %v2292, 0.0
        %vm2402 = vcmp.ge.f32.partialorder %v2396, 0.0
        %v2403 = vmul.f32 %v2084, 0.01
        %v2404 = vmul.f32 %v2188, 0.01
        %v2405 = vmul.f32 %v2292, 0.01
        %v2406 = vmul.f32 %v2396, 0.01
        %v2407 = vsel %vm2399, %v2084, %v2403
        %v2408 = vsel %vm2400, %v2188, %v2404
        %v2409 = vsel %vm2401, %v2292, %v2405
        %v2410 = vsel %vm2402, %v2396, %v2406
        %v2411 = vpack.c.bf16 %v2407, %v2407
        %v2412 = vpack.c.bf16 %v2408, %v2408
        %v2413 = vpack.c.bf16 %v2409, %v2409
        %v2414 = vpack.c.bf16 %v2410, %v2410
        %v2415 = vld [vmem:[%s3] sm:$0xff]
        %v2416 = vld [vmem:[%s3 + $0x8] sm:$0xff]
        %v2417 = vld [vmem:[%s3 + $0x10] sm:$0xff]
        %v2418 = vld [vmem:[%s3 + $0x18] sm:$0xff]
        %v2419 = vld [vmem:[%s3 + $0x20] sm:$0xff]
        %v2420 = vld [vmem:[%s3 + $0x28] sm:$0xff]
        %v2421 = vld [vmem:[%s3 + $0x30] sm:$0xff]
        %v2422 = vld [vmem:[%s3 + $0x38] sm:$0xff]
        %v2423 = vld [vmem:[%s3 + $0x40] sm:$0xff]
        %v2424 = vld [vmem:[%s3 + $0x48] sm:$0xff]
        %v2425 = vld [vmem:[%s3 + $0x50] sm:$0xff]
        %v2426 = vld [vmem:[%s3 + $0x58] sm:$0xff]
        %v2427 = vld [vmem:[%s3 + $0x60] sm:$0xff]
        %v2428 = vld [vmem:[%s3 + $0x68] sm:$0xff]
        %v2429 = vld [vmem:[%s3 + $0x70] sm:$0xff]
        %v2430 = vld [vmem:[%s3 + $0x78] sm:$0xff]
        %v2431 = vld [vmem:[%s3 + $0x80] sm:$0xff]
        %v2432 = vld [vmem:[%s3 + $0x88] sm:$0xff]
        %v2433 = vld [vmem:[%s3 + $0x90] sm:$0xff]
        %v2434 = vld [vmem:[%s3 + $0x98] sm:$0xff]
        %v2435 = vld [vmem:[%s3 + $0xa0] sm:$0xff]
        %v2436 = vld [vmem:[%s3 + $0xa8] sm:$0xff]
        %v2437 = vld [vmem:[%s3 + $0xb0] sm:$0xff]
        %v2438 = vld [vmem:[%s3 + $0xb8] sm:$0xff]
        %v2439 = vld [vmem:[%s3 + $0xc0] sm:$0xff]
        %v2440 = vld [vmem:[%s3 + $0xc8] sm:$0xff]
        %v2441 = vld [vmem:[%s3 + $0xd0] sm:$0xff]
        %v2442 = vld [vmem:[%s3 + $0xd8] sm:$0xff]
        %v2443 = vld [vmem:[%s3 + $0xe0] sm:$0xff]
        %v2444 = vld [vmem:[%s3 + $0xe8] sm:$0xff]
        %v2445 = vld [vmem:[%s3 + $0xf0] sm:$0xff]
        %v2446 = vld [vmem:[%s3 + $0xf8] sm:$0xff]
        %v2447 = vld [vmem:[%s3 + $0x100] sm:$0xff]
        %v2448 = vld [vmem:[%s3 + $0x108] sm:$0xff]
        %v2449 = vld [vmem:[%s3 + $0x110] sm:$0xff]
        %v2450 = vld [vmem:[%s3 + $0x118] sm:$0xff]
        %v2451 = vld [vmem:[%s3 + $0x120] sm:$0xff]
        %v2452 = vld [vmem:[%s3 + $0x128] sm:$0xff]
        %v2453 = vld [vmem:[%s3 + $0x130] sm:$0xff]
        %v2454 = vld [vmem:[%s3 + $0x138] sm:$0xff]
        %v2455 = vld [vmem:[%s3 + $0x140] sm:$0xff]
        %v2456 = vld [vmem:[%s3 + $0x148] sm:$0xff]
        %v2457 = vld [vmem:[%s3 + $0x150] sm:$0xff]
        %v2458 = vld [vmem:[%s3 + $0x158] sm:$0xff]
        %v2459 = vld [vmem:[%s3 + $0x160] sm:$0xff]
        %v2460 = vld [vmem:[%s3 + $0x168] sm:$0xff]
        %v2461 = vld [vmem:[%s3 + $0x170] sm:$0xff]
        %v2462 = vld [vmem:[%s3 + $0x178] sm:$0xff]
        %v2463 = vld [vmem:[%s3 + $0x180] sm:$0xff]
        %v2464 = vld [vmem:[%s3 + $0x188] sm:$0xff]
        %v2465 = vld [vmem:[%s3 + $0x190] sm:$0xff]
        %v2466 = vld [vmem:[%s3 + $0x198] sm:$0xff]
        %v2467 = vld [vmem:[%s3 + $0x1a0] sm:$0xff]
        %v2468 = vld [vmem:[%s3 + $0x1a8] sm:$0xff]
        %v2469 = vld [vmem:[%s3 + $0x1b0] sm:$0xff]
        %v2470 = vld [vmem:[%s3 + $0x1b8] sm:$0xff]
        %v2471 = vld [vmem:[%s3 + $0x1c0] sm:$0xff]
        %v2472 = vld [vmem:[%s3 + $0x1c8] sm:$0xff]
        %v2473 = vld [vmem:[%s3 + $0x1d0] sm:$0xff]
        %v2474 = vld [vmem:[%s3 + $0x1d8] sm:$0xff]
        %v2475 = vld [vmem:[%s3 + $0x1e0] sm:$0xff]
        %v2476 = vld [vmem:[%s3 + $0x1e8] sm:$0xff]
        %v2477 = vld [vmem:[%s3 + $0x1f0] sm:$0xff]
        %v2478 = vld [vmem:[%s3 + $0x1f8] sm:$0xff]
        %v2543 = vunpack.c.l.b16 %v2415
        %v2544 = vunpack.c.h.b16 %v2415
        %v2545 = vunpack.c.l.b16 %v2416
        %v2546 = vunpack.c.h.b16 %v2416
        %v2547 = vunpack.c.l.b16 %v2417
        %v2548 = vunpack.c.h.b16 %v2417
        %v2549 = vunpack.c.l.b16 %v2418
        %v2550 = vunpack.c.h.b16 %v2418
        %v2551 = vunpack.c.l.b16 %v2419
        %v2552 = vunpack.c.h.b16 %v2419
        %v2553 = vunpack.c.l.b16 %v2420
        %v2554 = vunpack.c.h.b16 %v2420
        %v2555 = vunpack.c.l.b16 %v2421
        %v2556 = vunpack.c.h.b16 %v2421
        %v2557 = vunpack.c.l.b16 %v2422
        %v2558 = vunpack.c.h.b16 %v2422
        %v2559 = vunpack.c.l.b16 %v2423
        %v2560 = vunpack.c.h.b16 %v2423
        %v2561 = vunpack.c.l.b16 %v2424
        %v2562 = vunpack.c.h.b16 %v2424
        %v2563 = vunpack.c.l.b16 %v2425
        %v2564 = vunpack.c.h.b16 %v2425
        %v2565 = vunpack.c.l.b16 %v2426
        %v2566 = vunpack.c.h.b16 %v2426
        %v2567 = vunpack.c.l.b16 %v2427
        %v2568 = vunpack.c.h.b16 %v2427
        %v2569 = vunpack.c.l.b16 %v2428
        %v2570 = vunpack.c.h.b16 %v2428
        %v2571 = vunpack.c.l.b16 %v2429
        %v2572 = vunpack.c.h.b16 %v2429
        %v2573 = vunpack.c.l.b16 %v2430
        %v2574 = vunpack.c.h.b16 %v2430
        %v2575 = vunpack.c.l.b16 %v2431
        %v2576 = vunpack.c.h.b16 %v2431
        %v2577 = vunpack.c.l.b16 %v2432
        %v2578 = vunpack.c.h.b16 %v2432
        %v2579 = vunpack.c.l.b16 %v2433
        %v2580 = vunpack.c.h.b16 %v2433
        %v2581 = vunpack.c.l.b16 %v2434
        %v2582 = vunpack.c.h.b16 %v2434
        %v2583 = vunpack.c.l.b16 %v2435
        %v2584 = vunpack.c.h.b16 %v2435
        %v2585 = vunpack.c.l.b16 %v2436
        %v2586 = vunpack.c.h.b16 %v2436
        %v2587 = vunpack.c.l.b16 %v2437
        %v2588 = vunpack.c.h.b16 %v2437
        %v2589 = vunpack.c.l.b16 %v2438
        %v2590 = vunpack.c.h.b16 %v2438
        %v2591 = vunpack.c.l.b16 %v2439
        %v2592 = vunpack.c.h.b16 %v2439
        %v2593 = vunpack.c.l.b16 %v2440
        %v2594 = vunpack.c.h.b16 %v2440
        %v2595 = vunpack.c.l.b16 %v2441
        %v2596 = vunpack.c.h.b16 %v2441
        %v2597 = vunpack.c.l.b16 %v2442
        %v2598 = vunpack.c.h.b16 %v2442
        %v2599 = vunpack.c.l.b16 %v2443
        %v2600 = vunpack.c.h.b16 %v2443
        %v2601 = vunpack.c.l.b16 %v2444
        %v2602 = vunpack.c.h.b16 %v2444
        %v2603 = vunpack.c.l.b16 %v2445
        %v2604 = vunpack.c.h.b16 %v2445
        %v2605 = vunpack.c.l.b16 %v2446
        %v2606 = vunpack.c.h.b16 %v2446
        %v2607 = vunpack.c.l.b16 %v2447
        %v2608 = vunpack.c.h.b16 %v2447
        %v2609 = vunpack.c.l.b16 %v2448
        %v2610 = vunpack.c.h.b16 %v2448
        %v2611 = vunpack.c.l.b16 %v2449
        %v2612 = vunpack.c.h.b16 %v2449
        %v2613 = vunpack.c.l.b16 %v2450
        %v2614 = vunpack.c.h.b16 %v2450
        %v2615 = vunpack.c.l.b16 %v2451
        %v2616 = vunpack.c.h.b16 %v2451
        %v2617 = vunpack.c.l.b16 %v2452
        %v2618 = vunpack.c.h.b16 %v2452
        %v2619 = vunpack.c.l.b16 %v2453
        %v2620 = vunpack.c.h.b16 %v2453
        %v2621 = vunpack.c.l.b16 %v2454
        %v2622 = vunpack.c.h.b16 %v2454
        %v2623 = vunpack.c.l.b16 %v2455
        %v2624 = vunpack.c.h.b16 %v2455
        %v2625 = vunpack.c.l.b16 %v2456
        %v2626 = vunpack.c.h.b16 %v2456
        %v2627 = vunpack.c.l.b16 %v2457
        %v2628 = vunpack.c.h.b16 %v2457
        %v2629 = vunpack.c.l.b16 %v2458
        %v2630 = vunpack.c.h.b16 %v2458
        %v2631 = vunpack.c.l.b16 %v2459
        %v2632 = vunpack.c.h.b16 %v2459
        %v2633 = vunpack.c.l.b16 %v2460
        %v2634 = vunpack.c.h.b16 %v2460
        %v2635 = vunpack.c.l.b16 %v2461
        %v2636 = vunpack.c.h.b16 %v2461
        %v2637 = vunpack.c.l.b16 %v2462
        %v2638 = vunpack.c.h.b16 %v2462
        %v2639 = vunpack.c.l.b16 %v2463
        %v2640 = vunpack.c.h.b16 %v2463
        %v2641 = vunpack.c.l.b16 %v2464
        %v2642 = vunpack.c.h.b16 %v2464
        %v2643 = vunpack.c.l.b16 %v2465
        %v2644 = vunpack.c.h.b16 %v2465
        %v2645 = vunpack.c.l.b16 %v2466
        %v2646 = vunpack.c.h.b16 %v2466
        %v2647 = vunpack.c.l.b16 %v2467
        %v2648 = vunpack.c.h.b16 %v2467
        %v2649 = vunpack.c.l.b16 %v2468
        %v2650 = vunpack.c.h.b16 %v2468
        %v2651 = vunpack.c.l.b16 %v2469
        %v2652 = vunpack.c.h.b16 %v2469
        %v2653 = vunpack.c.l.b16 %v2470
        %v2654 = vunpack.c.h.b16 %v2470
        %v2655 = vunpack.c.l.b16 %v2471
        %v2656 = vunpack.c.h.b16 %v2471
        %v2657 = vunpack.c.l.b16 %v2472
        %v2658 = vunpack.c.h.b16 %v2472
        %v2659 = vunpack.c.l.b16 %v2473
        %v2660 = vunpack.c.h.b16 %v2473
        %v2661 = vunpack.c.l.b16 %v2474
        %v2662 = vunpack.c.h.b16 %v2474
        %v2663 = vunpack.c.l.b16 %v2475
        %v2664 = vunpack.c.h.b16 %v2475
        %v2665 = vunpack.c.l.b16 %v2476
        %v2666 = vunpack.c.h.b16 %v2476
        %v2667 = vunpack.c.l.b16 %v2477
        %v2668 = vunpack.c.h.b16 %v2477
        %v2669 = vunpack.c.l.b16 %v2478
        %v2670 = vunpack.c.h.b16 %v2478
        %v2671 = vpack.c.b16 %v2545, %v2543
        %v2672 = vpack.c.b16 %v2546, %v2544
        %v2673 = vpack.c.b16 %v2549, %v2547
        %v2674 = vpack.c.b16 %v2550, %v2548
        %v2675 = vpack.c.b16 %v2553, %v2551
        %v2676 = vpack.c.b16 %v2554, %v2552
        %v2677 = vpack.c.b16 %v2557, %v2555
        %v2678 = vpack.c.b16 %v2558, %v2556
        %v2679 = vpack.c.b16 %v2561, %v2559
        %v2680 = vpack.c.b16 %v2562, %v2560
        %v2681 = vpack.c.b16 %v2565, %v2563
        %v2682 = vpack.c.b16 %v2566, %v2564
        %v2683 = vpack.c.b16 %v2569, %v2567
        %v2684 = vpack.c.b16 %v2570, %v2568
        %v2685 = vpack.c.b16 %v2573, %v2571
        %v2686 = vpack.c.b16 %v2574, %v2572
        %v2687 = vpack.c.b16 %v2577, %v2575
        %v2688 = vpack.c.b16 %v2578, %v2576
        %v2689 = vpack.c.b16 %v2581, %v2579
        %v2690 = vpack.c.b16 %v2582, %v2580
        %v2691 = vpack.c.b16 %v2585, %v2583
        %v2692 = vpack.c.b16 %v2586, %v2584
        %v2693 = vpack.c.b16 %v2589, %v2587
        %v2694 = vpack.c.b16 %v2590, %v2588
        %v2695 = vpack.c.b16 %v2593, %v2591
        %v2696 = vpack.c.b16 %v2594, %v2592
        %v2697 = vpack.c.b16 %v2597, %v2595
        %v2698 = vpack.c.b16 %v2598, %v2596
        %v2699 = vpack.c.b16 %v2601, %v2599
        %v2700 = vpack.c.b16 %v2602, %v2600
        %v2701 = vpack.c.b16 %v2605, %v2603
        %v2702 = vpack.c.b16 %v2606, %v2604
        %v2703 = vpack.c.b16 %v2609, %v2607
        %v2704 = vpack.c.b16 %v2610, %v2608
        %v2705 = vpack.c.b16 %v2613, %v2611
        %v2706 = vpack.c.b16 %v2614, %v2612
        %v2707 = vpack.c.b16 %v2617, %v2615
        %v2708 = vpack.c.b16 %v2618, %v2616
        %v2709 = vpack.c.b16 %v2621, %v2619
        %v2710 = vpack.c.b16 %v2622, %v2620
        %v2711 = vpack.c.b16 %v2625, %v2623
        %v2712 = vpack.c.b16 %v2626, %v2624
        %v2713 = vpack.c.b16 %v2629, %v2627
        %v2714 = vpack.c.b16 %v2630, %v2628
        %v2715 = vpack.c.b16 %v2633, %v2631
        %v2716 = vpack.c.b16 %v2634, %v2632
        %v2717 = vpack.c.b16 %v2637, %v2635
        %v2718 = vpack.c.b16 %v2638, %v2636
        %v2719 = vpack.c.b16 %v2641, %v2639
        %v2720 = vpack.c.b16 %v2642, %v2640
        %v2721 = vpack.c.b16 %v2645, %v2643
        %v2722 = vpack.c.b16 %v2646, %v2644
        %v2723 = vpack.c.b16 %v2649, %v2647
        %v2724 = vpack.c.b16 %v2650, %v2648
        %v2725 = vpack.c.b16 %v2653, %v2651
        %v2726 = vpack.c.b16 %v2654, %v2652
        %v2727 = vpack.c.b16 %v2657, %v2655
        %v2728 = vpack.c.b16 %v2658, %v2656
        %v2729 = vpack.c.b16 %v2661, %v2659
        %v2730 = vpack.c.b16 %v2662, %v2660
        %v2731 = vpack.c.b16 %v2665, %v2663
        %v2732 = vpack.c.b16 %v2666, %v2664
        %v2733 = vpack.c.b16 %v2669, %v2667
        %v2734 = vpack.c.b16 %v2670, %v2668
        %2799 = vmatpush.bf16.msra.mxu0 %v2685
        %2800 = vmatpush.bf16.msra.mxu0 %v2683
        %2801 = vmatpush.bf16.msra.mxu0 %v2681
        %2802 = vmatpush.bf16.msra.mxu0 %v2679
        %2803 = vmatpush.bf16.msra.mxu0 %v2677
        %2804 = vmatpush.bf16.msra.mxu0 %v2675
        %2805 = vmatpush.bf16.msra.mxu0 %v2673
        %2806 = vmatpush.bf16.msra.mxu0 %v2671
        %2807 = vmatmul.bf16.gmra.mxu0 %v2411
        %v2808 = vpop.f32.mrf.mxu0
        %v2809 = vadd.f32 0.0, %v2808
        %v2810 = vpop.f32.mrf.mxu0
        %2811 = vdwg.mxu0
        %2812 = vmatpush.bf16.msra.mxu0 %v2701
        %2813 = vmatpush.bf16.msra.mxu0 %v2699
        %2814 = vmatpush.bf16.msra.mxu0 %v2697
        %2815 = vmatpush.bf16.msra.mxu0 %v2695
        %2816 = vmatpush.bf16.msra.mxu0 %v2693
        %2817 = vmatpush.bf16.msra.mxu0 %v2691
        %2818 = vmatpush.bf16.msra.mxu0 %v2689
        %2819 = vmatpush.bf16.msra.mxu0 %v2687
        %2820 = vmatmul.bf16.gmra.mxu0 %v2412
        %v2821 = vpop.f32.mrf.mxu0
        %v2822 = vadd.f32 %v2809, %v2821
        %v2823 = vpop.f32.mrf.mxu0
        %2824 = vdwg.mxu0
        %2825 = vmatpush.bf16.msra.mxu0 %v2717
        %2826 = vmatpush.bf16.msra.mxu0 %v2715
        %2827 = vmatpush.bf16.msra.mxu0 %v2713
        %2828 = vmatpush.bf16.msra.mxu0 %v2711
        %2829 = vmatpush.bf16.msra.mxu0 %v2709
        %2830 = vmatpush.bf16.msra.mxu0 %v2707
        %2831 = vmatpush.bf16.msra.mxu0 %v2705
        %2832 = vmatpush.bf16.msra.mxu0 %v2703
        %2833 = vmatmul.bf16.gmra.mxu0 %v2413
        %v2834 = vpop.f32.mrf.mxu0
        %v2835 = vadd.f32 %v2822, %v2834
        %v2836 = vpop.f32.mrf.mxu0
        %2837 = vdwg.mxu0
        %2838 = vmatpush.bf16.msra.mxu0 %v2733
        %2839 = vmatpush.bf16.msra.mxu0 %v2731
        %2840 = vmatpush.bf16.msra.mxu0 %v2729
        %2841 = vmatpush.bf16.msra.mxu0 %v2727
        %2842 = vmatpush.bf16.msra.mxu0 %v2725
        %2843 = vmatpush.bf16.msra.mxu0 %v2723
        %2844 = vmatpush.bf16.msra.mxu0 %v2721
        %2845 = vmatpush.bf16.msra.mxu0 %v2719
        %2846 = vmatmul.bf16.gmra.mxu0 %v2414
        %v2847 = vpop.f32.mrf.mxu0
        %v2848 = vadd.f32 %v2835, %v2847
        %v2849 = vpop.f32.mrf.mxu0
        %2850 = vdwg.mxu0
        %2851 = vmatpush.bf16.msra.mxu0 %v2686
        %2852 = vmatpush.bf16.msra.mxu0 %v2684
        %2853 = vmatpush.bf16.msra.mxu0 %v2682
        %2854 = vmatpush.bf16.msra.mxu0 %v2680
        %2855 = vmatpush.bf16.msra.mxu0 %v2678
        %2856 = vmatpush.bf16.msra.mxu0 %v2676
        %2857 = vmatpush.bf16.msra.mxu0 %v2674
        %2858 = vmatpush.bf16.msra.mxu0 %v2672
        %2859 = vmatmul.bf16.gmra.mxu0 %v2411
        %v2860 = vpop.f32.mrf.mxu0
        %v2861 = vadd.f32 0.0, %v2860
        %v2862 = vpop.f32.mrf.mxu0
        %2863 = vdwg.mxu0
        %2864 = vmatpush.bf16.msra.mxu0 %v2702
        %2865 = vmatpush.bf16.msra.mxu0 %v2700
        %2866 = vmatpush.bf16.msra.mxu0 %v2698
        %2867 = vmatpush.bf16.msra.mxu0 %v2696
        %2868 = vmatpush.bf16.msra.mxu0 %v2694
        %2869 = vmatpush.bf16.msra.mxu0 %v2692
        %2870 = vmatpush.bf16.msra.mxu0 %v2690
        %2871 = vmatpush.bf16.msra.mxu0 %v2688
        %2872 = vmatmul.bf16.gmra.mxu0 %v2412
        %v2873 = vpop.f32.mrf.mxu0
        %v2874 = vadd.f32 %v2861, %v2873
        %v2875 = vpop.f32.mrf.mxu0
        %2876 = vdwg.mxu0
        %2877 = vmatpush.bf16.msra.mxu0 %v2718
        %2878 = vmatpush.bf16.msra.mxu0 %v2716
        %2879 = vmatpush.bf16.msra.mxu0 %v2714
        %2880 = vmatpush.bf16.msra.mxu0 %v2712
        %2881 = vmatpush.bf16.msra.mxu0 %v2710
        %2882 = vmatpush.bf16.msra.mxu0 %v2708
        %2883 = vmatpush.bf16.msra.mxu0 %v2706
        %2884 = vmatpush.bf16.msra.mxu0 %v2704
        %2885 = vmatmul.bf16.gmra.mxu0 %v2413
        %v2886 = vpop.f32.mrf.mxu0
        %v2887 = vadd.f32 %v2874, %v2886
        %v2888 = vpop.f32.mrf.mxu0
        %2889 = vdwg.mxu0
        %2890 = vmatpush.bf16.msra.mxu0 %v2734
        %2891 = vmatpush.bf16.msra.mxu0 %v2732
        %2892 = vmatpush.bf16.msra.mxu0 %v2730
        %2893 = vmatpush.bf16.msra.mxu0 %v2728
        %2894 = vmatpush.bf16.msra.mxu0 %v2726
        %2895 = vmatpush.bf16.msra.mxu0 %v2724
        %2896 = vmatpush.bf16.msra.mxu0 %v2722
        %2897 = vmatpush.bf16.msra.mxu0 %v2720
        %2898 = vmatmul.bf16.gmra.mxu0 %v2414
        %v2899 = vpop.f32.mrf.mxu0
        %v2900 = vadd.f32 %v2887, %v2899
        %v2901 = vpop.f32.mrf.mxu0
        %2902 = vdwg.mxu0
        %vm2903 = vcmp.ge.f32.partialorder %v2848, 0.0
        %vm2904 = vcmp.ge.f32.partialorder %v2900, 0.0
        %v2905 = vmul.f32 %v2848, 0.01
        %v2906 = vmul.f32 %v2900, 0.01
        %v2907 = vsel %vm2903, %v2848, %v2905
        %v2908 = vsel %vm2904, %v2900, %v2906
        %v2909 = vpack.c.bf16 %v2907, %v2907
        %v2910 = vpack.c.bf16 %v2908, %v2908
        %v2911 = vld [vmem:[%s4] sm:$0xf]
        %v2912 = vld [vmem:[%s4 + $0x4] sm:$0xf]
        %v2913 = vld [vmem:[%s4 + $0x8] sm:$0xf]
        %v2914 = vld [vmem:[%s4 + $0xc] sm:$0xf]
        %v2915 = vld [vmem:[%s4 + $0x10] sm:$0xf]
        %v2916 = vld [vmem:[%s4 + $0x14] sm:$0xf]
        %v2917 = vld [vmem:[%s4 + $0x18] sm:$0xf]
        %v2918 = vld [vmem:[%s4 + $0x1c] sm:$0xf]
        %v2919 = vld [vmem:[%s4 + $0x20] sm:$0xf]
        %v2920 = vld [vmem:[%s4 + $0x24] sm:$0xf]
        %v2921 = vld [vmem:[%s4 + $0x28] sm:$0xf]
        %v2922 = vld [vmem:[%s4 + $0x2c] sm:$0xf]
        %v2923 = vld [vmem:[%s4 + $0x30] sm:$0xf]
        %v2924 = vld [vmem:[%s4 + $0x34] sm:$0xf]
        %v2925 = vld [vmem:[%s4 + $0x38] sm:$0xf]
        %v2926 = vld [vmem:[%s4 + $0x3c] sm:$0xf]
        %v2927 = vld [vmem:[%s4 + $0x40] sm:$0xf]
        %v2928 = vld [vmem:[%s4 + $0x44] sm:$0xf]
        %v2929 = vld [vmem:[%s4 + $0x48] sm:$0xf]
        %v2930 = vld [vmem:[%s4 + $0x4c] sm:$0xf]
        %v2931 = vld [vmem:[%s4 + $0x50] sm:$0xf]
        %v2932 = vld [vmem:[%s4 + $0x54] sm:$0xf]
        %v2933 = vld [vmem:[%s4 + $0x58] sm:$0xf]
        %v2934 = vld [vmem:[%s4 + $0x5c] sm:$0xf]
        %v2935 = vld [vmem:[%s4 + $0x60] sm:$0xf]
        %v2936 = vld [vmem:[%s4 + $0x64] sm:$0xf]
        %v2937 = vld [vmem:[%s4 + $0x68] sm:$0xf]
        %v2938 = vld [vmem:[%s4 + $0x6c] sm:$0xf]
        %v2939 = vld [vmem:[%s4 + $0x70] sm:$0xf]
        %v2940 = vld [vmem:[%s4 + $0x74] sm:$0xf]
        %v2941 = vld [vmem:[%s4 + $0x78] sm:$0xf]
        %v2942 = vld [vmem:[%s4 + $0x7c] sm:$0xf]
        %v2975 = vunpack.c.l.b16 %v2911
        %v2976 = vunpack.c.l.b16 %v2912
        %v2977 = vunpack.c.l.b16 %v2913
        %v2978 = vunpack.c.l.b16 %v2914
        %v2979 = vunpack.c.l.b16 %v2915
        %v2980 = vunpack.c.l.b16 %v2916
        %v2981 = vunpack.c.l.b16 %v2917
        %v2982 = vunpack.c.l.b16 %v2918
        %v2983 = vunpack.c.l.b16 %v2919
        %v2984 = vunpack.c.l.b16 %v2920
        %v2985 = vunpack.c.l.b16 %v2921
        %v2986 = vunpack.c.l.b16 %v2922
        %v2987 = vunpack.c.l.b16 %v2923
        %v2988 = vunpack.c.l.b16 %v2924
        %v2989 = vunpack.c.l.b16 %v2925
        %v2990 = vunpack.c.l.b16 %v2926
        %v2991 = vunpack.c.l.b16 %v2927
        %v2992 = vunpack.c.l.b16 %v2928
        %v2993 = vunpack.c.l.b16 %v2929
        %v2994 = vunpack.c.l.b16 %v2930
        %v2995 = vunpack.c.l.b16 %v2931
        %v2996 = vunpack.c.l.b16 %v2932
        %v2997 = vunpack.c.l.b16 %v2933
        %v2998 = vunpack.c.l.b16 %v2934
        %v2999 = vunpack.c.l.b16 %v2935
        %v3000 = vunpack.c.l.b16 %v2936
        %v3001 = vunpack.c.l.b16 %v2937
        %v3002 = vunpack.c.l.b16 %v2938
        %v3003 = vunpack.c.l.b16 %v2939
        %v3004 = vunpack.c.l.b16 %v2940
        %v3005 = vunpack.c.l.b16 %v2941
        %v3006 = vunpack.c.l.b16 %v2942
        %v3007 = vpack.c.b16 %v2976, %v2975
        %v3008 = vpack.c.b16 %v2978, %v2977
        %v3009 = vpack.c.b16 %v2980, %v2979
        %v3010 = vpack.c.b16 %v2982, %v2981
        %v3011 = vpack.c.b16 %v2984, %v2983
        %v3012 = vpack.c.b16 %v2986, %v2985
        %v3013 = vpack.c.b16 %v2988, %v2987
        %v3014 = vpack.c.b16 %v2990, %v2989
        %v3015 = vpack.c.b16 %v2992, %v2991
        %v3016 = vpack.c.b16 %v2994, %v2993
        %v3017 = vpack.c.b16 %v2996, %v2995
        %v3018 = vpack.c.b16 %v2998, %v2997
        %v3019 = vpack.c.b16 %v3000, %v2999
        %v3020 = vpack.c.b16 %v3002, %v3001
        %v3021 = vpack.c.b16 %v3004, %v3003
        %v3022 = vpack.c.b16 %v3006, %v3005
        %3039 = vmatpush.bf16.msra.mxu0 %v3014
        %3040 = vmatpush.bf16.msra.mxu0 %v3013
        %3041 = vmatpush.bf16.msra.mxu0 %v3012
        %3042 = vmatpush.bf16.msra.mxu0 %v3011
        %3043 = vmatpush.bf16.msra.mxu0 %v3010
        %3044 = vmatpush.bf16.msra.mxu0 %v3009
        %3045 = vmatpush.bf16.msra.mxu0 %v3008
        %3046 = vmatpush.bf16.msra.mxu0 %v3007
        %3047 = vmatmul.bf16.gmra.mxu0 %v2909
        %v3048 = vpop.f32.mrf.mxu0
        %v3049 = vadd.f32 0.0, %v3048
        %v3050 = vpop.f32.mrf.mxu0
        %3051 = vdwg.mxu0
        %3052 = vmatpush.bf16.msra.mxu0 %v3022
        %3053 = vmatpush.bf16.msra.mxu0 %v3021
        %3054 = vmatpush.bf16.msra.mxu0 %v3020
        %3055 = vmatpush.bf16.msra.mxu0 %v3019
        %3056 = vmatpush.bf16.msra.mxu0 %v3018
        %3057 = vmatpush.bf16.msra.mxu0 %v3017
        %3058 = vmatpush.bf16.msra.mxu0 %v3016
        %3059 = vmatpush.bf16.msra.mxu0 %v3015
        %3060 = vmatmul.bf16.gmra.mxu0 %v2910
        %v3061 = vpop.f32.mrf.mxu0
        %v3062 = vadd.f32 %v3049, %v3061
        %v3063 = vpop.f32.mrf.mxu0
        %3064 = vdwg.mxu0
        %v3065 = vlaneseq
        %v3066 = vand.u32 %v3065, 127
        %vm3067 = vcmp.ge.s32.totalorder %v3066, 8
        %vm3068 = vcmp.lt.s32.totalorder %v3066, 16
        %vm3069 = vmand %vm3067, %vm3068
        %v3070 = vmul.f32 %v3062, 1.442695
        %v3071 = vpow.pop %v3070
        %v3072 = vsel %vm3069, %v3071, %v3062
        %3073 = vst [vmem:[%s427] sm:$0x1] %v3072
        %v3074 = vld [vmem:[%s420] sm:$0x1]
        %v3075 = vmul.f32 %v3072, %v3074
        %v3076 = vpack.c.bf16 %v3075, %v3075
        %v3077 = vld [vmem:[%s5] sm:$0xff]
        %v3078 = vld [vmem:[%s5 + $0x8] sm:$0xff]
        %v3079 = vld [vmem:[%s5 + $0x10] sm:$0xff]
        %v3080 = vld [vmem:[%s5 + $0x18] sm:$0xff]
        %v3081 = vld [vmem:[%s5 + $0x20] sm:$0xff]
        %v3082 = vld [vmem:[%s5 + $0x28] sm:$0xff]
        %v3083 = vld [vmem:[%s5 + $0x30] sm:$0xff]
        %v3084 = vld [vmem:[%s5 + $0x38] sm:$0xff]
        %v3085 = vld [vmem:[%s5 + $0x40] sm:$0xff]
        %v3086 = vld [vmem:[%s5 + $0x48] sm:$0xff]
        %v3087 = vld [vmem:[%s5 + $0x50] sm:$0xff]
        %v3088 = vld [vmem:[%s5 + $0x58] sm:$0xff]
        %v3089 = vld [vmem:[%s5 + $0x60] sm:$0xff]
        %v3090 = vld [vmem:[%s5 + $0x68] sm:$0xff]
        %v3091 = vld [vmem:[%s5 + $0x70] sm:$0xff]
        %v3092 = vld [vmem:[%s5 + $0x78] sm:$0xff]
        %v3109 = vunpack.c.l.b16 %v3077
        %v3110 = vunpack.c.h.b16 %v3077
        %v3111 = vunpack.c.l.b16 %v3078
        %v3112 = vunpack.c.h.b16 %v3078
        %v3113 = vunpack.c.l.b16 %v3079
        %v3114 = vunpack.c.h.b16 %v3079
        %v3115 = vunpack.c.l.b16 %v3080
        %v3116 = vunpack.c.h.b16 %v3080
        %v3117 = vunpack.c.l.b16 %v3081
        %v3118 = vunpack.c.h.b16 %v3081
        %v3119 = vunpack.c.l.b16 %v3082
        %v3120 = vunpack.c.h.b16 %v3082
        %v3121 = vunpack.c.l.b16 %v3083
        %v3122 = vunpack.c.h.b16 %v3083
        %v3123 = vunpack.c.l.b16 %v3084
        %v3124 = vunpack.c.h.b16 %v3084
        %v3125 = vunpack.c.l.b16 %v3085
        %v3126 = vunpack.c.h.b16 %v3085
        %v3127 = vunpack.c.l.b16 %v3086
        %v3128 = vunpack.c.h.b16 %v3086
        %v3129 = vunpack.c.l.b16 %v3087
        %v3130 = vunpack.c.h.b16 %v3087
        %v3131 = vunpack.c.l.b16 %v3088
        %v3132 = vunpack.c.h.b16 %v3088
        %v3133 = vunpack.c.l.b16 %v3089
        %v3134 = vunpack.c.h.b16 %v3089
        %v3135 = vunpack.c.l.b16 %v3090
        %v3136 = vunpack.c.h.b16 %v3090
        %v3137 = vunpack.c.l.b16 %v3091
        %v3138 = vunpack.c.h.b16 %v3091
        %v3139 = vunpack.c.l.b16 %v3092
        %v3140 = vunpack.c.h.b16 %v3092
        %v3141 = vpack.c.b16 %v3111, %v3109
        %v3142 = vpack.c.b16 %v3112, %v3110
        %v3143 = vpack.c.b16 %v3115, %v3113
        %v3144 = vpack.c.b16 %v3116, %v3114
        %v3145 = vpack.c.b16 %v3119, %v3117
        %v3146 = vpack.c.b16 %v3120, %v3118
        %v3147 = vpack.c.b16 %v3123, %v3121
        %v3148 = vpack.c.b16 %v3124, %v3122
        %v3149 = vpack.c.b16 %v3127, %v3125
        %v3150 = vpack.c.b16 %v3128, %v3126
        %v3151 = vpack.c.b16 %v3131, %v3129
        %v3152 = vpack.c.b16 %v3132, %v3130
        %v3153 = vpack.c.b16 %v3135, %v3133
        %v3154 = vpack.c.b16 %v3136, %v3134
        %v3155 = vpack.c.b16 %v3139, %v3137
        %v3156 = vpack.c.b16 %v3140, %v3138
        %3173 = vmatpush.bf16.msra.mxu0 %v3155
        %3174 = vmatpush.bf16.msra.mxu0 %v3153
        %3175 = vmatpush.bf16.msra.mxu0 %v3151
        %3176 = vmatpush.bf16.msra.mxu0 %v3149
        %3177 = vmatpush.bf16.msra.mxu0 %v3147
        %3178 = vmatpush.bf16.msra.mxu0 %v3145
        %3179 = vmatpush.bf16.msra.mxu0 %v3143
        %3180 = vmatpush.bf16.msra.mxu0 %v3141
        %3181 = vmatmul.bf16.gmra.mxu0 %v3076
        %v3182 = vpop.f32.mrf.mxu0
        %v3183 = vadd.f32 0.0, %v3182
        %v3184 = vpop.f32.mrf.mxu0
        %3185 = vdwg.mxu0
        %3186 = vmatpush.bf16.msra.mxu0 %v3156
        %3187 = vmatpush.bf16.msra.mxu0 %v3154
        %3188 = vmatpush.bf16.msra.mxu0 %v3152
        %3189 = vmatpush.bf16.msra.mxu0 %v3150
        %3190 = vmatpush.bf16.msra.mxu0 %v3148
        %3191 = vmatpush.bf16.msra.mxu0 %v3146
        %3192 = vmatpush.bf16.msra.mxu0 %v3144
        %3193 = vmatpush.bf16.msra.mxu0 %v3142
        %3194 = vmatmul.bf16.gmra.mxu0 %v3076
        %v3195 = vpop.f32.mrf.mxu0
        %v3196 = vadd.f32 0.0, %v3195
        %v3197 = vpop.f32.mrf.mxu0
        %3198 = vdwg.mxu0
        %vm3199 = vcmp.ge.f32.partialorder %v3183, 0.0
        %vm3200 = vcmp.ge.f32.partialorder %v3196, 0.0
        %v3201 = vmul.f32 %v3183, 0.01
        %v3202 = vmul.f32 %v3196, 0.01
        %v3203 = vsel %vm3199, %v3183, %v3201
        %v3204 = vsel %vm3200, %v3196, %v3202
        %v3205 = vpack.c.bf16 %v3203, %v3203
        %v3206 = vpack.c.bf16 %v3204, %v3204
        %v3207 = vld [vmem:[#allocation4] sm:$0xff]
        %v3208 = vld [vmem:[#allocation4 + $0x8] sm:$0xff]
        %v3209 = vld [vmem:[#allocation4 + $0x10] sm:$0xff]
        %v3210 = vld [vmem:[#allocation4 + $0x18] sm:$0xff]
        %v3211 = vld [vmem:[#allocation4 + $0x20] sm:$0xff]
        %v3212 = vld [vmem:[#allocation4 + $0x28] sm:$0xff]
        %v3213 = vld [vmem:[#allocation4 + $0x30] sm:$0xff]
        %v3214 = vld [vmem:[#allocation4 + $0x38] sm:$0xff]
        %v3215 = vld [vmem:[#allocation4 + $0x40] sm:$0xff]
        %v3216 = vld [vmem:[#allocation4 + $0x48] sm:$0xff]
        %v3217 = vld [vmem:[#allocation4 + $0x50] sm:$0xff]
        %v3218 = vld [vmem:[#allocation4 + $0x58] sm:$0xff]
        %v3219 = vld [vmem:[#allocation4 + $0x60] sm:$0xff]
        %v3220 = vld [vmem:[#allocation4 + $0x68] sm:$0xff]
        %v3221 = vld [vmem:[#allocation4 + $0x70] sm:$0xff]
        %v3222 = vld [vmem:[#allocation4 + $0x78] sm:$0xff]
        %v3223 = vld [vmem:[#allocation4 + $0x80] sm:$0xff]
        %v3224 = vld [vmem:[#allocation4 + $0x88] sm:$0xff]
        %v3225 = vld [vmem:[#allocation4 + $0x90] sm:$0xff]
        %v3226 = vld [vmem:[#allocation4 + $0x98] sm:$0xff]
        %v3227 = vld [vmem:[#allocation4 + $0xa0] sm:$0xff]
        %v3228 = vld [vmem:[#allocation4 + $0xa8] sm:$0xff]
        %v3229 = vld [vmem:[#allocation4 + $0xb0] sm:$0xff]
        %v3230 = vld [vmem:[#allocation4 + $0xb8] sm:$0xff]
        %v3231 = vld [vmem:[#allocation4 + $0xc0] sm:$0xff]
        %v3232 = vld [vmem:[#allocation4 + $0xc8] sm:$0xff]
        %v3233 = vld [vmem:[#allocation4 + $0xd0] sm:$0xff]
        %v3234 = vld [vmem:[#allocation4 + $0xd8] sm:$0xff]
        %v3235 = vld [vmem:[#allocation4 + $0xe0] sm:$0xff]
        %v3236 = vld [vmem:[#allocation4 + $0xe8] sm:$0xff]
        %v3237 = vld [vmem:[#allocation4 + $0xf0] sm:$0xff]
        %v3238 = vld [vmem:[#allocation4 + $0xf8] sm:$0xff]
        %v3239 = vld [vmem:[#allocation4 + $0x100] sm:$0xff]
        %v3240 = vld [vmem:[#allocation4 + $0x108] sm:$0xff]
        %v3241 = vld [vmem:[#allocation4 + $0x110] sm:$0xff]
        %v3242 = vld [vmem:[#allocation4 + $0x118] sm:$0xff]
        %v3243 = vld [vmem:[#allocation4 + $0x120] sm:$0xff]
        %v3244 = vld [vmem:[#allocation4 + $0x128] sm:$0xff]
        %v3245 = vld [vmem:[#allocation4 + $0x130] sm:$0xff]
        %v3246 = vld [vmem:[#allocation4 + $0x138] sm:$0xff]
        %v3247 = vld [vmem:[#allocation4 + $0x140] sm:$0xff]
        %v3248 = vld [vmem:[#allocation4 + $0x148] sm:$0xff]
        %v3249 = vld [vmem:[#allocation4 + $0x150] sm:$0xff]
        %v3250 = vld [vmem:[#allocation4 + $0x158] sm:$0xff]
        %v3251 = vld [vmem:[#allocation4 + $0x160] sm:$0xff]
        %v3252 = vld [vmem:[#allocation4 + $0x168] sm:$0xff]
        %v3253 = vld [vmem:[#allocation4 + $0x170] sm:$0xff]
        %v3254 = vld [vmem:[#allocation4 + $0x178] sm:$0xff]
        %v3255 = vld [vmem:[#allocation4 + $0x180] sm:$0xff]
        %v3256 = vld [vmem:[#allocation4 + $0x188] sm:$0xff]
        %v3257 = vld [vmem:[#allocation4 + $0x190] sm:$0xff]
        %v3258 = vld [vmem:[#allocation4 + $0x198] sm:$0xff]
        %v3259 = vld [vmem:[#allocation4 + $0x1a0] sm:$0xff]
        %v3260 = vld [vmem:[#allocation4 + $0x1a8] sm:$0xff]
        %v3261 = vld [vmem:[#allocation4 + $0x1b0] sm:$0xff]
        %v3262 = vld [vmem:[#allocation4 + $0x1b8] sm:$0xff]
        %v3263 = vld [vmem:[#allocation4 + $0x1c0] sm:$0xff]
        %v3264 = vld [vmem:[#allocation4 + $0x1c8] sm:$0xff]
        %v3265 = vld [vmem:[#allocation4 + $0x1d0] sm:$0xff]
        %v3266 = vld [vmem:[#allocation4 + $0x1d8] sm:$0xff]
        %v3267 = vld [vmem:[#allocation4 + $0x1e0] sm:$0xff]
        %v3268 = vld [vmem:[#allocation4 + $0x1e8] sm:$0xff]
        %v3269 = vld [vmem:[#allocation4 + $0x1f0] sm:$0xff]
        %v3270 = vld [vmem:[#allocation4 + $0x1f8] sm:$0xff]
        %v3335 = vunpack.c.l.b16 %v3207
        %v3336 = vunpack.c.h.b16 %v3207
        %v3337 = vunpack.c.l.b16 %v3208
        %v3338 = vunpack.c.h.b16 %v3208
        %v3339 = vunpack.c.l.b16 %v3209
        %v3340 = vunpack.c.h.b16 %v3209
        %v3341 = vunpack.c.l.b16 %v3210
        %v3342 = vunpack.c.h.b16 %v3210
        %v3343 = vunpack.c.l.b16 %v3211
        %v3344 = vunpack.c.h.b16 %v3211
        %v3345 = vunpack.c.l.b16 %v3212
        %v3346 = vunpack.c.h.b16 %v3212
        %v3347 = vunpack.c.l.b16 %v3213
        %v3348 = vunpack.c.h.b16 %v3213
        %v3349 = vunpack.c.l.b16 %v3214
        %v3350 = vunpack.c.h.b16 %v3214
        %v3351 = vunpack.c.l.b16 %v3215
        %v3352 = vunpack.c.h.b16 %v3215
        %v3353 = vunpack.c.l.b16 %v3216
        %v3354 = vunpack.c.h.b16 %v3216
        %v3355 = vunpack.c.l.b16 %v3217
        %v3356 = vunpack.c.h.b16 %v3217
        %v3357 = vunpack.c.l.b16 %v3218
        %v3358 = vunpack.c.h.b16 %v3218
        %v3359 = vunpack.c.l.b16 %v3219
        %v3360 = vunpack.c.h.b16 %v3219
        %v3361 = vunpack.c.l.b16 %v3220
        %v3362 = vunpack.c.h.b16 %v3220
        %v3363 = vunpack.c.l.b16 %v3221
        %v3364 = vunpack.c.h.b16 %v3221
        %v3365 = vunpack.c.l.b16 %v3222
        %v3366 = vunpack.c.h.b16 %v3222
        %v3367 = vunpack.c.l.b16 %v3223
        %v3368 = vunpack.c.h.b16 %v3223
        %v3369 = vunpack.c.l.b16 %v3224
        %v3370 = vunpack.c.h.b16 %v3224
        %v3371 = vunpack.c.l.b16 %v3225
        %v3372 = vunpack.c.h.b16 %v3225
        %v3373 = vunpack.c.l.b16 %v3226
        %v3374 = vunpack.c.h.b16 %v3226
        %v3375 = vunpack.c.l.b16 %v3227
        %v3376 = vunpack.c.h.b16 %v3227
        %v3377 = vunpack.c.l.b16 %v3228
        %v3378 = vunpack.c.h.b16 %v3228
        %v3379 = vunpack.c.l.b16 %v3229
        %v3380 = vunpack.c.h.b16 %v3229
        %v3381 = vunpack.c.l.b16 %v3230
        %v3382 = vunpack.c.h.b16 %v3230
        %v3383 = vunpack.c.l.b16 %v3231
        %v3384 = vunpack.c.h.b16 %v3231
        %v3385 = vunpack.c.l.b16 %v3232
        %v3386 = vunpack.c.h.b16 %v3232
        %v3387 = vunpack.c.l.b16 %v3233
        %v3388 = vunpack.c.h.b16 %v3233
        %v3389 = vunpack.c.l.b16 %v3234
        %v3390 = vunpack.c.h.b16 %v3234
        %v3391 = vunpack.c.l.b16 %v3235
        %v3392 = vunpack.c.h.b16 %v3235
        %v3393 = vunpack.c.l.b16 %v3236
        %v3394 = vunpack.c.h.b16 %v3236
        %v3395 = vunpack.c.l.b16 %v3237
        %v3396 = vunpack.c.h.b16 %v3237
        %v3397 = vunpack.c.l.b16 %v3238
        %v3398 = vunpack.c.h.b16 %v3238
        %v3399 = vunpack.c.l.b16 %v3239
        %v3400 = vunpack.c.h.b16 %v3239
        %v3401 = vunpack.c.l.b16 %v3240
        %v3402 = vunpack.c.h.b16 %v3240
        %v3403 = vunpack.c.l.b16 %v3241
        %v3404 = vunpack.c.h.b16 %v3241
        %v3405 = vunpack.c.l.b16 %v3242
        %v3406 = vunpack.c.h.b16 %v3242
        %v3407 = vunpack.c.l.b16 %v3243
        %v3408 = vunpack.c.h.b16 %v3243
        %v3409 = vunpack.c.l.b16 %v3244
        %v3410 = vunpack.c.h.b16 %v3244
        %v3411 = vunpack.c.l.b16 %v3245
        %v3412 = vunpack.c.h.b16 %v3245
        %v3413 = vunpack.c.l.b16 %v3246
        %v3414 = vunpack.c.h.b16 %v3246
        %v3415 = vunpack.c.l.b16 %v3247
        %v3416 = vunpack.c.h.b16 %v3247
        %v3417 = vunpack.c.l.b16 %v3248
        %v3418 = vunpack.c.h.b16 %v3248
        %v3419 = vunpack.c.l.b16 %v3249
        %v3420 = vunpack.c.h.b16 %v3249
        %v3421 = vunpack.c.l.b16 %v3250
        %v3422 = vunpack.c.h.b16 %v3250
        %v3423 = vunpack.c.l.b16 %v3251
        %v3424 = vunpack.c.h.b16 %v3251
        %v3425 = vunpack.c.l.b16 %v3252
        %v3426 = vunpack.c.h.b16 %v3252
        %v3427 = vunpack.c.l.b16 %v3253
        %v3428 = vunpack.c.h.b16 %v3253
        %v3429 = vunpack.c.l.b16 %v3254
        %v3430 = vunpack.c.h.b16 %v3254
        %v3431 = vunpack.c.l.b16 %v3255
        %v3432 = vunpack.c.h.b16 %v3255
        %v3433 = vunpack.c.l.b16 %v3256
        %v3434 = vunpack.c.h.b16 %v3256
        %v3435 = vunpack.c.l.b16 %v3257
        %v3436 = vunpack.c.h.b16 %v3257
        %v3437 = vunpack.c.l.b16 %v3258
        %v3438 = vunpack.c.h.b16 %v3258
        %v3439 = vunpack.c.l.b16 %v3259
        %v3440 = vunpack.c.h.b16 %v3259
        %v3441 = vunpack.c.l.b16 %v3260
        %v3442 = vunpack.c.h.b16 %v3260
        %v3443 = vunpack.c.l.b16 %v3261
        %v3444 = vunpack.c.h.b16 %v3261
        %v3445 = vunpack.c.l.b16 %v3262
        %v3446 = vunpack.c.h.b16 %v3262
        %v3447 = vunpack.c.l.b16 %v3263
        %v3448 = vunpack.c.h.b16 %v3263
        %v3449 = vunpack.c.l.b16 %v3264
        %v3450 = vunpack.c.h.b16 %v3264
        %v3451 = vunpack.c.l.b16 %v3265
        %v3452 = vunpack.c.h.b16 %v3265
        %v3453 = vunpack.c.l.b16 %v3266
        %v3454 = vunpack.c.h.b16 %v3266
        %v3455 = vunpack.c.l.b16 %v3267
        %v3456 = vunpack.c.h.b16 %v3267
        %v3457 = vunpack.c.l.b16 %v3268
        %v3458 = vunpack.c.h.b16 %v3268
        %v3459 = vunpack.c.l.b16 %v3269
        %v3460 = vunpack.c.h.b16 %v3269
        %v3461 = vunpack.c.l.b16 %v3270
        %v3462 = vunpack.c.h.b16 %v3270
        %v3463 = vpack.c.b16 %v3339, %v3335
        %v3464 = vpack.c.b16 %v3340, %v3336
        %v3465 = vpack.c.b16 %v3341, %v3337
        %v3466 = vpack.c.b16 %v3342, %v3338
        %v3467 = vpack.c.b16 %v3347, %v3343
        %v3468 = vpack.c.b16 %v3348, %v3344
        %v3469 = vpack.c.b16 %v3349, %v3345
        %v3470 = vpack.c.b16 %v3350, %v3346
        %v3471 = vpack.c.b16 %v3355, %v3351
        %v3472 = vpack.c.b16 %v3356, %v3352
        %v3473 = vpack.c.b16 %v3357, %v3353
        %v3474 = vpack.c.b16 %v3358, %v3354
        %v3475 = vpack.c.b16 %v3363, %v3359
        %v3476 = vpack.c.b16 %v3364, %v3360
        %v3477 = vpack.c.b16 %v3365, %v3361
        %v3478 = vpack.c.b16 %v3366, %v3362
        %v3479 = vpack.c.b16 %v3371, %v3367
        %v3480 = vpack.c.b16 %v3372, %v3368
        %v3481 = vpack.c.b16 %v3373, %v3369
        %v3482 = vpack.c.b16 %v3374, %v3370
        %v3483 = vpack.c.b16 %v3379, %v3375
        %v3484 = vpack.c.b16 %v3380, %v3376
        %v3485 = vpack.c.b16 %v3381, %v3377
        %v3486 = vpack.c.b16 %v3382, %v3378
        %v3487 = vpack.c.b16 %v3387, %v3383
        %v3488 = vpack.c.b16 %v3388, %v3384
        %v3489 = vpack.c.b16 %v3389, %v3385
        %v3490 = vpack.c.b16 %v3390, %v3386
        %v3491 = vpack.c.b16 %v3395, %v3391
        %v3492 = vpack.c.b16 %v3396, %v3392
        %v3493 = vpack.c.b16 %v3397, %v3393
        %v3494 = vpack.c.b16 %v3398, %v3394
        %v3495 = vpack.c.b16 %v3403, %v3399
        %v3496 = vpack.c.b16 %v3404, %v3400
        %v3497 = vpack.c.b16 %v3405, %v3401
        %v3498 = vpack.c.b16 %v3406, %v3402
        %v3499 = vpack.c.b16 %v3411, %v3407
        %v3500 = vpack.c.b16 %v3412, %v3408
        %v3501 = vpack.c.b16 %v3413, %v3409
        %v3502 = vpack.c.b16 %v3414, %v3410
        %v3503 = vpack.c.b16 %v3419, %v3415
        %v3504 = vpack.c.b16 %v3420, %v3416
        %v3505 = vpack.c.b16 %v3421, %v3417
        %v3506 = vpack.c.b16 %v3422, %v3418
        %v3507 = vpack.c.b16 %v3427, %v3423
        %v3508 = vpack.c.b16 %v3428, %v3424
        %v3509 = vpack.c.b16 %v3429, %v3425
        %v3510 = vpack.c.b16 %v3430, %v3426
        %v3511 = vpack.c.b16 %v3435, %v3431
        %v3512 = vpack.c.b16 %v3436, %v3432
        %v3513 = vpack.c.b16 %v3437, %v3433
        %v3514 = vpack.c.b16 %v3438, %v3434
        %v3515 = vpack.c.b16 %v3443, %v3439
        %v3516 = vpack.c.b16 %v3444, %v3440
        %v3517 = vpack.c.b16 %v3445, %v3441
        %v3518 = vpack.c.b16 %v3446, %v3442
        %v3519 = vpack.c.b16 %v3451, %v3447
        %v3520 = vpack.c.b16 %v3452, %v3448
        %v3521 = vpack.c.b16 %v3453, %v3449
        %v3522 = vpack.c.b16 %v3454, %v3450
        %v3523 = vpack.c.b16 %v3459, %v3455
        %v3524 = vpack.c.b16 %v3460, %v3456
        %v3525 = vpack.c.b16 %v3461, %v3457
        %v3526 = vpack.c.b16 %v3462, %v3458
        %3591 = vmatpush.bf16.msra.mxu0 %v3491
        %3592 = vmatpush.bf16.msra.mxu0 %v3487
        %3593 = vmatpush.bf16.msra.mxu0 %v3483
        %3594 = vmatpush.bf16.msra.mxu0 %v3479
        %3595 = vmatpush.bf16.msra.mxu0 %v3475
        %3596 = vmatpush.bf16.msra.mxu0 %v3471
        %3597 = vmatpush.bf16.msra.mxu0 %v3467
        %3598 = vmatpush.bf16.msra.mxu0 %v3463
        %3599 = vmatmul.bf16.gmra.mxu0 %v3205
        %v3600 = vpop.f32.mrf.mxu0
        %v3601 = vadd.f32 0.0, %v3600
        %v3602 = vpop.f32.mrf.mxu0
        %3603 = vdwg.mxu0
        %3604 = vmatpush.bf16.msra.mxu0 %v3523
        %3605 = vmatpush.bf16.msra.mxu0 %v3519
        %3606 = vmatpush.bf16.msra.mxu0 %v3515
        %3607 = vmatpush.bf16.msra.mxu0 %v3511
        %3608 = vmatpush.bf16.msra.mxu0 %v3507
        %3609 = vmatpush.bf16.msra.mxu0 %v3503
        %3610 = vmatpush.bf16.msra.mxu0 %v3499
        %3611 = vmatpush.bf16.msra.mxu0 %v3495
        %3612 = vmatmul.bf16.gmra.mxu0 %v3206
        %v3613 = vpop.f32.mrf.mxu0
        %v3614 = vadd.f32 %v3601, %v3613
        %v3615 = vpop.f32.mrf.mxu0
        %3616 = vdwg.mxu0
        %3617 = vmatpush.bf16.msra.mxu0 %v3492
        %3618 = vmatpush.bf16.msra.mxu0 %v3488
        %3619 = vmatpush.bf16.msra.mxu0 %v3484
        %3620 = vmatpush.bf16.msra.mxu0 %v3480
        %3621 = vmatpush.bf16.msra.mxu0 %v3476
        %3622 = vmatpush.bf16.msra.mxu0 %v3472
        %3623 = vmatpush.bf16.msra.mxu0 %v3468
        %3624 = vmatpush.bf16.msra.mxu0 %v3464
        %3625 = vmatmul.bf16.gmra.mxu0 %v3205
        %v3626 = vpop.f32.mrf.mxu0
        %v3627 = vadd.f32 0.0, %v3626
        %v3628 = vpop.f32.mrf.mxu0
        %3629 = vdwg.mxu0
        %3630 = vmatpush.bf16.msra.mxu0 %v3524
        %3631 = vmatpush.bf16.msra.mxu0 %v3520
        %3632 = vmatpush.bf16.msra.mxu0 %v3516
        %3633 = vmatpush.bf16.msra.mxu0 %v3512
        %3634 = vmatpush.bf16.msra.mxu0 %v3508
        %3635 = vmatpush.bf16.msra.mxu0 %v3504
        %3636 = vmatpush.bf16.msra.mxu0 %v3500
        %3637 = vmatpush.bf16.msra.mxu0 %v3496
        %3638 = vmatmul.bf16.gmra.mxu0 %v3206
        %v3639 = vpop.f32.mrf.mxu0
        %v3640 = vadd.f32 %v3627, %v3639
        %v3641 = vpop.f32.mrf.mxu0
        %3642 = vdwg.mxu0
        %3643 = vmatpush.bf16.msra.mxu0 %v3493
        %3644 = vmatpush.bf16.msra.mxu0 %v3489
        %3645 = vmatpush.bf16.msra.mxu0 %v3485
        %3646 = vmatpush.bf16.msra.mxu0 %v3481
        %3647 = vmatpush.bf16.msra.mxu0 %v3477
        %3648 = vmatpush.bf16.msra.mxu0 %v3473
        %3649 = vmatpush.bf16.msra.mxu0 %v3469
        %3650 = vmatpush.bf16.msra.mxu0 %v3465
        %3651 = vmatmul.bf16.gmra.mxu0 %v3205
        %v3652 = vpop.f32.mrf.mxu0
        %v3653 = vadd.f32 0.0, %v3652
        %v3654 = vpop.f32.mrf.mxu0
        %3655 = vdwg.mxu0
        %3656 = vmatpush.bf16.msra.mxu0 %v3525
        %3657 = vmatpush.bf16.msra.mxu0 %v3521
        %3658 = vmatpush.bf16.msra.mxu0 %v3517
        %3659 = vmatpush.bf16.msra.mxu0 %v3513
        %3660 = vmatpush.bf16.msra.mxu0 %v3509
        %3661 = vmatpush.bf16.msra.mxu0 %v3505
        %3662 = vmatpush.bf16.msra.mxu0 %v3501
        %3663 = vmatpush.bf16.msra.mxu0 %v3497
        %3664 = vmatmul.bf16.gmra.mxu0 %v3206
        %v3665 = vpop.f32.mrf.mxu0
        %v3666 = vadd.f32 %v3653, %v3665
        %v3667 = vpop.f32.mrf.mxu0
        %3668 = vdwg.mxu0
        %3669 = vmatpush.bf16.msra.mxu0 %v3494
        %3670 = vmatpush.bf16.msra.mxu0 %v3490
        %3671 = vmatpush.bf16.msra.mxu0 %v3486
        %3672 = vmatpush.bf16.msra.mxu0 %v3482
        %3673 = vmatpush.bf16.msra.mxu0 %v3478
        %3674 = vmatpush.bf16.msra.mxu0 %v3474
        %3675 = vmatpush.bf16.msra.mxu0 %v3470
        %3676 = vmatpush.bf16.msra.mxu0 %v3466
        %3677 = vmatmul.bf16.gmra.mxu0 %v3205
        %v3678 = vpop.f32.mrf.mxu0
        %v3679 = vadd.f32 0.0, %v3678
        %v3680 = vpop.f32.mrf.mxu0
        %3681 = vdwg.mxu0
        %3682 = vmatpush.bf16.msra.mxu0 %v3526
        %3683 = vmatpush.bf16.msra.mxu0 %v3522
        %3684 = vmatpush.bf16.msra.mxu0 %v3518
        %3685 = vmatpush.bf16.msra.mxu0 %v3514
        %3686 = vmatpush.bf16.msra.mxu0 %v3510
        %3687 = vmatpush.bf16.msra.mxu0 %v3506
        %3688 = vmatpush.bf16.msra.mxu0 %v3502
        %3689 = vmatpush.bf16.msra.mxu0 %v3498
        %3690 = vmatmul.bf16.gmra.mxu0 %v3206
        %v3691 = vpop.f32.mrf.mxu0
        %v3692 = vadd.f32 %v3679, %v3691
        %v3693 = vpop.f32.mrf.mxu0
        %3694 = vdwg.mxu0
        %vm3695 = vcmp.ge.f32.partialorder %v3614, 0.0
        %vm3696 = vcmp.ge.f32.partialorder %v3640, 0.0
        %vm3697 = vcmp.ge.f32.partialorder %v3666, 0.0
        %vm3698 = vcmp.ge.f32.partialorder %v3692, 0.0
        %v3699 = vmul.f32 %v3614, 0.01
        %v3700 = vmul.f32 %v3640, 0.01
        %v3701 = vmul.f32 %v3666, 0.01
        %v3702 = vmul.f32 %v3692, 0.01
        %v3703 = vsel %vm3695, %v3614, %v3699
        %v3704 = vsel %vm3696, %v3640, %v3700
        %v3705 = vsel %vm3697, %v3666, %v3701
        %v3706 = vsel %vm3698, %v3692, %v3702
        %v3707 = vpack.c.bf16 %v3703, %v3703
        %v3708 = vpack.c.bf16 %v3704, %v3704
        %v3709 = vpack.c.bf16 %v3705, %v3705
        %v3710 = vpack.c.bf16 %v3706, %v3706
        %v3711 = vld [vmem:[#allocation6] sm:$0xff]
        %v3712 = vld [vmem:[#allocation6 + $0x8] sm:$0xff]
        %v3713 = vld [vmem:[#allocation6 + $0x10] sm:$0xff]
        %v3714 = vld [vmem:[#allocation6 + $0x18] sm:$0xff]
        %v3715 = vld [vmem:[#allocation6 + $0x20] sm:$0xff]
        %v3716 = vld [vmem:[#allocation6 + $0x28] sm:$0xff]
        %v3717 = vld [vmem:[#allocation6 + $0x30] sm:$0xff]
        %v3718 = vld [vmem:[#allocation6 + $0x38] sm:$0xff]
        %v3719 = vld [vmem:[#allocation6 + $0x40] sm:$0xff]
        %v3720 = vld [vmem:[#allocation6 + $0x48] sm:$0xff]
        %v3721 = vld [vmem:[#allocation6 + $0x50] sm:$0xff]
        %v3722 = vld [vmem:[#allocation6 + $0x58] sm:$0xff]
        %v3723 = vld [vmem:[#allocation6 + $0x60] sm:$0xff]
        %v3724 = vld [vmem:[#allocation6 + $0x68] sm:$0xff]
        %v3725 = vld [vmem:[#allocation6 + $0x70] sm:$0xff]
        %v3726 = vld [vmem:[#allocation6 + $0x78] sm:$0xff]
        %v3727 = vld [vmem:[#allocation6 + $0x80] sm:$0xff]
        %v3728 = vld [vmem:[#allocation6 + $0x88] sm:$0xff]
        %v3729 = vld [vmem:[#allocation6 + $0x90] sm:$0xff]
        %v3730 = vld [vmem:[#allocation6 + $0x98] sm:$0xff]
        %v3731 = vld [vmem:[#allocation6 + $0xa0] sm:$0xff]
        %v3732 = vld [vmem:[#allocation6 + $0xa8] sm:$0xff]
        %v3733 = vld [vmem:[#allocation6 + $0xb0] sm:$0xff]
        %v3734 = vld [vmem:[#allocation6 + $0xb8] sm:$0xff]
        %v3735 = vld [vmem:[#allocation6 + $0xc0] sm:$0xff]
        %v3736 = vld [vmem:[#allocation6 + $0xc8] sm:$0xff]
        %v3737 = vld [vmem:[#allocation6 + $0xd0] sm:$0xff]
        %v3738 = vld [vmem:[#allocation6 + $0xd8] sm:$0xff]
        %v3739 = vld [vmem:[#allocation6 + $0xe0] sm:$0xff]
        %v3740 = vld [vmem:[#allocation6 + $0xe8] sm:$0xff]
        %v3741 = vld [vmem:[#allocation6 + $0xf0] sm:$0xff]
        %v3742 = vld [vmem:[#allocation6 + $0xf8] sm:$0xff]
        %v3743 = vld [vmem:[#allocation6 + $0x100] sm:$0xff]
        %v3744 = vld [vmem:[#allocation6 + $0x108] sm:$0xff]
        %v3745 = vld [vmem:[#allocation6 + $0x110] sm:$0xff]
        %v3746 = vld [vmem:[#allocation6 + $0x118] sm:$0xff]
        %v3747 = vld [vmem:[#allocation6 + $0x120] sm:$0xff]
        %v3748 = vld [vmem:[#allocation6 + $0x128] sm:$0xff]
        %v3749 = vld [vmem:[#allocation6 + $0x130] sm:$0xff]
        %v3750 = vld [vmem:[#allocation6 + $0x138] sm:$0xff]
        %v3751 = vld [vmem:[#allocation6 + $0x140] sm:$0xff]
        %v3752 = vld [vmem:[#allocation6 + $0x148] sm:$0xff]
        %v3753 = vld [vmem:[#allocation6 + $0x150] sm:$0xff]
        %v3754 = vld [vmem:[#allocation6 + $0x158] sm:$0xff]
        %v3755 = vld [vmem:[#allocation6 + $0x160] sm:$0xff]
        %v3756 = vld [vmem:[#allocation6 + $0x168] sm:$0xff]
        %v3757 = vld [vmem:[#allocation6 + $0x170] sm:$0xff]
        %v3758 = vld [vmem:[#allocation6 + $0x178] sm:$0xff]
        %v3759 = vld [vmem:[#allocation6 + $0x180] sm:$0xff]
        %v3760 = vld [vmem:[#allocation6 + $0x188] sm:$0xff]
        %v3761 = vld [vmem:[#allocation6 + $0x190] sm:$0xff]
        %v3762 = vld [vmem:[#allocation6 + $0x198] sm:$0xff]
        %v3763 = vld [vmem:[#allocation6 + $0x1a0] sm:$0xff]
        %v3764 = vld [vmem:[#allocation6 + $0x1a8] sm:$0xff]
        %v3765 = vld [vmem:[#allocation6 + $0x1b0] sm:$0xff]
        %v3766 = vld [vmem:[#allocation6 + $0x1b8] sm:$0xff]
        %v3767 = vld [vmem:[#allocation6 + $0x1c0] sm:$0xff]
        %v3768 = vld [vmem:[#allocation6 + $0x1c8] sm:$0xff]
        %v3769 = vld [vmem:[#allocation6 + $0x1d0] sm:$0xff]
        %v3770 = vld [vmem:[#allocation6 + $0x1d8] sm:$0xff]
        %v3771 = vld [vmem:[#allocation6 + $0x1e0] sm:$0xff]
        %v3772 = vld [vmem:[#allocation6 + $0x1e8] sm:$0xff]
        %v3773 = vld [vmem:[#allocation6 + $0x1f0] sm:$0xff]
        %v3774 = vld [vmem:[#allocation6 + $0x1f8] sm:$0xff]
        %v3775 = vld [vmem:[#allocation6 + $0x200] sm:$0xff]
        %v3776 = vld [vmem:[#allocation6 + $0x208] sm:$0xff]
        %v3777 = vld [vmem:[#allocation6 + $0x210] sm:$0xff]
        %v3778 = vld [vmem:[#allocation6 + $0x218] sm:$0xff]
        %v3779 = vld [vmem:[#allocation6 + $0x220] sm:$0xff]
        %v3780 = vld [vmem:[#allocation6 + $0x228] sm:$0xff]
        %v3781 = vld [vmem:[#allocation6 + $0x230] sm:$0xff]
        %v3782 = vld [vmem:[#allocation6 + $0x238] sm:$0xff]
        %v3783 = vld [vmem:[#allocation6 + $0x240] sm:$0xff]
        %v3784 = vld [vmem:[#allocation6 + $0x248] sm:$0xff]
        %v3785 = vld [vmem:[#allocation6 + $0x250] sm:$0xff]
        %v3786 = vld [vmem:[#allocation6 + $0x258] sm:$0xff]
        %v3787 = vld [vmem:[#allocation6 + $0x260] sm:$0xff]
        %v3788 = vld [vmem:[#allocation6 + $0x268] sm:$0xff]
        %v3789 = vld [vmem:[#allocation6 + $0x270] sm:$0xff]
        %v3790 = vld [vmem:[#allocation6 + $0x278] sm:$0xff]
        %v3791 = vld [vmem:[#allocation6 + $0x280] sm:$0xff]
        %v3792 = vld [vmem:[#allocation6 + $0x288] sm:$0xff]
        %v3793 = vld [vmem:[#allocation6 + $0x290] sm:$0xff]
        %v3794 = vld [vmem:[#allocation6 + $0x298] sm:$0xff]
        %v3795 = vld [vmem:[#allocation6 + $0x2a0] sm:$0xff]
        %v3796 = vld [vmem:[#allocation6 + $0x2a8] sm:$0xff]
        %v3797 = vld [vmem:[#allocation6 + $0x2b0] sm:$0xff]
        %v3798 = vld [vmem:[#allocation6 + $0x2b8] sm:$0xff]
        %v3799 = vld [vmem:[#allocation6 + $0x2c0] sm:$0xff]
        %v3800 = vld [vmem:[#allocation6 + $0x2c8] sm:$0xff]
        %v3801 = vld [vmem:[#allocation6 + $0x2d0] sm:$0xff]
        %v3802 = vld [vmem:[#allocation6 + $0x2d8] sm:$0xff]
        %v3803 = vld [vmem:[#allocation6 + $0x2e0] sm:$0xff]
        %v3804 = vld [vmem:[#allocation6 + $0x2e8] sm:$0xff]
        %v3805 = vld [vmem:[#allocation6 + $0x2f0] sm:$0xff]
        %v3806 = vld [vmem:[#allocation6 + $0x2f8] sm:$0xff]
        %v3807 = vld [vmem:[#allocation6 + $0x300] sm:$0xff]
        %v3808 = vld [vmem:[#allocation6 + $0x308] sm:$0xff]
        %v3809 = vld [vmem:[#allocation6 + $0x310] sm:$0xff]
        %v3810 = vld [vmem:[#allocation6 + $0x318] sm:$0xff]
        %v3811 = vld [vmem:[#allocation6 + $0x320] sm:$0xff]
        %v3812 = vld [vmem:[#allocation6 + $0x328] sm:$0xff]
        %v3813 = vld [vmem:[#allocation6 + $0x330] sm:$0xff]
        %v3814 = vld [vmem:[#allocation6 + $0x338] sm:$0xff]
        %v3815 = vld [vmem:[#allocation6 + $0x340] sm:$0xff]
        %v3816 = vld [vmem:[#allocation6 + $0x348] sm:$0xff]
        %v3817 = vld [vmem:[#allocation6 + $0x350] sm:$0xff]
        %v3818 = vld [vmem:[#allocation6 + $0x358] sm:$0xff]
        %v3819 = vld [vmem:[#allocation6 + $0x360] sm:$0xff]
        %v3820 = vld [vmem:[#allocation6 + $0x368] sm:$0xff]
        %v3821 = vld [vmem:[#allocation6 + $0x370] sm:$0xff]
        %v3822 = vld [vmem:[#allocation6 + $0x378] sm:$0xff]
        %v3823 = vld [vmem:[#allocation6 + $0x380] sm:$0xff]
        %v3824 = vld [vmem:[#allocation6 + $0x388] sm:$0xff]
        %v3825 = vld [vmem:[#allocation6 + $0x390] sm:$0xff]
        %v3826 = vld [vmem:[#allocation6 + $0x398] sm:$0xff]
        %v3827 = vld [vmem:[#allocation6 + $0x3a0] sm:$0xff]
        %v3828 = vld [vmem:[#allocation6 + $0x3a8] sm:$0xff]
        %v3829 = vld [vmem:[#allocation6 + $0x3b0] sm:$0xff]
        %v3830 = vld [vmem:[#allocation6 + $0x3b8] sm:$0xff]
        %v3831 = vld [vmem:[#allocation6 + $0x3c0] sm:$0xff]
        %v3832 = vld [vmem:[#allocation6 + $0x3c8] sm:$0xff]
        %v3833 = vld [vmem:[#allocation6 + $0x3d0] sm:$0xff]
        %v3834 = vld [vmem:[#allocation6 + $0x3d8] sm:$0xff]
        %v3835 = vld [vmem:[#allocation6 + $0x3e0] sm:$0xff]
        %v3836 = vld [vmem:[#allocation6 + $0x3e8] sm:$0xff]
        %v3837 = vld [vmem:[#allocation6 + $0x3f0] sm:$0xff]
        %v3838 = vld [vmem:[#allocation6 + $0x3f8] sm:$0xff]
        %v3839 = vld [vmem:[#allocation6 + $0x400] sm:$0xff]
        %v3840 = vld [vmem:[#allocation6 + $0x408] sm:$0xff]
        %v3841 = vld [vmem:[#allocation6 + $0x410] sm:$0xff]
        %v3842 = vld [vmem:[#allocation6 + $0x418] sm:$0xff]
        %v3843 = vld [vmem:[#allocation6 + $0x420] sm:$0xff]
        %v3844 = vld [vmem:[#allocation6 + $0x428] sm:$0xff]
        %v3845 = vld [vmem:[#allocation6 + $0x430] sm:$0xff]
        %v3846 = vld [vmem:[#allocation6 + $0x438] sm:$0xff]
        %v3847 = vld [vmem:[#allocation6 + $0x440] sm:$0xff]
        %v3848 = vld [vmem:[#allocation6 + $0x448] sm:$0xff]
        %v3849 = vld [vmem:[#allocation6 + $0x450] sm:$0xff]
        %v3850 = vld [vmem:[#allocation6 + $0x458] sm:$0xff]
        %v3851 = vld [vmem:[#allocation6 + $0x460] sm:$0xff]
        %v3852 = vld [vmem:[#allocation6 + $0x468] sm:$0xff]
        %v3853 = vld [vmem:[#allocation6 + $0x470] sm:$0xff]
        %v3854 = vld [vmem:[#allocation6 + $0x478] sm:$0xff]
        %v3855 = vld [vmem:[#allocation6 + $0x480] sm:$0xff]
        %v3856 = vld [vmem:[#allocation6 + $0x488] sm:$0xff]
        %v3857 = vld [vmem:[#allocation6 + $0x490] sm:$0xff]
        %v3858 = vld [vmem:[#allocation6 + $0x498] sm:$0xff]
        %v3859 = vld [vmem:[#allocation6 + $0x4a0] sm:$0xff]
        %v3860 = vld [vmem:[#allocation6 + $0x4a8] sm:$0xff]
        %v3861 = vld [vmem:[#allocation6 + $0x4b0] sm:$0xff]
        %v3862 = vld [vmem:[#allocation6 + $0x4b8] sm:$0xff]
        %v3863 = vld [vmem:[#allocation6 + $0x4c0] sm:$0xff]
        %v3864 = vld [vmem:[#allocation6 + $0x4c8] sm:$0xff]
        %v3865 = vld [vmem:[#allocation6 + $0x4d0] sm:$0xff]
        %v3866 = vld [vmem:[#allocation6 + $0x4d8] sm:$0xff]
        %v3867 = vld [vmem:[#allocation6 + $0x4e0] sm:$0xff]
        %v3868 = vld [vmem:[#allocation6 + $0x4e8] sm:$0xff]
        %v3869 = vld [vmem:[#allocation6 + $0x4f0] sm:$0xff]
        %v3870 = vld [vmem:[#allocation6 + $0x4f8] sm:$0xff]
        %v3871 = vld [vmem:[#allocation6 + $0x500] sm:$0xff]
        %v3872 = vld [vmem:[#allocation6 + $0x508] sm:$0xff]
        %v3873 = vld [vmem:[#allocation6 + $0x510] sm:$0xff]
        %v3874 = vld [vmem:[#allocation6 + $0x518] sm:$0xff]
        %v3875 = vld [vmem:[#allocation6 + $0x520] sm:$0xff]
        %v3876 = vld [vmem:[#allocation6 + $0x528] sm:$0xff]
        %v3877 = vld [vmem:[#allocation6 + $0x530] sm:$0xff]
        %v3878 = vld [vmem:[#allocation6 + $0x538] sm:$0xff]
        %v3879 = vld [vmem:[#allocation6 + $0x540] sm:$0xff]
        %v3880 = vld [vmem:[#allocation6 + $0x548] sm:$0xff]
        %v3881 = vld [vmem:[#allocation6 + $0x550] sm:$0xff]
        %v3882 = vld [vmem:[#allocation6 + $0x558] sm:$0xff]
        %v3883 = vld [vmem:[#allocation6 + $0x560] sm:$0xff]
        %v3884 = vld [vmem:[#allocation6 + $0x568] sm:$0xff]
        %v3885 = vld [vmem:[#allocation6 + $0x570] sm:$0xff]
        %v3886 = vld [vmem:[#allocation6 + $0x578] sm:$0xff]
        %v3887 = vld [vmem:[#allocation6 + $0x580] sm:$0xff]
        %v3888 = vld [vmem:[#allocation6 + $0x588] sm:$0xff]
        %v3889 = vld [vmem:[#allocation6 + $0x590] sm:$0xff]
        %v3890 = vld [vmem:[#allocation6 + $0x598] sm:$0xff]
        %v3891 = vld [vmem:[#allocation6 + $0x5a0] sm:$0xff]
        %v3892 = vld [vmem:[#allocation6 + $0x5a8] sm:$0xff]
        %v3893 = vld [vmem:[#allocation6 + $0x5b0] sm:$0xff]
        %v3894 = vld [vmem:[#allocation6 + $0x5b8] sm:$0xff]
        %v3895 = vld [vmem:[#allocation6 + $0x5c0] sm:$0xff]
        %v3896 = vld [vmem:[#allocation6 + $0x5c8] sm:$0xff]
        %v3897 = vld [vmem:[#allocation6 + $0x5d0] sm:$0xff]
        %v3898 = vld [vmem:[#allocation6 + $0x5d8] sm:$0xff]
        %v3899 = vld [vmem:[#allocation6 + $0x5e0] sm:$0xff]
        %v3900 = vld [vmem:[#allocation6 + $0x5e8] sm:$0xff]
        %v3901 = vld [vmem:[#allocation6 + $0x5f0] sm:$0xff]
        %v3902 = vld [vmem:[#allocation6 + $0x5f8] sm:$0xff]
        %v3903 = vld [vmem:[#allocation6 + $0x600] sm:$0xff]
        %v3904 = vld [vmem:[#allocation6 + $0x608] sm:$0xff]
        %v3905 = vld [vmem:[#allocation6 + $0x610] sm:$0xff]
        %v3906 = vld [vmem:[#allocation6 + $0x618] sm:$0xff]
        %v3907 = vld [vmem:[#allocation6 + $0x620] sm:$0xff]
        %v3908 = vld [vmem:[#allocation6 + $0x628] sm:$0xff]
        %v3909 = vld [vmem:[#allocation6 + $0x630] sm:$0xff]
        %v3910 = vld [vmem:[#allocation6 + $0x638] sm:$0xff]
        %v3911 = vld [vmem:[#allocation6 + $0x640] sm:$0xff]
        %v3912 = vld [vmem:[#allocation6 + $0x648] sm:$0xff]
        %v3913 = vld [vmem:[#allocation6 + $0x650] sm:$0xff]
        %v3914 = vld [vmem:[#allocation6 + $0x658] sm:$0xff]
        %v3915 = vld [vmem:[#allocation6 + $0x660] sm:$0xff]
        %v3916 = vld [vmem:[#allocation6 + $0x668] sm:$0xff]
        %v3917 = vld [vmem:[#allocation6 + $0x670] sm:$0xff]
        %v3918 = vld [vmem:[#allocation6 + $0x678] sm:$0xff]
        %v3919 = vld [vmem:[#allocation6 + $0x680] sm:$0xff]
        %v3920 = vld [vmem:[#allocation6 + $0x688] sm:$0xff]
        %v3921 = vld [vmem:[#allocation6 + $0x690] sm:$0xff]
        %v3922 = vld [vmem:[#allocation6 + $0x698] sm:$0xff]
        %v3923 = vld [vmem:[#allocation6 + $0x6a0] sm:$0xff]
        %v3924 = vld [vmem:[#allocation6 + $0x6a8] sm:$0xff]
        %v3925 = vld [vmem:[#allocation6 + $0x6b0] sm:$0xff]
        %v3926 = vld [vmem:[#allocation6 + $0x6b8] sm:$0xff]
        %v3927 = vld [vmem:[#allocation6 + $0x6c0] sm:$0xff]
        %v3928 = vld [vmem:[#allocation6 + $0x6c8] sm:$0xff]
        %v3929 = vld [vmem:[#allocation6 + $0x6d0] sm:$0xff]
        %v3930 = vld [vmem:[#allocation6 + $0x6d8] sm:$0xff]
        %v3931 = vld [vmem:[#allocation6 + $0x6e0] sm:$0xff]
        %v3932 = vld [vmem:[#allocation6 + $0x6e8] sm:$0xff]
        %v3933 = vld [vmem:[#allocation6 + $0x6f0] sm:$0xff]
        %v3934 = vld [vmem:[#allocation6 + $0x6f8] sm:$0xff]
        %v3935 = vld [vmem:[#allocation6 + $0x700] sm:$0xff]
        %v3936 = vld [vmem:[#allocation6 + $0x708] sm:$0xff]
        %v3937 = vld [vmem:[#allocation6 + $0x710] sm:$0xff]
        %v3938 = vld [vmem:[#allocation6 + $0x718] sm:$0xff]
        %v3939 = vld [vmem:[#allocation6 + $0x720] sm:$0xff]
        %v3940 = vld [vmem:[#allocation6 + $0x728] sm:$0xff]
        %v3941 = vld [vmem:[#allocation6 + $0x730] sm:$0xff]
        %v3942 = vld [vmem:[#allocation6 + $0x738] sm:$0xff]
        %v3943 = vld [vmem:[#allocation6 + $0x740] sm:$0xff]
        %v3944 = vld [vmem:[#allocation6 + $0x748] sm:$0xff]
        %v3945 = vld [vmem:[#allocation6 + $0x750] sm:$0xff]
        %v3946 = vld [vmem:[#allocation6 + $0x758] sm:$0xff]
        %v3947 = vld [vmem:[#allocation6 + $0x760] sm:$0xff]
        %v3948 = vld [vmem:[#allocation6 + $0x768] sm:$0xff]
        %v3949 = vld [vmem:[#allocation6 + $0x770] sm:$0xff]
        %v3950 = vld [vmem:[#allocation6 + $0x778] sm:$0xff]
        %v3951 = vld [vmem:[#allocation6 + $0x780] sm:$0xff]
        %v3952 = vld [vmem:[#allocation6 + $0x788] sm:$0xff]
        %v3953 = vld [vmem:[#allocation6 + $0x790] sm:$0xff]
        %v3954 = vld [vmem:[#allocation6 + $0x798] sm:$0xff]
        %v3955 = vld [vmem:[#allocation6 + $0x7a0] sm:$0xff]
        %v3956 = vld [vmem:[#allocation6 + $0x7a8] sm:$0xff]
        %v3957 = vld [vmem:[#allocation6 + $0x7b0] sm:$0xff]
        %v3958 = vld [vmem:[#allocation6 + $0x7b8] sm:$0xff]
        %v3959 = vld [vmem:[#allocation6 + $0x7c0] sm:$0xff]
        %v3960 = vld [vmem:[#allocation6 + $0x7c8] sm:$0xff]
        %v3961 = vld [vmem:[#allocation6 + $0x7d0] sm:$0xff]
        %v3962 = vld [vmem:[#allocation6 + $0x7d8] sm:$0xff]
        %v3963 = vld [vmem:[#allocation6 + $0x7e0] sm:$0xff]
        %v3964 = vld [vmem:[#allocation6 + $0x7e8] sm:$0xff]
        %v3965 = vld [vmem:[#allocation6 + $0x7f0] sm:$0xff]
        %v3966 = vld [vmem:[#allocation6 + $0x7f8] sm:$0xff]
        %v3967 = vld [vmem:[%s8] sm:$0xff]
        %v4224 = vunpack.c.l.b16 %v3711
        %v4225 = vunpack.c.h.b16 %v3711
        %v4226 = vunpack.c.l.b16 %v3712
        %v4227 = vunpack.c.h.b16 %v3712
        %v4228 = vunpack.c.l.b16 %v3713
        %v4229 = vunpack.c.h.b16 %v3713
        %v4230 = vunpack.c.l.b16 %v3714
        %v4231 = vunpack.c.h.b16 %v3714
        %v4232 = vunpack.c.l.b16 %v3715
        %v4233 = vunpack.c.h.b16 %v3715
        %v4234 = vunpack.c.l.b16 %v3716
        %v4235 = vunpack.c.h.b16 %v3716
        %v4236 = vunpack.c.l.b16 %v3717
        %v4237 = vunpack.c.h.b16 %v3717
        %v4238 = vunpack.c.l.b16 %v3718
        %v4239 = vunpack.c.h.b16 %v3718
        %v4240 = vunpack.c.l.b16 %v3719
        %v4241 = vunpack.c.h.b16 %v3719
        %v4242 = vunpack.c.l.b16 %v3720
        %v4243 = vunpack.c.h.b16 %v3720
        %v4244 = vunpack.c.l.b16 %v3721
        %v4245 = vunpack.c.h.b16 %v3721
        %v4246 = vunpack.c.l.b16 %v3722
        %v4247 = vunpack.c.h.b16 %v3722
        %v4248 = vunpack.c.l.b16 %v3723
        %v4249 = vunpack.c.h.b16 %v3723
        %v4250 = vunpack.c.l.b16 %v3724
        %v4251 = vunpack.c.h.b16 %v3724
        %v4252 = vunpack.c.l.b16 %v3725
        %v4253 = vunpack.c.h.b16 %v3725
        %v4254 = vunpack.c.l.b16 %v3726
        %v4255 = vunpack.c.h.b16 %v3726
        %v4256 = vunpack.c.l.b16 %v3727
        %v4257 = vunpack.c.h.b16 %v3727
        %v4258 = vunpack.c.l.b16 %v3728
        %v4259 = vunpack.c.h.b16 %v3728
        %v4260 = vunpack.c.l.b16 %v3729
        %v4261 = vunpack.c.h.b16 %v3729
        %v4262 = vunpack.c.l.b16 %v3730
        %v4263 = vunpack.c.h.b16 %v3730
        %v4264 = vunpack.c.l.b16 %v3731
        %v4265 = vunpack.c.h.b16 %v3731
        %v4266 = vunpack.c.l.b16 %v3732
        %v4267 = vunpack.c.h.b16 %v3732
        %v4268 = vunpack.c.l.b16 %v3733
        %v4269 = vunpack.c.h.b16 %v3733
        %v4270 = vunpack.c.l.b16 %v3734
        %v4271 = vunpack.c.h.b16 %v3734
        %v4272 = vunpack.c.l.b16 %v3735
        %v4273 = vunpack.c.h.b16 %v3735
        %v4274 = vunpack.c.l.b16 %v3736
        %v4275 = vunpack.c.h.b16 %v3736
        %v4276 = vunpack.c.l.b16 %v3737
        %v4277 = vunpack.c.h.b16 %v3737
        %v4278 = vunpack.c.l.b16 %v3738
        %v4279 = vunpack.c.h.b16 %v3738
        %v4280 = vunpack.c.l.b16 %v3739
        %v4281 = vunpack.c.h.b16 %v3739
        %v4282 = vunpack.c.l.b16 %v3740
        %v4283 = vunpack.c.h.b16 %v3740
        %v4284 = vunpack.c.l.b16 %v3741
        %v4285 = vunpack.c.h.b16 %v3741
        %v4286 = vunpack.c.l.b16 %v3742
        %v4287 = vunpack.c.h.b16 %v3742
        %v4288 = vunpack.c.l.b16 %v3743
        %v4289 = vunpack.c.h.b16 %v3743
        %v4290 = vunpack.c.l.b16 %v3744
        %v4291 = vunpack.c.h.b16 %v3744
        %v4292 = vunpack.c.l.b16 %v3745
        %v4293 = vunpack.c.h.b16 %v3745
        %v4294 = vunpack.c.l.b16 %v3746
        %v4295 = vunpack.c.h.b16 %v3746
        %v4296 = vunpack.c.l.b16 %v3747
        %v4297 = vunpack.c.h.b16 %v3747
        %v4298 = vunpack.c.l.b16 %v3748
        %v4299 = vunpack.c.h.b16 %v3748
        %v4300 = vunpack.c.l.b16 %v3749
        %v4301 = vunpack.c.h.b16 %v3749
        %v4302 = vunpack.c.l.b16 %v3750
        %v4303 = vunpack.c.h.b16 %v3750
        %v4304 = vunpack.c.l.b16 %v3751
        %v4305 = vunpack.c.h.b16 %v3751
        %v4306 = vunpack.c.l.b16 %v3752
        %v4307 = vunpack.c.h.b16 %v3752
        %v4308 = vunpack.c.l.b16 %v3753
        %v4309 = vunpack.c.h.b16 %v3753
        %v4310 = vunpack.c.l.b16 %v3754
        %v4311 = vunpack.c.h.b16 %v3754
        %v4312 = vunpack.c.l.b16 %v3755
        %v4313 = vunpack.c.h.b16 %v3755
        %v4314 = vunpack.c.l.b16 %v3756
        %v4315 = vunpack.c.h.b16 %v3756
        %v4316 = vunpack.c.l.b16 %v3757
        %v4317 = vunpack.c.h.b16 %v3757
        %v4318 = vunpack.c.l.b16 %v3758
        %v4319 = vunpack.c.h.b16 %v3758
        %v4320 = vunpack.c.l.b16 %v3759
        %v4321 = vunpack.c.h.b16 %v3759
        %v4322 = vunpack.c.l.b16 %v3760
        %v4323 = vunpack.c.h.b16 %v3760
        %v4324 = vunpack.c.l.b16 %v3761
        %v4325 = vunpack.c.h.b16 %v3761
        %v4326 = vunpack.c.l.b16 %v3762
        %v4327 = vunpack.c.h.b16 %v3762
        %v4328 = vunpack.c.l.b16 %v3763
        %v4329 = vunpack.c.h.b16 %v3763
        %v4330 = vunpack.c.l.b16 %v3764
        %v4331 = vunpack.c.h.b16 %v3764
        %v4332 = vunpack.c.l.b16 %v3765
        %v4333 = vunpack.c.h.b16 %v3765
        %v4334 = vunpack.c.l.b16 %v3766
        %v4335 = vunpack.c.h.b16 %v3766
        %v4336 = vunpack.c.l.b16 %v3767
        %v4337 = vunpack.c.h.b16 %v3767
        %v4338 = vunpack.c.l.b16 %v3768
        %v4339 = vunpack.c.h.b16 %v3768
        %v4340 = vunpack.c.l.b16 %v3769
        %v4341 = vunpack.c.h.b16 %v3769
        %v4342 = vunpack.c.l.b16 %v3770
        %v4343 = vunpack.c.h.b16 %v3770
        %v4344 = vunpack.c.l.b16 %v3771
        %v4345 = vunpack.c.h.b16 %v3771
        %v4346 = vunpack.c.l.b16 %v3772
        %v4347 = vunpack.c.h.b16 %v3772
        %v4348 = vunpack.c.l.b16 %v3773
        %v4349 = vunpack.c.h.b16 %v3773
        %v4350 = vunpack.c.l.b16 %v3774
        %v4351 = vunpack.c.h.b16 %v3774
        %v4352 = vunpack.c.l.b16 %v3775
        %v4353 = vunpack.c.h.b16 %v3775
        %v4354 = vunpack.c.l.b16 %v3776
        %v4355 = vunpack.c.h.b16 %v3776
        %v4356 = vunpack.c.l.b16 %v3777
        %v4357 = vunpack.c.h.b16 %v3777
        %v4358 = vunpack.c.l.b16 %v3778
        %v4359 = vunpack.c.h.b16 %v3778
        %v4360 = vunpack.c.l.b16 %v3779
        %v4361 = vunpack.c.h.b16 %v3779
        %v4362 = vunpack.c.l.b16 %v3780
        %v4363 = vunpack.c.h.b16 %v3780
        %v4364 = vunpack.c.l.b16 %v3781
        %v4365 = vunpack.c.h.b16 %v3781
        %v4366 = vunpack.c.l.b16 %v3782
        %v4367 = vunpack.c.h.b16 %v3782
        %v4368 = vunpack.c.l.b16 %v3783
        %v4369 = vunpack.c.h.b16 %v3783
        %v4370 = vunpack.c.l.b16 %v3784
        %v4371 = vunpack.c.h.b16 %v3784
        %v4372 = vunpack.c.l.b16 %v3785
        %v4373 = vunpack.c.h.b16 %v3785
        %v4374 = vunpack.c.l.b16 %v3786
        %v4375 = vunpack.c.h.b16 %v3786
        %v4376 = vunpack.c.l.b16 %v3787
        %v4377 = vunpack.c.h.b16 %v3787
        %v4378 = vunpack.c.l.b16 %v3788
        %v4379 = vunpack.c.h.b16 %v3788
        %v4380 = vunpack.c.l.b16 %v3789
        %v4381 = vunpack.c.h.b16 %v3789
        %v4382 = vunpack.c.l.b16 %v3790
        %v4383 = vunpack.c.h.b16 %v3790
        %v4384 = vunpack.c.l.b16 %v3791
        %v4385 = vunpack.c.h.b16 %v3791
        %v4386 = vunpack.c.l.b16 %v3792
        %v4387 = vunpack.c.h.b16 %v3792
        %v4388 = vunpack.c.l.b16 %v3793
        %v4389 = vunpack.c.h.b16 %v3793
        %v4390 = vunpack.c.l.b16 %v3794
        %v4391 = vunpack.c.h.b16 %v3794
        %v4392 = vunpack.c.l.b16 %v3795
        %v4393 = vunpack.c.h.b16 %v3795
        %v4394 = vunpack.c.l.b16 %v3796
        %v4395 = vunpack.c.h.b16 %v3796
        %v4396 = vunpack.c.l.b16 %v3797
        %v4397 = vunpack.c.h.b16 %v3797
        %v4398 = vunpack.c.l.b16 %v3798
        %v4399 = vunpack.c.h.b16 %v3798
        %v4400 = vunpack.c.l.b16 %v3799
        %v4401 = vunpack.c.h.b16 %v3799
        %v4402 = vunpack.c.l.b16 %v3800
        %v4403 = vunpack.c.h.b16 %v3800
        %v4404 = vunpack.c.l.b16 %v3801
        %v4405 = vunpack.c.h.b16 %v3801
        %v4406 = vunpack.c.l.b16 %v3802
        %v4407 = vunpack.c.h.b16 %v3802
        %v4408 = vunpack.c.l.b16 %v3803
        %v4409 = vunpack.c.h.b16 %v3803
        %v4410 = vunpack.c.l.b16 %v3804
        %v4411 = vunpack.c.h.b16 %v3804
        %v4412 = vunpack.c.l.b16 %v3805
        %v4413 = vunpack.c.h.b16 %v3805
        %v4414 = vunpack.c.l.b16 %v3806
        %v4415 = vunpack.c.h.b16 %v3806
        %v4416 = vunpack.c.l.b16 %v3807
        %v4417 = vunpack.c.h.b16 %v3807
        %v4418 = vunpack.c.l.b16 %v3808
        %v4419 = vunpack.c.h.b16 %v3808
        %v4420 = vunpack.c.l.b16 %v3809
        %v4421 = vunpack.c.h.b16 %v3809
        %v4422 = vunpack.c.l.b16 %v3810
        %v4423 = vunpack.c.h.b16 %v3810
        %v4424 = vunpack.c.l.b16 %v3811
        %v4425 = vunpack.c.h.b16 %v3811
        %v4426 = vunpack.c.l.b16 %v3812
        %v4427 = vunpack.c.h.b16 %v3812
        %v4428 = vunpack.c.l.b16 %v3813
        %v4429 = vunpack.c.h.b16 %v3813
        %v4430 = vunpack.c.l.b16 %v3814
        %v4431 = vunpack.c.h.b16 %v3814
        %v4432 = vunpack.c.l.b16 %v3815
        %v4433 = vunpack.c.h.b16 %v3815
        %v4434 = vunpack.c.l.b16 %v3816
        %v4435 = vunpack.c.h.b16 %v3816
        %v4436 = vunpack.c.l.b16 %v3817
        %v4437 = vunpack.c.h.b16 %v3817
        %v4438 = vunpack.c.l.b16 %v3818
        %v4439 = vunpack.c.h.b16 %v3818
        %v4440 = vunpack.c.l.b16 %v3819
        %v4441 = vunpack.c.h.b16 %v3819
        %v4442 = vunpack.c.l.b16 %v3820
        %v4443 = vunpack.c.h.b16 %v3820
        %v4444 = vunpack.c.l.b16 %v3821
        %v4445 = vunpack.c.h.b16 %v3821
        %v4446 = vunpack.c.l.b16 %v3822
        %v4447 = vunpack.c.h.b16 %v3822
        %v4448 = vunpack.c.l.b16 %v3823
        %v4449 = vunpack.c.h.b16 %v3823
        %v4450 = vunpack.c.l.b16 %v3824
        %v4451 = vunpack.c.h.b16 %v3824
        %v4452 = vunpack.c.l.b16 %v3825
        %v4453 = vunpack.c.h.b16 %v3825
        %v4454 = vunpack.c.l.b16 %v3826
        %v4455 = vunpack.c.h.b16 %v3826
        %v4456 = vunpack.c.l.b16 %v3827
        %v4457 = vunpack.c.h.b16 %v3827
        %v4458 = vunpack.c.l.b16 %v3828
        %v4459 = vunpack.c.h.b16 %v3828
        %v4460 = vunpack.c.l.b16 %v3829
        %v4461 = vunpack.c.h.b16 %v3829
        %v4462 = vunpack.c.l.b16 %v3830
        %v4463 = vunpack.c.h.b16 %v3830
        %v4464 = vunpack.c.l.b16 %v3831
        %v4465 = vunpack.c.h.b16 %v3831
        %v4466 = vunpack.c.l.b16 %v3832
        %v4467 = vunpack.c.h.b16 %v3832
        %v4468 = vunpack.c.l.b16 %v3833
        %v4469 = vunpack.c.h.b16 %v3833
        %v4470 = vunpack.c.l.b16 %v3834
        %v4471 = vunpack.c.h.b16 %v3834
        %v4472 = vunpack.c.l.b16 %v3835
        %v4473 = vunpack.c.h.b16 %v3835
        %v4474 = vunpack.c.l.b16 %v3836
        %v4475 = vunpack.c.h.b16 %v3836
        %v4476 = vunpack.c.l.b16 %v3837
        %v4477 = vunpack.c.h.b16 %v3837
        %v4478 = vunpack.c.l.b16 %v3838
        %v4479 = vunpack.c.h.b16 %v3838
        %v4480 = vunpack.c.l.b16 %v3839
        %v4481 = vunpack.c.h.b16 %v3839
        %v4482 = vunpack.c.l.b16 %v3840
        %v4483 = vunpack.c.h.b16 %v3840
        %v4484 = vunpack.c.l.b16 %v3841
        %v4485 = vunpack.c.h.b16 %v3841
        %v4486 = vunpack.c.l.b16 %v3842
        %v4487 = vunpack.c.h.b16 %v3842
        %v4488 = vunpack.c.l.b16 %v3843
        %v4489 = vunpack.c.h.b16 %v3843
        %v4490 = vunpack.c.l.b16 %v3844
        %v4491 = vunpack.c.h.b16 %v3844
        %v4492 = vunpack.c.l.b16 %v3845
        %v4493 = vunpack.c.h.b16 %v3845
        %v4494 = vunpack.c.l.b16 %v3846
        %v4495 = vunpack.c.h.b16 %v3846
        %v4496 = vunpack.c.l.b16 %v3847
        %v4497 = vunpack.c.h.b16 %v3847
        %v4498 = vunpack.c.l.b16 %v3848
        %v4499 = vunpack.c.h.b16 %v3848
        %v4500 = vunpack.c.l.b16 %v3849
        %v4501 = vunpack.c.h.b16 %v3849
        %v4502 = vunpack.c.l.b16 %v3850
        %v4503 = vunpack.c.h.b16 %v3850
        %v4504 = vunpack.c.l.b16 %v3851
        %v4505 = vunpack.c.h.b16 %v3851
        %v4506 = vunpack.c.l.b16 %v3852
        %v4507 = vunpack.c.h.b16 %v3852
        %v4508 = vunpack.c.l.b16 %v3853
        %v4509 = vunpack.c.h.b16 %v3853
        %v4510 = vunpack.c.l.b16 %v3854
        %v4511 = vunpack.c.h.b16 %v3854
        %v4512 = vunpack.c.l.b16 %v3855
        %v4513 = vunpack.c.h.b16 %v3855
        %v4514 = vunpack.c.l.b16 %v3856
        %v4515 = vunpack.c.h.b16 %v3856
        %v4516 = vunpack.c.l.b16 %v3857
        %v4517 = vunpack.c.h.b16 %v3857
        %v4518 = vunpack.c.l.b16 %v3858
        %v4519 = vunpack.c.h.b16 %v3858
        %v4520 = vunpack.c.l.b16 %v3859
        %v4521 = vunpack.c.h.b16 %v3859
        %v4522 = vunpack.c.l.b16 %v3860
        %v4523 = vunpack.c.h.b16 %v3860
        %v4524 = vunpack.c.l.b16 %v3861
        %v4525 = vunpack.c.h.b16 %v3861
        %v4526 = vunpack.c.l.b16 %v3862
        %v4527 = vunpack.c.h.b16 %v3862
        %v4528 = vunpack.c.l.b16 %v3863
        %v4529 = vunpack.c.h.b16 %v3863
        %v4530 = vunpack.c.l.b16 %v3864
        %v4531 = vunpack.c.h.b16 %v3864
        %v4532 = vunpack.c.l.b16 %v3865
        %v4533 = vunpack.c.h.b16 %v3865
        %v4534 = vunpack.c.l.b16 %v3866
        %v4535 = vunpack.c.h.b16 %v3866
        %v4536 = vunpack.c.l.b16 %v3867
        %v4537 = vunpack.c.h.b16 %v3867
        %v4538 = vunpack.c.l.b16 %v3868
        %v4539 = vunpack.c.h.b16 %v3868
        %v4540 = vunpack.c.l.b16 %v3869
        %v4541 = vunpack.c.h.b16 %v3869
        %v4542 = vunpack.c.l.b16 %v3870
        %v4543 = vunpack.c.h.b16 %v3870
        %v4544 = vunpack.c.l.b16 %v3871
        %v4545 = vunpack.c.h.b16 %v3871
        %v4546 = vunpack.c.l.b16 %v3872
        %v4547 = vunpack.c.h.b16 %v3872
        %v4548 = vunpack.c.l.b16 %v3873
        %v4549 = vunpack.c.h.b16 %v3873
        %v4550 = vunpack.c.l.b16 %v3874
        %v4551 = vunpack.c.h.b16 %v3874
        %v4552 = vunpack.c.l.b16 %v3875
        %v4553 = vunpack.c.h.b16 %v3875
        %v4554 = vunpack.c.l.b16 %v3876
        %v4555 = vunpack.c.h.b16 %v3876
        %v4556 = vunpack.c.l.b16 %v3877
        %v4557 = vunpack.c.h.b16 %v3877
        %v4558 = vunpack.c.l.b16 %v3878
        %v4559 = vunpack.c.h.b16 %v3878
        %v4560 = vunpack.c.l.b16 %v3879
        %v4561 = vunpack.c.h.b16 %v3879
        %v4562 = vunpack.c.l.b16 %v3880
        %v4563 = vunpack.c.h.b16 %v3880
        %v4564 = vunpack.c.l.b16 %v3881
        %v4565 = vunpack.c.h.b16 %v3881
        %v4566 = vunpack.c.l.b16 %v3882
        %v4567 = vunpack.c.h.b16 %v3882
        %v4568 = vunpack.c.l.b16 %v3883
        %v4569 = vunpack.c.h.b16 %v3883
        %v4570 = vunpack.c.l.b16 %v3884
        %v4571 = vunpack.c.h.b16 %v3884
        %v4572 = vunpack.c.l.b16 %v3885
        %v4573 = vunpack.c.h.b16 %v3885
        %v4574 = vunpack.c.l.b16 %v3886
        %v4575 = vunpack.c.h.b16 %v3886
        %v4576 = vunpack.c.l.b16 %v3887
        %v4577 = vunpack.c.h.b16 %v3887
        %v4578 = vunpack.c.l.b16 %v3888
        %v4579 = vunpack.c.h.b16 %v3888
        %v4580 = vunpack.c.l.b16 %v3889
        %v4581 = vunpack.c.h.b16 %v3889
        %v4582 = vunpack.c.l.b16 %v3890
        %v4583 = vunpack.c.h.b16 %v3890
        %v4584 = vunpack.c.l.b16 %v3891
        %v4585 = vunpack.c.h.b16 %v3891
        %v4586 = vunpack.c.l.b16 %v3892
        %v4587 = vunpack.c.h.b16 %v3892
        %v4588 = vunpack.c.l.b16 %v3893
        %v4589 = vunpack.c.h.b16 %v3893
        %v4590 = vunpack.c.l.b16 %v3894
        %v4591 = vunpack.c.h.b16 %v3894
        %v4592 = vunpack.c.l.b16 %v3895
        %v4593 = vunpack.c.h.b16 %v3895
        %v4594 = vunpack.c.l.b16 %v3896
        %v4595 = vunpack.c.h.b16 %v3896
        %v4596 = vunpack.c.l.b16 %v3897
        %v4597 = vunpack.c.h.b16 %v3897
        %v4598 = vunpack.c.l.b16 %v3898
        %v4599 = vunpack.c.h.b16 %v3898
        %v4600 = vunpack.c.l.b16 %v3899
        %v4601 = vunpack.c.h.b16 %v3899
        %v4602 = vunpack.c.l.b16 %v3900
        %v4603 = vunpack.c.h.b16 %v3900
        %v4604 = vunpack.c.l.b16 %v3901
        %v4605 = vunpack.c.h.b16 %v3901
        %v4606 = vunpack.c.l.b16 %v3902
        %v4607 = vunpack.c.h.b16 %v3902
        %v4608 = vunpack.c.l.b16 %v3903
        %v4609 = vunpack.c.h.b16 %v3903
        %v4610 = vunpack.c.l.b16 %v3904
        %v4611 = vunpack.c.h.b16 %v3904
        %v4612 = vunpack.c.l.b16 %v3905
        %v4613 = vunpack.c.h.b16 %v3905
        %v4614 = vunpack.c.l.b16 %v3906
        %v4615 = vunpack.c.h.b16 %v3906
        %v4616 = vunpack.c.l.b16 %v3907
        %v4617 = vunpack.c.h.b16 %v3907
        %v4618 = vunpack.c.l.b16 %v3908
        %v4619 = vunpack.c.h.b16 %v3908
        %v4620 = vunpack.c.l.b16 %v3909
        %v4621 = vunpack.c.h.b16 %v3909
        %v4622 = vunpack.c.l.b16 %v3910
        %v4623 = vunpack.c.h.b16 %v3910
        %v4624 = vunpack.c.l.b16 %v3911
        %v4625 = vunpack.c.h.b16 %v3911
        %v4626 = vunpack.c.l.b16 %v3912
        %v4627 = vunpack.c.h.b16 %v3912
        %v4628 = vunpack.c.l.b16 %v3913
        %v4629 = vunpack.c.h.b16 %v3913
        %v4630 = vunpack.c.l.b16 %v3914
        %v4631 = vunpack.c.h.b16 %v3914
        %v4632 = vunpack.c.l.b16 %v3915
        %v4633 = vunpack.c.h.b16 %v3915
        %v4634 = vunpack.c.l.b16 %v3916
        %v4635 = vunpack.c.h.b16 %v3916
        %v4636 = vunpack.c.l.b16 %v3917
        %v4637 = vunpack.c.h.b16 %v3917
        %v4638 = vunpack.c.l.b16 %v3918
        %v4639 = vunpack.c.h.b16 %v3918
        %v4640 = vunpack.c.l.b16 %v3919
        %v4641 = vunpack.c.h.b16 %v3919
        %v4642 = vunpack.c.l.b16 %v3920
        %v4643 = vunpack.c.h.b16 %v3920
        %v4644 = vunpack.c.l.b16 %v3921
        %v4645 = vunpack.c.h.b16 %v3921
        %v4646 = vunpack.c.l.b16 %v3922
        %v4647 = vunpack.c.h.b16 %v3922
        %v4648 = vunpack.c.l.b16 %v3923
        %v4649 = vunpack.c.h.b16 %v3923
        %v4650 = vunpack.c.l.b16 %v3924
        %v4651 = vunpack.c.h.b16 %v3924
        %v4652 = vunpack.c.l.b16 %v3925
        %v4653 = vunpack.c.h.b16 %v3925
        %v4654 = vunpack.c.l.b16 %v3926
        %v4655 = vunpack.c.h.b16 %v3926
        %v4656 = vunpack.c.l.b16 %v3927
        %v4657 = vunpack.c.h.b16 %v3927
        %v4658 = vunpack.c.l.b16 %v3928
        %v4659 = vunpack.c.h.b16 %v3928
        %v4660 = vunpack.c.l.b16 %v3929
        %v4661 = vunpack.c.h.b16 %v3929
        %v4662 = vunpack.c.l.b16 %v3930
        %v4663 = vunpack.c.h.b16 %v3930
        %v4664 = vunpack.c.l.b16 %v3931
        %v4665 = vunpack.c.h.b16 %v3931
        %v4666 = vunpack.c.l.b16 %v3932
        %v4667 = vunpack.c.h.b16 %v3932
        %v4668 = vunpack.c.l.b16 %v3933
        %v4669 = vunpack.c.h.b16 %v3933
        %v4670 = vunpack.c.l.b16 %v3934
        %v4671 = vunpack.c.h.b16 %v3934
        %v4672 = vunpack.c.l.b16 %v3935
        %v4673 = vunpack.c.h.b16 %v3935
        %v4674 = vunpack.c.l.b16 %v3936
        %v4675 = vunpack.c.h.b16 %v3936
        %v4676 = vunpack.c.l.b16 %v3937
        %v4677 = vunpack.c.h.b16 %v3937
        %v4678 = vunpack.c.l.b16 %v3938
        %v4679 = vunpack.c.h.b16 %v3938
        %v4680 = vunpack.c.l.b16 %v3939
        %v4681 = vunpack.c.h.b16 %v3939
        %v4682 = vunpack.c.l.b16 %v3940
        %v4683 = vunpack.c.h.b16 %v3940
        %v4684 = vunpack.c.l.b16 %v3941
        %v4685 = vunpack.c.h.b16 %v3941
        %v4686 = vunpack.c.l.b16 %v3942
        %v4687 = vunpack.c.h.b16 %v3942
        %v4688 = vunpack.c.l.b16 %v3943
        %v4689 = vunpack.c.h.b16 %v3943
        %v4690 = vunpack.c.l.b16 %v3944
        %v4691 = vunpack.c.h.b16 %v3944
        %v4692 = vunpack.c.l.b16 %v3945
        %v4693 = vunpack.c.h.b16 %v3945
        %v4694 = vunpack.c.l.b16 %v3946
        %v4695 = vunpack.c.h.b16 %v3946
        %v4696 = vunpack.c.l.b16 %v3947
        %v4697 = vunpack.c.h.b16 %v3947
        %v4698 = vunpack.c.l.b16 %v3948
        %v4699 = vunpack.c.h.b16 %v3948
        %v4700 = vunpack.c.l.b16 %v3949
        %v4701 = vunpack.c.h.b16 %v3949
        %v4702 = vunpack.c.l.b16 %v3950
        %v4703 = vunpack.c.h.b16 %v3950
        %v4704 = vunpack.c.l.b16 %v3951
        %v4705 = vunpack.c.h.b16 %v3951
        %v4706 = vunpack.c.l.b16 %v3952
        %v4707 = vunpack.c.h.b16 %v3952
        %v4708 = vunpack.c.l.b16 %v3953
        %v4709 = vunpack.c.h.b16 %v3953
        %v4710 = vunpack.c.l.b16 %v3954
        %v4711 = vunpack.c.h.b16 %v3954
        %v4712 = vunpack.c.l.b16 %v3955
        %v4713 = vunpack.c.h.b16 %v3955
        %v4714 = vunpack.c.l.b16 %v3956
        %v4715 = vunpack.c.h.b16 %v3956
        %v4716 = vunpack.c.l.b16 %v3957
        %v4717 = vunpack.c.h.b16 %v3957
        %v4718 = vunpack.c.l.b16 %v3958
        %v4719 = vunpack.c.h.b16 %v3958
        %v4720 = vunpack.c.l.b16 %v3959
        %v4721 = vunpack.c.h.b16 %v3959
        %v4722 = vunpack.c.l.b16 %v3960
        %v4723 = vunpack.c.h.b16 %v3960
        %v4724 = vunpack.c.l.b16 %v3961
        %v4725 = vunpack.c.h.b16 %v3961
        %v4726 = vunpack.c.l.b16 %v3962
        %v4727 = vunpack.c.h.b16 %v3962
        %v4728 = vunpack.c.l.b16 %v3963
        %v4729 = vunpack.c.h.b16 %v3963
        %v4730 = vunpack.c.l.b16 %v3964
        %v4731 = vunpack.c.h.b16 %v3964
        %v4732 = vunpack.c.l.b16 %v3965
        %v4733 = vunpack.c.h.b16 %v3965
        %v4734 = vunpack.c.l.b16 %v3966
        %v4735 = vunpack.c.h.b16 %v3966
        %v4736 = vpack.c.b16 %v4232, %v4224
        %v4737 = vpack.c.b16 %v4233, %v4225
        %v4738 = vpack.c.b16 %v4234, %v4226
        %v4739 = vpack.c.b16 %v4235, %v4227
        %v4740 = vpack.c.b16 %v4236, %v4228
        %v4741 = vpack.c.b16 %v4237, %v4229
        %v4742 = vpack.c.b16 %v4238, %v4230
        %v4743 = vpack.c.b16 %v4239, %v4231
        %v4744 = vpack.c.b16 %v4248, %v4240
        %v4745 = vpack.c.b16 %v4249, %v4241
        %v4746 = vpack.c.b16 %v4250, %v4242
        %v4747 = vpack.c.b16 %v4251, %v4243
        %v4748 = vpack.c.b16 %v4252, %v4244
        %v4749 = vpack.c.b16 %v4253, %v4245
        %v4750 = vpack.c.b16 %v4254, %v4246
        %v4751 = vpack.c.b16 %v4255, %v4247
        %v4752 = vpack.c.b16 %v4264, %v4256
        %v4753 = vpack.c.b16 %v4265, %v4257
        %v4754 = vpack.c.b16 %v4266, %v4258
        %v4755 = vpack.c.b16 %v4267, %v4259
        %v4756 = vpack.c.b16 %v4268, %v4260
        %v4757 = vpack.c.b16 %v4269, %v4261
        %v4758 = vpack.c.b16 %v4270, %v4262
        %v4759 = vpack.c.b16 %v4271, %v4263
        %v4760 = vpack.c.b16 %v4280, %v4272
        %v4761 = vpack.c.b16 %v4281, %v4273
        %v4762 = vpack.c.b16 %v4282, %v4274
        %v4763 = vpack.c.b16 %v4283, %v4275
        %v4764 = vpack.c.b16 %v4284, %v4276
        %v4765 = vpack.c.b16 %v4285, %v4277
        %v4766 = vpack.c.b16 %v4286, %v4278
        %v4767 = vpack.c.b16 %v4287, %v4279
        %v4768 = vpack.c.b16 %v4296, %v4288
        %v4769 = vpack.c.b16 %v4297, %v4289
        %v4770 = vpack.c.b16 %v4298, %v4290
        %v4771 = vpack.c.b16 %v4299, %v4291
        %v4772 = vpack.c.b16 %v4300, %v4292
        %v4773 = vpack.c.b16 %v4301, %v4293
        %v4774 = vpack.c.b16 %v4302, %v4294
        %v4775 = vpack.c.b16 %v4303, %v4295
        %v4776 = vpack.c.b16 %v4312, %v4304
        %v4777 = vpack.c.b16 %v4313, %v4305
        %v4778 = vpack.c.b16 %v4314, %v4306
        %v4779 = vpack.c.b16 %v4315, %v4307
        %v4780 = vpack.c.b16 %v4316, %v4308
        %v4781 = vpack.c.b16 %v4317, %v4309
        %v4782 = vpack.c.b16 %v4318, %v4310
        %v4783 = vpack.c.b16 %v4319, %v4311
        %v4784 = vpack.c.b16 %v4328, %v4320
        %v4785 = vpack.c.b16 %v4329, %v4321
        %v4786 = vpack.c.b16 %v4330, %v4322
        %v4787 = vpack.c.b16 %v4331, %v4323
        %v4788 = vpack.c.b16 %v4332, %v4324
        %v4789 = vpack.c.b16 %v4333, %v4325
        %v4790 = vpack.c.b16 %v4334, %v4326
        %v4791 = vpack.c.b16 %v4335, %v4327
        %v4792 = vpack.c.b16 %v4344, %v4336
        %v4793 = vpack.c.b16 %v4345, %v4337
        %v4794 = vpack.c.b16 %v4346, %v4338
        %v4795 = vpack.c.b16 %v4347, %v4339
        %v4796 = vpack.c.b16 %v4348, %v4340
        %v4797 = vpack.c.b16 %v4349, %v4341
        %v4798 = vpack.c.b16 %v4350, %v4342
        %v4799 = vpack.c.b16 %v4351, %v4343
        %v4800 = vpack.c.b16 %v4360, %v4352
        %v4801 = vpack.c.b16 %v4361, %v4353
        %v4802 = vpack.c.b16 %v4362, %v4354
        %v4803 = vpack.c.b16 %v4363, %v4355
        %v4804 = vpack.c.b16 %v4364, %v4356
        %v4805 = vpack.c.b16 %v4365, %v4357
        %v4806 = vpack.c.b16 %v4366, %v4358
        %v4807 = vpack.c.b16 %v4367, %v4359
        %v4808 = vpack.c.b16 %v4376, %v4368
        %v4809 = vpack.c.b16 %v4377, %v4369
        %v4810 = vpack.c.b16 %v4378, %v4370
        %v4811 = vpack.c.b16 %v4379, %v4371
        %v4812 = vpack.c.b16 %v4380, %v4372
        %v4813 = vpack.c.b16 %v4381, %v4373
        %v4814 = vpack.c.b16 %v4382, %v4374
        %v4815 = vpack.c.b16 %v4383, %v4375
        %v4816 = vpack.c.b16 %v4392, %v4384
        %v4817 = vpack.c.b16 %v4393, %v4385
        %v4818 = vpack.c.b16 %v4394, %v4386
        %v4819 = vpack.c.b16 %v4395, %v4387
        %v4820 = vpack.c.b16 %v4396, %v4388
        %v4821 = vpack.c.b16 %v4397, %v4389
        %v4822 = vpack.c.b16 %v4398, %v4390
        %v4823 = vpack.c.b16 %v4399, %v4391
        %v4824 = vpack.c.b16 %v4408, %v4400
        %v4825 = vpack.c.b16 %v4409, %v4401
        %v4826 = vpack.c.b16 %v4410, %v4402
        %v4827 = vpack.c.b16 %v4411, %v4403
        %v4828 = vpack.c.b16 %v4412, %v4404
        %v4829 = vpack.c.b16 %v4413, %v4405
        %v4830 = vpack.c.b16 %v4414, %v4406
        %v4831 = vpack.c.b16 %v4415, %v4407
        %v4832 = vpack.c.b16 %v4424, %v4416
        %v4833 = vpack.c.b16 %v4425, %v4417
        %v4834 = vpack.c.b16 %v4426, %v4418
        %v4835 = vpack.c.b16 %v4427, %v4419
        %v4836 = vpack.c.b16 %v4428, %v4420
        %v4837 = vpack.c.b16 %v4429, %v4421
        %v4838 = vpack.c.b16 %v4430, %v4422
        %v4839 = vpack.c.b16 %v4431, %v4423
        %v4840 = vpack.c.b16 %v4440, %v4432
        %v4841 = vpack.c.b16 %v4441, %v4433
        %v4842 = vpack.c.b16 %v4442, %v4434
        %v4843 = vpack.c.b16 %v4443, %v4435
        %v4844 = vpack.c.b16 %v4444, %v4436
        %v4845 = vpack.c.b16 %v4445, %v4437
        %v4846 = vpack.c.b16 %v4446, %v4438
        %v4847 = vpack.c.b16 %v4447, %v4439
        %v4848 = vpack.c.b16 %v4456, %v4448
        %v4849 = vpack.c.b16 %v4457, %v4449
        %v4850 = vpack.c.b16 %v4458, %v4450
        %v4851 = vpack.c.b16 %v4459, %v4451
        %v4852 = vpack.c.b16 %v4460, %v4452
        %v4853 = vpack.c.b16 %v4461, %v4453
        %v4854 = vpack.c.b16 %v4462, %v4454
        %v4855 = vpack.c.b16 %v4463, %v4455
        %v4856 = vpack.c.b16 %v4472, %v4464
        %v4857 = vpack.c.b16 %v4473, %v4465
        %v4858 = vpack.c.b16 %v4474, %v4466
        %v4859 = vpack.c.b16 %v4475, %v4467
        %v4860 = vpack.c.b16 %v4476, %v4468
        %v4861 = vpack.c.b16 %v4477, %v4469
        %v4862 = vpack.c.b16 %v4478, %v4470
        %v4863 = vpack.c.b16 %v4479, %v4471
        %v4864 = vpack.c.b16 %v4488, %v4480
        %v4865 = vpack.c.b16 %v4489, %v4481
        %v4866 = vpack.c.b16 %v4490, %v4482
        %v4867 = vpack.c.b16 %v4491, %v4483
        %v4868 = vpack.c.b16 %v4492, %v4484
        %v4869 = vpack.c.b16 %v4493, %v4485
        %v4870 = vpack.c.b16 %v4494, %v4486
        %v4871 = vpack.c.b16 %v4495, %v4487
        %v4872 = vpack.c.b16 %v4504, %v4496
        %v4873 = vpack.c.b16 %v4505, %v4497
        %v4874 = vpack.c.b16 %v4506, %v4498
        %v4875 = vpack.c.b16 %v4507, %v4499
        %v4876 = vpack.c.b16 %v4508, %v4500
        %v4877 = vpack.c.b16 %v4509, %v4501
        %v4878 = vpack.c.b16 %v4510, %v4502
        %v4879 = vpack.c.b16 %v4511, %v4503
        %v4880 = vpack.c.b16 %v4520, %v4512
        %v4881 = vpack.c.b16 %v4521, %v4513
        %v4882 = vpack.c.b16 %v4522, %v4514
        %v4883 = vpack.c.b16 %v4523, %v4515
        %v4884 = vpack.c.b16 %v4524, %v4516
        %v4885 = vpack.c.b16 %v4525, %v4517
        %v4886 = vpack.c.b16 %v4526, %v4518
        %v4887 = vpack.c.b16 %v4527, %v4519
        %v4888 = vpack.c.b16 %v4536, %v4528
        %v4889 = vpack.c.b16 %v4537, %v4529
        %v4890 = vpack.c.b16 %v4538, %v4530
        %v4891 = vpack.c.b16 %v4539, %v4531
        %v4892 = vpack.c.b16 %v4540, %v4532
        %v4893 = vpack.c.b16 %v4541, %v4533
        %v4894 = vpack.c.b16 %v4542, %v4534
        %v4895 = vpack.c.b16 %v4543, %v4535
        %v4896 = vpack.c.b16 %v4552, %v4544
        %v4897 = vpack.c.b16 %v4553, %v4545
        %v4898 = vpack.c.b16 %v4554, %v4546
        %v4899 = vpack.c.b16 %v4555, %v4547
        %v4900 = vpack.c.b16 %v4556, %v4548
        %v4901 = vpack.c.b16 %v4557, %v4549
        %v4902 = vpack.c.b16 %v4558, %v4550
        %v4903 = vpack.c.b16 %v4559, %v4551
        %v4904 = vpack.c.b16 %v4568, %v4560
        %v4905 = vpack.c.b16 %v4569, %v4561
        %v4906 = vpack.c.b16 %v4570, %v4562
        %v4907 = vpack.c.b16 %v4571, %v4563
        %v4908 = vpack.c.b16 %v4572, %v4564
        %v4909 = vpack.c.b16 %v4573, %v4565
        %v4910 = vpack.c.b16 %v4574, %v4566
        %v4911 = vpack.c.b16 %v4575, %v4567
        %v4912 = vpack.c.b16 %v4584, %v4576
        %v4913 = vpack.c.b16 %v4585, %v4577
        %v4914 = vpack.c.b16 %v4586, %v4578
        %v4915 = vpack.c.b16 %v4587, %v4579
        %v4916 = vpack.c.b16 %v4588, %v4580
        %v4917 = vpack.c.b16 %v4589, %v4581
        %v4918 = vpack.c.b16 %v4590, %v4582
        %v4919 = vpack.c.b16 %v4591, %v4583
        %v4920 = vpack.c.b16 %v4600, %v4592
        %v4921 = vpack.c.b16 %v4601, %v4593
        %v4922 = vpack.c.b16 %v4602, %v4594
        %v4923 = vpack.c.b16 %v4603, %v4595
        %v4924 = vpack.c.b16 %v4604, %v4596
        %v4925 = vpack.c.b16 %v4605, %v4597
        %v4926 = vpack.c.b16 %v4606, %v4598
        %v4927 = vpack.c.b16 %v4607, %v4599
        %v4928 = vpack.c.b16 %v4616, %v4608
        %v4929 = vpack.c.b16 %v4617, %v4609
        %v4930 = vpack.c.b16 %v4618, %v4610
        %v4931 = vpack.c.b16 %v4619, %v4611
        %v4932 = vpack.c.b16 %v4620, %v4612
        %v4933 = vpack.c.b16 %v4621, %v4613
        %v4934 = vpack.c.b16 %v4622, %v4614
        %v4935 = vpack.c.b16 %v4623, %v4615
        %v4936 = vpack.c.b16 %v4632, %v4624
        %v4937 = vpack.c.b16 %v4633, %v4625
        %v4938 = vpack.c.b16 %v4634, %v4626
        %v4939 = vpack.c.b16 %v4635, %v4627
        %v4940 = vpack.c.b16 %v4636, %v4628
        %v4941 = vpack.c.b16 %v4637, %v4629
        %v4942 = vpack.c.b16 %v4638, %v4630
        %v4943 = vpack.c.b16 %v4639, %v4631
        %v4944 = vpack.c.b16 %v4648, %v4640
        %v4945 = vpack.c.b16 %v4649, %v4641
        %v4946 = vpack.c.b16 %v4650, %v4642
        %v4947 = vpack.c.b16 %v4651, %v4643
        %v4948 = vpack.c.b16 %v4652, %v4644
        %v4949 = vpack.c.b16 %v4653, %v4645
        %v4950 = vpack.c.b16 %v4654, %v4646
        %v4951 = vpack.c.b16 %v4655, %v4647
        %v4952 = vpack.c.b16 %v4664, %v4656
        %v4953 = vpack.c.b16 %v4665, %v4657
        %v4954 = vpack.c.b16 %v4666, %v4658
        %v4955 = vpack.c.b16 %v4667, %v4659
        %v4956 = vpack.c.b16 %v4668, %v4660
        %v4957 = vpack.c.b16 %v4669, %v4661
        %v4958 = vpack.c.b16 %v4670, %v4662
        %v4959 = vpack.c.b16 %v4671, %v4663
        %v4960 = vpack.c.b16 %v4680, %v4672
        %v4961 = vpack.c.b16 %v4681, %v4673
        %v4962 = vpack.c.b16 %v4682, %v4674
        %v4963 = vpack.c.b16 %v4683, %v4675
        %v4964 = vpack.c.b16 %v4684, %v4676
        %v4965 = vpack.c.b16 %v4685, %v4677
        %v4966 = vpack.c.b16 %v4686, %v4678
        %v4967 = vpack.c.b16 %v4687, %v4679
        %v4968 = vpack.c.b16 %v4696, %v4688
        %v4969 = vpack.c.b16 %v4697, %v4689
        %v4970 = vpack.c.b16 %v4698, %v4690
        %v4971 = vpack.c.b16 %v4699, %v4691
        %v4972 = vpack.c.b16 %v4700, %v4692
        %v4973 = vpack.c.b16 %v4701, %v4693
        %v4974 = vpack.c.b16 %v4702, %v4694
        %v4975 = vpack.c.b16 %v4703, %v4695
        %v4976 = vpack.c.b16 %v4712, %v4704
        %v4977 = vpack.c.b16 %v4713, %v4705
        %v4978 = vpack.c.b16 %v4714, %v4706
        %v4979 = vpack.c.b16 %v4715, %v4707
        %v4980 = vpack.c.b16 %v4716, %v4708
        %v4981 = vpack.c.b16 %v4717, %v4709
        %v4982 = vpack.c.b16 %v4718, %v4710
        %v4983 = vpack.c.b16 %v4719, %v4711
        %v4984 = vpack.c.b16 %v4728, %v4720
        %v4985 = vpack.c.b16 %v4729, %v4721
        %v4986 = vpack.c.b16 %v4730, %v4722
        %v4987 = vpack.c.b16 %v4731, %v4723
        %v4988 = vpack.c.b16 %v4732, %v4724
        %v4989 = vpack.c.b16 %v4733, %v4725
        %v4990 = vpack.c.b16 %v4734, %v4726
        %v4991 = vpack.c.b16 %v4735, %v4727
        %v5249 = vperm.slane %v3967, 0
        %v5250 = vperm.slane %v3967, 1
        %v5251 = vperm.slane %v3967, 2
        %v5252 = vperm.slane %v3967, 3
        %v5253 = vperm.slane %v3967, 4
        %v5254 = vperm.slane %v3967, 5
        %v5255 = vperm.slane %v3967, 6
        %v5256 = vperm.slane %v3967, 7
        %5265 = vmatpush.bf16.msra.mxu0 %v4792
        %5266 = vmatpush.bf16.msra.mxu0 %v4784
        %5267 = vmatpush.bf16.msra.mxu0 %v4776
        %5268 = vmatpush.bf16.msra.mxu0 %v4768
        %5269 = vmatpush.bf16.msra.mxu0 %v4760
        %5270 = vmatpush.bf16.msra.mxu0 %v4752
        %5271 = vmatpush.bf16.msra.mxu0 %v4744
        %5272 = vmatpush.bf16.msra.mxu0 %v4736
        %5273 = vmatmul.bf16.gmra.mxu0 %v3707
        %v5274 = vpop.f32.mrf.mxu0
        %v5275 = vadd.f32 %v5249, %v5274
        %v5276 = vpop.f32.mrf.mxu0
        %5277 = vdwg.mxu0
        %5278 = vmatpush.bf16.msra.mxu0 %v4856
        %5279 = vmatpush.bf16.msra.mxu0 %v4848
        %5280 = vmatpush.bf16.msra.mxu0 %v4840
        %5281 = vmatpush.bf16.msra.mxu0 %v4832
        %5282 = vmatpush.bf16.msra.mxu0 %v4824
        %5283 = vmatpush.bf16.msra.mxu0 %v4816
        %5284 = vmatpush.bf16.msra.mxu0 %v4808
        %5285 = vmatpush.bf16.msra.mxu0 %v4800
        %5286 = vmatmul.bf16.gmra.mxu0 %v3708
        %v5287 = vpop.f32.mrf.mxu0
        %v5288 = vadd.f32 %v5275, %v5287
        %v5289 = vpop.f32.mrf.mxu0
        %5290 = vdwg.mxu0
        %5291 = vmatpush.bf16.msra.mxu0 %v4920
        %5292 = vmatpush.bf16.msra.mxu0 %v4912
        %5293 = vmatpush.bf16.msra.mxu0 %v4904
        %5294 = vmatpush.bf16.msra.mxu0 %v4896
        %5295 = vmatpush.bf16.msra.mxu0 %v4888
        %5296 = vmatpush.bf16.msra.mxu0 %v4880
        %5297 = vmatpush.bf16.msra.mxu0 %v4872
        %5298 = vmatpush.bf16.msra.mxu0 %v4864
        %5299 = vmatmul.bf16.gmra.mxu0 %v3709
        %v5300 = vpop.f32.mrf.mxu0
        %v5301 = vadd.f32 %v5288, %v5300
        %v5302 = vpop.f32.mrf.mxu0
        %5303 = vdwg.mxu0
        %5304 = vmatpush.bf16.msra.mxu0 %v4984
        %5305 = vmatpush.bf16.msra.mxu0 %v4976
        %5306 = vmatpush.bf16.msra.mxu0 %v4968
        %5307 = vmatpush.bf16.msra.mxu0 %v4960
        %5308 = vmatpush.bf16.msra.mxu0 %v4952
        %5309 = vmatpush.bf16.msra.mxu0 %v4944
        %5310 = vmatpush.bf16.msra.mxu0 %v4936
        %5311 = vmatpush.bf16.msra.mxu0 %v4928
        %5312 = vmatmul.bf16.gmra.mxu0 %v3710
        %v5313 = vpop.f32.mrf.mxu0
        %v5314 = vadd.f32 %v5301, %v5313
        %v5315 = vpop.f32.mrf.mxu0
        %5316 = vdwg.mxu0
        %5317 = vmatpush.bf16.msra.mxu0 %v4793
        %5318 = vmatpush.bf16.msra.mxu0 %v4785
        %5319 = vmatpush.bf16.msra.mxu0 %v4777
        %5320 = vmatpush.bf16.msra.mxu0 %v4769
        %5321 = vmatpush.bf16.msra.mxu0 %v4761
        %5322 = vmatpush.bf16.msra.mxu0 %v4753
        %5323 = vmatpush.bf16.msra.mxu0 %v4745
        %5324 = vmatpush.bf16.msra.mxu0 %v4737
        %5325 = vmatmul.bf16.gmra.mxu0 %v3707
        %v5326 = vpop.f32.mrf.mxu0
        %v5327 = vadd.f32 %v5250, %v5326
        %v5328 = vpop.f32.mrf.mxu0
        %5329 = vdwg.mxu0
        %5330 = vmatpush.bf16.msra.mxu0 %v4857
        %5331 = vmatpush.bf16.msra.mxu0 %v4849
        %5332 = vmatpush.bf16.msra.mxu0 %v4841
        %5333 = vmatpush.bf16.msra.mxu0 %v4833
        %5334 = vmatpush.bf16.msra.mxu0 %v4825
        %5335 = vmatpush.bf16.msra.mxu0 %v4817
        %5336 = vmatpush.bf16.msra.mxu0 %v4809
        %5337 = vmatpush.bf16.msra.mxu0 %v4801
        %5338 = vmatmul.bf16.gmra.mxu0 %v3708
        %v5339 = vpop.f32.mrf.mxu0
        %v5340 = vadd.f32 %v5327, %v5339
        %v5341 = vpop.f32.mrf.mxu0
        %5342 = vdwg.mxu0
        %5343 = vmatpush.bf16.msra.mxu0 %v4921
        %5344 = vmatpush.bf16.msra.mxu0 %v4913
        %5345 = vmatpush.bf16.msra.mxu0 %v4905
        %5346 = vmatpush.bf16.msra.mxu0 %v4897
        %5347 = vmatpush.bf16.msra.mxu0 %v4889
        %5348 = vmatpush.bf16.msra.mxu0 %v4881
        %5349 = vmatpush.bf16.msra.mxu0 %v4873
        %5350 = vmatpush.bf16.msra.mxu0 %v4865
        %5351 = vmatmul.bf16.gmra.mxu0 %v3709
        %v5352 = vpop.f32.mrf.mxu0
        %v5353 = vadd.f32 %v5340, %v5352
        %v5354 = vpop.f32.mrf.mxu0
        %5355 = vdwg.mxu0
        %5356 = vmatpush.bf16.msra.mxu0 %v4985
        %5357 = vmatpush.bf16.msra.mxu0 %v4977
        %5358 = vmatpush.bf16.msra.mxu0 %v4969
        %5359 = vmatpush.bf16.msra.mxu0 %v4961
        %5360 = vmatpush.bf16.msra.mxu0 %v4953
        %5361 = vmatpush.bf16.msra.mxu0 %v4945
        %5362 = vmatpush.bf16.msra.mxu0 %v4937
        %5363 = vmatpush.bf16.msra.mxu0 %v4929
        %5364 = vmatmul.bf16.gmra.mxu0 %v3710
        %v5365 = vpop.f32.mrf.mxu0
        %v5366 = vadd.f32 %v5353, %v5365
        %v5367 = vpop.f32.mrf.mxu0
        %5368 = vdwg.mxu0
        %5369 = vmatpush.bf16.msra.mxu0 %v4794
        %5370 = vmatpush.bf16.msra.mxu0 %v4786
        %5371 = vmatpush.bf16.msra.mxu0 %v4778
        %5372 = vmatpush.bf16.msra.mxu0 %v4770
        %5373 = vmatpush.bf16.msra.mxu0 %v4762
        %5374 = vmatpush.bf16.msra.mxu0 %v4754
        %5375 = vmatpush.bf16.msra.mxu0 %v4746
        %5376 = vmatpush.bf16.msra.mxu0 %v4738
        %5377 = vmatmul.bf16.gmra.mxu0 %v3707
        %v5378 = vpop.f32.mrf.mxu0
        %v5379 = vadd.f32 %v5251, %v5378
        %v5380 = vpop.f32.mrf.mxu0
        %5381 = vdwg.mxu0
        %5382 = vmatpush.bf16.msra.mxu0 %v4858
        %5383 = vmatpush.bf16.msra.mxu0 %v4850
        %5384 = vmatpush.bf16.msra.mxu0 %v4842
        %5385 = vmatpush.bf16.msra.mxu0 %v4834
        %5386 = vmatpush.bf16.msra.mxu0 %v4826
        %5387 = vmatpush.bf16.msra.mxu0 %v4818
        %5388 = vmatpush.bf16.msra.mxu0 %v4810
        %5389 = vmatpush.bf16.msra.mxu0 %v4802
        %5390 = vmatmul.bf16.gmra.mxu0 %v3708
        %v5391 = vpop.f32.mrf.mxu0
        %v5392 = vadd.f32 %v5379, %v5391
        %v5393 = vpop.f32.mrf.mxu0
        %5394 = vdwg.mxu0
        %5395 = vmatpush.bf16.msra.mxu0 %v4922
        %5396 = vmatpush.bf16.msra.mxu0 %v4914
        %5397 = vmatpush.bf16.msra.mxu0 %v4906
        %5398 = vmatpush.bf16.msra.mxu0 %v4898
        %5399 = vmatpush.bf16.msra.mxu0 %v4890
        %5400 = vmatpush.bf16.msra.mxu0 %v4882
        %5401 = vmatpush.bf16.msra.mxu0 %v4874
        %5402 = vmatpush.bf16.msra.mxu0 %v4866
        %5403 = vmatmul.bf16.gmra.mxu0 %v3709
        %v5404 = vpop.f32.mrf.mxu0
        %v5405 = vadd.f32 %v5392, %v5404
        %v5406 = vpop.f32.mrf.mxu0
        %5407 = vdwg.mxu0
        %5408 = vmatpush.bf16.msra.mxu0 %v4986
        %5409 = vmatpush.bf16.msra.mxu0 %v4978
        %5410 = vmatpush.bf16.msra.mxu0 %v4970
        %5411 = vmatpush.bf16.msra.mxu0 %v4962
        %5412 = vmatpush.bf16.msra.mxu0 %v4954
        %5413 = vmatpush.bf16.msra.mxu0 %v4946
        %5414 = vmatpush.bf16.msra.mxu0 %v4938
        %5415 = vmatpush.bf16.msra.mxu0 %v4930
        %5416 = vmatmul.bf16.gmra.mxu0 %v3710
        %v5417 = vpop.f32.mrf.mxu0
        %v5418 = vadd.f32 %v5405, %v5417
        %v5419 = vpop.f32.mrf.mxu0
        %5420 = vdwg.mxu0
        %5421 = vmatpush.bf16.msra.mxu0 %v4795
        %5422 = vmatpush.bf16.msra.mxu0 %v4787
        %5423 = vmatpush.bf16.msra.mxu0 %v4779
        %5424 = vmatpush.bf16.msra.mxu0 %v4771
        %5425 = vmatpush.bf16.msra.mxu0 %v4763
        %5426 = vmatpush.bf16.msra.mxu0 %v4755
        %5427 = vmatpush.bf16.msra.mxu0 %v4747
        %5428 = vmatpush.bf16.msra.mxu0 %v4739
        %5429 = vmatmul.bf16.gmra.mxu0 %v3707
        %v5430 = vpop.f32.mrf.mxu0
        %v5431 = vadd.f32 %v5252, %v5430
        %v5432 = vpop.f32.mrf.mxu0
        %5433 = vdwg.mxu0
        %5434 = vmatpush.bf16.msra.mxu0 %v4859
        %5435 = vmatpush.bf16.msra.mxu0 %v4851
        %5436 = vmatpush.bf16.msra.mxu0 %v4843
        %5437 = vmatpush.bf16.msra.mxu0 %v4835
        %5438 = vmatpush.bf16.msra.mxu0 %v4827
        %5439 = vmatpush.bf16.msra.mxu0 %v4819
        %5440 = vmatpush.bf16.msra.mxu0 %v4811
        %5441 = vmatpush.bf16.msra.mxu0 %v4803
        %5442 = vmatmul.bf16.gmra.mxu0 %v3708
        %v5443 = vpop.f32.mrf.mxu0
        %v5444 = vadd.f32 %v5431, %v5443
        %v5445 = vpop.f32.mrf.mxu0
        %5446 = vdwg.mxu0
        %5447 = vmatpush.bf16.msra.mxu0 %v4923
        %5448 = vmatpush.bf16.msra.mxu0 %v4915
        %5449 = vmatpush.bf16.msra.mxu0 %v4907
        %5450 = vmatpush.bf16.msra.mxu0 %v4899
        %5451 = vmatpush.bf16.msra.mxu0 %v4891
        %5452 = vmatpush.bf16.msra.mxu0 %v4883
        %5453 = vmatpush.bf16.msra.mxu0 %v4875
        %5454 = vmatpush.bf16.msra.mxu0 %v4867
        %5455 = vmatmul.bf16.gmra.mxu0 %v3709
        %v5456 = vpop.f32.mrf.mxu0
        %v5457 = vadd.f32 %v5444, %v5456
        %v5458 = vpop.f32.mrf.mxu0
        %5459 = vdwg.mxu0
        %5460 = vmatpush.bf16.msra.mxu0 %v4987
        %5461 = vmatpush.bf16.msra.mxu0 %v4979
        %5462 = vmatpush.bf16.msra.mxu0 %v4971
        %5463 = vmatpush.bf16.msra.mxu0 %v4963
        %5464 = vmatpush.bf16.msra.mxu0 %v4955
        %5465 = vmatpush.bf16.msra.mxu0 %v4947
        %5466 = vmatpush.bf16.msra.mxu0 %v4939
        %5467 = vmatpush.bf16.msra.mxu0 %v4931
        %5468 = vmatmul.bf16.gmra.mxu0 %v3710
        %v5469 = vpop.f32.mrf.mxu0
        %v5470 = vadd.f32 %v5457, %v5469
        %v5471 = vpop.f32.mrf.mxu0
        %5472 = vdwg.mxu0
        %5473 = vmatpush.bf16.msra.mxu0 %v4796
        %5474 = vmatpush.bf16.msra.mxu0 %v4788
        %5475 = vmatpush.bf16.msra.mxu0 %v4780
        %5476 = vmatpush.bf16.msra.mxu0 %v4772
        %5477 = vmatpush.bf16.msra.mxu0 %v4764
        %5478 = vmatpush.bf16.msra.mxu0 %v4756
        %5479 = vmatpush.bf16.msra.mxu0 %v4748
        %5480 = vmatpush.bf16.msra.mxu0 %v4740
        %5481 = vmatmul.bf16.gmra.mxu0 %v3707
        %v5482 = vpop.f32.mrf.mxu0
        %v5483 = vadd.f32 %v5253, %v5482
        %v5484 = vpop.f32.mrf.mxu0
        %5485 = vdwg.mxu0
        %5486 = vmatpush.bf16.msra.mxu0 %v4860
        %5487 = vmatpush.bf16.msra.mxu0 %v4852
        %5488 = vmatpush.bf16.msra.mxu0 %v4844
        %5489 = vmatpush.bf16.msra.mxu0 %v4836
        %5490 = vmatpush.bf16.msra.mxu0 %v4828
        %5491 = vmatpush.bf16.msra.mxu0 %v4820
        %5492 = vmatpush.bf16.msra.mxu0 %v4812
        %5493 = vmatpush.bf16.msra.mxu0 %v4804
        %5494 = vmatmul.bf16.gmra.mxu0 %v3708
        %v5495 = vpop.f32.mrf.mxu0
        %v5496 = vadd.f32 %v5483, %v5495
        %v5497 = vpop.f32.mrf.mxu0
        %5498 = vdwg.mxu0
        %5499 = vmatpush.bf16.msra.mxu0 %v4924
        %5500 = vmatpush.bf16.msra.mxu0 %v4916
        %5501 = vmatpush.bf16.msra.mxu0 %v4908
        %5502 = vmatpush.bf16.msra.mxu0 %v4900
        %5503 = vmatpush.bf16.msra.mxu0 %v4892
        %5504 = vmatpush.bf16.msra.mxu0 %v4884
        %5505 = vmatpush.bf16.msra.mxu0 %v4876
        %5506 = vmatpush.bf16.msra.mxu0 %v4868
        %5507 = vmatmul.bf16.gmra.mxu0 %v3709
        %v5508 = vpop.f32.mrf.mxu0
        %v5509 = vadd.f32 %v5496, %v5508
        %v5510 = vpop.f32.mrf.mxu0
        %5511 = vdwg.mxu0
        %5512 = vmatpush.bf16.msra.mxu0 %v4988
        %5513 = vmatpush.bf16.msra.mxu0 %v4980
        %5514 = vmatpush.bf16.msra.mxu0 %v4972
        %5515 = vmatpush.bf16.msra.mxu0 %v4964
        %5516 = vmatpush.bf16.msra.mxu0 %v4956
        %5517 = vmatpush.bf16.msra.mxu0 %v4948
        %5518 = vmatpush.bf16.msra.mxu0 %v4940
        %5519 = vmatpush.bf16.msra.mxu0 %v4932
        %5520 = vmatmul.bf16.gmra.mxu0 %v3710
        %v5521 = vpop.f32.mrf.mxu0
        %v5522 = vadd.f32 %v5509, %v5521
        %v5523 = vpop.f32.mrf.mxu0
        %5524 = vdwg.mxu0
        %5525 = vmatpush.bf16.msra.mxu0 %v4797
        %5526 = vmatpush.bf16.msra.mxu0 %v4789
        %5527 = vmatpush.bf16.msra.mxu0 %v4781
        %5528 = vmatpush.bf16.msra.mxu0 %v4773
        %5529 = vmatpush.bf16.msra.mxu0 %v4765
        %5530 = vmatpush.bf16.msra.mxu0 %v4757
        %5531 = vmatpush.bf16.msra.mxu0 %v4749
        %5532 = vmatpush.bf16.msra.mxu0 %v4741
        %5533 = vmatmul.bf16.gmra.mxu0 %v3707
        %v5534 = vpop.f32.mrf.mxu0
        %v5535 = vadd.f32 %v5254, %v5534
        %v5536 = vpop.f32.mrf.mxu0
        %5537 = vdwg.mxu0
        %5538 = vmatpush.bf16.msra.mxu0 %v4861
        %5539 = vmatpush.bf16.msra.mxu0 %v4853
        %5540 = vmatpush.bf16.msra.mxu0 %v4845
        %5541 = vmatpush.bf16.msra.mxu0 %v4837
        %5542 = vmatpush.bf16.msra.mxu0 %v4829
        %5543 = vmatpush.bf16.msra.mxu0 %v4821
        %5544 = vmatpush.bf16.msra.mxu0 %v4813
        %5545 = vmatpush.bf16.msra.mxu0 %v4805
        %5546 = vmatmul.bf16.gmra.mxu0 %v3708
        %v5547 = vpop.f32.mrf.mxu0
        %v5548 = vadd.f32 %v5535, %v5547
        %v5549 = vpop.f32.mrf.mxu0
        %5550 = vdwg.mxu0
        %5551 = vmatpush.bf16.msra.mxu0 %v4925
        %5552 = vmatpush.bf16.msra.mxu0 %v4917
        %5553 = vmatpush.bf16.msra.mxu0 %v4909
        %5554 = vmatpush.bf16.msra.mxu0 %v4901
        %5555 = vmatpush.bf16.msra.mxu0 %v4893
        %5556 = vmatpush.bf16.msra.mxu0 %v4885
        %5557 = vmatpush.bf16.msra.mxu0 %v4877
        %5558 = vmatpush.bf16.msra.mxu0 %v4869
        %5559 = vmatmul.bf16.gmra.mxu0 %v3709
        %v5560 = vpop.f32.mrf.mxu0
        %v5561 = vadd.f32 %v5548, %v5560
        %v5562 = vpop.f32.mrf.mxu0
        %5563 = vdwg.mxu0
        %5564 = vmatpush.bf16.msra.mxu0 %v4989
        %5565 = vmatpush.bf16.msra.mxu0 %v4981
        %5566 = vmatpush.bf16.msra.mxu0 %v4973
        %5567 = vmatpush.bf16.msra.mxu0 %v4965
        %5568 = vmatpush.bf16.msra.mxu0 %v4957
        %5569 = vmatpush.bf16.msra.mxu0 %v4949
        %5570 = vmatpush.bf16.msra.mxu0 %v4941
        %5571 = vmatpush.bf16.msra.mxu0 %v4933
        %5572 = vmatmul.bf16.gmra.mxu0 %v3710
        %v5573 = vpop.f32.mrf.mxu0
        %v5574 = vadd.f32 %v5561, %v5573
        %v5575 = vpop.f32.mrf.mxu0
        %5576 = vdwg.mxu0
        %5577 = vmatpush.bf16.msra.mxu0 %v4798
        %5578 = vmatpush.bf16.msra.mxu0 %v4790
        %5579 = vmatpush.bf16.msra.mxu0 %v4782
        %5580 = vmatpush.bf16.msra.mxu0 %v4774
        %5581 = vmatpush.bf16.msra.mxu0 %v4766
        %5582 = vmatpush.bf16.msra.mxu0 %v4758
        %5583 = vmatpush.bf16.msra.mxu0 %v4750
        %5584 = vmatpush.bf16.msra.mxu0 %v4742
        %5585 = vmatmul.bf16.gmra.mxu0 %v3707
        %v5586 = vpop.f32.mrf.mxu0
        %v5587 = vadd.f32 %v5255, %v5586
        %v5588 = vpop.f32.mrf.mxu0
        %5589 = vdwg.mxu0
        %5590 = vmatpush.bf16.msra.mxu0 %v4862
        %5591 = vmatpush.bf16.msra.mxu0 %v4854
        %5592 = vmatpush.bf16.msra.mxu0 %v4846
        %5593 = vmatpush.bf16.msra.mxu0 %v4838
        %5594 = vmatpush.bf16.msra.mxu0 %v4830
        %5595 = vmatpush.bf16.msra.mxu0 %v4822
        %5596 = vmatpush.bf16.msra.mxu0 %v4814
        %5597 = vmatpush.bf16.msra.mxu0 %v4806
        %5598 = vmatmul.bf16.gmra.mxu0 %v3708
        %v5599 = vpop.f32.mrf.mxu0
        %v5600 = vadd.f32 %v5587, %v5599
        %v5601 = vpop.f32.mrf.mxu0
        %5602 = vdwg.mxu0
        %5603 = vmatpush.bf16.msra.mxu0 %v4926
        %5604 = vmatpush.bf16.msra.mxu0 %v4918
        %5605 = vmatpush.bf16.msra.mxu0 %v4910
        %5606 = vmatpush.bf16.msra.mxu0 %v4902
        %5607 = vmatpush.bf16.msra.mxu0 %v4894
        %5608 = vmatpush.bf16.msra.mxu0 %v4886
        %5609 = vmatpush.bf16.msra.mxu0 %v4878
        %5610 = vmatpush.bf16.msra.mxu0 %v4870
        %5611 = vmatmul.bf16.gmra.mxu0 %v3709
        %v5612 = vpop.f32.mrf.mxu0
        %v5613 = vadd.f32 %v5600, %v5612
        %v5614 = vpop.f32.mrf.mxu0
        %5615 = vdwg.mxu0
        %5616 = vmatpush.bf16.msra.mxu0 %v4990
        %5617 = vmatpush.bf16.msra.mxu0 %v4982
        %5618 = vmatpush.bf16.msra.mxu0 %v4974
        %5619 = vmatpush.bf16.msra.mxu0 %v4966
        %5620 = vmatpush.bf16.msra.mxu0 %v4958
        %5621 = vmatpush.bf16.msra.mxu0 %v4950
        %5622 = vmatpush.bf16.msra.mxu0 %v4942
        %5623 = vmatpush.bf16.msra.mxu0 %v4934
        %5624 = vmatmul.bf16.gmra.mxu0 %v3710
        %v5625 = vpop.f32.mrf.mxu0
        %v5626 = vadd.f32 %v5613, %v5625
        %v5627 = vpop.f32.mrf.mxu0
        %5628 = vdwg.mxu0
        %5629 = vmatpush.bf16.msra.mxu0 %v4799
        %5630 = vmatpush.bf16.msra.mxu0 %v4791
        %5631 = vmatpush.bf16.msra.mxu0 %v4783
        %5632 = vmatpush.bf16.msra.mxu0 %v4775
        %5633 = vmatpush.bf16.msra.mxu0 %v4767
        %5634 = vmatpush.bf16.msra.mxu0 %v4759
        %5635 = vmatpush.bf16.msra.mxu0 %v4751
        %5636 = vmatpush.bf16.msra.mxu0 %v4743
        %5637 = vmatmul.bf16.gmra.mxu0 %v3707
        %v5638 = vpop.f32.mrf.mxu0
        %v5639 = vadd.f32 %v5256, %v5638
        %v5640 = vpop.f32.mrf.mxu0
        %5641 = vdwg.mxu0
        %5642 = vmatpush.bf16.msra.mxu0 %v4863
        %5643 = vmatpush.bf16.msra.mxu0 %v4855
        %5644 = vmatpush.bf16.msra.mxu0 %v4847
        %5645 = vmatpush.bf16.msra.mxu0 %v4839
        %5646 = vmatpush.bf16.msra.mxu0 %v4831
        %5647 = vmatpush.bf16.msra.mxu0 %v4823
        %5648 = vmatpush.bf16.msra.mxu0 %v4815
        %5649 = vmatpush.bf16.msra.mxu0 %v4807
        %5650 = vmatmul.bf16.gmra.mxu0 %v3708
        %v5651 = vpop.f32.mrf.mxu0
        %v5652 = vadd.f32 %v5639, %v5651
        %v5653 = vpop.f32.mrf.mxu0
        %5654 = vdwg.mxu0
        %5655 = vmatpush.bf16.msra.mxu0 %v4927
        %5656 = vmatpush.bf16.msra.mxu0 %v4919
        %5657 = vmatpush.bf16.msra.mxu0 %v4911
        %5658 = vmatpush.bf16.msra.mxu0 %v4903
        %5659 = vmatpush.bf16.msra.mxu0 %v4895
        %5660 = vmatpush.bf16.msra.mxu0 %v4887
        %5661 = vmatpush.bf16.msra.mxu0 %v4879
        %5662 = vmatpush.bf16.msra.mxu0 %v4871
        %5663 = vmatmul.bf16.gmra.mxu0 %v3709
        %v5664 = vpop.f32.mrf.mxu0
        %v5665 = vadd.f32 %v5652, %v5664
        %v5666 = vpop.f32.mrf.mxu0
        %5667 = vdwg.mxu0
        %5668 = vmatpush.bf16.msra.mxu0 %v4991
        %5669 = vmatpush.bf16.msra.mxu0 %v4983
        %5670 = vmatpush.bf16.msra.mxu0 %v4975
        %5671 = vmatpush.bf16.msra.mxu0 %v4967
        %5672 = vmatpush.bf16.msra.mxu0 %v4959
        %5673 = vmatpush.bf16.msra.mxu0 %v4951
        %5674 = vmatpush.bf16.msra.mxu0 %v4943
        %5675 = vmatpush.bf16.msra.mxu0 %v4935
        %5676 = vmatmul.bf16.gmra.mxu0 %v3710
        %v5677 = vpop.f32.mrf.mxu0
        %v5678 = vadd.f32 %v5665, %v5677
        %v5679 = vpop.f32.mrf.mxu0
        %5680 = vdwg.mxu0
        %vm5681 = vcmp.ge.f32.partialorder %v5314, 0.0
        %vm5682 = vcmp.ge.f32.partialorder %v5366, 0.0
        %vm5683 = vcmp.ge.f32.partialorder %v5418, 0.0
        %vm5684 = vcmp.ge.f32.partialorder %v5470, 0.0
        %vm5685 = vcmp.ge.f32.partialorder %v5522, 0.0
        %vm5686 = vcmp.ge.f32.partialorder %v5574, 0.0
        %vm5687 = vcmp.ge.f32.partialorder %v5626, 0.0
        %vm5688 = vcmp.ge.f32.partialorder %v5678, 0.0
        %v5689 = vmul.f32 %v5314, 0.01
        %v5690 = vmul.f32 %v5366, 0.01
        %v5691 = vmul.f32 %v5418, 0.01
        %v5692 = vmul.f32 %v5470, 0.01
        %v5693 = vmul.f32 %v5522, 0.01
        %v5694 = vmul.f32 %v5574, 0.01
        %v5695 = vmul.f32 %v5626, 0.01
        %v5696 = vmul.f32 %v5678, 0.01
        %v5697 = vsel %vm5681, %v5314, %v5689
        %v5698 = vsel %vm5682, %v5366, %v5690
        %v5699 = vsel %vm5683, %v5418, %v5691
        %v5700 = vsel %vm5684, %v5470, %v5692
        %v5701 = vsel %vm5685, %v5522, %v5693
        %v5702 = vsel %vm5686, %v5574, %v5694
        %v5703 = vsel %vm5687, %v5626, %v5695
        %v5704 = vsel %vm5688, %v5678, %v5696
        %v5713 = vrot.slane %v5698, 7
        %v5714 = vrot.slane %v5699, 6
        %v5715 = vrot.slane %v5700, 5
        %v5716 = vrot.slane %v5701, 4
        %v5717 = vrot.slane %v5702, 3
        %v5718 = vrot.slane %v5703, 2
        %v5719 = vrot.slane %v5704, 1
        %vm5720 = vcmask 1040384
        %v5721 = vsel %vm5720, %v5697, %v5713
        %vm5722 = vcmask 1042434
        %v5723 = vsel %vm5722, %v5714, %v5715
        %vm5724 = vcmask 1041408
        %v5725 = vsel %vm5724, %v5721, %v5723
        %vm5726 = vcmask 1044484
        %v5727 = vsel %vm5726, %v5716, %v5717
        %vm5728 = vcmask 1046534
        %v5729 = vsel %vm5728, %v5718, %v5719
        %vm5730 = vcmask 1045508
        %v5731 = vsel %vm5730, %v5727, %v5729
        %vm5732 = vcmask 1043456
        %v5733 = vsel %vm5732, %v5725, %v5731
        %5735 = vst [vmem:[%s424] sm:$0xff] %v5733
        %p5736 = scmp.lt.s32.totalorder %s24, 1
        %s5737 = scalar_select %p5736, %s24, 1
        %s5738 = smul.addr %s5737, 8
        %s5739 = scalar_lea.vmem %s9, %s5738
        %p5740 = scmp.lt.s32.totalorder %s24, 1
        %s5741 = scalar_select %p5740, %s24, 1
        %s5742 = scalar_lea.vmem %s10, %s5741
        // Predicated region
        $region69: #{_lambda_.1} parent=55 // pred_check
          %p5743 = pneg %p241
        $region70: #{_lambda_.1} parent=55 // pred_check_branch
          %5745 = sbr.rel (%p5743) target = $region72
        $region71: #{_lambda_.1} parent=55 // pred_region
          _
        $region72: #{_lambda_.1} parent=55 // pred_fallthru
          _
        // Predicated region
        $region73: #{_lambda_.1} parent=55 // pred_check
          %p5746 = pneg %p267
        $region74: #{_lambda_.1} parent=55 // pred_check_branch
          %5748 = sbr.rel (%p5746) target = $region76
        $region75: #{_lambda_.1} parent=55 // pred_region
          _
        $region76: #{_lambda_.1} parent=55 // pred_fallthru
          _
      $region56: #{_lambda_.1} parent=5 // pred_fallthru
        _
      %p5749 = scmp.le.s32.totalorder 2, %s19
      // Predicated region
      $region77: #{_lambda_.1} parent=5 // pred_check
        %p5750 = pneg %p5749
      $region78: #{_lambda_.1} parent=5 // pred_check_branch
        %5752 = sbr.rel (%p5750) target = $region80
      $region79: #{_lambda_.1} parent=5 // pred_region
        %s5753 = ssub.s32 %s19, 2
        // Predicated region
        $region81: #{_lambda_.1} parent=79 // pred_check
          %p5754 = pneg %p247
        $region82: #{_lambda_.1} parent=79 // pred_check_branch
          %5756 = sbr.rel (%p5754) target = $region84
        $region83: #{_lambda_.1} parent=79 // pred_region
          %p5757 = scmp.lt.s32.totalorder %s25, 1
          %s5758 = scalar_select %p5757, %s25, 1
          %s5759 = smul.addr %s5758, 8
          %s5760 = scalar_lea.vmem %s9, %s5759
        $region84: #{_lambda_.1} parent=79 // pred_fallthru
          _
        // Predicated region
        $region85: #{_lambda_.1} parent=79 // pred_check
          %p5761 = pneg %p273
        $region86: #{_lambda_.1} parent=79 // pred_check_branch
          %5763 = sbr.rel (%p5761) target = $region88
        $region87: #{_lambda_.1} parent=79 // pred_region
          %p5764 = scmp.lt.s32.totalorder %s25, 1
          %s5765 = scalar_select %p5764, %s25, 1
          %s5766 = scalar_lea.vmem %s10, %s5765
        $region88: #{_lambda_.1} parent=79 // pred_fallthru
          _
      $region80: #{_lambda_.1} parent=5 // pred_fallthru
        _
    $region6: #{_lambda_.1} parent=1 // loop_footer
      %s23 = sadd.s32 1, %s19
    $region7: #{_lambda_.1} parent=1 // loop_footer_branch
      %18 = sbr.rel target = $region3
    $region8: #{_lambda_.1} parent=1 // loop_exit
      _
    %5767 = vsyncpa [#allocation3], 1
    %s5768 = scalar_lea.sflag [#allocation3], 1
    %5769 = vsyncpa %s5768, 1
    %5770 = vsyncpa [#allocation5], 1

</llo_original>
